<compile_context>
chip_gen: v7x
topology: tpu7x:2x2x1
jax: 0.10.0
libtpu: 0.0.40
codegen_flags: <defaults>
</compile_context>

<pallas_src>
import jax
import jax.numpy as jnp
from jax.experimental import pallas as pl
from jax.experimental.pallas import tpu as pltpu

NZ_DEFAULT = 32        # example nz (the module takes nz as a constructor arg)
HIDDEN = 1000          # fixed by the module definition
HIDDEN_PAD = 1024      # 1000 padded to a multiple of 128 lanes
SUBLANE = 16           # bf16 sublane tile -> batch tiles are multiples of 16


def _round_up(x, m):
    return ((x + m - 1) // m) * m


def dis_z_kernel(z_ref, w1_ref, b1_ref, w2_ref, b2_ref, w3_ref, b3_ref, o_ref):
    """One batch tile of the MLP; weights are VMEM-resident across tiles."""
    # Layer 1: Linear(nz, 1024) + ReLU   (bf16 inputs, f32 accumulate)
    h1 = jnp.dot(z_ref[...], w1_ref[...], preferred_element_type=jnp.float32)
    h1 = jnp.maximum(h1 + b1_ref[...], 0.0).astype(jnp.bfloat16)

    # Layer 2: Linear(1024, 1024) + ReLU  (dominant MXU work)
    h2 = jnp.dot(h1, w2_ref[...], preferred_element_type=jnp.float32)
    h2 = jnp.maximum(h2 + b2_ref[...], 0.0)

    # Layer 3: Linear(1024, 1) + sigmoid as a (1,K)x(K,tb) contraction so the
    # per-tile result is a lane-dense (1, tb) row (one unmasked store).
    logits = jax.lax.dot_general(
        w3_ref[...].astype(jnp.float32), h2,
        dimension_numbers=(((1,), (1,)), ((), ())),
        preferred_element_type=jnp.float32) + b3_ref[...]
    o_ref[...] = jax.nn.sigmoid(logits)[None].astype(o_ref.dtype)


def _pick_batch_tile(B, batch_tile):
    """Multiple of 16 sublanes, fitted to B, >= 2 grid steps when possible."""
    min_tiles = 2 if B > SUBLANE else 1           # let v7x use both TensorCores
    n_tiles = max(pl.cdiv(B, batch_tile), min_tiles)
    tb = _round_up(pl.cdiv(B, n_tiles), SUBLANE)
    tb = min(tb, _round_up(batch_tile, SUBLANE))
    b_pad = _round_up(B, tb)
    return tb, b_pad


def dis_z_forward(z, params, *, batch_tile=512):
    """z: (B, nz) float32 -> (B, 1) float32 probabilities."""
    w1, b1, w2, b2, w3, b3 = params
    B, nz = z.shape
    nz_k = w1.shape[0]

    tb, b_pad = _pick_batch_tile(B, batch_tile)
    n_tiles = b_pad // tb

    # Stream z as bf16; only the small batch-row / K-to-8 padding is added
    # (zero rows/cols are inert through ReLU and the final contraction).
    z_p = jnp.pad(z.astype(jnp.bfloat16), ((0, b_pad - B), (0, nz_k - nz)))

    def run(single_buffer_weights):
        def const_spec(a):
            kwargs = {}
            if single_buffer_weights:
                # Grid-invariant operands: no need for double-buffering.
                kwargs["pipeline_mode"] = pl.Buffered(1)
            return pl.BlockSpec(a.shape, lambda i: (0,) * a.ndim, **kwargs)

        return pl.pallas_call(
            dis_z_kernel,
            out_shape=jax.ShapeDtypeStruct((n_tiles, 1, tb), jnp.float32),
            grid=(n_tiles,),
            in_specs=[
                pl.BlockSpec((tb, nz_k), lambda i: (i, 0)),   # z tiles stream
                const_spec(w1), const_spec(b1),               # weights resident
                const_spec(w2), const_spec(b2),
                const_spec(w3), const_spec(b3),
            ],
            out_specs=pl.BlockSpec((1, 1, tb), lambda i: (i, 0, 0)),
            compiler_params=pltpu.CompilerParams(
                dimension_semantics=("parallel",),
                vmem_limit_bytes=32 << 20,
            ),
        )(z_p, w1, b1, w2, b2, w3, b3)

    try:
        out = run(True)     # single-buffered resident weights (preferred)
    except Exception:       # pipeline_mode=Buffered(1) unsupported -> fallback
        out = run(False)

    # (n_tiles, 1, tb) lane-dense rows -> (B, 1) column of probabilities.
    return out.reshape(-1)[:B].reshape(B, 1)


def init_params(key, nz, weight_dtype=jnp.bfloat16):
    """Torch-style Linear init, padded to TPU-friendly shapes.

    Weights are stored (in, out) (transposed vs nn.Linear.weight).  Hidden
    width padded 1000 -> 1024 lanes; layer-1 K stays at nz rounded to 8
    sublanes (NOT to 128).  Weights bf16 (MXU-native); biases f32.
    """
    nz_k = _round_up(max(nz, 1), 8)
    k1, k2, k3, k4, k5, k6 = jax.random.split(key, 6)

    def linear(kw, kb, fan_in, fan_out):
        bound = 1.0 / jnp.sqrt(jnp.float32(fan_in))
        w = jax.random.uniform(kw, (fan_in, fan_out), jnp.float32, -bound, bound)
        b = jax.random.uniform(kb, (fan_out,), jnp.float32, -bound, bound)
        return w, b

    w1, b1 = linear(k1, k2, nz, HIDDEN)
    w2, b2 = linear(k3, k4, HIDDEN, HIDDEN)
    w3, b3 = linear(k5, k6, HIDDEN, 1)

    w1p = jnp.zeros((nz_k, HIDDEN_PAD), weight_dtype).at[:nz, :HIDDEN].set(
        w1.astype(weight_dtype))
    b1p = jnp.zeros((1, HIDDEN_PAD), jnp.float32).at[0, :HIDDEN].set(b1)
    w2p = jnp.zeros((HIDDEN_PAD, HIDDEN_PAD), weight_dtype).at[:HIDDEN, :HIDDEN].set(
        w2.astype(weight_dtype))
    b2p = jnp.zeros((1, HIDDEN_PAD), jnp.float32).at[0, :HIDDEN].set(b2)
    w3p = jnp.zeros((1, HIDDEN_PAD), weight_dtype).at[0, :HIDDEN].set(
        w3[:, 0].astype(weight_dtype))
    b3p = jnp.reshape(b3, (1, 1)).astype(jnp.float32)

    return (w1p, b1p, w2p, b2p, w3p, b3p)


def dis_z_reference(z, params):
    """Plain-JAX reference using the same padded bf16 weights (same numerics)."""
    w1, b1, w2, b2, w3, b3 = params
    nz_k = w1.shape[0]
    z_p = jnp.pad(z, ((0, 0), (0, nz_k - z.shape[1]))).astype(jnp.bfloat16)
    h1 = jnp.maximum(
        jnp.dot(z_p, w1, preferred_element_type=jnp.float32) + b1, 0.0)
    h2 = jnp.maximum(
        jnp.dot(h1.astype(jnp.bfloat16), w2, preferred_element_type=jnp.float32) + b2,
        0.0)
    logits = jnp.dot(h2, w3.astype(jnp.float32).T,
                     preferred_element_type=jnp.float32) + b3
    return jax.nn.sigmoid(logits)


if __name__ == "__main__":
    key = jax.random.PRNGKey(0)
    k_params, k_z, k_z2 = jax.random.split(key, 3)

    B, nz = 8, NZ_DEFAULT
    params = init_params(k_params, nz)

    # Single-tile path (small batch).
    z = jax.random.normal(k_z, (B, nz), dtype=jnp.float32)
    out = jax.block_until_ready(dis_z_forward(z, params))
    ref = dis_z_reference(z, params)
    assert out.shape == (B, 1), out.shape
    assert jnp.allclose(out, ref, atol=2e-3, rtol=2e-3), "mismatch vs reference"

    # Multi-tile path (>= 2 grid steps, non-multiple-of-tile batch).
    B2 = 40
    z2 = jax.random.normal(k_z2, (B2, nz), dtype=jnp.float32)
    out2 = jax.block_until_ready(dis_z_forward(z2, params))
    ref2 = dis_z_reference(z2, params)
    assert out2.shape == (B2, 1), out2.shape
    assert jnp.allclose(out2, ref2, atol=2e-3, rtol=2e-3), "mismatch vs reference"

    print("KERNEL_OK")
</pallas_src>

<mosaic_0001>
module attributes {stable_mosaic.version = 11 : i64} {
  func.func @dis_z_kernel(%arg0: i32, %arg1: memref<16x32xbf16, #tpu.memory_space<vmem>>, %arg2: memref<32x1024xbf16, #tpu.memory_space<vmem>>, %arg3: memref<1x1024xf32, #tpu.memory_space<vmem>>, %arg4: memref<1024x1024xbf16, #tpu.memory_space<vmem>>, %arg5: memref<1x1024xf32, #tpu.memory_space<vmem>>, %arg6: memref<1x1024xbf16, #tpu.memory_space<vmem>>, %arg7: memref<1x1xf32, #tpu.memory_space<vmem>>, %arg8: memref<1x1x16xf32, #tpu.memory_space<vmem>>) attributes {dimension_semantics = [#tpu.dimension_semantics<parallel>], iteration_bounds = array<i64: 1>, scalar_prefetch = 0 : i64, scratch_operands = 0 : i64, tpu.core_type = #tpu.core_type<tc>, window_params = [{transform_indices = @transform_0, window_bounds = array<i64: 16, 32>}, {pipeline_mode = #tpu.pipeline_mode<synchronous>, transform_indices = @transform_1, window_bounds = array<i64: 32, 1024>}, {pipeline_mode = #tpu.pipeline_mode<synchronous>, transform_indices = @transform_2, window_bounds = array<i64: 1, 1024>}, {pipeline_mode = #tpu.pipeline_mode<synchronous>, transform_indices = @transform_3, window_bounds = array<i64: 1024, 1024>}, {pipeline_mode = #tpu.pipeline_mode<synchronous>, transform_indices = @transform_4, window_bounds = array<i64: 1, 1024>}, {pipeline_mode = #tpu.pipeline_mode<synchronous>, transform_indices = @transform_5, window_bounds = array<i64: 1, 1024>}, {pipeline_mode = #tpu.pipeline_mode<synchronous>, transform_indices = @transform_6, window_bounds = array<i64: 1, 1>}, {transform_indices = @transform_7, window_bounds = array<i64: 1, 1, 16>}]} {
    %c0 = arith.constant 0 : index
    %c0_0 = arith.constant 0 : index
    %0 = vector.load %arg1[%c0, %c0_0] : memref<16x32xbf16, #tpu.memory_space<vmem>>, vector<16x32xbf16>
    %c0_1 = arith.constant 0 : index
    %c0_2 = arith.constant 0 : index
    %1 = vector.load %arg2[%c0_1, %c0_2] : memref<32x1024xbf16, #tpu.memory_space<vmem>>, vector<32x1024xbf16>
    %cst = arith.constant dense<0.000000e+00> : vector<16x1024xf32>
    %2 = tpu.matmul %0, %1, %cst {dimension_numbers = #tpu.dot_dimension_numbers<[1], [0], [0], [1], [0, 0, 1, 1], [], []>} : vector<16x32xbf16>, vector<32x1024xbf16>, vector<16x1024xf32> -> vector<16x1024xf32>
    %c0_3 = arith.constant 0 : index
    %c0_4 = arith.constant 0 : index
    %3 = vector.load %arg3[%c0_3, %c0_4] : memref<1x1024xf32, #tpu.memory_space<vmem>>, vector<1x1024xf32>
    %4 = vector.broadcast %3 : vector<1x1024xf32> to vector<16x1024xf32>
    %5 = arith.addf %2, %4 : vector<16x1024xf32>
    %cst_5 = arith.constant 0.000000e+00 : f32
    %6 = vector.broadcast %cst_5 : f32 to vector<16x1024xf32>
    %7 = arith.maximumf %5, %6 : vector<16x1024xf32>
    %8 = arith.truncf %7 : vector<16x1024xf32> to vector<16x1024xbf16>
    %c0_6 = arith.constant 0 : index
    %c0_7 = arith.constant 0 : index
    %9 = vector.load %arg4[%c0_6, %c0_7] : memref<1024x1024xbf16, #tpu.memory_space<vmem>>, vector<1024x1024xbf16>
    %cst_8 = arith.constant dense<0.000000e+00> : vector<16x1024xf32>
    %10 = tpu.matmul %8, %9, %cst_8 {dimension_numbers = #tpu.dot_dimension_numbers<[1], [0], [0], [1], [0, 0, 1, 1], [], []>} : vector<16x1024xbf16>, vector<1024x1024xbf16>, vector<16x1024xf32> -> vector<16x1024xf32>
    %c0_9 = arith.constant 0 : index
    %c0_10 = arith.constant 0 : index
    %11 = vector.load %arg5[%c0_9, %c0_10] : memref<1x1024xf32, #tpu.memory_space<vmem>>, vector<1x1024xf32>
    %12 = vector.broadcast %11 : vector<1x1024xf32> to vector<16x1024xf32>
    %13 = arith.addf %10, %12 : vector<16x1024xf32>
    %cst_11 = arith.constant 0.000000e+00 : f32
    %14 = vector.broadcast %cst_11 : f32 to vector<16x1024xf32>
    %15 = arith.maximumf %13, %14 : vector<16x1024xf32>
    %c0_12 = arith.constant 0 : index
    %c0_13 = arith.constant 0 : index
    %16 = vector.load %arg6[%c0_12, %c0_13] : memref<1x1024xbf16, #tpu.memory_space<vmem>>, vector<1x1024xbf16>
    %17 = arith.extf %16 : vector<1x1024xbf16> to vector<1x1024xf32>
    %cst_14 = arith.constant dense<0.000000e+00> : vector<1x16xf32>
    %18 = tpu.matmul %17, %15, %cst_14 {dimension_numbers = #tpu.dot_dimension_numbers<[1], [1], [0], [0], [0, 0, 1, 0], [], []>} : vector<1x1024xf32>, vector<16x1024xf32>, vector<1x16xf32> -> vector<1x16xf32>
    %c0_15 = arith.constant 0 : index
    %c0_16 = arith.constant 0 : index
    %19 = vector.load %arg7[%c0_15, %c0_16] : memref<1x1xf32, #tpu.memory_space<vmem>>, vector<1x1xf32>
    %20 = vector.broadcast %19 : vector<1x1xf32> to vector<1x16xf32>
    %21 = arith.addf %18, %20 : vector<1x16xf32>
    %22 = arith.negf %21 : vector<1x16xf32>
    %23 = math.exp %22 : vector<1x16xf32>
    %cst_17 = arith.constant 1.000000e+00 : f32
    %24 = vector.broadcast %cst_17 : f32 to vector<1x16xf32>
    %25 = arith.addf %24, %23 : vector<1x16xf32>
    %26 = arith.divf %24, %25 : vector<1x16xf32>
    %27 = vector.shape_cast %26 : vector<1x16xf32> to vector<1x1x16xf32>
    %c0_18 = arith.constant 0 : index
    %c0_19 = arith.constant 0 : index
    %c0_20 = arith.constant 0 : index
    %28 = vector.load %arg8[%c0_18, %c0_19, %c0_20] : memref<1x1x16xf32, #tpu.memory_space<vmem>>, vector<1x1x16xf32>
    tpu.vector_store %arg8[%c0_18, %c0_19, %c0_20], %27 {strides = array<i32>} : memref<1x1x16xf32, #tpu.memory_space<vmem>>, vector<1x1x16xf32>,
    return
  }
  func.func @transform_0(%arg0: i32) -> (i32, i32) {
    %c0_i32 = arith.constant 0 : i32
    %c0_i32_0 = arith.constant 0 : i32
    return %arg0, %c0_i32 : i32, i32
  }
  func.func @transform_1(%arg0: i32) -> (i32, i32) {
    %c0_i32 = arith.constant 0 : i32
    %c0_i32_0 = arith.constant 0 : i32
    %c0_i32_1 = arith.constant 0 : i32
    return %c0_i32, %c0_i32_0 : i32, i32
  }
  func.func @transform_2(%arg0: i32) -> (i32, i32) {
    %c0_i32 = arith.constant 0 : i32
    %c0_i32_0 = arith.constant 0 : i32
    %c0_i32_1 = arith.constant 0 : i32
    return %c0_i32, %c0_i32_0 : i32, i32
  }
  func.func @transform_3(%arg0: i32) -> (i32, i32) {
    %c0_i32 = arith.constant 0 : i32
    %c0_i32_0 = arith.constant 0 : i32
    %c0_i32_1 = arith.constant 0 : i32
    return %c0_i32, %c0_i32_0 : i32, i32
  }
  func.func @transform_4(%arg0: i32) -> (i32, i32) {
    %c0_i32 = arith.constant 0 : i32
    %c0_i32_0 = arith.constant 0 : i32
    %c0_i32_1 = arith.constant 0 : i32
    return %c0_i32, %c0_i32_0 : i32, i32
  }
  func.func @transform_5(%arg0: i32) -> (i32, i32) {
    %c0_i32 = arith.constant 0 : i32
    %c0_i32_0 = arith.constant 0 : i32
    %c0_i32_1 = arith.constant 0 : i32
    return %c0_i32, %c0_i32_0 : i32, i32
  }
  func.func @transform_6(%arg0: i32) -> (i32, i32) {
    %c0_i32 = arith.constant 0 : i32
    %c0_i32_0 = arith.constant 0 : i32
    %c0_i32_1 = arith.constant 0 : i32
    return %c0_i32, %c0_i32_0 : i32, i32
  }
  func.func @transform_7(%arg0: i32) -> (i32, i32, i32) {
    %c0_i32 = arith.constant 0 : i32
    %c0_i32_0 = arith.constant 0 : i32
    %c0_i32_1 = arith.constant 0 : i32
    return %arg0, %c0_i32, %c0_i32_0 : i32, i32, i32
  }
}

module attributes {stable_mosaic.version = 11 : i64} {
  func.func @dis_z_kernel(%arg0: i32, %arg1: memref<16x32xbf16, #tpu.memory_space<vmem>>, %arg2: memref<32x1024xbf16, #tpu.memory_space<vmem>>, %arg3: memref<1x1024xf32, #tpu.memory_space<vmem>>, %arg4: memref<1024x1024xbf16, #tpu.memory_space<vmem>>, %arg5: memref<1x1024xf32, #tpu.memory_space<vmem>>, %arg6: memref<1x1024xbf16, #tpu.memory_space<vmem>>, %arg7: memref<1x1xf32, #tpu.memory_space<vmem>>, %arg8: memref<1x1x16xf32, #tpu.memory_space<vmem>>) attributes {dimension_semantics = [#tpu.dimension_semantics<parallel>], iteration_bounds = array<i64: 1>, scalar_prefetch = 0 : i64, scratch_operands = 0 : i64, tpu.core_type = #tpu.core_type<tc>, window_params = [{transform_indices = @transform_0, window_bounds = array<i64: 16, 32>}, {pipeline_mode = #tpu.pipeline_mode<synchronous>, transform_indices = @transform_1, window_bounds = array<i64: 32, 1024>}, {pipeline_mode = #tpu.pipeline_mode<synchronous>, transform_indices = @transform_2, window_bounds = array<i64: 1, 1024>}, {pipeline_mode = #tpu.pipeline_mode<synchronous>, transform_indices = @transform_3, window_bounds = array<i64: 1024, 1024>}, {pipeline_mode = #tpu.pipeline_mode<synchronous>, transform_indices = @transform_4, window_bounds = array<i64: 1, 1024>}, {pipeline_mode = #tpu.pipeline_mode<synchronous>, transform_indices = @transform_5, window_bounds = array<i64: 1, 1024>}, {pipeline_mode = #tpu.pipeline_mode<synchronous>, transform_indices = @transform_6, window_bounds = array<i64: 1, 1>}, {transform_indices = @transform_7, window_bounds = array<i64: 1, 1, 16>}]} {
    %c0 = arith.constant 0 : index
    %c0_0 = arith.constant 0 : index
    %0 = vector.load %arg1[%c0, %c0_0] : memref<16x32xbf16, #tpu.memory_space<vmem>>, vector<16x32xbf16>
    %c0_1 = arith.constant 0 : index
    %c0_2 = arith.constant 0 : index
    %1 = vector.load %arg2[%c0_1, %c0_2] : memref<32x1024xbf16, #tpu.memory_space<vmem>>, vector<32x1024xbf16>
    %cst = arith.constant dense<0.000000e+00> : vector<16x1024xf32>
    %2 = tpu.matmul %0, %1, %cst {dimension_numbers = #tpu.dot_dimension_numbers<[1], [0], [0], [1], [0, 0, 1, 1], [], []>} : vector<16x32xbf16>, vector<32x1024xbf16>, vector<16x1024xf32> -> vector<16x1024xf32>
    %c0_3 = arith.constant 0 : index
    %c0_4 = arith.constant 0 : index
    %3 = vector.load %arg3[%c0_3, %c0_4] : memref<1x1024xf32, #tpu.memory_space<vmem>>, vector<1x1024xf32>
    %4 = vector.broadcast %3 : vector<1x1024xf32> to vector<16x1024xf32>
    %5 = arith.addf %2, %4 : vector<16x1024xf32>
    %cst_5 = arith.constant 0.000000e+00 : f32
    %6 = vector.broadcast %cst_5 : f32 to vector<16x1024xf32>
    %7 = arith.maximumf %5, %6 : vector<16x1024xf32>
    %8 = arith.truncf %7 : vector<16x1024xf32> to vector<16x1024xbf16>
    %c0_6 = arith.constant 0 : index
    %c0_7 = arith.constant 0 : index
    %9 = vector.load %arg4[%c0_6, %c0_7] : memref<1024x1024xbf16, #tpu.memory_space<vmem>>, vector<1024x1024xbf16>
    %cst_8 = arith.constant dense<0.000000e+00> : vector<16x1024xf32>
    %10 = tpu.matmul %8, %9, %cst_8 {dimension_numbers = #tpu.dot_dimension_numbers<[1], [0], [0], [1], [0, 0, 1, 1], [], []>} : vector<16x1024xbf16>, vector<1024x1024xbf16>, vector<16x1024xf32> -> vector<16x1024xf32>
    %c0_9 = arith.constant 0 : index
    %c0_10 = arith.constant 0 : index
    %11 = vector.load %arg5[%c0_9, %c0_10] : memref<1x1024xf32, #tpu.memory_space<vmem>>, vector<1x1024xf32>
    %12 = vector.broadcast %11 : vector<1x1024xf32> to vector<16x1024xf32>
    %13 = arith.addf %10, %12 : vector<16x1024xf32>
    %cst_11 = arith.constant 0.000000e+00 : f32
    %14 = vector.broadcast %cst_11 : f32 to vector<16x1024xf32>
    %15 = arith.maximumf %13, %14 : vector<16x1024xf32>
    %c0_12 = arith.constant 0 : index
    %c0_13 = arith.constant 0 : index
    %16 = vector.load %arg6[%c0_12, %c0_13] : memref<1x1024xbf16, #tpu.memory_space<vmem>>, vector<1x1024xbf16>
    %17 = arith.extf %16 : vector<1x1024xbf16> to vector<1x1024xf32>
    %cst_14 = arith.constant dense<0.000000e+00> : vector<1x16xf32>
    %18 = tpu.matmul %17, %15, %cst_14 {dimension_numbers = #tpu.dot_dimension_numbers<[1], [1], [0], [0], [0, 0, 1, 0], [], []>} : vector<1x1024xf32>, vector<16x1024xf32>, vector<1x16xf32> -> vector<1x16xf32>
    %c0_15 = arith.constant 0 : index
    %c0_16 = arith.constant 0 : index
    %19 = vector.load %arg7[%c0_15, %c0_16] : memref<1x1xf32, #tpu.memory_space<vmem>>, vector<1x1xf32>
    %20 = vector.broadcast %19 : vector<1x1xf32> to vector<1x16xf32>
    %21 = arith.addf %18, %20 : vector<1x16xf32>
    %22 = arith.negf %21 : vector<1x16xf32>
    %23 = math.exp %22 : vector<1x16xf32>
    %cst_17 = arith.constant 1.000000e+00 : f32
    %24 = vector.broadcast %cst_17 : f32 to vector<1x16xf32>
    %25 = arith.addf %24, %23 : vector<1x16xf32>
    %26 = arith.divf %24, %25 : vector<1x16xf32>
    %27 = vector.shape_cast %26 : vector<1x16xf32> to vector<1x1x16xf32>
    %c0_18 = arith.constant 0 : index
    %c0_19 = arith.constant 0 : index
    %c0_20 = arith.constant 0 : index
    %28 = vector.load %arg8[%c0_18, %c0_19, %c0_20] : memref<1x1x16xf32, #tpu.memory_space<vmem>>, vector<1x1x16xf32>
    tpu.vector_store %arg8[%c0_18, %c0_19, %c0_20], %27 {strides = array<i32>} : memref<1x1x16xf32, #tpu.memory_space<vmem>>, vector<1x1x16xf32>,
    return
  }
  func.func @transform_0(%arg0: i32) -> (i32, i32) {
    %c0_i32 = arith.constant 0 : i32
    %c0_i32_0 = arith.constant 0 : i32
    return %arg0, %c0_i32 : i32, i32
  }
  func.func @transform_1(%arg0: i32) -> (i32, i32) {
    %c0_i32 = arith.constant 0 : i32
    %c0_i32_0 = arith.constant 0 : i32
    %c0_i32_1 = arith.constant 0 : i32
    return %c0_i32, %c0_i32_0 : i32, i32
  }
  func.func @transform_2(%arg0: i32) -> (i32, i32) {
    %c0_i32 = arith.constant 0 : i32
    %c0_i32_0 = arith.constant 0 : i32
    %c0_i32_1 = arith.constant 0 : i32
    return %c0_i32, %c0_i32_0 : i32, i32
  }
  func.func @transform_3(%arg0: i32) -> (i32, i32) {
    %c0_i32 = arith.constant 0 : i32
    %c0_i32_0 = arith.constant 0 : i32
    %c0_i32_1 = arith.constant 0 : i32
    return %c0_i32, %c0_i32_0 : i32, i32
  }
  func.func @transform_4(%arg0: i32) -> (i32, i32) {
    %c0_i32 = arith.constant 0 : i32
    %c0_i32_0 = arith.constant 0 : i32
    %c0_i32_1 = arith.constant 0 : i32
    return %c0_i32, %c0_i32_0 : i32, i32
  }
  func.func @transform_5(%arg0: i32) -> (i32, i32) {
    %c0_i32 = arith.constant 0 : i32
    %c0_i32_0 = arith.constant 0 : i32
    %c0_i32_1 = arith.constant 0 : i32
    return %c0_i32, %c0_i32_0 : i32, i32
  }
  func.func @transform_6(%arg0: i32) -> (i32, i32) {
    %c0_i32 = arith.constant 0 : i32
    %c0_i32_0 = arith.constant 0 : i32
    %c0_i32_1 = arith.constant 0 : i32
    return %c0_i32, %c0_i32_0 : i32, i32
  }
  func.func @transform_7(%arg0: i32) -> (i32, i32, i32) {
    %c0_i32 = arith.constant 0 : i32
    %c0_i32_0 = arith.constant 0 : i32
    %c0_i32_1 = arith.constant 0 : i32
    return %arg0, %c0_i32, %c0_i32_0 : i32, i32, i32
  }
}

</mosaic_0001>

<llo_original>
// kernel: tpu_custom_call.1
$region0: #{tpu_custom_call.1}
  #allocation0 [shape = 'u32[]', space=smem, size = 0x4, offset = 0x4, fixed_abs, tag = 'smem constant byte address 0x4 - core index']
  #allocation1 [shape = 'u32[144,128]{1,0:T(1,128)}', space=vmem, size = 0x12000, scoped, tag = 'internal scratch']
  #allocation2 [shape = 'f32[1,1]{1,0:T(1,128)S(1)}', space=vmem, size = 0x200, scoped, tag = 'scoped memory for tpu_custom_call.1']
  %s0 = inlined_call_operand.hbm [shape: bf16[16,32], index: 0, kind: input, shape index: {}]
  %s1 = inlined_call_operand.hbm [shape: bf16[32,1024], index: 1, kind: input, shape index: {}]
  %s2 = inlined_call_operand.hbm [shape: f32[1,1024], index: 2, kind: input, shape index: {}]
  %s3 = inlined_call_operand.hbm [shape: bf16[1024,1024], index: 3, kind: input, shape index: {}]
  %s4 = inlined_call_operand.hbm [shape: f32[1,1024], index: 4, kind: input, shape index: {}]
  %s5 = inlined_call_operand.hbm [shape: bf16[1,1024], index: 5, kind: input, shape index: {}]
  %s6 = inlined_call_operand.<no memory space> [shape: f32[1,1], index: 6, kind: input, shape index: {}]
  %s7 = inlined_call_operand.hbm [shape: f32[1,1,16], index: 7, kind: output, shape index: {}]
  %s8 = sld [smem:[#allocation0]]
  $region62: #{tpu_custom_call.1} parent=0
    _
  %s10 = ssub.s32 1, %s8
  %s11 = scalar_select 0, %s10, %s8
  %v12 = vstv %s6
  %13 = vst [vmem:[#allocation2] sm:$0x1] %v12
  $region1: #{tpu_custom_call.1} parent=0
    #allocation3 [shape = 'u8[4096]{0}', space=vmem, size = 0x1000, scoped, tag = 'input window, operand 0, single buffered']
    #allocation4 [shape = 's32[1]{0}', space=sflag, size = 0x4, scoped, tag = 'scoped memory for tpu_custom_call.1']
    #allocation5 [shape = 's32[1]{0}', space=sflag, size = 0x4, scoped, tag = 'scoped memory for tpu_custom_call.1']
    #allocation6 [shape = 'u8[65536]{0}', space=vmem, size = 0x10000, scoped, tag = 'input window, operand 1, single buffered']
    #allocation7 [shape = 's32[1]{0}', space=sflag, size = 0x4, scoped, tag = 'scoped memory for tpu_custom_call.1']
    #allocation8 [shape = 'u8[4096]{0}', space=vmem, size = 0x1000, scoped, tag = 'input window, operand 2, single buffered']
    #allocation9 [shape = 'u8[2097152]{0}', space=vmem, size = 0x200000, scoped, tag = 'input window, operand 3, single buffered']
    #allocation10 [shape = 's32[1]{0}', space=sflag, size = 0x4, scoped, tag = 'scoped memory for tpu_custom_call.1']
    #allocation11 [shape = 'u8[4096]{0}', space=vmem, size = 0x1000, scoped, tag = 'input window, operand 4, single buffered']
    #allocation12 [shape = 'u8[4096]{0}', space=vmem, size = 0x1000, scoped, tag = 'input window, operand 5, single buffered']
    #allocation13 [shape = 's32[1]{0}', space=sflag, size = 0x4, scoped, tag = 'scoped memory for tpu_custom_call.1']
    #allocation14 [shape = 'u8[512]{0}', space=vmem, size = 0x400, scoped, tag = 'output window, operand 0, single buffered']
    %14 = vsyncpa [#allocation4], 0
    %15 = vsyncpa [#allocation7], 0
    %16 = vsyncpa [#allocation10], 0
    %17 = vsyncpa [#allocation13], 0
    %18 = vsyncpa [#allocation5], 0
    // Predicated region
    $region2: #{tpu_custom_call.1} parent=1 // pred_check
      _
    $region3: #{tpu_custom_call.1} parent=1 // pred_check_branch
      %20 = sbr.rel (0) target = $region5
    $region4: #{tpu_custom_call.1} parent=1 // pred_region
      %s22 = ssub.s32 128, 128
      %23 = vsyncadd [#allocation4], %s22
      %s24 = sshll.u32 [#allocation3], 4
      %s25 = int_to_ptr.vmem [resolvable:$true] %s24
      %30 = dma.hbm_to_vmem [thread:$0]  %s0, 128, %s25, [#allocation4], 64, 64, 4
    $region5: #{tpu_custom_call.1} parent=1 // pred_fallthru
      _
    // Predicated region
    $region6: #{tpu_custom_call.1} parent=1 // pred_check
      _
    $region7: #{tpu_custom_call.1} parent=1 // pred_check_branch
      %32 = sbr.rel (0) target = $region9
    $region8: #{tpu_custom_call.1} parent=1 // pred_region
      %s34 = ssub.s32 2048, 2048
      %35 = vsyncadd [#allocation7], %s34
      %s36 = sshll.u32 [#allocation6], 4
      %s37 = int_to_ptr.vmem [resolvable:$true] %s36
      %42 = dma.hbm_to_vmem [thread:$0]  %s1, 2048, %s37, [#allocation7], 512, 512, 32
    $region9: #{tpu_custom_call.1} parent=1 // pred_fallthru
      _
    // Predicated region
    $region10: #{tpu_custom_call.1} parent=1 // pred_check
      _
    $region11: #{tpu_custom_call.1} parent=1 // pred_check_branch
      %44 = sbr.rel (0) target = $region13
    $region12: #{tpu_custom_call.1} parent=1 // pred_region
      %s46 = ssub.s32 128, 128
      %47 = vsyncadd [#allocation7], %s46
      %s49 = sshll.u32 [#allocation8], 4
      %s50 = int_to_ptr.vmem [resolvable:$true] %s49
      %52 = dma.hbm_to_vmem [thread:$0]  %s2, 128, %s50, [#allocation7]
    $region13: #{tpu_custom_call.1} parent=1 // pred_fallthru
      _
    // Predicated region
    $region14: #{tpu_custom_call.1} parent=1 // pred_check
      _
    $region15: #{tpu_custom_call.1} parent=1 // pred_check_branch
      %54 = sbr.rel (0) target = $region17
    $region16: #{tpu_custom_call.1} parent=1 // pred_region
      %s56 = ssub.s32 65536, 65536
      %57 = vsyncadd [#allocation10], %s56
      %s58 = sshll.u32 [#allocation9], 4
      %s59 = int_to_ptr.vmem [resolvable:$true] %s58
      %64 = dma.hbm_to_vmem [thread:$0]  %s3, 65536, %s59, [#allocation10], 512, 512, 32
    $region17: #{tpu_custom_call.1} parent=1 // pred_fallthru
      _
    // Predicated region
    $region18: #{tpu_custom_call.1} parent=1 // pred_check
      _
    $region19: #{tpu_custom_call.1} parent=1 // pred_check_branch
      %66 = sbr.rel (0) target = $region21
    $region20: #{tpu_custom_call.1} parent=1 // pred_region
      %s68 = ssub.s32 128, 128
      %69 = vsyncadd [#allocation10], %s68
      %s71 = sshll.u32 [#allocation11], 4
      %s72 = int_to_ptr.vmem [resolvable:$true] %s71
      %74 = dma.hbm_to_vmem [thread:$0]  %s4, 128, %s72, [#allocation10]
    $region21: #{tpu_custom_call.1} parent=1 // pred_fallthru
      _
    // Predicated region
    $region22: #{tpu_custom_call.1} parent=1 // pred_check
      _
    $region23: #{tpu_custom_call.1} parent=1 // pred_check_branch
      %76 = sbr.rel (0) target = $region25
    $region24: #{tpu_custom_call.1} parent=1 // pred_region
      %s78 = ssub.s32 128, 128
      %79 = vsyncadd [#allocation13], %s78
      %s81 = sshll.u32 [#allocation12], 4
      %s82 = int_to_ptr.vmem [resolvable:$true] %s81
      %84 = dma.hbm_to_vmem [thread:$0]  %s5, 128, %s82, [#allocation13]
    $region25: #{tpu_custom_call.1} parent=1 // pred_fallthru
      _
    // Predicated region
    $region26: #{tpu_custom_call.1} parent=1 // pred_check
      _
    $region27: #{tpu_custom_call.1} parent=1 // pred_check_branch
      %86 = sbr.rel (0) target = $region29
    $region28: #{tpu_custom_call.1} parent=1 // pred_region
      _
    $region29: #{tpu_custom_call.1} parent=1 // pred_fallthru
      _
    // Predicated region
    $region30: #{tpu_custom_call.1} parent=1 // pred_check
      _
    $region31: #{tpu_custom_call.1} parent=1 // pred_check_branch
      %88 = sbr.rel (0) target = $region33
    $region32: #{tpu_custom_call.1} parent=1 // pred_region
      %89 = dma.done [#allocation4], 128
    $region33: #{tpu_custom_call.1} parent=1 // pred_fallthru
      _
    // Predicated region
    $region34: #{tpu_custom_call.1} parent=1 // pred_check
      _
    $region35: #{tpu_custom_call.1} parent=1 // pred_check_branch
      %91 = sbr.rel (0) target = $region37
    $region36: #{tpu_custom_call.1} parent=1 // pred_region
      %92 = dma.done [#allocation7], 2048
    $region37: #{tpu_custom_call.1} parent=1 // pred_fallthru
      _
    // Predicated region
    $region38: #{tpu_custom_call.1} parent=1 // pred_check
      _
    $region39: #{tpu_custom_call.1} parent=1 // pred_check_branch
      %94 = sbr.rel (0) target = $region41
    $region40: #{tpu_custom_call.1} parent=1 // pred_region
      %95 = dma.done [#allocation7], 128
    $region41: #{tpu_custom_call.1} parent=1 // pred_fallthru
      _
    // Predicated region
    $region42: #{tpu_custom_call.1} parent=1 // pred_check
      _
    $region43: #{tpu_custom_call.1} parent=1 // pred_check_branch
      %97 = sbr.rel (0) target = $region45
    $region44: #{tpu_custom_call.1} parent=1 // pred_region
      %98 = dma.done [#allocation10], 65536
    $region45: #{tpu_custom_call.1} parent=1 // pred_fallthru
      _
    // Predicated region
    $region46: #{tpu_custom_call.1} parent=1 // pred_check
      _
    $region47: #{tpu_custom_call.1} parent=1 // pred_check_branch
      %100 = sbr.rel (0) target = $region49
    $region48: #{tpu_custom_call.1} parent=1 // pred_region
      %101 = dma.done [#allocation10], 128
    $region49: #{tpu_custom_call.1} parent=1 // pred_fallthru
      _
    // Predicated region
    $region50: #{tpu_custom_call.1} parent=1 // pred_check
      _
    $region51: #{tpu_custom_call.1} parent=1 // pred_check_branch
      %103 = sbr.rel (0) target = $region53
    $region52: #{tpu_custom_call.1} parent=1 // pred_region
      %104 = dma.done [#allocation13], 128
    $region53: #{tpu_custom_call.1} parent=1 // pred_fallthru
      _
    %v106 = vld [vmem:[#allocation3] sm:$0xf]
    %v107 = vld [vmem:[#allocation3 + $0x4] sm:$0xf]
    %v108 = vld [vmem:[#allocation6] sm:$0xff]
    %v109 = vld [vmem:[#allocation6 + $0x8] sm:$0xff]
    %v110 = vld [vmem:[#allocation6 + $0x10] sm:$0xff]
    %v111 = vld [vmem:[#allocation6 + $0x18] sm:$0xff]
    %v112 = vld [vmem:[#allocation6 + $0x20] sm:$0xff]
    %v113 = vld [vmem:[#allocation6 + $0x28] sm:$0xff]
    %v114 = vld [vmem:[#allocation6 + $0x30] sm:$0xff]
    %v115 = vld [vmem:[#allocation6 + $0x38] sm:$0xff]
    %v116 = vld [vmem:[#allocation6 + $0x40] sm:$0xff]
    %v117 = vld [vmem:[#allocation6 + $0x48] sm:$0xff]
    %v118 = vld [vmem:[#allocation6 + $0x50] sm:$0xff]
    %v119 = vld [vmem:[#allocation6 + $0x58] sm:$0xff]
    %v120 = vld [vmem:[#allocation6 + $0x60] sm:$0xff]
    %v121 = vld [vmem:[#allocation6 + $0x68] sm:$0xff]
    %v122 = vld [vmem:[#allocation6 + $0x70] sm:$0xff]
    %v123 = vld [vmem:[#allocation6 + $0x78] sm:$0xff]
    %v124 = vld [vmem:[#allocation8] sm:$0xff]
    %v126 = vlaneseq
    %v127 = vshrl.u32 %v126, 7
    %v128 = vsub.s32 0, %v127
    %v129 = vrot.slane %v124, %v128
    %v130 = vlaneseq
    %v131 = vshrl.u32 %v130, 7
    %v132 = vsub.s32 1, %v131
    %v133 = vrot.slane %v124, %v132
    %v134 = vlaneseq
    %v135 = vshrl.u32 %v134, 7
    %v136 = vsub.s32 2, %v135
    %v137 = vrot.slane %v124, %v136
    %v138 = vlaneseq
    %v139 = vshrl.u32 %v138, 7
    %v140 = vsub.s32 3, %v139
    %v141 = vrot.slane %v124, %v140
    %v142 = vlaneseq
    %v143 = vshrl.u32 %v142, 7
    %v144 = vsub.s32 4, %v143
    %v145 = vrot.slane %v124, %v144
    %v146 = vlaneseq
    %v147 = vshrl.u32 %v146, 7
    %v148 = vsub.s32 5, %v147
    %v149 = vrot.slane %v124, %v148
    %v150 = vlaneseq
    %v151 = vshrl.u32 %v150, 7
    %v152 = vsub.s32 6, %v151
    %v153 = vrot.slane %v124, %v152
    %v154 = vlaneseq
    %v155 = vshrl.u32 %v154, 7
    %v156 = vsub.s32 7, %v155
    %v157 = vrot.slane %v124, %v156
    %v168 = vunpack.c.l.b16 %v106
    %v169 = vunpack.c.l.b16 %v107
    %v170 = vpack.c.b16 %v169, %v168
    %v187 = vunpack.c.l.b16 %v108
    %v188 = vunpack.c.h.b16 %v108
    %v189 = vunpack.c.l.b16 %v109
    %v190 = vunpack.c.h.b16 %v109
    %v191 = vunpack.c.l.b16 %v110
    %v192 = vunpack.c.h.b16 %v110
    %v193 = vunpack.c.l.b16 %v111
    %v194 = vunpack.c.h.b16 %v111
    %v195 = vunpack.c.l.b16 %v112
    %v196 = vunpack.c.h.b16 %v112
    %v197 = vunpack.c.l.b16 %v113
    %v198 = vunpack.c.h.b16 %v113
    %v199 = vunpack.c.l.b16 %v114
    %v200 = vunpack.c.h.b16 %v114
    %v201 = vunpack.c.l.b16 %v115
    %v202 = vunpack.c.h.b16 %v115
    %v203 = vunpack.c.l.b16 %v116
    %v204 = vunpack.c.h.b16 %v116
    %v205 = vunpack.c.l.b16 %v117
    %v206 = vunpack.c.h.b16 %v117
    %v207 = vunpack.c.l.b16 %v118
    %v208 = vunpack.c.h.b16 %v118
    %v209 = vunpack.c.l.b16 %v119
    %v210 = vunpack.c.h.b16 %v119
    %v211 = vunpack.c.l.b16 %v120
    %v212 = vunpack.c.h.b16 %v120
    %v213 = vunpack.c.l.b16 %v121
    %v214 = vunpack.c.h.b16 %v121
    %v215 = vunpack.c.l.b16 %v122
    %v216 = vunpack.c.h.b16 %v122
    %v217 = vunpack.c.l.b16 %v123
    %v218 = vunpack.c.h.b16 %v123
    %v219 = vpack.c.b16 %v195, %v187
    %v220 = vpack.c.b16 %v196, %v188
    %v221 = vpack.c.b16 %v197, %v189
    %v222 = vpack.c.b16 %v198, %v190
    %v223 = vpack.c.b16 %v199, %v191
    %v224 = vpack.c.b16 %v200, %v192
    %v225 = vpack.c.b16 %v201, %v193
    %v226 = vpack.c.b16 %v202, %v194
    %v227 = vpack.c.b16 %v211, %v203
    %v228 = vpack.c.b16 %v212, %v204
    %v229 = vpack.c.b16 %v213, %v205
    %v230 = vpack.c.b16 %v214, %v206
    %v231 = vpack.c.b16 %v215, %v207
    %v232 = vpack.c.b16 %v216, %v208
    %v233 = vpack.c.b16 %v217, %v209
    %v234 = vpack.c.b16 %v218, %v210
    %vm251 = vcmask 261120
    %v253 = vsel %vm251, %v170, 0
    %255 = vmatprep.subr.bf16.mxu0 %v220
    %256 = vmatpush1.bf16.msra.mxu0 %v219
    %257 = vmatprep.subr.bf16.mxu0 %v228
    %258 = vmatpush1.bf16.msra.mxu0 %v227
    %259 = vmatprep.subr.bf16.mxu0 0
    %260 = vmatpush1.bf16.msra.mxu0 0
    %261 = vmatprep.subr.bf16.mxu0 0
    %262 = vmatpush1.bf16.msra.mxu0 0
    %263 = vmatprep.subr.bf16.mxu0 0
    %264 = vmatpush1.bf16.msra.mxu0 0
    %265 = vmatprep.subr.bf16.mxu0 0
    %266 = vmatpush1.bf16.msra.mxu0 0
    %267 = vmatprep.subr.bf16.mxu0 0
    %268 = vmatpush1.bf16.msra.mxu0 0
    %269 = vmatprep.subr.bf16.mxu0 0
    %270 = vmatpush1.bf16.msra.mxu0 0
    %271 = vmatprep.subr.bf16.mxu0 0
    %272 = vmatpush1.bf16.msra.mxu0 0
    %273 = vmatprep.subr.bf16.mxu0 0
    %274 = vmatpush1.bf16.msra.mxu0 0
    %275 = vmatprep.subr.bf16.mxu0 0
    %276 = vmatpush1.bf16.msra.mxu0 0
    %277 = vmatprep.subr.bf16.mxu0 0
    %278 = vmatpush1.bf16.msra.mxu0 0
    %279 = vmatprep.subr.bf16.mxu0 0
    %280 = vmatpush1.bf16.msra.mxu0 0
    %281 = vmatprep.subr.bf16.mxu0 0
    %282 = vmatpush1.bf16.msra.mxu0 0
    %283 = vmatprep.subr.bf16.mxu0 0
    %284 = vmatpush1.bf16.msra.mxu0 0
    %285 = vmatprep.subr.bf16.mxu0 0
    %286 = vmatpush1.bf16.msra.mxu0 0
    %287 = vmatprep.mubr.bf16.mxu0 0
    %288 = vmatmul.mubr.bf16.gmra.mrb[0].mxu0 %v253
    %v289 = vpop.f32.mrb[0].mxu0
    %v290 = vadd.f32 %v129, %v289
    %v291 = vpop.f32.mrb[0].mxu0
    %v292 = vadd.f32 %v133, %v291
    %v293 = vpop.f32.mrb[0].mxu0
    %v294 = vadd.f32 %v129, %v293
    %v295 = vpop.f32.mrb[0].mxu0
    %v296 = vadd.f32 %v133, %v295
    %297 = vdwg.mxu0
    %298 = vmatprep.subr.bf16.mxu0 %v222
    %299 = vmatpush1.bf16.msra.mxu0 %v221
    %300 = vmatprep.subr.bf16.mxu0 %v230
    %301 = vmatpush1.bf16.msra.mxu0 %v229
    %302 = vmatprep.subr.bf16.mxu0 0
    %303 = vmatpush1.bf16.msra.mxu0 0
    %304 = vmatprep.subr.bf16.mxu0 0
    %305 = vmatpush1.bf16.msra.mxu0 0
    %306 = vmatprep.subr.bf16.mxu0 0
    %307 = vmatpush1.bf16.msra.mxu0 0
    %308 = vmatprep.subr.bf16.mxu0 0
    %309 = vmatpush1.bf16.msra.mxu0 0
    %310 = vmatprep.subr.bf16.mxu0 0
    %311 = vmatpush1.bf16.msra.mxu0 0
    %312 = vmatprep.subr.bf16.mxu0 0
    %313 = vmatpush1.bf16.msra.mxu0 0
    %314 = vmatprep.subr.bf16.mxu0 0
    %315 = vmatpush1.bf16.msra.mxu0 0
    %316 = vmatprep.subr.bf16.mxu0 0
    %317 = vmatpush1.bf16.msra.mxu0 0
    %318 = vmatprep.subr.bf16.mxu0 0
    %319 = vmatpush1.bf16.msra.mxu0 0
    %320 = vmatprep.subr.bf16.mxu0 0
    %321 = vmatpush1.bf16.msra.mxu0 0
    %322 = vmatprep.subr.bf16.mxu0 0
    %323 = vmatpush1.bf16.msra.mxu0 0
    %324 = vmatprep.subr.bf16.mxu0 0
    %325 = vmatpush1.bf16.msra.mxu0 0
    %326 = vmatprep.subr.bf16.mxu0 0
    %327 = vmatpush1.bf16.msra.mxu0 0
    %328 = vmatprep.subr.bf16.mxu0 0
    %329 = vmatpush1.bf16.msra.mxu0 0
    %330 = vmatprep.mubr.bf16.mxu0 0
    %331 = vmatmul.mubr.bf16.gmra.mrb[0].mxu0 %v253
    %v332 = vpop.f32.mrb[0].mxu0
    %v333 = vadd.f32 %v137, %v332
    %v334 = vpop.f32.mrb[0].mxu0
    %v335 = vadd.f32 %v141, %v334
    %v336 = vpop.f32.mrb[0].mxu0
    %v337 = vadd.f32 %v137, %v336
    %v338 = vpop.f32.mrb[0].mxu0
    %v339 = vadd.f32 %v141, %v338
    %340 = vdwg.mxu0
    %341 = vmatprep.subr.bf16.mxu0 %v224
    %342 = vmatpush1.bf16.msra.mxu0 %v223
    %343 = vmatprep.subr.bf16.mxu0 %v232
    %344 = vmatpush1.bf16.msra.mxu0 %v231
    %345 = vmatprep.subr.bf16.mxu0 0
    %346 = vmatpush1.bf16.msra.mxu0 0
    %347 = vmatprep.subr.bf16.mxu0 0
    %348 = vmatpush1.bf16.msra.mxu0 0
    %349 = vmatprep.subr.bf16.mxu0 0
    %350 = vmatpush1.bf16.msra.mxu0 0
    %351 = vmatprep.subr.bf16.mxu0 0
    %352 = vmatpush1.bf16.msra.mxu0 0
    %353 = vmatprep.subr.bf16.mxu0 0
    %354 = vmatpush1.bf16.msra.mxu0 0
    %355 = vmatprep.subr.bf16.mxu0 0
    %356 = vmatpush1.bf16.msra.mxu0 0
    %357 = vmatprep.subr.bf16.mxu0 0
    %358 = vmatpush1.bf16.msra.mxu0 0
    %359 = vmatprep.subr.bf16.mxu0 0
    %360 = vmatpush1.bf16.msra.mxu0 0
    %361 = vmatprep.subr.bf16.mxu0 0
    %362 = vmatpush1.bf16.msra.mxu0 0
    %363 = vmatprep.subr.bf16.mxu0 0
    %364 = vmatpush1.bf16.msra.mxu0 0
    %365 = vmatprep.subr.bf16.mxu0 0
    %366 = vmatpush1.bf16.msra.mxu0 0
    %367 = vmatprep.subr.bf16.mxu0 0
    %368 = vmatpush1.bf16.msra.mxu0 0
    %369 = vmatprep.subr.bf16.mxu0 0
    %370 = vmatpush1.bf16.msra.mxu0 0
    %371 = vmatprep.subr.bf16.mxu0 0
    %372 = vmatpush1.bf16.msra.mxu0 0
    %373 = vmatprep.mubr.bf16.mxu0 0
    %374 = vmatmul.mubr.bf16.gmra.mrb[0].mxu0 %v253
    %v375 = vpop.f32.mrb[0].mxu0
    %v376 = vadd.f32 %v145, %v375
    %v377 = vpop.f32.mrb[0].mxu0
    %v378 = vadd.f32 %v149, %v377
    %v379 = vpop.f32.mrb[0].mxu0
    %v380 = vadd.f32 %v145, %v379
    %v381 = vpop.f32.mrb[0].mxu0
    %v382 = vadd.f32 %v149, %v381
    %383 = vdwg.mxu0
    %384 = vmatprep.subr.bf16.mxu0 %v226
    %385 = vmatpush1.bf16.msra.mxu0 %v225
    %386 = vmatprep.subr.bf16.mxu0 %v234
    %387 = vmatpush1.bf16.msra.mxu0 %v233
    %388 = vmatprep.subr.bf16.mxu0 0
    %389 = vmatpush1.bf16.msra.mxu0 0
    %390 = vmatprep.subr.bf16.mxu0 0
    %391 = vmatpush1.bf16.msra.mxu0 0
    %392 = vmatprep.subr.bf16.mxu0 0
    %393 = vmatpush1.bf16.msra.mxu0 0
    %394 = vmatprep.subr.bf16.mxu0 0
    %395 = vmatpush1.bf16.msra.mxu0 0
    %396 = vmatprep.subr.bf16.mxu0 0
    %397 = vmatpush1.bf16.msra.mxu0 0
    %398 = vmatprep.subr.bf16.mxu0 0
    %399 = vmatpush1.bf16.msra.mxu0 0
    %400 = vmatprep.subr.bf16.mxu0 0
    %401 = vmatpush1.bf16.msra.mxu0 0
    %402 = vmatprep.subr.bf16.mxu0 0
    %403 = vmatpush1.bf16.msra.mxu0 0
    %404 = vmatprep.subr.bf16.mxu0 0
    %405 = vmatpush1.bf16.msra.mxu0 0
    %406 = vmatprep.subr.bf16.mxu0 0
    %407 = vmatpush1.bf16.msra.mxu0 0
    %408 = vmatprep.subr.bf16.mxu0 0
    %409 = vmatpush1.bf16.msra.mxu0 0
    %410 = vmatprep.subr.bf16.mxu0 0
    %411 = vmatpush1.bf16.msra.mxu0 0
    %412 = vmatprep.subr.bf16.mxu0 0
    %413 = vmatpush1.bf16.msra.mxu0 0
    %414 = vmatprep.subr.bf16.mxu0 0
    %415 = vmatpush1.bf16.msra.mxu0 0
    %416 = vmatprep.mubr.bf16.mxu0 0
    %417 = vmatmul.mubr.bf16.gmra.mrb[0].mxu0 %v253
    %v418 = vpop.f32.mrb[0].mxu0
    %v419 = vadd.f32 %v153, %v418
    %v420 = vpop.f32.mrb[0].mxu0
    %v421 = vadd.f32 %v157, %v420
    %v422 = vpop.f32.mrb[0].mxu0
    %v423 = vadd.f32 %v153, %v422
    %v424 = vpop.f32.mrb[0].mxu0
    %v425 = vadd.f32 %v157, %v424
    %426 = vdwg.mxu0
    %v427 = vmax.f32 %v290, 0.0
    %v428 = vmax.f32 %v292, 0.0
    %v429 = vmax.f32 %v333, 0.0
    %v430 = vmax.f32 %v335, 0.0
    %v431 = vmax.f32 %v376, 0.0
    %v432 = vmax.f32 %v378, 0.0
    %v433 = vmax.f32 %v419, 0.0
    %v434 = vmax.f32 %v421, 0.0
    %v435 = vmax.f32 %v294, 0.0
    %v436 = vmax.f32 %v296, 0.0
    %v437 = vmax.f32 %v337, 0.0
    %v438 = vmax.f32 %v339, 0.0
    %v439 = vmax.f32 %v380, 0.0
    %v440 = vmax.f32 %v382, 0.0
    %v441 = vmax.f32 %v423, 0.0
    %v442 = vmax.f32 %v425, 0.0
    %v443 = vpack.c.bf16 %v435, %v427
    %v444 = vpack.c.bf16 %v436, %v428
    %v445 = vpack.c.bf16 %v437, %v429
    %v446 = vpack.c.bf16 %v438, %v430
    %v447 = vpack.c.bf16 %v439, %v431
    %v448 = vpack.c.bf16 %v440, %v432
    %v449 = vpack.c.bf16 %v441, %v433
    %v450 = vpack.c.bf16 %v442, %v434
    %v451 = vld [vmem:[#allocation9] sm:$0xff]
    %v452 = vld [vmem:[#allocation9 + $0x8] sm:$0xff]
    %v453 = vld [vmem:[#allocation9 + $0x10] sm:$0xff]
    %v454 = vld [vmem:[#allocation9 + $0x18] sm:$0xff]
    %v455 = vld [vmem:[#allocation9 + $0x20] sm:$0xff]
    %v456 = vld [vmem:[#allocation9 + $0x28] sm:$0xff]
    %v457 = vld [vmem:[#allocation9 + $0x30] sm:$0xff]
    %v458 = vld [vmem:[#allocation9 + $0x38] sm:$0xff]
    %v459 = vld [vmem:[#allocation9 + $0x40] sm:$0xff]
    %v460 = vld [vmem:[#allocation9 + $0x48] sm:$0xff]
    %v461 = vld [vmem:[#allocation9 + $0x50] sm:$0xff]
    %v462 = vld [vmem:[#allocation9 + $0x58] sm:$0xff]
    %v463 = vld [vmem:[#allocation9 + $0x60] sm:$0xff]
    %v464 = vld [vmem:[#allocation9 + $0x68] sm:$0xff]
    %v465 = vld [vmem:[#allocation9 + $0x70] sm:$0xff]
    %v466 = vld [vmem:[#allocation9 + $0x78] sm:$0xff]
    %v467 = vld [vmem:[#allocation9 + $0x80] sm:$0xff]
    %v468 = vld [vmem:[#allocation9 + $0x88] sm:$0xff]
    %v469 = vld [vmem:[#allocation9 + $0x90] sm:$0xff]
    %v470 = vld [vmem:[#allocation9 + $0x98] sm:$0xff]
    %v471 = vld [vmem:[#allocation9 + $0xa0] sm:$0xff]
    %v472 = vld [vmem:[#allocation9 + $0xa8] sm:$0xff]
    %v473 = vld [vmem:[#allocation9 + $0xb0] sm:$0xff]
    %v474 = vld [vmem:[#allocation9 + $0xb8] sm:$0xff]
    %v475 = vld [vmem:[#allocation9 + $0xc0] sm:$0xff]
    %v476 = vld [vmem:[#allocation9 + $0xc8] sm:$0xff]
    %v477 = vld [vmem:[#allocation9 + $0xd0] sm:$0xff]
    %v478 = vld [vmem:[#allocation9 + $0xd8] sm:$0xff]
    %v479 = vld [vmem:[#allocation9 + $0xe0] sm:$0xff]
    %v480 = vld [vmem:[#allocation9 + $0xe8] sm:$0xff]
    %v481 = vld [vmem:[#allocation9 + $0xf0] sm:$0xff]
    %v482 = vld [vmem:[#allocation9 + $0xf8] sm:$0xff]
    %v483 = vld [vmem:[#allocation9 + $0x100] sm:$0xff]
    %v484 = vld [vmem:[#allocation9 + $0x108] sm:$0xff]
    %v485 = vld [vmem:[#allocation9 + $0x110] sm:$0xff]
    %v486 = vld [vmem:[#allocation9 + $0x118] sm:$0xff]
    %v487 = vld [vmem:[#allocation9 + $0x120] sm:$0xff]
    %v488 = vld [vmem:[#allocation9 + $0x128] sm:$0xff]
    %v489 = vld [vmem:[#allocation9 + $0x130] sm:$0xff]
    %v490 = vld [vmem:[#allocation9 + $0x138] sm:$0xff]
    %v491 = vld [vmem:[#allocation9 + $0x140] sm:$0xff]
    %v492 = vld [vmem:[#allocation9 + $0x148] sm:$0xff]
    %v493 = vld [vmem:[#allocation9 + $0x150] sm:$0xff]
    %v494 = vld [vmem:[#allocation9 + $0x158] sm:$0xff]
    %v495 = vld [vmem:[#allocation9 + $0x160] sm:$0xff]
    %v496 = vld [vmem:[#allocation9 + $0x168] sm:$0xff]
    %v497 = vld [vmem:[#allocation9 + $0x170] sm:$0xff]
    %v498 = vld [vmem:[#allocation9 + $0x178] sm:$0xff]
    %v499 = vld [vmem:[#allocation9 + $0x180] sm:$0xff]
    %v500 = vld [vmem:[#allocation9 + $0x188] sm:$0xff]
    %v501 = vld [vmem:[#allocation9 + $0x190] sm:$0xff]
    %v502 = vld [vmem:[#allocation9 + $0x198] sm:$0xff]
    %v503 = vld [vmem:[#allocation9 + $0x1a0] sm:$0xff]
    %v504 = vld [vmem:[#allocation9 + $0x1a8] sm:$0xff]
    %v505 = vld [vmem:[#allocation9 + $0x1b0] sm:$0xff]
    %v506 = vld [vmem:[#allocation9 + $0x1b8] sm:$0xff]
    %v507 = vld [vmem:[#allocation9 + $0x1c0] sm:$0xff]
    %v508 = vld [vmem:[#allocation9 + $0x1c8] sm:$0xff]
    %v509 = vld [vmem:[#allocation9 + $0x1d0] sm:$0xff]
    %v510 = vld [vmem:[#allocation9 + $0x1d8] sm:$0xff]
    %v511 = vld [vmem:[#allocation9 + $0x1e0] sm:$0xff]
    %v512 = vld [vmem:[#allocation9 + $0x1e8] sm:$0xff]
    %v513 = vld [vmem:[#allocation9 + $0x1f0] sm:$0xff]
    %v514 = vld [vmem:[#allocation9 + $0x1f8] sm:$0xff]
    %v515 = vld [vmem:[#allocation9 + $0x200] sm:$0xff]
    %v516 = vld [vmem:[#allocation9 + $0x208] sm:$0xff]
    %v517 = vld [vmem:[#allocation9 + $0x210] sm:$0xff]
    %v518 = vld [vmem:[#allocation9 + $0x218] sm:$0xff]
    %v519 = vld [vmem:[#allocation9 + $0x220] sm:$0xff]
    %v520 = vld [vmem:[#allocation9 + $0x228] sm:$0xff]
    %v521 = vld [vmem:[#allocation9 + $0x230] sm:$0xff]
    %v522 = vld [vmem:[#allocation9 + $0x238] sm:$0xff]
    %v523 = vld [vmem:[#allocation9 + $0x240] sm:$0xff]
    %v524 = vld [vmem:[#allocation9 + $0x248] sm:$0xff]
    %v525 = vld [vmem:[#allocation9 + $0x250] sm:$0xff]
    %v526 = vld [vmem:[#allocation9 + $0x258] sm:$0xff]
    %v527 = vld [vmem:[#allocation9 + $0x260] sm:$0xff]
    %v528 = vld [vmem:[#allocation9 + $0x268] sm:$0xff]
    %v529 = vld [vmem:[#allocation9 + $0x270] sm:$0xff]
    %v530 = vld [vmem:[#allocation9 + $0x278] sm:$0xff]
    %v531 = vld [vmem:[#allocation9 + $0x280] sm:$0xff]
    %v532 = vld [vmem:[#allocation9 + $0x288] sm:$0xff]
    %v533 = vld [vmem:[#allocation9 + $0x290] sm:$0xff]
    %v534 = vld [vmem:[#allocation9 + $0x298] sm:$0xff]
    %v535 = vld [vmem:[#allocation9 + $0x2a0] sm:$0xff]
    %v536 = vld [vmem:[#allocation9 + $0x2a8] sm:$0xff]
    %v537 = vld [vmem:[#allocation9 + $0x2b0] sm:$0xff]
    %v538 = vld [vmem:[#allocation9 + $0x2b8] sm:$0xff]
    %v539 = vld [vmem:[#allocation9 + $0x2c0] sm:$0xff]
    %v540 = vld [vmem:[#allocation9 + $0x2c8] sm:$0xff]
    %v541 = vld [vmem:[#allocation9 + $0x2d0] sm:$0xff]
    %v542 = vld [vmem:[#allocation9 + $0x2d8] sm:$0xff]
    %v543 = vld [vmem:[#allocation9 + $0x2e0] sm:$0xff]
    %v544 = vld [vmem:[#allocation9 + $0x2e8] sm:$0xff]
    %v545 = vld [vmem:[#allocation9 + $0x2f0] sm:$0xff]
    %v546 = vld [vmem:[#allocation9 + $0x2f8] sm:$0xff]
    %v547 = vld [vmem:[#allocation9 + $0x300] sm:$0xff]
    %v548 = vld [vmem:[#allocation9 + $0x308] sm:$0xff]
    %v549 = vld [vmem:[#allocation9 + $0x310] sm:$0xff]
    %v550 = vld [vmem:[#allocation9 + $0x318] sm:$0xff]
    %v551 = vld [vmem:[#allocation9 + $0x320] sm:$0xff]
    %v552 = vld [vmem:[#allocation9 + $0x328] sm:$0xff]
    %v553 = vld [vmem:[#allocation9 + $0x330] sm:$0xff]
    %v554 = vld [vmem:[#allocation9 + $0x338] sm:$0xff]
    %v555 = vld [vmem:[#allocation9 + $0x340] sm:$0xff]
    %v556 = vld [vmem:[#allocation9 + $0x348] sm:$0xff]
    %v557 = vld [vmem:[#allocation9 + $0x350] sm:$0xff]
    %v558 = vld [vmem:[#allocation9 + $0x358] sm:$0xff]
    %v559 = vld [vmem:[#allocation9 + $0x360] sm:$0xff]
    %v560 = vld [vmem:[#allocation9 + $0x368] sm:$0xff]
    %v561 = vld [vmem:[#allocation9 + $0x370] sm:$0xff]
    %v562 = vld [vmem:[#allocation9 + $0x378] sm:$0xff]
    %v563 = vld [vmem:[#allocation9 + $0x380] sm:$0xff]
    %v564 = vld [vmem:[#allocation9 + $0x388] sm:$0xff]
    %v565 = vld [vmem:[#allocation9 + $0x390] sm:$0xff]
    %v566 = vld [vmem:[#allocation9 + $0x398] sm:$0xff]
    %v567 = vld [vmem:[#allocation9 + $0x3a0] sm:$0xff]
    %v568 = vld [vmem:[#allocation9 + $0x3a8] sm:$0xff]
    %v569 = vld [vmem:[#allocation9 + $0x3b0] sm:$0xff]
    %v570 = vld [vmem:[#allocation9 + $0x3b8] sm:$0xff]
    %v571 = vld [vmem:[#allocation9 + $0x3c0] sm:$0xff]
    %v572 = vld [vmem:[#allocation9 + $0x3c8] sm:$0xff]
    %v573 = vld [vmem:[#allocation9 + $0x3d0] sm:$0xff]
    %v574 = vld [vmem:[#allocation9 + $0x3d8] sm:$0xff]
    %v575 = vld [vmem:[#allocation9 + $0x3e0] sm:$0xff]
    %v576 = vld [vmem:[#allocation9 + $0x3e8] sm:$0xff]
    %v577 = vld [vmem:[#allocation9 + $0x3f0] sm:$0xff]
    %v578 = vld [vmem:[#allocation9 + $0x3f8] sm:$0xff]
    %v579 = vld [vmem:[#allocation9 + $0x400] sm:$0xff]
    %v580 = vld [vmem:[#allocation9 + $0x408] sm:$0xff]
    %v581 = vld [vmem:[#allocation9 + $0x410] sm:$0xff]
    %v582 = vld [vmem:[#allocation9 + $0x418] sm:$0xff]
    %v583 = vld [vmem:[#allocation9 + $0x420] sm:$0xff]
    %v584 = vld [vmem:[#allocation9 + $0x428] sm:$0xff]
    %v585 = vld [vmem:[#allocation9 + $0x430] sm:$0xff]
    %v586 = vld [vmem:[#allocation9 + $0x438] sm:$0xff]
    %v587 = vld [vmem:[#allocation9 + $0x440] sm:$0xff]
    %v588 = vld [vmem:[#allocation9 + $0x448] sm:$0xff]
    %v589 = vld [vmem:[#allocation9 + $0x450] sm:$0xff]
    %v590 = vld [vmem:[#allocation9 + $0x458] sm:$0xff]
    %v591 = vld [vmem:[#allocation9 + $0x460] sm:$0xff]
    %v592 = vld [vmem:[#allocation9 + $0x468] sm:$0xff]
    %v593 = vld [vmem:[#allocation9 + $0x470] sm:$0xff]
    %v594 = vld [vmem:[#allocation9 + $0x478] sm:$0xff]
    %v595 = vld [vmem:[#allocation9 + $0x480] sm:$0xff]
    %v596 = vld [vmem:[#allocation9 + $0x488] sm:$0xff]
    %v597 = vld [vmem:[#allocation9 + $0x490] sm:$0xff]
    %v598 = vld [vmem:[#allocation9 + $0x498] sm:$0xff]
    %v599 = vld [vmem:[#allocation9 + $0x4a0] sm:$0xff]
    %v600 = vld [vmem:[#allocation9 + $0x4a8] sm:$0xff]
    %v601 = vld [vmem:[#allocation9 + $0x4b0] sm:$0xff]
    %v602 = vld [vmem:[#allocation9 + $0x4b8] sm:$0xff]
    %v603 = vld [vmem:[#allocation9 + $0x4c0] sm:$0xff]
    %v604 = vld [vmem:[#allocation9 + $0x4c8] sm:$0xff]
    %v605 = vld [vmem:[#allocation9 + $0x4d0] sm:$0xff]
    %v606 = vld [vmem:[#allocation9 + $0x4d8] sm:$0xff]
    %v607 = vld [vmem:[#allocation9 + $0x4e0] sm:$0xff]
    %v608 = vld [vmem:[#allocation9 + $0x4e8] sm:$0xff]
    %v609 = vld [vmem:[#allocation9 + $0x4f0] sm:$0xff]
    %v610 = vld [vmem:[#allocation9 + $0x4f8] sm:$0xff]
    %v611 = vld [vmem:[#allocation9 + $0x500] sm:$0xff]
    %v612 = vld [vmem:[#allocation9 + $0x508] sm:$0xff]
    %v613 = vld [vmem:[#allocation9 + $0x510] sm:$0xff]
    %v614 = vld [vmem:[#allocation9 + $0x518] sm:$0xff]
    %v615 = vld [vmem:[#allocation9 + $0x520] sm:$0xff]
    %v616 = vld [vmem:[#allocation9 + $0x528] sm:$0xff]
    %v617 = vld [vmem:[#allocation9 + $0x530] sm:$0xff]
    %v618 = vld [vmem:[#allocation9 + $0x538] sm:$0xff]
    %v619 = vld [vmem:[#allocation9 + $0x540] sm:$0xff]
    %v620 = vld [vmem:[#allocation9 + $0x548] sm:$0xff]
    %v621 = vld [vmem:[#allocation9 + $0x550] sm:$0xff]
    %v622 = vld [vmem:[#allocation9 + $0x558] sm:$0xff]
    %v623 = vld [vmem:[#allocation9 + $0x560] sm:$0xff]
    %v624 = vld [vmem:[#allocation9 + $0x568] sm:$0xff]
    %v625 = vld [vmem:[#allocation9 + $0x570] sm:$0xff]
    %v626 = vld [vmem:[#allocation9 + $0x578] sm:$0xff]
    %v627 = vld [vmem:[#allocation9 + $0x580] sm:$0xff]
    %v628 = vld [vmem:[#allocation9 + $0x588] sm:$0xff]
    %v629 = vld [vmem:[#allocation9 + $0x590] sm:$0xff]
    %v630 = vld [vmem:[#allocation9 + $0x598] sm:$0xff]
    %v631 = vld [vmem:[#allocation9 + $0x5a0] sm:$0xff]
    %v632 = vld [vmem:[#allocation9 + $0x5a8] sm:$0xff]
    %v633 = vld [vmem:[#allocation9 + $0x5b0] sm:$0xff]
    %v634 = vld [vmem:[#allocation9 + $0x5b8] sm:$0xff]
    %v635 = vld [vmem:[#allocation9 + $0x5c0] sm:$0xff]
    %v636 = vld [vmem:[#allocation9 + $0x5c8] sm:$0xff]
    %v637 = vld [vmem:[#allocation9 + $0x5d0] sm:$0xff]
    %v638 = vld [vmem:[#allocation9 + $0x5d8] sm:$0xff]
    %v639 = vld [vmem:[#allocation9 + $0x5e0] sm:$0xff]
    %v640 = vld [vmem:[#allocation9 + $0x5e8] sm:$0xff]
    %v641 = vld [vmem:[#allocation9 + $0x5f0] sm:$0xff]
    %v642 = vld [vmem:[#allocation9 + $0x5f8] sm:$0xff]
    %v643 = vld [vmem:[#allocation9 + $0x600] sm:$0xff]
    %v644 = vld [vmem:[#allocation9 + $0x608] sm:$0xff]
    %v645 = vld [vmem:[#allocation9 + $0x610] sm:$0xff]
    %v646 = vld [vmem:[#allocation9 + $0x618] sm:$0xff]
    %v647 = vld [vmem:[#allocation9 + $0x620] sm:$0xff]
    %v648 = vld [vmem:[#allocation9 + $0x628] sm:$0xff]
    %v649 = vld [vmem:[#allocation9 + $0x630] sm:$0xff]
    %v650 = vld [vmem:[#allocation9 + $0x638] sm:$0xff]
    %v651 = vld [vmem:[#allocation9 + $0x640] sm:$0xff]
    %v652 = vld [vmem:[#allocation9 + $0x648] sm:$0xff]
    %v653 = vld [vmem:[#allocation9 + $0x650] sm:$0xff]
    %v654 = vld [vmem:[#allocation9 + $0x658] sm:$0xff]
    %v655 = vld [vmem:[#allocation9 + $0x660] sm:$0xff]
    %v656 = vld [vmem:[#allocation9 + $0x668] sm:$0xff]
    %v657 = vld [vmem:[#allocation9 + $0x670] sm:$0xff]
    %v658 = vld [vmem:[#allocation9 + $0x678] sm:$0xff]
    %v659 = vld [vmem:[#allocation9 + $0x680] sm:$0xff]
    %v660 = vld [vmem:[#allocation9 + $0x688] sm:$0xff]
    %v661 = vld [vmem:[#allocation9 + $0x690] sm:$0xff]
    %v662 = vld [vmem:[#allocation9 + $0x698] sm:$0xff]
    %v663 = vld [vmem:[#allocation9 + $0x6a0] sm:$0xff]
    %v664 = vld [vmem:[#allocation9 + $0x6a8] sm:$0xff]
    %v665 = vld [vmem:[#allocation9 + $0x6b0] sm:$0xff]
    %v666 = vld [vmem:[#allocation9 + $0x6b8] sm:$0xff]
    %v667 = vld [vmem:[#allocation9 + $0x6c0] sm:$0xff]
    %v668 = vld [vmem:[#allocation9 + $0x6c8] sm:$0xff]
    %v669 = vld [vmem:[#allocation9 + $0x6d0] sm:$0xff]
    %v670 = vld [vmem:[#allocation9 + $0x6d8] sm:$0xff]
    %v671 = vld [vmem:[#allocation9 + $0x6e0] sm:$0xff]
    %v672 = vld [vmem:[#allocation9 + $0x6e8] sm:$0xff]
    %v673 = vld [vmem:[#allocation9 + $0x6f0] sm:$0xff]
    %v674 = vld [vmem:[#allocation9 + $0x6f8] sm:$0xff]
    %v675 = vld [vmem:[#allocation9 + $0x700] sm:$0xff]
    %v676 = vld [vmem:[#allocation9 + $0x708] sm:$0xff]
    %v677 = vld [vmem:[#allocation9 + $0x710] sm:$0xff]
    %v678 = vld [vmem:[#allocation9 + $0x718] sm:$0xff]
    %v679 = vld [vmem:[#allocation9 + $0x720] sm:$0xff]
    %v680 = vld [vmem:[#allocation9 + $0x728] sm:$0xff]
    %v681 = vld [vmem:[#allocation9 + $0x730] sm:$0xff]
    %v682 = vld [vmem:[#allocation9 + $0x738] sm:$0xff]
    %v683 = vld [vmem:[#allocation9 + $0x740] sm:$0xff]
    %v684 = vld [vmem:[#allocation9 + $0x748] sm:$0xff]
    %v685 = vld [vmem:[#allocation9 + $0x750] sm:$0xff]
    %v686 = vld [vmem:[#allocation9 + $0x758] sm:$0xff]
    %v687 = vld [vmem:[#allocation9 + $0x760] sm:$0xff]
    %v688 = vld [vmem:[#allocation9 + $0x768] sm:$0xff]
    %v689 = vld [vmem:[#allocation9 + $0x770] sm:$0xff]
    %v690 = vld [vmem:[#allocation9 + $0x778] sm:$0xff]
    %v691 = vld [vmem:[#allocation9 + $0x780] sm:$0xff]
    %v692 = vld [vmem:[#allocation9 + $0x788] sm:$0xff]
    %v693 = vld [vmem:[#allocation9 + $0x790] sm:$0xff]
    %v694 = vld [vmem:[#allocation9 + $0x798] sm:$0xff]
    %v695 = vld [vmem:[#allocation9 + $0x7a0] sm:$0xff]
    %v696 = vld [vmem:[#allocation9 + $0x7a8] sm:$0xff]
    %v697 = vld [vmem:[#allocation9 + $0x7b0] sm:$0xff]
    %v698 = vld [vmem:[#allocation9 + $0x7b8] sm:$0xff]
    %v699 = vld [vmem:[#allocation9 + $0x7c0] sm:$0xff]
    %v700 = vld [vmem:[#allocation9 + $0x7c8] sm:$0xff]
    %v701 = vld [vmem:[#allocation9 + $0x7d0] sm:$0xff]
    %v702 = vld [vmem:[#allocation9 + $0x7d8] sm:$0xff]
    %v703 = vld [vmem:[#allocation9 + $0x7e0] sm:$0xff]
    %v704 = vld [vmem:[#allocation9 + $0x7e8] sm:$0xff]
    %v705 = vld [vmem:[#allocation9 + $0x7f0] sm:$0xff]
    %v706 = vld [vmem:[#allocation9 + $0x7f8] sm:$0xff]
    %v707 = vld [vmem:[#allocation9 + $0x800] sm:$0xff]
    %v708 = vld [vmem:[#allocation9 + $0x808] sm:$0xff]
    %v709 = vld [vmem:[#allocation9 + $0x810] sm:$0xff]
    %v710 = vld [vmem:[#allocation9 + $0x818] sm:$0xff]
    %v711 = vld [vmem:[#allocation9 + $0x820] sm:$0xff]
    %v712 = vld [vmem:[#allocation9 + $0x828] sm:$0xff]
    %v713 = vld [vmem:[#allocation9 + $0x830] sm:$0xff]
    %v714 = vld [vmem:[#allocation9 + $0x838] sm:$0xff]
    %v715 = vld [vmem:[#allocation9 + $0x840] sm:$0xff]
    %v716 = vld [vmem:[#allocation9 + $0x848] sm:$0xff]
    %v717 = vld [vmem:[#allocation9 + $0x850] sm:$0xff]
    %v718 = vld [vmem:[#allocation9 + $0x858] sm:$0xff]
    %v719 = vld [vmem:[#allocation9 + $0x860] sm:$0xff]
    %v720 = vld [vmem:[#allocation9 + $0x868] sm:$0xff]
    %v721 = vld [vmem:[#allocation9 + $0x870] sm:$0xff]
    %v722 = vld [vmem:[#allocation9 + $0x878] sm:$0xff]
    %v723 = vld [vmem:[#allocation9 + $0x880] sm:$0xff]
    %v724 = vld [vmem:[#allocation9 + $0x888] sm:$0xff]
    %v725 = vld [vmem:[#allocation9 + $0x890] sm:$0xff]
    %v726 = vld [vmem:[#allocation9 + $0x898] sm:$0xff]
    %v727 = vld [vmem:[#allocation9 + $0x8a0] sm:$0xff]
    %v728 = vld [vmem:[#allocation9 + $0x8a8] sm:$0xff]
    %v729 = vld [vmem:[#allocation9 + $0x8b0] sm:$0xff]
    %v730 = vld [vmem:[#allocation9 + $0x8b8] sm:$0xff]
    %v731 = vld [vmem:[#allocation9 + $0x8c0] sm:$0xff]
    %v732 = vld [vmem:[#allocation9 + $0x8c8] sm:$0xff]
    %v733 = vld [vmem:[#allocation9 + $0x8d0] sm:$0xff]
    %v734 = vld [vmem:[#allocation9 + $0x8d8] sm:$0xff]
    %v735 = vld [vmem:[#allocation9 + $0x8e0] sm:$0xff]
    %v736 = vld [vmem:[#allocation9 + $0x8e8] sm:$0xff]
    %v737 = vld [vmem:[#allocation9 + $0x8f0] sm:$0xff]
    %v738 = vld [vmem:[#allocation9 + $0x8f8] sm:$0xff]
    %v739 = vld [vmem:[#allocation9 + $0x900] sm:$0xff]
    %v740 = vld [vmem:[#allocation9 + $0x908] sm:$0xff]
    %v741 = vld [vmem:[#allocation9 + $0x910] sm:$0xff]
    %v742 = vld [vmem:[#allocation9 + $0x918] sm:$0xff]
    %v743 = vld [vmem:[#allocation9 + $0x920] sm:$0xff]
    %v744 = vld [vmem:[#allocation9 + $0x928] sm:$0xff]
    %v745 = vld [vmem:[#allocation9 + $0x930] sm:$0xff]
    %v746 = vld [vmem:[#allocation9 + $0x938] sm:$0xff]
    %v747 = vld [vmem:[#allocation9 + $0x940] sm:$0xff]
    %v748 = vld [vmem:[#allocation9 + $0x948] sm:$0xff]
    %v749 = vld [vmem:[#allocation9 + $0x950] sm:$0xff]
    %v750 = vld [vmem:[#allocation9 + $0x958] sm:$0xff]
    %v751 = vld [vmem:[#allocation9 + $0x960] sm:$0xff]
    %v752 = vld [vmem:[#allocation9 + $0x968] sm:$0xff]
    %v753 = vld [vmem:[#allocation9 + $0x970] sm:$0xff]
    %v754 = vld [vmem:[#allocation9 + $0x978] sm:$0xff]
    %v755 = vld [vmem:[#allocation9 + $0x980] sm:$0xff]
    %v756 = vld [vmem:[#allocation9 + $0x988] sm:$0xff]
    %v757 = vld [vmem:[#allocation9 + $0x990] sm:$0xff]
    %v758 = vld [vmem:[#allocation9 + $0x998] sm:$0xff]
    %v759 = vld [vmem:[#allocation9 + $0x9a0] sm:$0xff]
    %v760 = vld [vmem:[#allocation9 + $0x9a8] sm:$0xff]
    %v761 = vld [vmem:[#allocation9 + $0x9b0] sm:$0xff]
    %v762 = vld [vmem:[#allocation9 + $0x9b8] sm:$0xff]
    %v763 = vld [vmem:[#allocation9 + $0x9c0] sm:$0xff]
    %v764 = vld [vmem:[#allocation9 + $0x9c8] sm:$0xff]
    %v765 = vld [vmem:[#allocation9 + $0x9d0] sm:$0xff]
    %v766 = vld [vmem:[#allocation9 + $0x9d8] sm:$0xff]
    %v767 = vld [vmem:[#allocation9 + $0x9e0] sm:$0xff]
    %v768 = vld [vmem:[#allocation9 + $0x9e8] sm:$0xff]
    %v769 = vld [vmem:[#allocation9 + $0x9f0] sm:$0xff]
    %v770 = vld [vmem:[#allocation9 + $0x9f8] sm:$0xff]
    %v771 = vld [vmem:[#allocation9 + $0xa00] sm:$0xff]
    %v772 = vld [vmem:[#allocation9 + $0xa08] sm:$0xff]
    %v773 = vld [vmem:[#allocation9 + $0xa10] sm:$0xff]
    %v774 = vld [vmem:[#allocation9 + $0xa18] sm:$0xff]
    %v775 = vld [vmem:[#allocation9 + $0xa20] sm:$0xff]
    %v776 = vld [vmem:[#allocation9 + $0xa28] sm:$0xff]
    %v777 = vld [vmem:[#allocation9 + $0xa30] sm:$0xff]
    %v778 = vld [vmem:[#allocation9 + $0xa38] sm:$0xff]
    %v779 = vld [vmem:[#allocation9 + $0xa40] sm:$0xff]
    %v780 = vld [vmem:[#allocation9 + $0xa48] sm:$0xff]
    %v781 = vld [vmem:[#allocation9 + $0xa50] sm:$0xff]
    %v782 = vld [vmem:[#allocation9 + $0xa58] sm:$0xff]
    %v783 = vld [vmem:[#allocation9 + $0xa60] sm:$0xff]
    %v784 = vld [vmem:[#allocation9 + $0xa68] sm:$0xff]
    %v785 = vld [vmem:[#allocation9 + $0xa70] sm:$0xff]
    %v786 = vld [vmem:[#allocation9 + $0xa78] sm:$0xff]
    %v787 = vld [vmem:[#allocation9 + $0xa80] sm:$0xff]
    %v788 = vld [vmem:[#allocation9 + $0xa88] sm:$0xff]
    %v789 = vld [vmem:[#allocation9 + $0xa90] sm:$0xff]
    %v790 = vld [vmem:[#allocation9 + $0xa98] sm:$0xff]
    %v791 = vld [vmem:[#allocation9 + $0xaa0] sm:$0xff]
    %v792 = vld [vmem:[#allocation9 + $0xaa8] sm:$0xff]
    %v793 = vld [vmem:[#allocation9 + $0xab0] sm:$0xff]
    %v794 = vld [vmem:[#allocation9 + $0xab8] sm:$0xff]
    %v795 = vld [vmem:[#allocation9 + $0xac0] sm:$0xff]
    %v796 = vld [vmem:[#allocation9 + $0xac8] sm:$0xff]
    %v797 = vld [vmem:[#allocation9 + $0xad0] sm:$0xff]
    %v798 = vld [vmem:[#allocation9 + $0xad8] sm:$0xff]
    %v799 = vld [vmem:[#allocation9 + $0xae0] sm:$0xff]
    %v800 = vld [vmem:[#allocation9 + $0xae8] sm:$0xff]
    %v801 = vld [vmem:[#allocation9 + $0xaf0] sm:$0xff]
    %v802 = vld [vmem:[#allocation9 + $0xaf8] sm:$0xff]
    %v803 = vld [vmem:[#allocation9 + $0xb00] sm:$0xff]
    %v804 = vld [vmem:[#allocation9 + $0xb08] sm:$0xff]
    %v805 = vld [vmem:[#allocation9 + $0xb10] sm:$0xff]
    %v806 = vld [vmem:[#allocation9 + $0xb18] sm:$0xff]
    %v807 = vld [vmem:[#allocation9 + $0xb20] sm:$0xff]
    %v808 = vld [vmem:[#allocation9 + $0xb28] sm:$0xff]
    %v809 = vld [vmem:[#allocation9 + $0xb30] sm:$0xff]
    %v810 = vld [vmem:[#allocation9 + $0xb38] sm:$0xff]
    %v811 = vld [vmem:[#allocation9 + $0xb40] sm:$0xff]
    %v812 = vld [vmem:[#allocation9 + $0xb48] sm:$0xff]
    %v813 = vld [vmem:[#allocation9 + $0xb50] sm:$0xff]
    %v814 = vld [vmem:[#allocation9 + $0xb58] sm:$0xff]
    %v815 = vld [vmem:[#allocation9 + $0xb60] sm:$0xff]
    %v816 = vld [vmem:[#allocation9 + $0xb68] sm:$0xff]
    %v817 = vld [vmem:[#allocation9 + $0xb70] sm:$0xff]
    %v818 = vld [vmem:[#allocation9 + $0xb78] sm:$0xff]
    %v819 = vld [vmem:[#allocation9 + $0xb80] sm:$0xff]
    %v820 = vld [vmem:[#allocation9 + $0xb88] sm:$0xff]
    %v821 = vld [vmem:[#allocation9 + $0xb90] sm:$0xff]
    %v822 = vld [vmem:[#allocation9 + $0xb98] sm:$0xff]
    %v823 = vld [vmem:[#allocation9 + $0xba0] sm:$0xff]
    %v824 = vld [vmem:[#allocation9 + $0xba8] sm:$0xff]
    %v825 = vld [vmem:[#allocation9 + $0xbb0] sm:$0xff]
    %v826 = vld [vmem:[#allocation9 + $0xbb8] sm:$0xff]
    %v827 = vld [vmem:[#allocation9 + $0xbc0] sm:$0xff]
    %v828 = vld [vmem:[#allocation9 + $0xbc8] sm:$0xff]
    %v829 = vld [vmem:[#allocation9 + $0xbd0] sm:$0xff]
    %v830 = vld [vmem:[#allocation9 + $0xbd8] sm:$0xff]
    %v831 = vld [vmem:[#allocation9 + $0xbe0] sm:$0xff]
    %v832 = vld [vmem:[#allocation9 + $0xbe8] sm:$0xff]
    %v833 = vld [vmem:[#allocation9 + $0xbf0] sm:$0xff]
    %v834 = vld [vmem:[#allocation9 + $0xbf8] sm:$0xff]
    %v835 = vld [vmem:[#allocation9 + $0xc00] sm:$0xff]
    %v836 = vld [vmem:[#allocation9 + $0xc08] sm:$0xff]
    %v837 = vld [vmem:[#allocation9 + $0xc10] sm:$0xff]
    %v838 = vld [vmem:[#allocation9 + $0xc18] sm:$0xff]
    %v839 = vld [vmem:[#allocation9 + $0xc20] sm:$0xff]
    %v840 = vld [vmem:[#allocation9 + $0xc28] sm:$0xff]
    %v841 = vld [vmem:[#allocation9 + $0xc30] sm:$0xff]
    %v842 = vld [vmem:[#allocation9 + $0xc38] sm:$0xff]
    %v843 = vld [vmem:[#allocation9 + $0xc40] sm:$0xff]
    %v844 = vld [vmem:[#allocation9 + $0xc48] sm:$0xff]
    %v845 = vld [vmem:[#allocation9 + $0xc50] sm:$0xff]
    %v846 = vld [vmem:[#allocation9 + $0xc58] sm:$0xff]
    %v847 = vld [vmem:[#allocation9 + $0xc60] sm:$0xff]
    %v848 = vld [vmem:[#allocation9 + $0xc68] sm:$0xff]
    %v849 = vld [vmem:[#allocation9 + $0xc70] sm:$0xff]
    %v850 = vld [vmem:[#allocation9 + $0xc78] sm:$0xff]
    %v851 = vld [vmem:[#allocation9 + $0xc80] sm:$0xff]
    %v852 = vld [vmem:[#allocation9 + $0xc88] sm:$0xff]
    %v853 = vld [vmem:[#allocation9 + $0xc90] sm:$0xff]
    %v854 = vld [vmem:[#allocation9 + $0xc98] sm:$0xff]
    %v855 = vld [vmem:[#allocation9 + $0xca0] sm:$0xff]
    %v856 = vld [vmem:[#allocation9 + $0xca8] sm:$0xff]
    %v857 = vld [vmem:[#allocation9 + $0xcb0] sm:$0xff]
    %v858 = vld [vmem:[#allocation9 + $0xcb8] sm:$0xff]
    %v859 = vld [vmem:[#allocation9 + $0xcc0] sm:$0xff]
    %v860 = vld [vmem:[#allocation9 + $0xcc8] sm:$0xff]
    %v861 = vld [vmem:[#allocation9 + $0xcd0] sm:$0xff]
    %v862 = vld [vmem:[#allocation9 + $0xcd8] sm:$0xff]
    %v863 = vld [vmem:[#allocation9 + $0xce0] sm:$0xff]
    %v864 = vld [vmem:[#allocation9 + $0xce8] sm:$0xff]
    %v865 = vld [vmem:[#allocation9 + $0xcf0] sm:$0xff]
    %v866 = vld [vmem:[#allocation9 + $0xcf8] sm:$0xff]
    %v867 = vld [vmem:[#allocation9 + $0xd00] sm:$0xff]
    %v868 = vld [vmem:[#allocation9 + $0xd08] sm:$0xff]
    %v869 = vld [vmem:[#allocation9 + $0xd10] sm:$0xff]
    %v870 = vld [vmem:[#allocation9 + $0xd18] sm:$0xff]
    %v871 = vld [vmem:[#allocation9 + $0xd20] sm:$0xff]
    %v872 = vld [vmem:[#allocation9 + $0xd28] sm:$0xff]
    %v873 = vld [vmem:[#allocation9 + $0xd30] sm:$0xff]
    %v874 = vld [vmem:[#allocation9 + $0xd38] sm:$0xff]
    %v875 = vld [vmem:[#allocation9 + $0xd40] sm:$0xff]
    %v876 = vld [vmem:[#allocation9 + $0xd48] sm:$0xff]
    %v877 = vld [vmem:[#allocation9 + $0xd50] sm:$0xff]
    %v878 = vld [vmem:[#allocation9 + $0xd58] sm:$0xff]
    %v879 = vld [vmem:[#allocation9 + $0xd60] sm:$0xff]
    %v880 = vld [vmem:[#allocation9 + $0xd68] sm:$0xff]
    %v881 = vld [vmem:[#allocation9 + $0xd70] sm:$0xff]
    %v882 = vld [vmem:[#allocation9 + $0xd78] sm:$0xff]
    %v883 = vld [vmem:[#allocation9 + $0xd80] sm:$0xff]
    %v884 = vld [vmem:[#allocation9 + $0xd88] sm:$0xff]
    %v885 = vld [vmem:[#allocation9 + $0xd90] sm:$0xff]
    %v886 = vld [vmem:[#allocation9 + $0xd98] sm:$0xff]
    %v887 = vld [vmem:[#allocation9 + $0xda0] sm:$0xff]
    %v888 = vld [vmem:[#allocation9 + $0xda8] sm:$0xff]
    %v889 = vld [vmem:[#allocation9 + $0xdb0] sm:$0xff]
    %v890 = vld [vmem:[#allocation9 + $0xdb8] sm:$0xff]
    %v891 = vld [vmem:[#allocation9 + $0xdc0] sm:$0xff]
    %v892 = vld [vmem:[#allocation9 + $0xdc8] sm:$0xff]
    %v893 = vld [vmem:[#allocation9 + $0xdd0] sm:$0xff]
    %v894 = vld [vmem:[#allocation9 + $0xdd8] sm:$0xff]
    %v895 = vld [vmem:[#allocation9 + $0xde0] sm:$0xff]
    %v896 = vld [vmem:[#allocation9 + $0xde8] sm:$0xff]
    %v897 = vld [vmem:[#allocation9 + $0xdf0] sm:$0xff]
    %v898 = vld [vmem:[#allocation9 + $0xdf8] sm:$0xff]
    %v899 = vld [vmem:[#allocation9 + $0xe00] sm:$0xff]
    %v900 = vld [vmem:[#allocation9 + $0xe08] sm:$0xff]
    %v901 = vld [vmem:[#allocation9 + $0xe10] sm:$0xff]
    %v902 = vld [vmem:[#allocation9 + $0xe18] sm:$0xff]
    %v903 = vld [vmem:[#allocation9 + $0xe20] sm:$0xff]
    %v904 = vld [vmem:[#allocation9 + $0xe28] sm:$0xff]
    %v905 = vld [vmem:[#allocation9 + $0xe30] sm:$0xff]
    %v906 = vld [vmem:[#allocation9 + $0xe38] sm:$0xff]
    %v907 = vld [vmem:[#allocation9 + $0xe40] sm:$0xff]
    %v908 = vld [vmem:[#allocation9 + $0xe48] sm:$0xff]
    %v909 = vld [vmem:[#allocation9 + $0xe50] sm:$0xff]
    %v910 = vld [vmem:[#allocation9 + $0xe58] sm:$0xff]
    %v911 = vld [vmem:[#allocation9 + $0xe60] sm:$0xff]
    %v912 = vld [vmem:[#allocation9 + $0xe68] sm:$0xff]
    %v913 = vld [vmem:[#allocation9 + $0xe70] sm:$0xff]
    %v914 = vld [vmem:[#allocation9 + $0xe78] sm:$0xff]
    %v915 = vld [vmem:[#allocation9 + $0xe80] sm:$0xff]
    %v916 = vld [vmem:[#allocation9 + $0xe88] sm:$0xff]
    %v917 = vld [vmem:[#allocation9 + $0xe90] sm:$0xff]
    %v918 = vld [vmem:[#allocation9 + $0xe98] sm:$0xff]
    %v919 = vld [vmem:[#allocation9 + $0xea0] sm:$0xff]
    %v920 = vld [vmem:[#allocation9 + $0xea8] sm:$0xff]
    %v921 = vld [vmem:[#allocation9 + $0xeb0] sm:$0xff]
    %v922 = vld [vmem:[#allocation9 + $0xeb8] sm:$0xff]
    %v923 = vld [vmem:[#allocation9 + $0xec0] sm:$0xff]
    %v924 = vld [vmem:[#allocation9 + $0xec8] sm:$0xff]
    %v925 = vld [vmem:[#allocation9 + $0xed0] sm:$0xff]
    %v926 = vld [vmem:[#allocation9 + $0xed8] sm:$0xff]
    %v927 = vld [vmem:[#allocation9 + $0xee0] sm:$0xff]
    %v928 = vld [vmem:[#allocation9 + $0xee8] sm:$0xff]
    %v929 = vld [vmem:[#allocation9 + $0xef0] sm:$0xff]
    %v930 = vld [vmem:[#allocation9 + $0xef8] sm:$0xff]
    %v931 = vld [vmem:[#allocation9 + $0xf00] sm:$0xff]
    %v932 = vld [vmem:[#allocation9 + $0xf08] sm:$0xff]
    %v933 = vld [vmem:[#allocation9 + $0xf10] sm:$0xff]
    %v934 = vld [vmem:[#allocation9 + $0xf18] sm:$0xff]
    %v935 = vld [vmem:[#allocation9 + $0xf20] sm:$0xff]
    %v936 = vld [vmem:[#allocation9 + $0xf28] sm:$0xff]
    %v937 = vld [vmem:[#allocation9 + $0xf30] sm:$0xff]
    %v938 = vld [vmem:[#allocation9 + $0xf38] sm:$0xff]
    %v939 = vld [vmem:[#allocation9 + $0xf40] sm:$0xff]
    %v940 = vld [vmem:[#allocation9 + $0xf48] sm:$0xff]
    %v941 = vld [vmem:[#allocation9 + $0xf50] sm:$0xff]
    %v942 = vld [vmem:[#allocation9 + $0xf58] sm:$0xff]
    %v943 = vld [vmem:[#allocation9 + $0xf60] sm:$0xff]
    %v944 = vld [vmem:[#allocation9 + $0xf68] sm:$0xff]
    %v945 = vld [vmem:[#allocation9 + $0xf70] sm:$0xff]
    %v946 = vld [vmem:[#allocation9 + $0xf78] sm:$0xff]
    %v947 = vld [vmem:[#allocation9 + $0xf80] sm:$0xff]
    %v948 = vld [vmem:[#allocation9 + $0xf88] sm:$0xff]
    %v949 = vld [vmem:[#allocation9 + $0xf90] sm:$0xff]
    %v950 = vld [vmem:[#allocation9 + $0xf98] sm:$0xff]
    %v951 = vld [vmem:[#allocation9 + $0xfa0] sm:$0xff]
    %v952 = vld [vmem:[#allocation9 + $0xfa8] sm:$0xff]
    %v953 = vld [vmem:[#allocation9 + $0xfb0] sm:$0xff]
    %v954 = vld [vmem:[#allocation9 + $0xfb8] sm:$0xff]
    %v955 = vld [vmem:[#allocation9 + $0xfc0] sm:$0xff]
    %v956 = vld [vmem:[#allocation9 + $0xfc8] sm:$0xff]
    %v957 = vld [vmem:[#allocation9 + $0xfd0] sm:$0xff]
    %v958 = vld [vmem:[#allocation9 + $0xfd8] sm:$0xff]
    %v959 = vld [vmem:[#allocation9 + $0xfe0] sm:$0xff]
    %v960 = vld [vmem:[#allocation9 + $0xfe8] sm:$0xff]
    %v961 = vld [vmem:[#allocation9 + $0xff0] sm:$0xff]
    %v962 = vld [vmem:[#allocation9 + $0xff8] sm:$0xff]
    %v963 = vld [vmem:[#allocation11] sm:$0xff]
    %v965 = vlaneseq
    %v966 = vshrl.u32 %v965, 7
    %v967 = vsub.s32 0, %v966
    %v968 = vrot.slane %v963, %v967
    %v969 = vlaneseq
    %v970 = vshrl.u32 %v969, 7
    %v971 = vsub.s32 1, %v970
    %v972 = vrot.slane %v963, %v971
    %v973 = vlaneseq
    %v974 = vshrl.u32 %v973, 7
    %v975 = vsub.s32 2, %v974
    %v976 = vrot.slane %v963, %v975
    %v977 = vlaneseq
    %v978 = vshrl.u32 %v977, 7
    %v979 = vsub.s32 3, %v978
    %v980 = vrot.slane %v963, %v979
    %v981 = vlaneseq
    %v982 = vshrl.u32 %v981, 7
    %v983 = vsub.s32 4, %v982
    %v984 = vrot.slane %v963, %v983
    %v985 = vlaneseq
    %v986 = vshrl.u32 %v985, 7
    %v987 = vsub.s32 5, %v986
    %v988 = vrot.slane %v963, %v987
    %v989 = vlaneseq
    %v990 = vshrl.u32 %v989, 7
    %v991 = vsub.s32 6, %v990
    %v992 = vrot.slane %v963, %v991
    %v993 = vlaneseq
    %v994 = vshrl.u32 %v993, 7
    %v995 = vsub.s32 7, %v994
    %v996 = vrot.slane %v963, %v995
    %v1517 = vunpack.c.l.b16 %v451
    %v1518 = vunpack.c.h.b16 %v451
    %v1519 = vunpack.c.l.b16 %v452
    %v1520 = vunpack.c.h.b16 %v452
    %v1521 = vunpack.c.l.b16 %v453
    %v1522 = vunpack.c.h.b16 %v453
    %v1523 = vunpack.c.l.b16 %v454
    %v1524 = vunpack.c.h.b16 %v454
    %v1525 = vunpack.c.l.b16 %v455
    %v1526 = vunpack.c.h.b16 %v455
    %v1527 = vunpack.c.l.b16 %v456
    %v1528 = vunpack.c.h.b16 %v456
    %v1529 = vunpack.c.l.b16 %v457
    %v1530 = vunpack.c.h.b16 %v457
    %v1531 = vunpack.c.l.b16 %v458
    %v1532 = vunpack.c.h.b16 %v458
    %v1533 = vunpack.c.l.b16 %v459
    %v1534 = vunpack.c.h.b16 %v459
    %v1535 = vunpack.c.l.b16 %v460
    %v1536 = vunpack.c.h.b16 %v460
    %v1537 = vunpack.c.l.b16 %v461
    %v1538 = vunpack.c.h.b16 %v461
    %v1539 = vunpack.c.l.b16 %v462
    %v1540 = vunpack.c.h.b16 %v462
    %v1541 = vunpack.c.l.b16 %v463
    %v1542 = vunpack.c.h.b16 %v463
    %v1543 = vunpack.c.l.b16 %v464
    %v1544 = vunpack.c.h.b16 %v464
    %v1545 = vunpack.c.l.b16 %v465
    %v1546 = vunpack.c.h.b16 %v465
    %v1547 = vunpack.c.l.b16 %v466
    %v1548 = vunpack.c.h.b16 %v466
    %v1549 = vunpack.c.l.b16 %v467
    %v1550 = vunpack.c.h.b16 %v467
    %v1551 = vunpack.c.l.b16 %v468
    %v1552 = vunpack.c.h.b16 %v468
    %v1553 = vunpack.c.l.b16 %v469
    %v1554 = vunpack.c.h.b16 %v469
    %v1555 = vunpack.c.l.b16 %v470
    %v1556 = vunpack.c.h.b16 %v470
    %v1557 = vunpack.c.l.b16 %v471
    %v1558 = vunpack.c.h.b16 %v471
    %v1559 = vunpack.c.l.b16 %v472
    %v1560 = vunpack.c.h.b16 %v472
    %v1561 = vunpack.c.l.b16 %v473
    %v1562 = vunpack.c.h.b16 %v473
    %v1563 = vunpack.c.l.b16 %v474
    %v1564 = vunpack.c.h.b16 %v474
    %v1565 = vunpack.c.l.b16 %v475
    %v1566 = vunpack.c.h.b16 %v475
    %v1567 = vunpack.c.l.b16 %v476
    %v1568 = vunpack.c.h.b16 %v476
    %v1569 = vunpack.c.l.b16 %v477
    %v1570 = vunpack.c.h.b16 %v477
    %v1571 = vunpack.c.l.b16 %v478
    %v1572 = vunpack.c.h.b16 %v478
    %v1573 = vunpack.c.l.b16 %v479
    %v1574 = vunpack.c.h.b16 %v479
    %v1575 = vunpack.c.l.b16 %v480
    %v1576 = vunpack.c.h.b16 %v480
    %v1577 = vunpack.c.l.b16 %v481
    %v1578 = vunpack.c.h.b16 %v481
    %v1579 = vunpack.c.l.b16 %v482
    %v1580 = vunpack.c.h.b16 %v482
    %v1581 = vunpack.c.l.b16 %v483
    %v1582 = vunpack.c.h.b16 %v483
    %v1583 = vunpack.c.l.b16 %v484
    %v1584 = vunpack.c.h.b16 %v484
    %v1585 = vunpack.c.l.b16 %v485
    %v1586 = vunpack.c.h.b16 %v485
    %v1587 = vunpack.c.l.b16 %v486
    %v1588 = vunpack.c.h.b16 %v486
    %v1589 = vunpack.c.l.b16 %v487
    %v1590 = vunpack.c.h.b16 %v487
    %v1591 = vunpack.c.l.b16 %v488
    %v1592 = vunpack.c.h.b16 %v488
    %v1593 = vunpack.c.l.b16 %v489
    %v1594 = vunpack.c.h.b16 %v489
    %v1595 = vunpack.c.l.b16 %v490
    %v1596 = vunpack.c.h.b16 %v490
    %v1597 = vunpack.c.l.b16 %v491
    %v1598 = vunpack.c.h.b16 %v491
    %v1599 = vunpack.c.l.b16 %v492
    %v1600 = vunpack.c.h.b16 %v492
    %v1601 = vunpack.c.l.b16 %v493
    %v1602 = vunpack.c.h.b16 %v493
    %v1603 = vunpack.c.l.b16 %v494
    %v1604 = vunpack.c.h.b16 %v494
    %v1605 = vunpack.c.l.b16 %v495
    %v1606 = vunpack.c.h.b16 %v495
    %v1607 = vunpack.c.l.b16 %v496
    %v1608 = vunpack.c.h.b16 %v496
    %v1609 = vunpack.c.l.b16 %v497
    %v1610 = vunpack.c.h.b16 %v497
    %v1611 = vunpack.c.l.b16 %v498
    %v1612 = vunpack.c.h.b16 %v498
    %v1613 = vunpack.c.l.b16 %v499
    %v1614 = vunpack.c.h.b16 %v499
    %v1615 = vunpack.c.l.b16 %v500
    %v1616 = vunpack.c.h.b16 %v500
    %v1617 = vunpack.c.l.b16 %v501
    %v1618 = vunpack.c.h.b16 %v501
    %v1619 = vunpack.c.l.b16 %v502
    %v1620 = vunpack.c.h.b16 %v502
    %v1621 = vunpack.c.l.b16 %v503
    %v1622 = vunpack.c.h.b16 %v503
    %v1623 = vunpack.c.l.b16 %v504
    %v1624 = vunpack.c.h.b16 %v504
    %v1625 = vunpack.c.l.b16 %v505
    %v1626 = vunpack.c.h.b16 %v505
    %v1627 = vunpack.c.l.b16 %v506
    %v1628 = vunpack.c.h.b16 %v506
    %v1629 = vunpack.c.l.b16 %v507
    %v1630 = vunpack.c.h.b16 %v507
    %v1631 = vunpack.c.l.b16 %v508
    %v1632 = vunpack.c.h.b16 %v508
    %v1633 = vunpack.c.l.b16 %v509
    %v1634 = vunpack.c.h.b16 %v509
    %v1635 = vunpack.c.l.b16 %v510
    %v1636 = vunpack.c.h.b16 %v510
    %v1637 = vunpack.c.l.b16 %v511
    %v1638 = vunpack.c.h.b16 %v511
    %v1639 = vunpack.c.l.b16 %v512
    %v1640 = vunpack.c.h.b16 %v512
    %v1641 = vunpack.c.l.b16 %v513
    %v1642 = vunpack.c.h.b16 %v513
    %v1643 = vunpack.c.l.b16 %v514
    %v1644 = vunpack.c.h.b16 %v514
    %v1645 = vunpack.c.l.b16 %v515
    %v1646 = vunpack.c.h.b16 %v515
    %v1647 = vunpack.c.l.b16 %v516
    %v1648 = vunpack.c.h.b16 %v516
    %v1649 = vunpack.c.l.b16 %v517
    %v1650 = vunpack.c.h.b16 %v517
    %v1651 = vunpack.c.l.b16 %v518
    %v1652 = vunpack.c.h.b16 %v518
    %v1653 = vunpack.c.l.b16 %v519
    %v1654 = vunpack.c.h.b16 %v519
    %v1655 = vunpack.c.l.b16 %v520
    %v1656 = vunpack.c.h.b16 %v520
    %v1657 = vunpack.c.l.b16 %v521
    %v1658 = vunpack.c.h.b16 %v521
    %v1659 = vunpack.c.l.b16 %v522
    %v1660 = vunpack.c.h.b16 %v522
    %v1661 = vunpack.c.l.b16 %v523
    %v1662 = vunpack.c.h.b16 %v523
    %v1663 = vunpack.c.l.b16 %v524
    %v1664 = vunpack.c.h.b16 %v524
    %v1665 = vunpack.c.l.b16 %v525
    %v1666 = vunpack.c.h.b16 %v525
    %v1667 = vunpack.c.l.b16 %v526
    %v1668 = vunpack.c.h.b16 %v526
    %v1669 = vunpack.c.l.b16 %v527
    %v1670 = vunpack.c.h.b16 %v527
    %v1671 = vunpack.c.l.b16 %v528
    %v1672 = vunpack.c.h.b16 %v528
    %v1673 = vunpack.c.l.b16 %v529
    %v1674 = vunpack.c.h.b16 %v529
    %v1675 = vunpack.c.l.b16 %v530
    %v1676 = vunpack.c.h.b16 %v530
    %v1677 = vunpack.c.l.b16 %v531
    %v1678 = vunpack.c.h.b16 %v531
    %v1679 = vunpack.c.l.b16 %v532
    %v1680 = vunpack.c.h.b16 %v532
    %v1681 = vunpack.c.l.b16 %v533
    %v1682 = vunpack.c.h.b16 %v533
    %v1683 = vunpack.c.l.b16 %v534
    %v1684 = vunpack.c.h.b16 %v534
    %v1685 = vunpack.c.l.b16 %v535
    %v1686 = vunpack.c.h.b16 %v535
    %v1687 = vunpack.c.l.b16 %v536
    %v1688 = vunpack.c.h.b16 %v536
    %v1689 = vunpack.c.l.b16 %v537
    %v1690 = vunpack.c.h.b16 %v537
    %v1691 = vunpack.c.l.b16 %v538
    %v1692 = vunpack.c.h.b16 %v538
    %v1693 = vunpack.c.l.b16 %v539
    %v1694 = vunpack.c.h.b16 %v539
    %v1695 = vunpack.c.l.b16 %v540
    %v1696 = vunpack.c.h.b16 %v540
    %v1697 = vunpack.c.l.b16 %v541
    %v1698 = vunpack.c.h.b16 %v541
    %v1699 = vunpack.c.l.b16 %v542
    %v1700 = vunpack.c.h.b16 %v542
    %v1701 = vunpack.c.l.b16 %v543
    %v1702 = vunpack.c.h.b16 %v543
    %v1703 = vunpack.c.l.b16 %v544
    %v1704 = vunpack.c.h.b16 %v544
    %v1705 = vunpack.c.l.b16 %v545
    %v1706 = vunpack.c.h.b16 %v545
    %v1707 = vunpack.c.l.b16 %v546
    %v1708 = vunpack.c.h.b16 %v546
    %v1709 = vunpack.c.l.b16 %v547
    %v1710 = vunpack.c.h.b16 %v547
    %v1711 = vunpack.c.l.b16 %v548
    %v1712 = vunpack.c.h.b16 %v548
    %v1713 = vunpack.c.l.b16 %v549
    %v1714 = vunpack.c.h.b16 %v549
    %v1715 = vunpack.c.l.b16 %v550
    %v1716 = vunpack.c.h.b16 %v550
    %v1717 = vunpack.c.l.b16 %v551
    %v1718 = vunpack.c.h.b16 %v551
    %v1719 = vunpack.c.l.b16 %v552
    %v1720 = vunpack.c.h.b16 %v552
    %v1721 = vunpack.c.l.b16 %v553
    %v1722 = vunpack.c.h.b16 %v553
    %v1723 = vunpack.c.l.b16 %v554
    %v1724 = vunpack.c.h.b16 %v554
    %v1725 = vunpack.c.l.b16 %v555
    %v1726 = vunpack.c.h.b16 %v555
    %v1727 = vunpack.c.l.b16 %v556
    %v1728 = vunpack.c.h.b16 %v556
    %v1729 = vunpack.c.l.b16 %v557
    %v1730 = vunpack.c.h.b16 %v557
    %v1731 = vunpack.c.l.b16 %v558
    %v1732 = vunpack.c.h.b16 %v558
    %v1733 = vunpack.c.l.b16 %v559
    %v1734 = vunpack.c.h.b16 %v559
    %v1735 = vunpack.c.l.b16 %v560
    %v1736 = vunpack.c.h.b16 %v560
    %v1737 = vunpack.c.l.b16 %v561
    %v1738 = vunpack.c.h.b16 %v561
    %v1739 = vunpack.c.l.b16 %v562
    %v1740 = vunpack.c.h.b16 %v562
    %v1741 = vunpack.c.l.b16 %v563
    %v1742 = vunpack.c.h.b16 %v563
    %v1743 = vunpack.c.l.b16 %v564
    %v1744 = vunpack.c.h.b16 %v564
    %v1745 = vunpack.c.l.b16 %v565
    %v1746 = vunpack.c.h.b16 %v565
    %v1747 = vunpack.c.l.b16 %v566
    %v1748 = vunpack.c.h.b16 %v566
    %v1749 = vunpack.c.l.b16 %v567
    %v1750 = vunpack.c.h.b16 %v567
    %v1751 = vunpack.c.l.b16 %v568
    %v1752 = vunpack.c.h.b16 %v568
    %v1753 = vunpack.c.l.b16 %v569
    %v1754 = vunpack.c.h.b16 %v569
    %v1755 = vunpack.c.l.b16 %v570
    %v1756 = vunpack.c.h.b16 %v570
    %v1757 = vunpack.c.l.b16 %v571
    %v1758 = vunpack.c.h.b16 %v571
    %v1759 = vunpack.c.l.b16 %v572
    %v1760 = vunpack.c.h.b16 %v572
    %v1761 = vunpack.c.l.b16 %v573
    %v1762 = vunpack.c.h.b16 %v573
    %v1763 = vunpack.c.l.b16 %v574
    %v1764 = vunpack.c.h.b16 %v574
    %v1765 = vunpack.c.l.b16 %v575
    %v1766 = vunpack.c.h.b16 %v575
    %v1767 = vunpack.c.l.b16 %v576
    %v1768 = vunpack.c.h.b16 %v576
    %v1769 = vunpack.c.l.b16 %v577
    %v1770 = vunpack.c.h.b16 %v577
    %v1771 = vunpack.c.l.b16 %v578
    %v1772 = vunpack.c.h.b16 %v578
    %v1773 = vunpack.c.l.b16 %v579
    %v1774 = vunpack.c.h.b16 %v579
    %v1775 = vunpack.c.l.b16 %v580
    %v1776 = vunpack.c.h.b16 %v580
    %v1777 = vunpack.c.l.b16 %v581
    %v1778 = vunpack.c.h.b16 %v581
    %v1779 = vunpack.c.l.b16 %v582
    %v1780 = vunpack.c.h.b16 %v582
    %v1781 = vunpack.c.l.b16 %v583
    %v1782 = vunpack.c.h.b16 %v583
    %v1783 = vunpack.c.l.b16 %v584
    %v1784 = vunpack.c.h.b16 %v584
    %v1785 = vunpack.c.l.b16 %v585
    %v1786 = vunpack.c.h.b16 %v585
    %v1787 = vunpack.c.l.b16 %v586
    %v1788 = vunpack.c.h.b16 %v586
    %v1789 = vunpack.c.l.b16 %v587
    %v1790 = vunpack.c.h.b16 %v587
    %v1791 = vunpack.c.l.b16 %v588
    %v1792 = vunpack.c.h.b16 %v588
    %v1793 = vunpack.c.l.b16 %v589
    %v1794 = vunpack.c.h.b16 %v589
    %v1795 = vunpack.c.l.b16 %v590
    %v1796 = vunpack.c.h.b16 %v590
    %v1797 = vunpack.c.l.b16 %v591
    %v1798 = vunpack.c.h.b16 %v591
    %v1799 = vunpack.c.l.b16 %v592
    %v1800 = vunpack.c.h.b16 %v592
    %v1801 = vunpack.c.l.b16 %v593
    %v1802 = vunpack.c.h.b16 %v593
    %v1803 = vunpack.c.l.b16 %v594
    %v1804 = vunpack.c.h.b16 %v594
    %v1805 = vunpack.c.l.b16 %v595
    %v1806 = vunpack.c.h.b16 %v595
    %v1807 = vunpack.c.l.b16 %v596
    %v1808 = vunpack.c.h.b16 %v596
    %v1809 = vunpack.c.l.b16 %v597
    %v1810 = vunpack.c.h.b16 %v597
    %v1811 = vunpack.c.l.b16 %v598
    %v1812 = vunpack.c.h.b16 %v598
    %v1813 = vunpack.c.l.b16 %v599
    %v1814 = vunpack.c.h.b16 %v599
    %v1815 = vunpack.c.l.b16 %v600
    %v1816 = vunpack.c.h.b16 %v600
    %v1817 = vunpack.c.l.b16 %v601
    %v1818 = vunpack.c.h.b16 %v601
    %v1819 = vunpack.c.l.b16 %v602
    %v1820 = vunpack.c.h.b16 %v602
    %v1821 = vunpack.c.l.b16 %v603
    %v1822 = vunpack.c.h.b16 %v603
    %v1823 = vunpack.c.l.b16 %v604
    %v1824 = vunpack.c.h.b16 %v604
    %v1825 = vunpack.c.l.b16 %v605
    %v1826 = vunpack.c.h.b16 %v605
    %v1827 = vunpack.c.l.b16 %v606
    %v1828 = vunpack.c.h.b16 %v606
    %v1829 = vunpack.c.l.b16 %v607
    %v1830 = vunpack.c.h.b16 %v607
    %v1831 = vunpack.c.l.b16 %v608
    %v1832 = vunpack.c.h.b16 %v608
    %v1833 = vunpack.c.l.b16 %v609
    %v1834 = vunpack.c.h.b16 %v609
    %v1835 = vunpack.c.l.b16 %v610
    %v1836 = vunpack.c.h.b16 %v610
    %v1837 = vunpack.c.l.b16 %v611
    %v1838 = vunpack.c.h.b16 %v611
    %v1839 = vunpack.c.l.b16 %v612
    %v1840 = vunpack.c.h.b16 %v612
    %v1841 = vunpack.c.l.b16 %v613
    %v1842 = vunpack.c.h.b16 %v613
    %v1843 = vunpack.c.l.b16 %v614
    %v1844 = vunpack.c.h.b16 %v614
    %v1845 = vunpack.c.l.b16 %v615
    %v1846 = vunpack.c.h.b16 %v615
    %v1847 = vunpack.c.l.b16 %v616
    %v1848 = vunpack.c.h.b16 %v616
    %v1849 = vunpack.c.l.b16 %v617
    %v1850 = vunpack.c.h.b16 %v617
    %v1851 = vunpack.c.l.b16 %v618
    %v1852 = vunpack.c.h.b16 %v618
    %v1853 = vunpack.c.l.b16 %v619
    %v1854 = vunpack.c.h.b16 %v619
    %v1855 = vunpack.c.l.b16 %v620
    %v1856 = vunpack.c.h.b16 %v620
    %v1857 = vunpack.c.l.b16 %v621
    %v1858 = vunpack.c.h.b16 %v621
    %v1859 = vunpack.c.l.b16 %v622
    %v1860 = vunpack.c.h.b16 %v622
    %v1861 = vunpack.c.l.b16 %v623
    %v1862 = vunpack.c.h.b16 %v623
    %v1863 = vunpack.c.l.b16 %v624
    %v1864 = vunpack.c.h.b16 %v624
    %v1865 = vunpack.c.l.b16 %v625
    %v1866 = vunpack.c.h.b16 %v625
    %v1867 = vunpack.c.l.b16 %v626
    %v1868 = vunpack.c.h.b16 %v626
    %v1869 = vunpack.c.l.b16 %v627
    %v1870 = vunpack.c.h.b16 %v627
    %v1871 = vunpack.c.l.b16 %v628
    %v1872 = vunpack.c.h.b16 %v628
    %v1873 = vunpack.c.l.b16 %v629
    %v1874 = vunpack.c.h.b16 %v629
    %v1875 = vunpack.c.l.b16 %v630
    %v1876 = vunpack.c.h.b16 %v630
    %v1877 = vunpack.c.l.b16 %v631
    %v1878 = vunpack.c.h.b16 %v631
    %v1879 = vunpack.c.l.b16 %v632
    %v1880 = vunpack.c.h.b16 %v632
    %v1881 = vunpack.c.l.b16 %v633
    %v1882 = vunpack.c.h.b16 %v633
    %v1883 = vunpack.c.l.b16 %v634
    %v1884 = vunpack.c.h.b16 %v634
    %v1885 = vunpack.c.l.b16 %v635
    %v1886 = vunpack.c.h.b16 %v635
    %v1887 = vunpack.c.l.b16 %v636
    %v1888 = vunpack.c.h.b16 %v636
    %v1889 = vunpack.c.l.b16 %v637
    %v1890 = vunpack.c.h.b16 %v637
    %v1891 = vunpack.c.l.b16 %v638
    %v1892 = vunpack.c.h.b16 %v638
    %v1893 = vunpack.c.l.b16 %v639
    %v1894 = vunpack.c.h.b16 %v639
    %v1895 = vunpack.c.l.b16 %v640
    %v1896 = vunpack.c.h.b16 %v640
    %v1897 = vunpack.c.l.b16 %v641
    %v1898 = vunpack.c.h.b16 %v641
    %v1899 = vunpack.c.l.b16 %v642
    %v1900 = vunpack.c.h.b16 %v642
    %v1901 = vunpack.c.l.b16 %v643
    %v1902 = vunpack.c.h.b16 %v643
    %v1903 = vunpack.c.l.b16 %v644
    %v1904 = vunpack.c.h.b16 %v644
    %v1905 = vunpack.c.l.b16 %v645
    %v1906 = vunpack.c.h.b16 %v645
    %v1907 = vunpack.c.l.b16 %v646
    %v1908 = vunpack.c.h.b16 %v646
    %v1909 = vunpack.c.l.b16 %v647
    %v1910 = vunpack.c.h.b16 %v647
    %v1911 = vunpack.c.l.b16 %v648
    %v1912 = vunpack.c.h.b16 %v648
    %v1913 = vunpack.c.l.b16 %v649
    %v1914 = vunpack.c.h.b16 %v649
    %v1915 = vunpack.c.l.b16 %v650
    %v1916 = vunpack.c.h.b16 %v650
    %v1917 = vunpack.c.l.b16 %v651
    %v1918 = vunpack.c.h.b16 %v651
    %v1919 = vunpack.c.l.b16 %v652
    %v1920 = vunpack.c.h.b16 %v652
    %v1921 = vunpack.c.l.b16 %v653
    %v1922 = vunpack.c.h.b16 %v653
    %v1923 = vunpack.c.l.b16 %v654
    %v1924 = vunpack.c.h.b16 %v654
    %v1925 = vunpack.c.l.b16 %v655
    %v1926 = vunpack.c.h.b16 %v655
    %v1927 = vunpack.c.l.b16 %v656
    %v1928 = vunpack.c.h.b16 %v656
    %v1929 = vunpack.c.l.b16 %v657
    %v1930 = vunpack.c.h.b16 %v657
    %v1931 = vunpack.c.l.b16 %v658
    %v1932 = vunpack.c.h.b16 %v658
    %v1933 = vunpack.c.l.b16 %v659
    %v1934 = vunpack.c.h.b16 %v659
    %v1935 = vunpack.c.l.b16 %v660
    %v1936 = vunpack.c.h.b16 %v660
    %v1937 = vunpack.c.l.b16 %v661
    %v1938 = vunpack.c.h.b16 %v661
    %v1939 = vunpack.c.l.b16 %v662
    %v1940 = vunpack.c.h.b16 %v662
    %v1941 = vunpack.c.l.b16 %v663
    %v1942 = vunpack.c.h.b16 %v663
    %v1943 = vunpack.c.l.b16 %v664
    %v1944 = vunpack.c.h.b16 %v664
    %v1945 = vunpack.c.l.b16 %v665
    %v1946 = vunpack.c.h.b16 %v665
    %v1947 = vunpack.c.l.b16 %v666
    %v1948 = vunpack.c.h.b16 %v666
    %v1949 = vunpack.c.l.b16 %v667
    %v1950 = vunpack.c.h.b16 %v667
    %v1951 = vunpack.c.l.b16 %v668
    %v1952 = vunpack.c.h.b16 %v668
    %v1953 = vunpack.c.l.b16 %v669
    %v1954 = vunpack.c.h.b16 %v669
    %v1955 = vunpack.c.l.b16 %v670
    %v1956 = vunpack.c.h.b16 %v670
    %v1957 = vunpack.c.l.b16 %v671
    %v1958 = vunpack.c.h.b16 %v671
    %v1959 = vunpack.c.l.b16 %v672
    %v1960 = vunpack.c.h.b16 %v672
    %v1961 = vunpack.c.l.b16 %v673
    %v1962 = vunpack.c.h.b16 %v673
    %v1963 = vunpack.c.l.b16 %v674
    %v1964 = vunpack.c.h.b16 %v674
    %v1965 = vunpack.c.l.b16 %v675
    %v1966 = vunpack.c.h.b16 %v675
    %v1967 = vunpack.c.l.b16 %v676
    %v1968 = vunpack.c.h.b16 %v676
    %v1969 = vunpack.c.l.b16 %v677
    %v1970 = vunpack.c.h.b16 %v677
    %v1971 = vunpack.c.l.b16 %v678
    %v1972 = vunpack.c.h.b16 %v678
    %v1973 = vunpack.c.l.b16 %v679
    %v1974 = vunpack.c.h.b16 %v679
    %v1975 = vunpack.c.l.b16 %v680
    %v1976 = vunpack.c.h.b16 %v680
    %v1977 = vunpack.c.l.b16 %v681
    %v1978 = vunpack.c.h.b16 %v681
    %v1979 = vunpack.c.l.b16 %v682
    %v1980 = vunpack.c.h.b16 %v682
    %v1981 = vunpack.c.l.b16 %v683
    %v1982 = vunpack.c.h.b16 %v683
    %v1983 = vunpack.c.l.b16 %v684
    %v1984 = vunpack.c.h.b16 %v684
    %v1985 = vunpack.c.l.b16 %v685
    %v1986 = vunpack.c.h.b16 %v685
    %v1987 = vunpack.c.l.b16 %v686
    %v1988 = vunpack.c.h.b16 %v686
    %v1989 = vunpack.c.l.b16 %v687
    %v1990 = vunpack.c.h.b16 %v687
    %v1991 = vunpack.c.l.b16 %v688
    %v1992 = vunpack.c.h.b16 %v688
    %v1993 = vunpack.c.l.b16 %v689
    %v1994 = vunpack.c.h.b16 %v689
    %v1995 = vunpack.c.l.b16 %v690
    %v1996 = vunpack.c.h.b16 %v690
    %v1997 = vunpack.c.l.b16 %v691
    %v1998 = vunpack.c.h.b16 %v691
    %v1999 = vunpack.c.l.b16 %v692
    %v2000 = vunpack.c.h.b16 %v692
    %v2001 = vunpack.c.l.b16 %v693
    %v2002 = vunpack.c.h.b16 %v693
    %v2003 = vunpack.c.l.b16 %v694
    %v2004 = vunpack.c.h.b16 %v694
    %v2005 = vunpack.c.l.b16 %v695
    %v2006 = vunpack.c.h.b16 %v695
    %v2007 = vunpack.c.l.b16 %v696
    %v2008 = vunpack.c.h.b16 %v696
    %v2009 = vunpack.c.l.b16 %v697
    %v2010 = vunpack.c.h.b16 %v697
    %v2011 = vunpack.c.l.b16 %v698
    %v2012 = vunpack.c.h.b16 %v698
    %v2013 = vunpack.c.l.b16 %v699
    %v2014 = vunpack.c.h.b16 %v699
    %v2015 = vunpack.c.l.b16 %v700
    %v2016 = vunpack.c.h.b16 %v700
    %v2017 = vunpack.c.l.b16 %v701
    %v2018 = vunpack.c.h.b16 %v701
    %v2019 = vunpack.c.l.b16 %v702
    %v2020 = vunpack.c.h.b16 %v702
    %v2021 = vunpack.c.l.b16 %v703
    %v2022 = vunpack.c.h.b16 %v703
    %v2023 = vunpack.c.l.b16 %v704
    %v2024 = vunpack.c.h.b16 %v704
    %v2025 = vunpack.c.l.b16 %v705
    %v2026 = vunpack.c.h.b16 %v705
    %v2027 = vunpack.c.l.b16 %v706
    %v2028 = vunpack.c.h.b16 %v706
    %v2029 = vunpack.c.l.b16 %v707
    %v2030 = vunpack.c.h.b16 %v707
    %v2031 = vunpack.c.l.b16 %v708
    %v2032 = vunpack.c.h.b16 %v708
    %v2033 = vunpack.c.l.b16 %v709
    %v2034 = vunpack.c.h.b16 %v709
    %v2035 = vunpack.c.l.b16 %v710
    %v2036 = vunpack.c.h.b16 %v710
    %v2037 = vunpack.c.l.b16 %v711
    %v2038 = vunpack.c.h.b16 %v711
    %v2039 = vunpack.c.l.b16 %v712
    %v2040 = vunpack.c.h.b16 %v712
    %v2041 = vunpack.c.l.b16 %v713
    %v2042 = vunpack.c.h.b16 %v713
    %v2043 = vunpack.c.l.b16 %v714
    %v2044 = vunpack.c.h.b16 %v714
    %v2045 = vunpack.c.l.b16 %v715
    %v2046 = vunpack.c.h.b16 %v715
    %v2047 = vunpack.c.l.b16 %v716
    %v2048 = vunpack.c.h.b16 %v716
    %v2049 = vunpack.c.l.b16 %v717
    %v2050 = vunpack.c.h.b16 %v717
    %v2051 = vunpack.c.l.b16 %v718
    %v2052 = vunpack.c.h.b16 %v718
    %v2053 = vunpack.c.l.b16 %v719
    %v2054 = vunpack.c.h.b16 %v719
    %v2055 = vunpack.c.l.b16 %v720
    %v2056 = vunpack.c.h.b16 %v720
    %v2057 = vunpack.c.l.b16 %v721
    %v2058 = vunpack.c.h.b16 %v721
    %v2059 = vunpack.c.l.b16 %v722
    %v2060 = vunpack.c.h.b16 %v722
    %v2061 = vunpack.c.l.b16 %v723
    %v2062 = vunpack.c.h.b16 %v723
    %v2063 = vunpack.c.l.b16 %v724
    %v2064 = vunpack.c.h.b16 %v724
    %v2065 = vunpack.c.l.b16 %v725
    %v2066 = vunpack.c.h.b16 %v725
    %v2067 = vunpack.c.l.b16 %v726
    %v2068 = vunpack.c.h.b16 %v726
    %v2069 = vunpack.c.l.b16 %v727
    %v2070 = vunpack.c.h.b16 %v727
    %v2071 = vunpack.c.l.b16 %v728
    %v2072 = vunpack.c.h.b16 %v728
    %v2073 = vunpack.c.l.b16 %v729
    %v2074 = vunpack.c.h.b16 %v729
    %v2075 = vunpack.c.l.b16 %v730
    %v2076 = vunpack.c.h.b16 %v730
    %v2077 = vunpack.c.l.b16 %v731
    %v2078 = vunpack.c.h.b16 %v731
    %v2079 = vunpack.c.l.b16 %v732
    %v2080 = vunpack.c.h.b16 %v732
    %v2081 = vunpack.c.l.b16 %v733
    %v2082 = vunpack.c.h.b16 %v733
    %v2083 = vunpack.c.l.b16 %v734
    %v2084 = vunpack.c.h.b16 %v734
    %v2085 = vunpack.c.l.b16 %v735
    %v2086 = vunpack.c.h.b16 %v735
    %v2087 = vunpack.c.l.b16 %v736
    %v2088 = vunpack.c.h.b16 %v736
    %v2089 = vunpack.c.l.b16 %v737
    %v2090 = vunpack.c.h.b16 %v737
    %v2091 = vunpack.c.l.b16 %v738
    %v2092 = vunpack.c.h.b16 %v738
    %v2093 = vunpack.c.l.b16 %v739
    %v2094 = vunpack.c.h.b16 %v739
    %v2095 = vunpack.c.l.b16 %v740
    %v2096 = vunpack.c.h.b16 %v740
    %v2097 = vunpack.c.l.b16 %v741
    %v2098 = vunpack.c.h.b16 %v741
    %v2099 = vunpack.c.l.b16 %v742
    %v2100 = vunpack.c.h.b16 %v742
    %v2101 = vunpack.c.l.b16 %v743
    %v2102 = vunpack.c.h.b16 %v743
    %v2103 = vunpack.c.l.b16 %v744
    %v2104 = vunpack.c.h.b16 %v744
    %v2105 = vunpack.c.l.b16 %v745
    %v2106 = vunpack.c.h.b16 %v745
    %v2107 = vunpack.c.l.b16 %v746
    %v2108 = vunpack.c.h.b16 %v746
    %v2109 = vunpack.c.l.b16 %v747
    %v2110 = vunpack.c.h.b16 %v747
    %v2111 = vunpack.c.l.b16 %v748
    %v2112 = vunpack.c.h.b16 %v748
    %v2113 = vunpack.c.l.b16 %v749
    %v2114 = vunpack.c.h.b16 %v749
    %v2115 = vunpack.c.l.b16 %v750
    %v2116 = vunpack.c.h.b16 %v750
    %v2117 = vunpack.c.l.b16 %v751
    %v2118 = vunpack.c.h.b16 %v751
    %v2119 = vunpack.c.l.b16 %v752
    %v2120 = vunpack.c.h.b16 %v752
    %v2121 = vunpack.c.l.b16 %v753
    %v2122 = vunpack.c.h.b16 %v753
    %v2123 = vunpack.c.l.b16 %v754
    %v2124 = vunpack.c.h.b16 %v754
    %v2125 = vunpack.c.l.b16 %v755
    %v2126 = vunpack.c.h.b16 %v755
    %v2127 = vunpack.c.l.b16 %v756
    %v2128 = vunpack.c.h.b16 %v756
    %v2129 = vunpack.c.l.b16 %v757
    %v2130 = vunpack.c.h.b16 %v757
    %v2131 = vunpack.c.l.b16 %v758
    %v2132 = vunpack.c.h.b16 %v758
    %v2133 = vunpack.c.l.b16 %v759
    %v2134 = vunpack.c.h.b16 %v759
    %v2135 = vunpack.c.l.b16 %v760
    %v2136 = vunpack.c.h.b16 %v760
    %v2137 = vunpack.c.l.b16 %v761
    %v2138 = vunpack.c.h.b16 %v761
    %v2139 = vunpack.c.l.b16 %v762
    %v2140 = vunpack.c.h.b16 %v762
    %v2141 = vunpack.c.l.b16 %v763
    %v2142 = vunpack.c.h.b16 %v763
    %v2143 = vunpack.c.l.b16 %v764
    %v2144 = vunpack.c.h.b16 %v764
    %v2145 = vunpack.c.l.b16 %v765
    %v2146 = vunpack.c.h.b16 %v765
    %v2147 = vunpack.c.l.b16 %v766
    %v2148 = vunpack.c.h.b16 %v766
    %v2149 = vunpack.c.l.b16 %v767
    %v2150 = vunpack.c.h.b16 %v767
    %v2151 = vunpack.c.l.b16 %v768
    %v2152 = vunpack.c.h.b16 %v768
    %v2153 = vunpack.c.l.b16 %v769
    %v2154 = vunpack.c.h.b16 %v769
    %v2155 = vunpack.c.l.b16 %v770
    %v2156 = vunpack.c.h.b16 %v770
    %v2157 = vunpack.c.l.b16 %v771
    %v2158 = vunpack.c.h.b16 %v771
    %v2159 = vunpack.c.l.b16 %v772
    %v2160 = vunpack.c.h.b16 %v772
    %v2161 = vunpack.c.l.b16 %v773
    %v2162 = vunpack.c.h.b16 %v773
    %v2163 = vunpack.c.l.b16 %v774
    %v2164 = vunpack.c.h.b16 %v774
    %v2165 = vunpack.c.l.b16 %v775
    %v2166 = vunpack.c.h.b16 %v775
    %v2167 = vunpack.c.l.b16 %v776
    %v2168 = vunpack.c.h.b16 %v776
    %v2169 = vunpack.c.l.b16 %v777
    %v2170 = vunpack.c.h.b16 %v777
    %v2171 = vunpack.c.l.b16 %v778
    %v2172 = vunpack.c.h.b16 %v778
    %v2173 = vunpack.c.l.b16 %v779
    %v2174 = vunpack.c.h.b16 %v779
    %v2175 = vunpack.c.l.b16 %v780
    %v2176 = vunpack.c.h.b16 %v780
    %v2177 = vunpack.c.l.b16 %v781
    %v2178 = vunpack.c.h.b16 %v781
    %v2179 = vunpack.c.l.b16 %v782
    %v2180 = vunpack.c.h.b16 %v782
    %v2181 = vunpack.c.l.b16 %v783
    %v2182 = vunpack.c.h.b16 %v783
    %v2183 = vunpack.c.l.b16 %v784
    %v2184 = vunpack.c.h.b16 %v784
    %v2185 = vunpack.c.l.b16 %v785
    %v2186 = vunpack.c.h.b16 %v785
    %v2187 = vunpack.c.l.b16 %v786
    %v2188 = vunpack.c.h.b16 %v786
    %v2189 = vunpack.c.l.b16 %v787
    %v2190 = vunpack.c.h.b16 %v787
    %v2191 = vunpack.c.l.b16 %v788
    %v2192 = vunpack.c.h.b16 %v788
    %v2193 = vunpack.c.l.b16 %v789
    %v2194 = vunpack.c.h.b16 %v789
    %v2195 = vunpack.c.l.b16 %v790
    %v2196 = vunpack.c.h.b16 %v790
    %v2197 = vunpack.c.l.b16 %v791
    %v2198 = vunpack.c.h.b16 %v791
    %v2199 = vunpack.c.l.b16 %v792
    %v2200 = vunpack.c.h.b16 %v792
    %v2201 = vunpack.c.l.b16 %v793
    %v2202 = vunpack.c.h.b16 %v793
    %v2203 = vunpack.c.l.b16 %v794
    %v2204 = vunpack.c.h.b16 %v794
    %v2205 = vunpack.c.l.b16 %v795
    %v2206 = vunpack.c.h.b16 %v795
    %v2207 = vunpack.c.l.b16 %v796
    %v2208 = vunpack.c.h.b16 %v796
    %v2209 = vunpack.c.l.b16 %v797
    %v2210 = vunpack.c.h.b16 %v797
    %v2211 = vunpack.c.l.b16 %v798
    %v2212 = vunpack.c.h.b16 %v798
    %v2213 = vunpack.c.l.b16 %v799
    %v2214 = vunpack.c.h.b16 %v799
    %v2215 = vunpack.c.l.b16 %v800
    %v2216 = vunpack.c.h.b16 %v800
    %v2217 = vunpack.c.l.b16 %v801
    %v2218 = vunpack.c.h.b16 %v801
    %v2219 = vunpack.c.l.b16 %v802
    %v2220 = vunpack.c.h.b16 %v802
    %v2221 = vunpack.c.l.b16 %v803
    %v2222 = vunpack.c.h.b16 %v803
    %v2223 = vunpack.c.l.b16 %v804
    %v2224 = vunpack.c.h.b16 %v804
    %v2225 = vunpack.c.l.b16 %v805
    %v2226 = vunpack.c.h.b16 %v805
    %v2227 = vunpack.c.l.b16 %v806
    %v2228 = vunpack.c.h.b16 %v806
    %v2229 = vunpack.c.l.b16 %v807
    %v2230 = vunpack.c.h.b16 %v807
    %v2231 = vunpack.c.l.b16 %v808
    %v2232 = vunpack.c.h.b16 %v808
    %v2233 = vunpack.c.l.b16 %v809
    %v2234 = vunpack.c.h.b16 %v809
    %v2235 = vunpack.c.l.b16 %v810
    %v2236 = vunpack.c.h.b16 %v810
    %v2237 = vunpack.c.l.b16 %v811
    %v2238 = vunpack.c.h.b16 %v811
    %v2239 = vunpack.c.l.b16 %v812
    %v2240 = vunpack.c.h.b16 %v812
    %v2241 = vunpack.c.l.b16 %v813
    %v2242 = vunpack.c.h.b16 %v813
    %v2243 = vunpack.c.l.b16 %v814
    %v2244 = vunpack.c.h.b16 %v814
    %v2245 = vunpack.c.l.b16 %v815
    %v2246 = vunpack.c.h.b16 %v815
    %v2247 = vunpack.c.l.b16 %v816
    %v2248 = vunpack.c.h.b16 %v816
    %v2249 = vunpack.c.l.b16 %v817
    %v2250 = vunpack.c.h.b16 %v817
    %v2251 = vunpack.c.l.b16 %v818
    %v2252 = vunpack.c.h.b16 %v818
    %v2253 = vunpack.c.l.b16 %v819
    %v2254 = vunpack.c.h.b16 %v819
    %v2255 = vunpack.c.l.b16 %v820
    %v2256 = vunpack.c.h.b16 %v820
    %v2257 = vunpack.c.l.b16 %v821
    %v2258 = vunpack.c.h.b16 %v821
    %v2259 = vunpack.c.l.b16 %v822
    %v2260 = vunpack.c.h.b16 %v822
    %v2261 = vunpack.c.l.b16 %v823
    %v2262 = vunpack.c.h.b16 %v823
    %v2263 = vunpack.c.l.b16 %v824
    %v2264 = vunpack.c.h.b16 %v824
    %v2265 = vunpack.c.l.b16 %v825
    %v2266 = vunpack.c.h.b16 %v825
    %v2267 = vunpack.c.l.b16 %v826
    %v2268 = vunpack.c.h.b16 %v826
    %v2269 = vunpack.c.l.b16 %v827
    %v2270 = vunpack.c.h.b16 %v827
    %v2271 = vunpack.c.l.b16 %v828
    %v2272 = vunpack.c.h.b16 %v828
    %v2273 = vunpack.c.l.b16 %v829
    %v2274 = vunpack.c.h.b16 %v829
    %v2275 = vunpack.c.l.b16 %v830
    %v2276 = vunpack.c.h.b16 %v830
    %v2277 = vunpack.c.l.b16 %v831
    %v2278 = vunpack.c.h.b16 %v831
    %v2279 = vunpack.c.l.b16 %v832
    %v2280 = vunpack.c.h.b16 %v832
    %v2281 = vunpack.c.l.b16 %v833
    %v2282 = vunpack.c.h.b16 %v833
    %v2283 = vunpack.c.l.b16 %v834
    %v2284 = vunpack.c.h.b16 %v834
    %v2285 = vunpack.c.l.b16 %v835
    %v2286 = vunpack.c.h.b16 %v835
    %v2287 = vunpack.c.l.b16 %v836
    %v2288 = vunpack.c.h.b16 %v836
    %v2289 = vunpack.c.l.b16 %v837
    %v2290 = vunpack.c.h.b16 %v837
    %v2291 = vunpack.c.l.b16 %v838
    %v2292 = vunpack.c.h.b16 %v838
    %v2293 = vunpack.c.l.b16 %v839
    %v2294 = vunpack.c.h.b16 %v839
    %v2295 = vunpack.c.l.b16 %v840
    %v2296 = vunpack.c.h.b16 %v840
    %v2297 = vunpack.c.l.b16 %v841
    %v2298 = vunpack.c.h.b16 %v841
    %v2299 = vunpack.c.l.b16 %v842
    %v2300 = vunpack.c.h.b16 %v842
    %v2301 = vunpack.c.l.b16 %v843
    %v2302 = vunpack.c.h.b16 %v843
    %v2303 = vunpack.c.l.b16 %v844
    %v2304 = vunpack.c.h.b16 %v844
    %v2305 = vunpack.c.l.b16 %v845
    %v2306 = vunpack.c.h.b16 %v845
    %v2307 = vunpack.c.l.b16 %v846
    %v2308 = vunpack.c.h.b16 %v846
    %v2309 = vunpack.c.l.b16 %v847
    %v2310 = vunpack.c.h.b16 %v847
    %v2311 = vunpack.c.l.b16 %v848
    %v2312 = vunpack.c.h.b16 %v848
    %v2313 = vunpack.c.l.b16 %v849
    %v2314 = vunpack.c.h.b16 %v849
    %v2315 = vunpack.c.l.b16 %v850
    %v2316 = vunpack.c.h.b16 %v850
    %v2317 = vunpack.c.l.b16 %v851
    %v2318 = vunpack.c.h.b16 %v851
    %v2319 = vunpack.c.l.b16 %v852
    %v2320 = vunpack.c.h.b16 %v852
    %v2321 = vunpack.c.l.b16 %v853
    %v2322 = vunpack.c.h.b16 %v853
    %v2323 = vunpack.c.l.b16 %v854
    %v2324 = vunpack.c.h.b16 %v854
    %v2325 = vunpack.c.l.b16 %v855
    %v2326 = vunpack.c.h.b16 %v855
    %v2327 = vunpack.c.l.b16 %v856
    %v2328 = vunpack.c.h.b16 %v856
    %v2329 = vunpack.c.l.b16 %v857
    %v2330 = vunpack.c.h.b16 %v857
    %v2331 = vunpack.c.l.b16 %v858
    %v2332 = vunpack.c.h.b16 %v858
    %v2333 = vunpack.c.l.b16 %v859
    %v2334 = vunpack.c.h.b16 %v859
    %v2335 = vunpack.c.l.b16 %v860
    %v2336 = vunpack.c.h.b16 %v860
    %v2337 = vunpack.c.l.b16 %v861
    %v2338 = vunpack.c.h.b16 %v861
    %v2339 = vunpack.c.l.b16 %v862
    %v2340 = vunpack.c.h.b16 %v862
    %v2341 = vunpack.c.l.b16 %v863
    %v2342 = vunpack.c.h.b16 %v863
    %v2343 = vunpack.c.l.b16 %v864
    %v2344 = vunpack.c.h.b16 %v864
    %v2345 = vunpack.c.l.b16 %v865
    %v2346 = vunpack.c.h.b16 %v865
    %v2347 = vunpack.c.l.b16 %v866
    %v2348 = vunpack.c.h.b16 %v866
    %v2349 = vunpack.c.l.b16 %v867
    %v2350 = vunpack.c.h.b16 %v867
    %v2351 = vunpack.c.l.b16 %v868
    %v2352 = vunpack.c.h.b16 %v868
    %v2353 = vunpack.c.l.b16 %v869
    %v2354 = vunpack.c.h.b16 %v869
    %v2355 = vunpack.c.l.b16 %v870
    %v2356 = vunpack.c.h.b16 %v870
    %v2357 = vunpack.c.l.b16 %v871
    %v2358 = vunpack.c.h.b16 %v871
    %v2359 = vunpack.c.l.b16 %v872
    %v2360 = vunpack.c.h.b16 %v872
    %v2361 = vunpack.c.l.b16 %v873
    %v2362 = vunpack.c.h.b16 %v873
    %v2363 = vunpack.c.l.b16 %v874
    %v2364 = vunpack.c.h.b16 %v874
    %v2365 = vunpack.c.l.b16 %v875
    %v2366 = vunpack.c.h.b16 %v875
    %v2367 = vunpack.c.l.b16 %v876
    %v2368 = vunpack.c.h.b16 %v876
    %v2369 = vunpack.c.l.b16 %v877
    %v2370 = vunpack.c.h.b16 %v877
    %v2371 = vunpack.c.l.b16 %v878
    %v2372 = vunpack.c.h.b16 %v878
    %v2373 = vunpack.c.l.b16 %v879
    %v2374 = vunpack.c.h.b16 %v879
    %v2375 = vunpack.c.l.b16 %v880
    %v2376 = vunpack.c.h.b16 %v880
    %v2377 = vunpack.c.l.b16 %v881
    %v2378 = vunpack.c.h.b16 %v881
    %v2379 = vunpack.c.l.b16 %v882
    %v2380 = vunpack.c.h.b16 %v882
    %v2381 = vunpack.c.l.b16 %v883
    %v2382 = vunpack.c.h.b16 %v883
    %v2383 = vunpack.c.l.b16 %v884
    %v2384 = vunpack.c.h.b16 %v884
    %v2385 = vunpack.c.l.b16 %v885
    %v2386 = vunpack.c.h.b16 %v885
    %v2387 = vunpack.c.l.b16 %v886
    %v2388 = vunpack.c.h.b16 %v886
    %v2389 = vunpack.c.l.b16 %v887
    %v2390 = vunpack.c.h.b16 %v887
    %v2391 = vunpack.c.l.b16 %v888
    %v2392 = vunpack.c.h.b16 %v888
    %v2393 = vunpack.c.l.b16 %v889
    %v2394 = vunpack.c.h.b16 %v889
    %v2395 = vunpack.c.l.b16 %v890
    %v2396 = vunpack.c.h.b16 %v890
    %v2397 = vunpack.c.l.b16 %v891
    %v2398 = vunpack.c.h.b16 %v891
    %v2399 = vunpack.c.l.b16 %v892
    %v2400 = vunpack.c.h.b16 %v892
    %v2401 = vunpack.c.l.b16 %v893
    %v2402 = vunpack.c.h.b16 %v893
    %v2403 = vunpack.c.l.b16 %v894
    %v2404 = vunpack.c.h.b16 %v894
    %v2405 = vunpack.c.l.b16 %v895
    %v2406 = vunpack.c.h.b16 %v895
    %v2407 = vunpack.c.l.b16 %v896
    %v2408 = vunpack.c.h.b16 %v896
    %v2409 = vunpack.c.l.b16 %v897
    %v2410 = vunpack.c.h.b16 %v897
    %v2411 = vunpack.c.l.b16 %v898
    %v2412 = vunpack.c.h.b16 %v898
    %v2413 = vunpack.c.l.b16 %v899
    %v2414 = vunpack.c.h.b16 %v899
    %v2415 = vunpack.c.l.b16 %v900
    %v2416 = vunpack.c.h.b16 %v900
    %v2417 = vunpack.c.l.b16 %v901
    %v2418 = vunpack.c.h.b16 %v901
    %v2419 = vunpack.c.l.b16 %v902
    %v2420 = vunpack.c.h.b16 %v902
    %v2421 = vunpack.c.l.b16 %v903
    %v2422 = vunpack.c.h.b16 %v903
    %v2423 = vunpack.c.l.b16 %v904
    %v2424 = vunpack.c.h.b16 %v904
    %v2425 = vunpack.c.l.b16 %v905
    %v2426 = vunpack.c.h.b16 %v905
    %v2427 = vunpack.c.l.b16 %v906
    %v2428 = vunpack.c.h.b16 %v906
    %v2429 = vunpack.c.l.b16 %v907
    %v2430 = vunpack.c.h.b16 %v907
    %v2431 = vunpack.c.l.b16 %v908
    %v2432 = vunpack.c.h.b16 %v908
    %v2433 = vunpack.c.l.b16 %v909
    %v2434 = vunpack.c.h.b16 %v909
    %v2435 = vunpack.c.l.b16 %v910
    %v2436 = vunpack.c.h.b16 %v910
    %v2437 = vunpack.c.l.b16 %v911
    %v2438 = vunpack.c.h.b16 %v911
    %v2439 = vunpack.c.l.b16 %v912
    %v2440 = vunpack.c.h.b16 %v912
    %v2441 = vunpack.c.l.b16 %v913
    %v2442 = vunpack.c.h.b16 %v913
    %v2443 = vunpack.c.l.b16 %v914
    %v2444 = vunpack.c.h.b16 %v914
    %v2445 = vunpack.c.l.b16 %v915
    %v2446 = vunpack.c.h.b16 %v915
    %v2447 = vunpack.c.l.b16 %v916
    %v2448 = vunpack.c.h.b16 %v916
    %v2449 = vunpack.c.l.b16 %v917
    %v2450 = vunpack.c.h.b16 %v917
    %v2451 = vunpack.c.l.b16 %v918
    %v2452 = vunpack.c.h.b16 %v918
    %v2453 = vunpack.c.l.b16 %v919
    %v2454 = vunpack.c.h.b16 %v919
    %v2455 = vunpack.c.l.b16 %v920
    %v2456 = vunpack.c.h.b16 %v920
    %v2457 = vunpack.c.l.b16 %v921
    %v2458 = vunpack.c.h.b16 %v921
    %v2459 = vunpack.c.l.b16 %v922
    %v2460 = vunpack.c.h.b16 %v922
    %v2461 = vunpack.c.l.b16 %v923
    %v2462 = vunpack.c.h.b16 %v923
    %v2463 = vunpack.c.l.b16 %v924
    %v2464 = vunpack.c.h.b16 %v924
    %v2465 = vunpack.c.l.b16 %v925
    %v2466 = vunpack.c.h.b16 %v925
    %v2467 = vunpack.c.l.b16 %v926
    %v2468 = vunpack.c.h.b16 %v926
    %v2469 = vunpack.c.l.b16 %v927
    %v2470 = vunpack.c.h.b16 %v927
    %v2471 = vunpack.c.l.b16 %v928
    %v2472 = vunpack.c.h.b16 %v928
    %v2473 = vunpack.c.l.b16 %v929
    %v2474 = vunpack.c.h.b16 %v929
    %v2475 = vunpack.c.l.b16 %v930
    %v2476 = vunpack.c.h.b16 %v930
    %v2477 = vunpack.c.l.b16 %v931
    %v2478 = vunpack.c.h.b16 %v931
    %v2479 = vunpack.c.l.b16 %v932
    %v2480 = vunpack.c.h.b16 %v932
    %v2481 = vunpack.c.l.b16 %v933
    %v2482 = vunpack.c.h.b16 %v933
    %v2483 = vunpack.c.l.b16 %v934
    %v2484 = vunpack.c.h.b16 %v934
    %v2485 = vunpack.c.l.b16 %v935
    %v2486 = vunpack.c.h.b16 %v935
    %v2487 = vunpack.c.l.b16 %v936
    %v2488 = vunpack.c.h.b16 %v936
    %v2489 = vunpack.c.l.b16 %v937
    %v2490 = vunpack.c.h.b16 %v937
    %v2491 = vunpack.c.l.b16 %v938
    %v2492 = vunpack.c.h.b16 %v938
    %v2493 = vunpack.c.l.b16 %v939
    %v2494 = vunpack.c.h.b16 %v939
    %v2495 = vunpack.c.l.b16 %v940
    %v2496 = vunpack.c.h.b16 %v940
    %v2497 = vunpack.c.l.b16 %v941
    %v2498 = vunpack.c.h.b16 %v941
    %v2499 = vunpack.c.l.b16 %v942
    %v2500 = vunpack.c.h.b16 %v942
    %v2501 = vunpack.c.l.b16 %v943
    %v2502 = vunpack.c.h.b16 %v943
    %v2503 = vunpack.c.l.b16 %v944
    %v2504 = vunpack.c.h.b16 %v944
    %v2505 = vunpack.c.l.b16 %v945
    %v2506 = vunpack.c.h.b16 %v945
    %v2507 = vunpack.c.l.b16 %v946
    %v2508 = vunpack.c.h.b16 %v946
    %v2509 = vunpack.c.l.b16 %v947
    %v2510 = vunpack.c.h.b16 %v947
    %v2511 = vunpack.c.l.b16 %v948
    %v2512 = vunpack.c.h.b16 %v948
    %v2513 = vunpack.c.l.b16 %v949
    %v2514 = vunpack.c.h.b16 %v949
    %v2515 = vunpack.c.l.b16 %v950
    %v2516 = vunpack.c.h.b16 %v950
    %v2517 = vunpack.c.l.b16 %v951
    %v2518 = vunpack.c.h.b16 %v951
    %v2519 = vunpack.c.l.b16 %v952
    %v2520 = vunpack.c.h.b16 %v952
    %v2521 = vunpack.c.l.b16 %v953
    %v2522 = vunpack.c.h.b16 %v953
    %v2523 = vunpack.c.l.b16 %v954
    %v2524 = vunpack.c.h.b16 %v954
    %v2525 = vunpack.c.l.b16 %v955
    %v2526 = vunpack.c.h.b16 %v955
    %v2527 = vunpack.c.l.b16 %v956
    %v2528 = vunpack.c.h.b16 %v956
    %v2529 = vunpack.c.l.b16 %v957
    %v2530 = vunpack.c.h.b16 %v957
    %v2531 = vunpack.c.l.b16 %v958
    %v2532 = vunpack.c.h.b16 %v958
    %v2533 = vunpack.c.l.b16 %v959
    %v2534 = vunpack.c.h.b16 %v959
    %v2535 = vunpack.c.l.b16 %v960
    %v2536 = vunpack.c.h.b16 %v960
    %v2537 = vunpack.c.l.b16 %v961
    %v2538 = vunpack.c.h.b16 %v961
    %v2539 = vunpack.c.l.b16 %v962
    %v2540 = vunpack.c.h.b16 %v962
    %v2541 = vpack.c.b16 %v1525, %v1517
    %v2542 = vpack.c.b16 %v1526, %v1518
    %v2543 = vpack.c.b16 %v1527, %v1519
    %v2544 = vpack.c.b16 %v1528, %v1520
    %v2545 = vpack.c.b16 %v1529, %v1521
    %v2546 = vpack.c.b16 %v1530, %v1522
    %v2547 = vpack.c.b16 %v1531, %v1523
    %v2548 = vpack.c.b16 %v1532, %v1524
    %v2549 = vpack.c.b16 %v1541, %v1533
    %v2550 = vpack.c.b16 %v1542, %v1534
    %v2551 = vpack.c.b16 %v1543, %v1535
    %v2552 = vpack.c.b16 %v1544, %v1536
    %v2553 = vpack.c.b16 %v1545, %v1537
    %v2554 = vpack.c.b16 %v1546, %v1538
    %v2555 = vpack.c.b16 %v1547, %v1539
    %v2556 = vpack.c.b16 %v1548, %v1540
    %v2557 = vpack.c.b16 %v1557, %v1549
    %v2558 = vpack.c.b16 %v1558, %v1550
    %v2559 = vpack.c.b16 %v1559, %v1551
    %v2560 = vpack.c.b16 %v1560, %v1552
    %v2561 = vpack.c.b16 %v1561, %v1553
    %v2562 = vpack.c.b16 %v1562, %v1554
    %v2563 = vpack.c.b16 %v1563, %v1555
    %v2564 = vpack.c.b16 %v1564, %v1556
    %v2565 = vpack.c.b16 %v1573, %v1565
    %v2566 = vpack.c.b16 %v1574, %v1566
    %v2567 = vpack.c.b16 %v1575, %v1567
    %v2568 = vpack.c.b16 %v1576, %v1568
    %v2569 = vpack.c.b16 %v1577, %v1569
    %v2570 = vpack.c.b16 %v1578, %v1570
    %v2571 = vpack.c.b16 %v1579, %v1571
    %v2572 = vpack.c.b16 %v1580, %v1572
    %v2573 = vpack.c.b16 %v1589, %v1581
    %v2574 = vpack.c.b16 %v1590, %v1582
    %v2575 = vpack.c.b16 %v1591, %v1583
    %v2576 = vpack.c.b16 %v1592, %v1584
    %v2577 = vpack.c.b16 %v1593, %v1585
    %v2578 = vpack.c.b16 %v1594, %v1586
    %v2579 = vpack.c.b16 %v1595, %v1587
    %v2580 = vpack.c.b16 %v1596, %v1588
    %v2581 = vpack.c.b16 %v1605, %v1597
    %v2582 = vpack.c.b16 %v1606, %v1598
    %v2583 = vpack.c.b16 %v1607, %v1599
    %v2584 = vpack.c.b16 %v1608, %v1600
    %v2585 = vpack.c.b16 %v1609, %v1601
    %v2586 = vpack.c.b16 %v1610, %v1602
    %v2587 = vpack.c.b16 %v1611, %v1603
    %v2588 = vpack.c.b16 %v1612, %v1604
    %v2589 = vpack.c.b16 %v1621, %v1613
    %v2590 = vpack.c.b16 %v1622, %v1614
    %v2591 = vpack.c.b16 %v1623, %v1615
    %v2592 = vpack.c.b16 %v1624, %v1616
    %v2593 = vpack.c.b16 %v1625, %v1617
    %v2594 = vpack.c.b16 %v1626, %v1618
    %v2595 = vpack.c.b16 %v1627, %v1619
    %v2596 = vpack.c.b16 %v1628, %v1620
    %v2597 = vpack.c.b16 %v1637, %v1629
    %v2598 = vpack.c.b16 %v1638, %v1630
    %v2599 = vpack.c.b16 %v1639, %v1631
    %v2600 = vpack.c.b16 %v1640, %v1632
    %v2601 = vpack.c.b16 %v1641, %v1633
    %v2602 = vpack.c.b16 %v1642, %v1634
    %v2603 = vpack.c.b16 %v1643, %v1635
    %v2604 = vpack.c.b16 %v1644, %v1636
    %v2605 = vpack.c.b16 %v1653, %v1645
    %v2606 = vpack.c.b16 %v1654, %v1646
    %v2607 = vpack.c.b16 %v1655, %v1647
    %v2608 = vpack.c.b16 %v1656, %v1648
    %v2609 = vpack.c.b16 %v1657, %v1649
    %v2610 = vpack.c.b16 %v1658, %v1650
    %v2611 = vpack.c.b16 %v1659, %v1651
    %v2612 = vpack.c.b16 %v1660, %v1652
    %v2613 = vpack.c.b16 %v1669, %v1661
    %v2614 = vpack.c.b16 %v1670, %v1662
    %v2615 = vpack.c.b16 %v1671, %v1663
    %v2616 = vpack.c.b16 %v1672, %v1664
    %v2617 = vpack.c.b16 %v1673, %v1665
    %v2618 = vpack.c.b16 %v1674, %v1666
    %v2619 = vpack.c.b16 %v1675, %v1667
    %v2620 = vpack.c.b16 %v1676, %v1668
    %v2621 = vpack.c.b16 %v1685, %v1677
    %v2622 = vpack.c.b16 %v1686, %v1678
    %v2623 = vpack.c.b16 %v1687, %v1679
    %v2624 = vpack.c.b16 %v1688, %v1680
    %v2625 = vpack.c.b16 %v1689, %v1681
    %v2626 = vpack.c.b16 %v1690, %v1682
    %v2627 = vpack.c.b16 %v1691, %v1683
    %v2628 = vpack.c.b16 %v1692, %v1684
    %v2629 = vpack.c.b16 %v1701, %v1693
    %v2630 = vpack.c.b16 %v1702, %v1694
    %v2631 = vpack.c.b16 %v1703, %v1695
    %v2632 = vpack.c.b16 %v1704, %v1696
    %v2633 = vpack.c.b16 %v1705, %v1697
    %v2634 = vpack.c.b16 %v1706, %v1698
    %v2635 = vpack.c.b16 %v1707, %v1699
    %v2636 = vpack.c.b16 %v1708, %v1700
    %v2637 = vpack.c.b16 %v1717, %v1709
    %v2638 = vpack.c.b16 %v1718, %v1710
    %v2639 = vpack.c.b16 %v1719, %v1711
    %v2640 = vpack.c.b16 %v1720, %v1712
    %v2641 = vpack.c.b16 %v1721, %v1713
    %v2642 = vpack.c.b16 %v1722, %v1714
    %v2643 = vpack.c.b16 %v1723, %v1715
    %v2644 = vpack.c.b16 %v1724, %v1716
    %v2645 = vpack.c.b16 %v1733, %v1725
    %v2646 = vpack.c.b16 %v1734, %v1726
    %v2647 = vpack.c.b16 %v1735, %v1727
    %v2648 = vpack.c.b16 %v1736, %v1728
    %v2649 = vpack.c.b16 %v1737, %v1729
    %v2650 = vpack.c.b16 %v1738, %v1730
    %v2651 = vpack.c.b16 %v1739, %v1731
    %v2652 = vpack.c.b16 %v1740, %v1732
    %v2653 = vpack.c.b16 %v1749, %v1741
    %v2654 = vpack.c.b16 %v1750, %v1742
    %v2655 = vpack.c.b16 %v1751, %v1743
    %v2656 = vpack.c.b16 %v1752, %v1744
    %v2657 = vpack.c.b16 %v1753, %v1745
    %v2658 = vpack.c.b16 %v1754, %v1746
    %v2659 = vpack.c.b16 %v1755, %v1747
    %v2660 = vpack.c.b16 %v1756, %v1748
    %v2661 = vpack.c.b16 %v1765, %v1757
    %v2662 = vpack.c.b16 %v1766, %v1758
    %v2663 = vpack.c.b16 %v1767, %v1759
    %v2664 = vpack.c.b16 %v1768, %v1760
    %v2665 = vpack.c.b16 %v1769, %v1761
    %v2666 = vpack.c.b16 %v1770, %v1762
    %v2667 = vpack.c.b16 %v1771, %v1763
    %v2668 = vpack.c.b16 %v1772, %v1764
    %v2669 = vpack.c.b16 %v1781, %v1773
    %v2670 = vpack.c.b16 %v1782, %v1774
    %v2671 = vpack.c.b16 %v1783, %v1775
    %v2672 = vpack.c.b16 %v1784, %v1776
    %v2673 = vpack.c.b16 %v1785, %v1777
    %v2674 = vpack.c.b16 %v1786, %v1778
    %v2675 = vpack.c.b16 %v1787, %v1779
    %v2676 = vpack.c.b16 %v1788, %v1780
    %v2677 = vpack.c.b16 %v1797, %v1789
    %v2678 = vpack.c.b16 %v1798, %v1790
    %v2679 = vpack.c.b16 %v1799, %v1791
    %v2680 = vpack.c.b16 %v1800, %v1792
    %v2681 = vpack.c.b16 %v1801, %v1793
    %v2682 = vpack.c.b16 %v1802, %v1794
    %v2683 = vpack.c.b16 %v1803, %v1795
    %v2684 = vpack.c.b16 %v1804, %v1796
    %v2685 = vpack.c.b16 %v1813, %v1805
    %v2686 = vpack.c.b16 %v1814, %v1806
    %v2687 = vpack.c.b16 %v1815, %v1807
    %v2688 = vpack.c.b16 %v1816, %v1808
    %v2689 = vpack.c.b16 %v1817, %v1809
    %v2690 = vpack.c.b16 %v1818, %v1810
    %v2691 = vpack.c.b16 %v1819, %v1811
    %v2692 = vpack.c.b16 %v1820, %v1812
    %v2693 = vpack.c.b16 %v1829, %v1821
    %v2694 = vpack.c.b16 %v1830, %v1822
    %v2695 = vpack.c.b16 %v1831, %v1823
    %v2696 = vpack.c.b16 %v1832, %v1824
    %v2697 = vpack.c.b16 %v1833, %v1825
    %v2698 = vpack.c.b16 %v1834, %v1826
    %v2699 = vpack.c.b16 %v1835, %v1827
    %v2700 = vpack.c.b16 %v1836, %v1828
    %v2701 = vpack.c.b16 %v1845, %v1837
    %v2702 = vpack.c.b16 %v1846, %v1838
    %v2703 = vpack.c.b16 %v1847, %v1839
    %v2704 = vpack.c.b16 %v1848, %v1840
    %v2705 = vpack.c.b16 %v1849, %v1841
    %v2706 = vpack.c.b16 %v1850, %v1842
    %v2707 = vpack.c.b16 %v1851, %v1843
    %v2708 = vpack.c.b16 %v1852, %v1844
    %v2709 = vpack.c.b16 %v1861, %v1853
    %v2710 = vpack.c.b16 %v1862, %v1854
    %v2711 = vpack.c.b16 %v1863, %v1855
    %v2712 = vpack.c.b16 %v1864, %v1856
    %v2713 = vpack.c.b16 %v1865, %v1857
    %v2714 = vpack.c.b16 %v1866, %v1858
    %v2715 = vpack.c.b16 %v1867, %v1859
    %v2716 = vpack.c.b16 %v1868, %v1860
    %v2717 = vpack.c.b16 %v1877, %v1869
    %v2718 = vpack.c.b16 %v1878, %v1870
    %v2719 = vpack.c.b16 %v1879, %v1871
    %v2720 = vpack.c.b16 %v1880, %v1872
    %v2721 = vpack.c.b16 %v1881, %v1873
    %v2722 = vpack.c.b16 %v1882, %v1874
    %v2723 = vpack.c.b16 %v1883, %v1875
    %v2724 = vpack.c.b16 %v1884, %v1876
    %v2725 = vpack.c.b16 %v1893, %v1885
    %v2726 = vpack.c.b16 %v1894, %v1886
    %v2727 = vpack.c.b16 %v1895, %v1887
    %v2728 = vpack.c.b16 %v1896, %v1888
    %v2729 = vpack.c.b16 %v1897, %v1889
    %v2730 = vpack.c.b16 %v1898, %v1890
    %v2731 = vpack.c.b16 %v1899, %v1891
    %v2732 = vpack.c.b16 %v1900, %v1892
    %v2733 = vpack.c.b16 %v1909, %v1901
    %v2734 = vpack.c.b16 %v1910, %v1902
    %v2735 = vpack.c.b16 %v1911, %v1903
    %v2736 = vpack.c.b16 %v1912, %v1904
    %v2737 = vpack.c.b16 %v1913, %v1905
    %v2738 = vpack.c.b16 %v1914, %v1906
    %v2739 = vpack.c.b16 %v1915, %v1907
    %v2740 = vpack.c.b16 %v1916, %v1908
    %v2741 = vpack.c.b16 %v1925, %v1917
    %v2742 = vpack.c.b16 %v1926, %v1918
    %v2743 = vpack.c.b16 %v1927, %v1919
    %v2744 = vpack.c.b16 %v1928, %v1920
    %v2745 = vpack.c.b16 %v1929, %v1921
    %v2746 = vpack.c.b16 %v1930, %v1922
    %v2747 = vpack.c.b16 %v1931, %v1923
    %v2748 = vpack.c.b16 %v1932, %v1924
    %v2749 = vpack.c.b16 %v1941, %v1933
    %v2750 = vpack.c.b16 %v1942, %v1934
    %v2751 = vpack.c.b16 %v1943, %v1935
    %v2752 = vpack.c.b16 %v1944, %v1936
    %v2753 = vpack.c.b16 %v1945, %v1937
    %v2754 = vpack.c.b16 %v1946, %v1938
    %v2755 = vpack.c.b16 %v1947, %v1939
    %v2756 = vpack.c.b16 %v1948, %v1940
    %v2757 = vpack.c.b16 %v1957, %v1949
    %v2758 = vpack.c.b16 %v1958, %v1950
    %v2759 = vpack.c.b16 %v1959, %v1951
    %v2760 = vpack.c.b16 %v1960, %v1952
    %v2761 = vpack.c.b16 %v1961, %v1953
    %v2762 = vpack.c.b16 %v1962, %v1954
    %v2763 = vpack.c.b16 %v1963, %v1955
    %v2764 = vpack.c.b16 %v1964, %v1956
    %v2765 = vpack.c.b16 %v1973, %v1965
    %v2766 = vpack.c.b16 %v1974, %v1966
    %v2767 = vpack.c.b16 %v1975, %v1967
    %v2768 = vpack.c.b16 %v1976, %v1968
    %v2769 = vpack.c.b16 %v1977, %v1969
    %v2770 = vpack.c.b16 %v1978, %v1970
    %v2771 = vpack.c.b16 %v1979, %v1971
    %v2772 = vpack.c.b16 %v1980, %v1972
    %v2773 = vpack.c.b16 %v1989, %v1981
    %v2774 = vpack.c.b16 %v1990, %v1982
    %v2775 = vpack.c.b16 %v1991, %v1983
    %v2776 = vpack.c.b16 %v1992, %v1984
    %v2777 = vpack.c.b16 %v1993, %v1985
    %v2778 = vpack.c.b16 %v1994, %v1986
    %v2779 = vpack.c.b16 %v1995, %v1987
    %v2780 = vpack.c.b16 %v1996, %v1988
    %v2781 = vpack.c.b16 %v2005, %v1997
    %v2782 = vpack.c.b16 %v2006, %v1998
    %v2783 = vpack.c.b16 %v2007, %v1999
    %v2784 = vpack.c.b16 %v2008, %v2000
    %v2785 = vpack.c.b16 %v2009, %v2001
    %v2786 = vpack.c.b16 %v2010, %v2002
    %v2787 = vpack.c.b16 %v2011, %v2003
    %v2788 = vpack.c.b16 %v2012, %v2004
    %v2789 = vpack.c.b16 %v2021, %v2013
    %v2790 = vpack.c.b16 %v2022, %v2014
    %v2791 = vpack.c.b16 %v2023, %v2015
    %v2792 = vpack.c.b16 %v2024, %v2016
    %v2793 = vpack.c.b16 %v2025, %v2017
    %v2794 = vpack.c.b16 %v2026, %v2018
    %v2795 = vpack.c.b16 %v2027, %v2019
    %v2796 = vpack.c.b16 %v2028, %v2020
    %v2797 = vpack.c.b16 %v2037, %v2029
    %v2798 = vpack.c.b16 %v2038, %v2030
    %v2799 = vpack.c.b16 %v2039, %v2031
    %v2800 = vpack.c.b16 %v2040, %v2032
    %v2801 = vpack.c.b16 %v2041, %v2033
    %v2802 = vpack.c.b16 %v2042, %v2034
    %v2803 = vpack.c.b16 %v2043, %v2035
    %v2804 = vpack.c.b16 %v2044, %v2036
    %v2805 = vpack.c.b16 %v2053, %v2045
    %v2806 = vpack.c.b16 %v2054, %v2046
    %v2807 = vpack.c.b16 %v2055, %v2047
    %v2808 = vpack.c.b16 %v2056, %v2048
    %v2809 = vpack.c.b16 %v2057, %v2049
    %v2810 = vpack.c.b16 %v2058, %v2050
    %v2811 = vpack.c.b16 %v2059, %v2051
    %v2812 = vpack.c.b16 %v2060, %v2052
    %v2813 = vpack.c.b16 %v2069, %v2061
    %v2814 = vpack.c.b16 %v2070, %v2062
    %v2815 = vpack.c.b16 %v2071, %v2063
    %v2816 = vpack.c.b16 %v2072, %v2064
    %v2817 = vpack.c.b16 %v2073, %v2065
    %v2818 = vpack.c.b16 %v2074, %v2066
    %v2819 = vpack.c.b16 %v2075, %v2067
    %v2820 = vpack.c.b16 %v2076, %v2068
    %v2821 = vpack.c.b16 %v2085, %v2077
    %v2822 = vpack.c.b16 %v2086, %v2078
    %v2823 = vpack.c.b16 %v2087, %v2079
    %v2824 = vpack.c.b16 %v2088, %v2080
    %v2825 = vpack.c.b16 %v2089, %v2081
    %v2826 = vpack.c.b16 %v2090, %v2082
    %v2827 = vpack.c.b16 %v2091, %v2083
    %v2828 = vpack.c.b16 %v2092, %v2084
    %v2829 = vpack.c.b16 %v2101, %v2093
    %v2830 = vpack.c.b16 %v2102, %v2094
    %v2831 = vpack.c.b16 %v2103, %v2095
    %v2832 = vpack.c.b16 %v2104, %v2096
    %v2833 = vpack.c.b16 %v2105, %v2097
    %v2834 = vpack.c.b16 %v2106, %v2098
    %v2835 = vpack.c.b16 %v2107, %v2099
    %v2836 = vpack.c.b16 %v2108, %v2100
    %v2837 = vpack.c.b16 %v2117, %v2109
    %v2838 = vpack.c.b16 %v2118, %v2110
    %v2839 = vpack.c.b16 %v2119, %v2111
    %v2840 = vpack.c.b16 %v2120, %v2112
    %v2841 = vpack.c.b16 %v2121, %v2113
    %v2842 = vpack.c.b16 %v2122, %v2114
    %v2843 = vpack.c.b16 %v2123, %v2115
    %v2844 = vpack.c.b16 %v2124, %v2116
    %v2845 = vpack.c.b16 %v2133, %v2125
    %v2846 = vpack.c.b16 %v2134, %v2126
    %v2847 = vpack.c.b16 %v2135, %v2127
    %v2848 = vpack.c.b16 %v2136, %v2128
    %v2849 = vpack.c.b16 %v2137, %v2129
    %v2850 = vpack.c.b16 %v2138, %v2130
    %v2851 = vpack.c.b16 %v2139, %v2131
    %v2852 = vpack.c.b16 %v2140, %v2132
    %v2853 = vpack.c.b16 %v2149, %v2141
    %v2854 = vpack.c.b16 %v2150, %v2142
    %v2855 = vpack.c.b16 %v2151, %v2143
    %v2856 = vpack.c.b16 %v2152, %v2144
    %v2857 = vpack.c.b16 %v2153, %v2145
    %v2858 = vpack.c.b16 %v2154, %v2146
    %v2859 = vpack.c.b16 %v2155, %v2147
    %v2860 = vpack.c.b16 %v2156, %v2148
    %v2861 = vpack.c.b16 %v2165, %v2157
    %v2862 = vpack.c.b16 %v2166, %v2158
    %v2863 = vpack.c.b16 %v2167, %v2159
    %v2864 = vpack.c.b16 %v2168, %v2160
    %v2865 = vpack.c.b16 %v2169, %v2161
    %v2866 = vpack.c.b16 %v2170, %v2162
    %v2867 = vpack.c.b16 %v2171, %v2163
    %v2868 = vpack.c.b16 %v2172, %v2164
    %v2869 = vpack.c.b16 %v2181, %v2173
    %v2870 = vpack.c.b16 %v2182, %v2174
    %v2871 = vpack.c.b16 %v2183, %v2175
    %v2872 = vpack.c.b16 %v2184, %v2176
    %v2873 = vpack.c.b16 %v2185, %v2177
    %v2874 = vpack.c.b16 %v2186, %v2178
    %v2875 = vpack.c.b16 %v2187, %v2179
    %v2876 = vpack.c.b16 %v2188, %v2180
    %v2877 = vpack.c.b16 %v2197, %v2189
    %v2878 = vpack.c.b16 %v2198, %v2190
    %v2879 = vpack.c.b16 %v2199, %v2191
    %v2880 = vpack.c.b16 %v2200, %v2192
    %v2881 = vpack.c.b16 %v2201, %v2193
    %v2882 = vpack.c.b16 %v2202, %v2194
    %v2883 = vpack.c.b16 %v2203, %v2195
    %v2884 = vpack.c.b16 %v2204, %v2196
    %v2885 = vpack.c.b16 %v2213, %v2205
    %v2886 = vpack.c.b16 %v2214, %v2206
    %v2887 = vpack.c.b16 %v2215, %v2207
    %v2888 = vpack.c.b16 %v2216, %v2208
    %v2889 = vpack.c.b16 %v2217, %v2209
    %v2890 = vpack.c.b16 %v2218, %v2210
    %v2891 = vpack.c.b16 %v2219, %v2211
    %v2892 = vpack.c.b16 %v2220, %v2212
    %v2893 = vpack.c.b16 %v2229, %v2221
    %v2894 = vpack.c.b16 %v2230, %v2222
    %v2895 = vpack.c.b16 %v2231, %v2223
    %v2896 = vpack.c.b16 %v2232, %v2224
    %v2897 = vpack.c.b16 %v2233, %v2225
    %v2898 = vpack.c.b16 %v2234, %v2226
    %v2899 = vpack.c.b16 %v2235, %v2227
    %v2900 = vpack.c.b16 %v2236, %v2228
    %v2901 = vpack.c.b16 %v2245, %v2237
    %v2902 = vpack.c.b16 %v2246, %v2238
    %v2903 = vpack.c.b16 %v2247, %v2239
    %v2904 = vpack.c.b16 %v2248, %v2240
    %v2905 = vpack.c.b16 %v2249, %v2241
    %v2906 = vpack.c.b16 %v2250, %v2242
    %v2907 = vpack.c.b16 %v2251, %v2243
    %v2908 = vpack.c.b16 %v2252, %v2244
    %v2909 = vpack.c.b16 %v2261, %v2253
    %v2910 = vpack.c.b16 %v2262, %v2254
    %v2911 = vpack.c.b16 %v2263, %v2255
    %v2912 = vpack.c.b16 %v2264, %v2256
    %v2913 = vpack.c.b16 %v2265, %v2257
    %v2914 = vpack.c.b16 %v2266, %v2258
    %v2915 = vpack.c.b16 %v2267, %v2259
    %v2916 = vpack.c.b16 %v2268, %v2260
    %v2917 = vpack.c.b16 %v2277, %v2269
    %v2918 = vpack.c.b16 %v2278, %v2270
    %v2919 = vpack.c.b16 %v2279, %v2271
    %v2920 = vpack.c.b16 %v2280, %v2272
    %v2921 = vpack.c.b16 %v2281, %v2273
    %v2922 = vpack.c.b16 %v2282, %v2274
    %v2923 = vpack.c.b16 %v2283, %v2275
    %v2924 = vpack.c.b16 %v2284, %v2276
    %v2925 = vpack.c.b16 %v2293, %v2285
    %v2926 = vpack.c.b16 %v2294, %v2286
    %v2927 = vpack.c.b16 %v2295, %v2287
    %v2928 = vpack.c.b16 %v2296, %v2288
    %v2929 = vpack.c.b16 %v2297, %v2289
    %v2930 = vpack.c.b16 %v2298, %v2290
    %v2931 = vpack.c.b16 %v2299, %v2291
    %v2932 = vpack.c.b16 %v2300, %v2292
    %v2933 = vpack.c.b16 %v2309, %v2301
    %v2934 = vpack.c.b16 %v2310, %v2302
    %v2935 = vpack.c.b16 %v2311, %v2303
    %v2936 = vpack.c.b16 %v2312, %v2304
    %v2937 = vpack.c.b16 %v2313, %v2305
    %v2938 = vpack.c.b16 %v2314, %v2306
    %v2939 = vpack.c.b16 %v2315, %v2307
    %v2940 = vpack.c.b16 %v2316, %v2308
    %v2941 = vpack.c.b16 %v2325, %v2317
    %v2942 = vpack.c.b16 %v2326, %v2318
    %v2943 = vpack.c.b16 %v2327, %v2319
    %v2944 = vpack.c.b16 %v2328, %v2320
    %v2945 = vpack.c.b16 %v2329, %v2321
    %v2946 = vpack.c.b16 %v2330, %v2322
    %v2947 = vpack.c.b16 %v2331, %v2323
    %v2948 = vpack.c.b16 %v2332, %v2324
    %v2949 = vpack.c.b16 %v2341, %v2333
    %v2950 = vpack.c.b16 %v2342, %v2334
    %v2951 = vpack.c.b16 %v2343, %v2335
    %v2952 = vpack.c.b16 %v2344, %v2336
    %v2953 = vpack.c.b16 %v2345, %v2337
    %v2954 = vpack.c.b16 %v2346, %v2338
    %v2955 = vpack.c.b16 %v2347, %v2339
    %v2956 = vpack.c.b16 %v2348, %v2340
    %v2957 = vpack.c.b16 %v2357, %v2349
    %v2958 = vpack.c.b16 %v2358, %v2350
    %v2959 = vpack.c.b16 %v2359, %v2351
    %v2960 = vpack.c.b16 %v2360, %v2352
    %v2961 = vpack.c.b16 %v2361, %v2353
    %v2962 = vpack.c.b16 %v2362, %v2354
    %v2963 = vpack.c.b16 %v2363, %v2355
    %v2964 = vpack.c.b16 %v2364, %v2356
    %v2965 = vpack.c.b16 %v2373, %v2365
    %v2966 = vpack.c.b16 %v2374, %v2366
    %v2967 = vpack.c.b16 %v2375, %v2367
    %v2968 = vpack.c.b16 %v2376, %v2368
    %v2969 = vpack.c.b16 %v2377, %v2369
    %v2970 = vpack.c.b16 %v2378, %v2370
    %v2971 = vpack.c.b16 %v2379, %v2371
    %v2972 = vpack.c.b16 %v2380, %v2372
    %v2973 = vpack.c.b16 %v2389, %v2381
    %v2974 = vpack.c.b16 %v2390, %v2382
    %v2975 = vpack.c.b16 %v2391, %v2383
    %v2976 = vpack.c.b16 %v2392, %v2384
    %v2977 = vpack.c.b16 %v2393, %v2385
    %v2978 = vpack.c.b16 %v2394, %v2386
    %v2979 = vpack.c.b16 %v2395, %v2387
    %v2980 = vpack.c.b16 %v2396, %v2388
    %v2981 = vpack.c.b16 %v2405, %v2397
    %v2982 = vpack.c.b16 %v2406, %v2398
    %v2983 = vpack.c.b16 %v2407, %v2399
    %v2984 = vpack.c.b16 %v2408, %v2400
    %v2985 = vpack.c.b16 %v2409, %v2401
    %v2986 = vpack.c.b16 %v2410, %v2402
    %v2987 = vpack.c.b16 %v2411, %v2403
    %v2988 = vpack.c.b16 %v2412, %v2404
    %v2989 = vpack.c.b16 %v2421, %v2413
    %v2990 = vpack.c.b16 %v2422, %v2414
    %v2991 = vpack.c.b16 %v2423, %v2415
    %v2992 = vpack.c.b16 %v2424, %v2416
    %v2993 = vpack.c.b16 %v2425, %v2417
    %v2994 = vpack.c.b16 %v2426, %v2418
    %v2995 = vpack.c.b16 %v2427, %v2419
    %v2996 = vpack.c.b16 %v2428, %v2420
    %v2997 = vpack.c.b16 %v2437, %v2429
    %v2998 = vpack.c.b16 %v2438, %v2430
    %v2999 = vpack.c.b16 %v2439, %v2431
    %v3000 = vpack.c.b16 %v2440, %v2432
    %v3001 = vpack.c.b16 %v2441, %v2433
    %v3002 = vpack.c.b16 %v2442, %v2434
    %v3003 = vpack.c.b16 %v2443, %v2435
    %v3004 = vpack.c.b16 %v2444, %v2436
    %v3005 = vpack.c.b16 %v2453, %v2445
    %v3006 = vpack.c.b16 %v2454, %v2446
    %v3007 = vpack.c.b16 %v2455, %v2447
    %v3008 = vpack.c.b16 %v2456, %v2448
    %v3009 = vpack.c.b16 %v2457, %v2449
    %v3010 = vpack.c.b16 %v2458, %v2450
    %v3011 = vpack.c.b16 %v2459, %v2451
    %v3012 = vpack.c.b16 %v2460, %v2452
    %v3013 = vpack.c.b16 %v2469, %v2461
    %v3014 = vpack.c.b16 %v2470, %v2462
    %v3015 = vpack.c.b16 %v2471, %v2463
    %v3016 = vpack.c.b16 %v2472, %v2464
    %v3017 = vpack.c.b16 %v2473, %v2465
    %v3018 = vpack.c.b16 %v2474, %v2466
    %v3019 = vpack.c.b16 %v2475, %v2467
    %v3020 = vpack.c.b16 %v2476, %v2468
    %v3021 = vpack.c.b16 %v2485, %v2477
    %v3022 = vpack.c.b16 %v2486, %v2478
    %v3023 = vpack.c.b16 %v2487, %v2479
    %v3024 = vpack.c.b16 %v2488, %v2480
    %v3025 = vpack.c.b16 %v2489, %v2481
    %v3026 = vpack.c.b16 %v2490, %v2482
    %v3027 = vpack.c.b16 %v2491, %v2483
    %v3028 = vpack.c.b16 %v2492, %v2484
    %v3029 = vpack.c.b16 %v2501, %v2493
    %v3030 = vpack.c.b16 %v2502, %v2494
    %v3031 = vpack.c.b16 %v2503, %v2495
    %v3032 = vpack.c.b16 %v2504, %v2496
    %v3033 = vpack.c.b16 %v2505, %v2497
    %v3034 = vpack.c.b16 %v2506, %v2498
    %v3035 = vpack.c.b16 %v2507, %v2499
    %v3036 = vpack.c.b16 %v2508, %v2500
    %v3037 = vpack.c.b16 %v2517, %v2509
    %v3038 = vpack.c.b16 %v2518, %v2510
    %v3039 = vpack.c.b16 %v2519, %v2511
    %v3040 = vpack.c.b16 %v2520, %v2512
    %v3041 = vpack.c.b16 %v2521, %v2513
    %v3042 = vpack.c.b16 %v2522, %v2514
    %v3043 = vpack.c.b16 %v2523, %v2515
    %v3044 = vpack.c.b16 %v2524, %v2516
    %v3045 = vpack.c.b16 %v2533, %v2525
    %v3046 = vpack.c.b16 %v2534, %v2526
    %v3047 = vpack.c.b16 %v2535, %v2527
    %v3048 = vpack.c.b16 %v2536, %v2528
    %v3049 = vpack.c.b16 %v2537, %v2529
    %v3050 = vpack.c.b16 %v2538, %v2530
    %v3051 = vpack.c.b16 %v2539, %v2531
    %v3052 = vpack.c.b16 %v2540, %v2532
    %3565 = vmatprep.subr.bf16.mxu0 %v2542
    %3566 = vmatpush1.bf16.msra.mxu0 %v2541
    %3567 = vmatprep.subr.bf16.mxu0 %v2550
    %3568 = vmatpush1.bf16.msra.mxu0 %v2549
    %3569 = vmatprep.subr.bf16.mxu0 %v2558
    %3570 = vmatpush1.bf16.msra.mxu0 %v2557
    %3571 = vmatprep.subr.bf16.mxu0 %v2566
    %3572 = vmatpush1.bf16.msra.mxu0 %v2565
    %3573 = vmatprep.subr.bf16.mxu0 %v2574
    %3574 = vmatpush1.bf16.msra.mxu0 %v2573
    %3575 = vmatprep.subr.bf16.mxu0 %v2582
    %3576 = vmatpush1.bf16.msra.mxu0 %v2581
    %3577 = vmatprep.subr.bf16.mxu0 %v2590
    %3578 = vmatpush1.bf16.msra.mxu0 %v2589
    %3579 = vmatprep.subr.bf16.mxu0 %v2598
    %3580 = vmatpush1.bf16.msra.mxu0 %v2597
    %3581 = vmatprep.subr.bf16.mxu0 %v2606
    %3582 = vmatpush1.bf16.msra.mxu0 %v2605
    %3583 = vmatprep.subr.bf16.mxu0 %v2614
    %3584 = vmatpush1.bf16.msra.mxu0 %v2613
    %3585 = vmatprep.subr.bf16.mxu0 %v2622
    %3586 = vmatpush1.bf16.msra.mxu0 %v2621
    %3587 = vmatprep.subr.bf16.mxu0 %v2630
    %3588 = vmatpush1.bf16.msra.mxu0 %v2629
    %3589 = vmatprep.subr.bf16.mxu0 %v2638
    %3590 = vmatpush1.bf16.msra.mxu0 %v2637
    %3591 = vmatprep.subr.bf16.mxu0 %v2646
    %3592 = vmatpush1.bf16.msra.mxu0 %v2645
    %3593 = vmatprep.subr.bf16.mxu0 %v2654
    %3594 = vmatpush1.bf16.msra.mxu0 %v2653
    %3595 = vmatprep.subr.bf16.mxu0 %v2662
    %3596 = vmatpush1.bf16.msra.mxu0 %v2661
    %3597 = vmatprep.mubr.bf16.mxu0 %v444
    %3598 = vmatmul.mubr.bf16.gmra.mrb[0].mxu0 %v443
    %v3599 = vpop.f32.mrb[0].mxu0
    %v3600 = vadd.f32 %v968, %v3599
    %v3601 = vpop.f32.mrb[0].mxu0
    %v3602 = vadd.f32 %v972, %v3601
    %v3603 = vpop.f32.mrb[0].mxu0
    %v3604 = vadd.f32 %v968, %v3603
    %v3605 = vpop.f32.mrb[0].mxu0
    %v3606 = vadd.f32 %v972, %v3605
    %3607 = vdwg.mxu0
    %3608 = vmatprep.subr.bf16.mxu0 %v2670
    %3609 = vmatpush1.bf16.msra.mxu0 %v2669
    %3610 = vmatprep.subr.bf16.mxu0 %v2678
    %3611 = vmatpush1.bf16.msra.mxu0 %v2677
    %3612 = vmatprep.subr.bf16.mxu0 %v2686
    %3613 = vmatpush1.bf16.msra.mxu0 %v2685
    %3614 = vmatprep.subr.bf16.mxu0 %v2694
    %3615 = vmatpush1.bf16.msra.mxu0 %v2693
    %3616 = vmatprep.subr.bf16.mxu0 %v2702
    %3617 = vmatpush1.bf16.msra.mxu0 %v2701
    %3618 = vmatprep.subr.bf16.mxu0 %v2710
    %3619 = vmatpush1.bf16.msra.mxu0 %v2709
    %3620 = vmatprep.subr.bf16.mxu0 %v2718
    %3621 = vmatpush1.bf16.msra.mxu0 %v2717
    %3622 = vmatprep.subr.bf16.mxu0 %v2726
    %3623 = vmatpush1.bf16.msra.mxu0 %v2725
    %3624 = vmatprep.subr.bf16.mxu0 %v2734
    %3625 = vmatpush1.bf16.msra.mxu0 %v2733
    %3626 = vmatprep.subr.bf16.mxu0 %v2742
    %3627 = vmatpush1.bf16.msra.mxu0 %v2741
    %3628 = vmatprep.subr.bf16.mxu0 %v2750
    %3629 = vmatpush1.bf16.msra.mxu0 %v2749
    %3630 = vmatprep.subr.bf16.mxu0 %v2758
    %3631 = vmatpush1.bf16.msra.mxu0 %v2757
    %3632 = vmatprep.subr.bf16.mxu0 %v2766
    %3633 = vmatpush1.bf16.msra.mxu0 %v2765
    %3634 = vmatprep.subr.bf16.mxu0 %v2774
    %3635 = vmatpush1.bf16.msra.mxu0 %v2773
    %3636 = vmatprep.subr.bf16.mxu0 %v2782
    %3637 = vmatpush1.bf16.msra.mxu0 %v2781
    %3638 = vmatprep.subr.bf16.mxu0 %v2790
    %3639 = vmatpush1.bf16.msra.mxu0 %v2789
    %3640 = vmatprep.mubr.bf16.mxu0 %v446
    %3641 = vmatmul.mubr.bf16.gmra.mrb[0].mxu0 %v445
    %v3642 = vpop.f32.mrb[0].mxu0
    %v3643 = vadd.f32 %v3600, %v3642
    %v3644 = vpop.f32.mrb[0].mxu0
    %v3645 = vadd.f32 %v3602, %v3644
    %v3646 = vpop.f32.mrb[0].mxu0
    %v3647 = vadd.f32 %v3604, %v3646
    %v3648 = vpop.f32.mrb[0].mxu0
    %v3649 = vadd.f32 %v3606, %v3648
    %3650 = vdwg.mxu0
    %3651 = vmatprep.subr.bf16.mxu0 %v2798
    %3652 = vmatpush1.bf16.msra.mxu0 %v2797
    %3653 = vmatprep.subr.bf16.mxu0 %v2806
    %3654 = vmatpush1.bf16.msra.mxu0 %v2805
    %3655 = vmatprep.subr.bf16.mxu0 %v2814
    %3656 = vmatpush1.bf16.msra.mxu0 %v2813
    %3657 = vmatprep.subr.bf16.mxu0 %v2822
    %3658 = vmatpush1.bf16.msra.mxu0 %v2821
    %3659 = vmatprep.subr.bf16.mxu0 %v2830
    %3660 = vmatpush1.bf16.msra.mxu0 %v2829
    %3661 = vmatprep.subr.bf16.mxu0 %v2838
    %3662 = vmatpush1.bf16.msra.mxu0 %v2837
    %3663 = vmatprep.subr.bf16.mxu0 %v2846
    %3664 = vmatpush1.bf16.msra.mxu0 %v2845
    %3665 = vmatprep.subr.bf16.mxu0 %v2854
    %3666 = vmatpush1.bf16.msra.mxu0 %v2853
    %3667 = vmatprep.subr.bf16.mxu0 %v2862
    %3668 = vmatpush1.bf16.msra.mxu0 %v2861
    %3669 = vmatprep.subr.bf16.mxu0 %v2870
    %3670 = vmatpush1.bf16.msra.mxu0 %v2869
    %3671 = vmatprep.subr.bf16.mxu0 %v2878
    %3672 = vmatpush1.bf16.msra.mxu0 %v2877
    %3673 = vmatprep.subr.bf16.mxu0 %v2886
    %3674 = vmatpush1.bf16.msra.mxu0 %v2885
    %3675 = vmatprep.subr.bf16.mxu0 %v2894
    %3676 = vmatpush1.bf16.msra.mxu0 %v2893
    %3677 = vmatprep.subr.bf16.mxu0 %v2902
    %3678 = vmatpush1.bf16.msra.mxu0 %v2901
    %3679 = vmatprep.subr.bf16.mxu0 %v2910
    %3680 = vmatpush1.bf16.msra.mxu0 %v2909
    %3681 = vmatprep.subr.bf16.mxu0 %v2918
    %3682 = vmatpush1.bf16.msra.mxu0 %v2917
    %3683 = vmatprep.mubr.bf16.mxu0 %v448
    %3684 = vmatmul.mubr.bf16.gmra.mrb[0].mxu0 %v447
    %v3685 = vpop.f32.mrb[0].mxu0
    %v3686 = vadd.f32 %v3643, %v3685
    %v3687 = vpop.f32.mrb[0].mxu0
    %v3688 = vadd.f32 %v3645, %v3687
    %v3689 = vpop.f32.mrb[0].mxu0
    %v3690 = vadd.f32 %v3647, %v3689
    %v3691 = vpop.f32.mrb[0].mxu0
    %v3692 = vadd.f32 %v3649, %v3691
    %3693 = vdwg.mxu0
    %3694 = vmatprep.subr.bf16.mxu0 %v2926
    %3695 = vmatpush1.bf16.msra.mxu0 %v2925
    %3696 = vmatprep.subr.bf16.mxu0 %v2934
    %3697 = vmatpush1.bf16.msra.mxu0 %v2933
    %3698 = vmatprep.subr.bf16.mxu0 %v2942
    %3699 = vmatpush1.bf16.msra.mxu0 %v2941
    %3700 = vmatprep.subr.bf16.mxu0 %v2950
    %3701 = vmatpush1.bf16.msra.mxu0 %v2949
    %3702 = vmatprep.subr.bf16.mxu0 %v2958
    %3703 = vmatpush1.bf16.msra.mxu0 %v2957
    %3704 = vmatprep.subr.bf16.mxu0 %v2966
    %3705 = vmatpush1.bf16.msra.mxu0 %v2965
    %3706 = vmatprep.subr.bf16.mxu0 %v2974
    %3707 = vmatpush1.bf16.msra.mxu0 %v2973
    %3708 = vmatprep.subr.bf16.mxu0 %v2982
    %3709 = vmatpush1.bf16.msra.mxu0 %v2981
    %3710 = vmatprep.subr.bf16.mxu0 %v2990
    %3711 = vmatpush1.bf16.msra.mxu0 %v2989
    %3712 = vmatprep.subr.bf16.mxu0 %v2998
    %3713 = vmatpush1.bf16.msra.mxu0 %v2997
    %3714 = vmatprep.subr.bf16.mxu0 %v3006
    %3715 = vmatpush1.bf16.msra.mxu0 %v3005
    %3716 = vmatprep.subr.bf16.mxu0 %v3014
    %3717 = vmatpush1.bf16.msra.mxu0 %v3013
    %3718 = vmatprep.subr.bf16.mxu0 %v3022
    %3719 = vmatpush1.bf16.msra.mxu0 %v3021
    %3720 = vmatprep.subr.bf16.mxu0 %v3030
    %3721 = vmatpush1.bf16.msra.mxu0 %v3029
    %3722 = vmatprep.subr.bf16.mxu0 %v3038
    %3723 = vmatpush1.bf16.msra.mxu0 %v3037
    %3724 = vmatprep.subr.bf16.mxu0 %v3046
    %3725 = vmatpush1.bf16.msra.mxu0 %v3045
    %3726 = vmatprep.mubr.bf16.mxu0 %v450
    %3727 = vmatmul.mubr.bf16.gmra.mrb[0].mxu0 %v449
    %v3728 = vpop.f32.mrb[0].mxu0
    %v3729 = vadd.f32 %v3686, %v3728
    %v3730 = vpop.f32.mrb[0].mxu0
    %v3731 = vadd.f32 %v3688, %v3730
    %v3732 = vpop.f32.mrb[0].mxu0
    %v3733 = vadd.f32 %v3690, %v3732
    %v3734 = vpop.f32.mrb[0].mxu0
    %v3735 = vadd.f32 %v3692, %v3734
    %3736 = vdwg.mxu0
    %3737 = vmatprep.subr.bf16.mxu0 %v2544
    %3738 = vmatpush1.bf16.msra.mxu0 %v2543
    %3739 = vmatprep.subr.bf16.mxu0 %v2552
    %3740 = vmatpush1.bf16.msra.mxu0 %v2551
    %3741 = vmatprep.subr.bf16.mxu0 %v2560
    %3742 = vmatpush1.bf16.msra.mxu0 %v2559
    %3743 = vmatprep.subr.bf16.mxu0 %v2568
    %3744 = vmatpush1.bf16.msra.mxu0 %v2567
    %3745 = vmatprep.subr.bf16.mxu0 %v2576
    %3746 = vmatpush1.bf16.msra.mxu0 %v2575
    %3747 = vmatprep.subr.bf16.mxu0 %v2584
    %3748 = vmatpush1.bf16.msra.mxu0 %v2583
    %3749 = vmatprep.subr.bf16.mxu0 %v2592
    %3750 = vmatpush1.bf16.msra.mxu0 %v2591
    %3751 = vmatprep.subr.bf16.mxu0 %v2600
    %3752 = vmatpush1.bf16.msra.mxu0 %v2599
    %3753 = vmatprep.subr.bf16.mxu0 %v2608
    %3754 = vmatpush1.bf16.msra.mxu0 %v2607
    %3755 = vmatprep.subr.bf16.mxu0 %v2616
    %3756 = vmatpush1.bf16.msra.mxu0 %v2615
    %3757 = vmatprep.subr.bf16.mxu0 %v2624
    %3758 = vmatpush1.bf16.msra.mxu0 %v2623
    %3759 = vmatprep.subr.bf16.mxu0 %v2632
    %3760 = vmatpush1.bf16.msra.mxu0 %v2631
    %3761 = vmatprep.subr.bf16.mxu0 %v2640
    %3762 = vmatpush1.bf16.msra.mxu0 %v2639
    %3763 = vmatprep.subr.bf16.mxu0 %v2648
    %3764 = vmatpush1.bf16.msra.mxu0 %v2647
    %3765 = vmatprep.subr.bf16.mxu0 %v2656
    %3766 = vmatpush1.bf16.msra.mxu0 %v2655
    %3767 = vmatprep.subr.bf16.mxu0 %v2664
    %3768 = vmatpush1.bf16.msra.mxu0 %v2663
    %3769 = vmatprep.mubr.bf16.mxu0 %v444
    %3770 = vmatmul.mubr.bf16.gmra.mrb[0].mxu0 %v443
    %v3771 = vpop.f32.mrb[0].mxu0
    %v3772 = vadd.f32 %v976, %v3771
    %v3773 = vpop.f32.mrb[0].mxu0
    %v3774 = vadd.f32 %v980, %v3773
    %v3775 = vpop.f32.mrb[0].mxu0
    %v3776 = vadd.f32 %v976, %v3775
    %v3777 = vpop.f32.mrb[0].mxu0
    %v3778 = vadd.f32 %v980, %v3777
    %3779 = vdwg.mxu0
    %3780 = vmatprep.subr.bf16.mxu0 %v2672
    %3781 = vmatpush1.bf16.msra.mxu0 %v2671
    %3782 = vmatprep.subr.bf16.mxu0 %v2680
    %3783 = vmatpush1.bf16.msra.mxu0 %v2679
    %3784 = vmatprep.subr.bf16.mxu0 %v2688
    %3785 = vmatpush1.bf16.msra.mxu0 %v2687
    %3786 = vmatprep.subr.bf16.mxu0 %v2696
    %3787 = vmatpush1.bf16.msra.mxu0 %v2695
    %3788 = vmatprep.subr.bf16.mxu0 %v2704
    %3789 = vmatpush1.bf16.msra.mxu0 %v2703
    %3790 = vmatprep.subr.bf16.mxu0 %v2712
    %3791 = vmatpush1.bf16.msra.mxu0 %v2711
    %3792 = vmatprep.subr.bf16.mxu0 %v2720
    %3793 = vmatpush1.bf16.msra.mxu0 %v2719
    %3794 = vmatprep.subr.bf16.mxu0 %v2728
    %3795 = vmatpush1.bf16.msra.mxu0 %v2727
    %3796 = vmatprep.subr.bf16.mxu0 %v2736
    %3797 = vmatpush1.bf16.msra.mxu0 %v2735
    %3798 = vmatprep.subr.bf16.mxu0 %v2744
    %3799 = vmatpush1.bf16.msra.mxu0 %v2743
    %3800 = vmatprep.subr.bf16.mxu0 %v2752
    %3801 = vmatpush1.bf16.msra.mxu0 %v2751
    %3802 = vmatprep.subr.bf16.mxu0 %v2760
    %3803 = vmatpush1.bf16.msra.mxu0 %v2759
    %3804 = vmatprep.subr.bf16.mxu0 %v2768
    %3805 = vmatpush1.bf16.msra.mxu0 %v2767
    %3806 = vmatprep.subr.bf16.mxu0 %v2776
    %3807 = vmatpush1.bf16.msra.mxu0 %v2775
    %3808 = vmatprep.subr.bf16.mxu0 %v2784
    %3809 = vmatpush1.bf16.msra.mxu0 %v2783
    %3810 = vmatprep.subr.bf16.mxu0 %v2792
    %3811 = vmatpush1.bf16.msra.mxu0 %v2791
    %3812 = vmatprep.mubr.bf16.mxu0 %v446
    %3813 = vmatmul.mubr.bf16.gmra.mrb[0].mxu0 %v445
    %v3814 = vpop.f32.mrb[0].mxu0
    %v3815 = vadd.f32 %v3772, %v3814
    %v3816 = vpop.f32.mrb[0].mxu0
    %v3817 = vadd.f32 %v3774, %v3816
    %v3818 = vpop.f32.mrb[0].mxu0
    %v3819 = vadd.f32 %v3776, %v3818
    %v3820 = vpop.f32.mrb[0].mxu0
    %v3821 = vadd.f32 %v3778, %v3820
    %3822 = vdwg.mxu0
    %3823 = vmatprep.subr.bf16.mxu0 %v2800
    %3824 = vmatpush1.bf16.msra.mxu0 %v2799
    %3825 = vmatprep.subr.bf16.mxu0 %v2808
    %3826 = vmatpush1.bf16.msra.mxu0 %v2807
    %3827 = vmatprep.subr.bf16.mxu0 %v2816
    %3828 = vmatpush1.bf16.msra.mxu0 %v2815
    %3829 = vmatprep.subr.bf16.mxu0 %v2824
    %3830 = vmatpush1.bf16.msra.mxu0 %v2823
    %3831 = vmatprep.subr.bf16.mxu0 %v2832
    %3832 = vmatpush1.bf16.msra.mxu0 %v2831
    %3833 = vmatprep.subr.bf16.mxu0 %v2840
    %3834 = vmatpush1.bf16.msra.mxu0 %v2839
    %3835 = vmatprep.subr.bf16.mxu0 %v2848
    %3836 = vmatpush1.bf16.msra.mxu0 %v2847
    %3837 = vmatprep.subr.bf16.mxu0 %v2856
    %3838 = vmatpush1.bf16.msra.mxu0 %v2855
    %3839 = vmatprep.subr.bf16.mxu0 %v2864
    %3840 = vmatpush1.bf16.msra.mxu0 %v2863
    %3841 = vmatprep.subr.bf16.mxu0 %v2872
    %3842 = vmatpush1.bf16.msra.mxu0 %v2871
    %3843 = vmatprep.subr.bf16.mxu0 %v2880
    %3844 = vmatpush1.bf16.msra.mxu0 %v2879
    %3845 = vmatprep.subr.bf16.mxu0 %v2888
    %3846 = vmatpush1.bf16.msra.mxu0 %v2887
    %3847 = vmatprep.subr.bf16.mxu0 %v2896
    %3848 = vmatpush1.bf16.msra.mxu0 %v2895
    %3849 = vmatprep.subr.bf16.mxu0 %v2904
    %3850 = vmatpush1.bf16.msra.mxu0 %v2903
    %3851 = vmatprep.subr.bf16.mxu0 %v2912
    %3852 = vmatpush1.bf16.msra.mxu0 %v2911
    %3853 = vmatprep.subr.bf16.mxu0 %v2920
    %3854 = vmatpush1.bf16.msra.mxu0 %v2919
    %3855 = vmatprep.mubr.bf16.mxu0 %v448
    %3856 = vmatmul.mubr.bf16.gmra.mrb[0].mxu0 %v447
    %v3857 = vpop.f32.mrb[0].mxu0
    %v3858 = vadd.f32 %v3815, %v3857
    %v3859 = vpop.f32.mrb[0].mxu0
    %v3860 = vadd.f32 %v3817, %v3859
    %v3861 = vpop.f32.mrb[0].mxu0
    %v3862 = vadd.f32 %v3819, %v3861
    %v3863 = vpop.f32.mrb[0].mxu0
    %v3864 = vadd.f32 %v3821, %v3863
    %3865 = vdwg.mxu0
    %3866 = vmatprep.subr.bf16.mxu0 %v2928
    %3867 = vmatpush1.bf16.msra.mxu0 %v2927
    %3868 = vmatprep.subr.bf16.mxu0 %v2936
    %3869 = vmatpush1.bf16.msra.mxu0 %v2935
    %3870 = vmatprep.subr.bf16.mxu0 %v2944
    %3871 = vmatpush1.bf16.msra.mxu0 %v2943
    %3872 = vmatprep.subr.bf16.mxu0 %v2952
    %3873 = vmatpush1.bf16.msra.mxu0 %v2951
    %3874 = vmatprep.subr.bf16.mxu0 %v2960
    %3875 = vmatpush1.bf16.msra.mxu0 %v2959
    %3876 = vmatprep.subr.bf16.mxu0 %v2968
    %3877 = vmatpush1.bf16.msra.mxu0 %v2967
    %3878 = vmatprep.subr.bf16.mxu0 %v2976
    %3879 = vmatpush1.bf16.msra.mxu0 %v2975
    %3880 = vmatprep.subr.bf16.mxu0 %v2984
    %3881 = vmatpush1.bf16.msra.mxu0 %v2983
    %3882 = vmatprep.subr.bf16.mxu0 %v2992
    %3883 = vmatpush1.bf16.msra.mxu0 %v2991
    %3884 = vmatprep.subr.bf16.mxu0 %v3000
    %3885 = vmatpush1.bf16.msra.mxu0 %v2999
    %3886 = vmatprep.subr.bf16.mxu0 %v3008
    %3887 = vmatpush1.bf16.msra.mxu0 %v3007
    %3888 = vmatprep.subr.bf16.mxu0 %v3016
    %3889 = vmatpush1.bf16.msra.mxu0 %v3015
    %3890 = vmatprep.subr.bf16.mxu0 %v3024
    %3891 = vmatpush1.bf16.msra.mxu0 %v3023
    %3892 = vmatprep.subr.bf16.mxu0 %v3032
    %3893 = vmatpush1.bf16.msra.mxu0 %v3031
    %3894 = vmatprep.subr.bf16.mxu0 %v3040
    %3895 = vmatpush1.bf16.msra.mxu0 %v3039
    %3896 = vmatprep.subr.bf16.mxu0 %v3048
    %3897 = vmatpush1.bf16.msra.mxu0 %v3047
    %3898 = vmatprep.mubr.bf16.mxu0 %v450
    %3899 = vmatmul.mubr.bf16.gmra.mrb[0].mxu0 %v449
    %v3900 = vpop.f32.mrb[0].mxu0
    %v3901 = vadd.f32 %v3858, %v3900
    %v3902 = vpop.f32.mrb[0].mxu0
    %v3903 = vadd.f32 %v3860, %v3902
    %v3904 = vpop.f32.mrb[0].mxu0
    %v3905 = vadd.f32 %v3862, %v3904
    %v3906 = vpop.f32.mrb[0].mxu0
    %v3907 = vadd.f32 %v3864, %v3906
    %3908 = vdwg.mxu0
    %3909 = vmatprep.subr.bf16.mxu0 %v2546
    %3910 = vmatpush1.bf16.msra.mxu0 %v2545
    %3911 = vmatprep.subr.bf16.mxu0 %v2554
    %3912 = vmatpush1.bf16.msra.mxu0 %v2553
    %3913 = vmatprep.subr.bf16.mxu0 %v2562
    %3914 = vmatpush1.bf16.msra.mxu0 %v2561
    %3915 = vmatprep.subr.bf16.mxu0 %v2570
    %3916 = vmatpush1.bf16.msra.mxu0 %v2569
    %3917 = vmatprep.subr.bf16.mxu0 %v2578
    %3918 = vmatpush1.bf16.msra.mxu0 %v2577
    %3919 = vmatprep.subr.bf16.mxu0 %v2586
    %3920 = vmatpush1.bf16.msra.mxu0 %v2585
    %3921 = vmatprep.subr.bf16.mxu0 %v2594
    %3922 = vmatpush1.bf16.msra.mxu0 %v2593
    %3923 = vmatprep.subr.bf16.mxu0 %v2602
    %3924 = vmatpush1.bf16.msra.mxu0 %v2601
    %3925 = vmatprep.subr.bf16.mxu0 %v2610
    %3926 = vmatpush1.bf16.msra.mxu0 %v2609
    %3927 = vmatprep.subr.bf16.mxu0 %v2618
    %3928 = vmatpush1.bf16.msra.mxu0 %v2617
    %3929 = vmatprep.subr.bf16.mxu0 %v2626
    %3930 = vmatpush1.bf16.msra.mxu0 %v2625
    %3931 = vmatprep.subr.bf16.mxu0 %v2634
    %3932 = vmatpush1.bf16.msra.mxu0 %v2633
    %3933 = vmatprep.subr.bf16.mxu0 %v2642
    %3934 = vmatpush1.bf16.msra.mxu0 %v2641
    %3935 = vmatprep.subr.bf16.mxu0 %v2650
    %3936 = vmatpush1.bf16.msra.mxu0 %v2649
    %3937 = vmatprep.subr.bf16.mxu0 %v2658
    %3938 = vmatpush1.bf16.msra.mxu0 %v2657
    %3939 = vmatprep.subr.bf16.mxu0 %v2666
    %3940 = vmatpush1.bf16.msra.mxu0 %v2665
    %3941 = vmatprep.mubr.bf16.mxu0 %v444
    %3942 = vmatmul.mubr.bf16.gmra.mrb[0].mxu0 %v443
    %v3943 = vpop.f32.mrb[0].mxu0
    %v3944 = vadd.f32 %v984, %v3943
    %v3945 = vpop.f32.mrb[0].mxu0
    %v3946 = vadd.f32 %v988, %v3945
    %v3947 = vpop.f32.mrb[0].mxu0
    %v3948 = vadd.f32 %v984, %v3947
    %v3949 = vpop.f32.mrb[0].mxu0
    %v3950 = vadd.f32 %v988, %v3949
    %3951 = vdwg.mxu0
    %3952 = vmatprep.subr.bf16.mxu0 %v2674
    %3953 = vmatpush1.bf16.msra.mxu0 %v2673
    %3954 = vmatprep.subr.bf16.mxu0 %v2682
    %3955 = vmatpush1.bf16.msra.mxu0 %v2681
    %3956 = vmatprep.subr.bf16.mxu0 %v2690
    %3957 = vmatpush1.bf16.msra.mxu0 %v2689
    %3958 = vmatprep.subr.bf16.mxu0 %v2698
    %3959 = vmatpush1.bf16.msra.mxu0 %v2697
    %3960 = vmatprep.subr.bf16.mxu0 %v2706
    %3961 = vmatpush1.bf16.msra.mxu0 %v2705
    %3962 = vmatprep.subr.bf16.mxu0 %v2714
    %3963 = vmatpush1.bf16.msra.mxu0 %v2713
    %3964 = vmatprep.subr.bf16.mxu0 %v2722
    %3965 = vmatpush1.bf16.msra.mxu0 %v2721
    %3966 = vmatprep.subr.bf16.mxu0 %v2730
    %3967 = vmatpush1.bf16.msra.mxu0 %v2729
    %3968 = vmatprep.subr.bf16.mxu0 %v2738
    %3969 = vmatpush1.bf16.msra.mxu0 %v2737
    %3970 = vmatprep.subr.bf16.mxu0 %v2746
    %3971 = vmatpush1.bf16.msra.mxu0 %v2745
    %3972 = vmatprep.subr.bf16.mxu0 %v2754
    %3973 = vmatpush1.bf16.msra.mxu0 %v2753
    %3974 = vmatprep.subr.bf16.mxu0 %v2762
    %3975 = vmatpush1.bf16.msra.mxu0 %v2761
    %3976 = vmatprep.subr.bf16.mxu0 %v2770
    %3977 = vmatpush1.bf16.msra.mxu0 %v2769
    %3978 = vmatprep.subr.bf16.mxu0 %v2778
    %3979 = vmatpush1.bf16.msra.mxu0 %v2777
    %3980 = vmatprep.subr.bf16.mxu0 %v2786
    %3981 = vmatpush1.bf16.msra.mxu0 %v2785
    %3982 = vmatprep.subr.bf16.mxu0 %v2794
    %3983 = vmatpush1.bf16.msra.mxu0 %v2793
    %3984 = vmatprep.mubr.bf16.mxu0 %v446
    %3985 = vmatmul.mubr.bf16.gmra.mrb[0].mxu0 %v445
    %v3986 = vpop.f32.mrb[0].mxu0
    %v3987 = vadd.f32 %v3944, %v3986
    %v3988 = vpop.f32.mrb[0].mxu0
    %v3989 = vadd.f32 %v3946, %v3988
    %v3990 = vpop.f32.mrb[0].mxu0
    %v3991 = vadd.f32 %v3948, %v3990
    %v3992 = vpop.f32.mrb[0].mxu0
    %v3993 = vadd.f32 %v3950, %v3992
    %3994 = vdwg.mxu0
    %3995 = vmatprep.subr.bf16.mxu0 %v2802
    %3996 = vmatpush1.bf16.msra.mxu0 %v2801
    %3997 = vmatprep.subr.bf16.mxu0 %v2810
    %3998 = vmatpush1.bf16.msra.mxu0 %v2809
    %3999 = vmatprep.subr.bf16.mxu0 %v2818
    %4000 = vmatpush1.bf16.msra.mxu0 %v2817
    %4001 = vmatprep.subr.bf16.mxu0 %v2826
    %4002 = vmatpush1.bf16.msra.mxu0 %v2825
    %4003 = vmatprep.subr.bf16.mxu0 %v2834
    %4004 = vmatpush1.bf16.msra.mxu0 %v2833
    %4005 = vmatprep.subr.bf16.mxu0 %v2842
    %4006 = vmatpush1.bf16.msra.mxu0 %v2841
    %4007 = vmatprep.subr.bf16.mxu0 %v2850
    %4008 = vmatpush1.bf16.msra.mxu0 %v2849
    %4009 = vmatprep.subr.bf16.mxu0 %v2858
    %4010 = vmatpush1.bf16.msra.mxu0 %v2857
    %4011 = vmatprep.subr.bf16.mxu0 %v2866
    %4012 = vmatpush1.bf16.msra.mxu0 %v2865
    %4013 = vmatprep.subr.bf16.mxu0 %v2874
    %4014 = vmatpush1.bf16.msra.mxu0 %v2873
    %4015 = vmatprep.subr.bf16.mxu0 %v2882
    %4016 = vmatpush1.bf16.msra.mxu0 %v2881
    %4017 = vmatprep.subr.bf16.mxu0 %v2890
    %4018 = vmatpush1.bf16.msra.mxu0 %v2889
    %4019 = vmatprep.subr.bf16.mxu0 %v2898
    %4020 = vmatpush1.bf16.msra.mxu0 %v2897
    %4021 = vmatprep.subr.bf16.mxu0 %v2906
    %4022 = vmatpush1.bf16.msra.mxu0 %v2905
    %4023 = vmatprep.subr.bf16.mxu0 %v2914
    %4024 = vmatpush1.bf16.msra.mxu0 %v2913
    %4025 = vmatprep.subr.bf16.mxu0 %v2922
    %4026 = vmatpush1.bf16.msra.mxu0 %v2921
    %4027 = vmatprep.mubr.bf16.mxu0 %v448
    %4028 = vmatmul.mubr.bf16.gmra.mrb[0].mxu0 %v447
    %v4029 = vpop.f32.mrb[0].mxu0
    %v4030 = vadd.f32 %v3987, %v4029
    %v4031 = vpop.f32.mrb[0].mxu0
    %v4032 = vadd.f32 %v3989, %v4031
    %v4033 = vpop.f32.mrb[0].mxu0
    %v4034 = vadd.f32 %v3991, %v4033
    %v4035 = vpop.f32.mrb[0].mxu0
    %v4036 = vadd.f32 %v3993, %v4035
    %4037 = vdwg.mxu0
    %4038 = vmatprep.subr.bf16.mxu0 %v2930
    %4039 = vmatpush1.bf16.msra.mxu0 %v2929
    %4040 = vmatprep.subr.bf16.mxu0 %v2938
    %4041 = vmatpush1.bf16.msra.mxu0 %v2937
    %4042 = vmatprep.subr.bf16.mxu0 %v2946
    %4043 = vmatpush1.bf16.msra.mxu0 %v2945
    %4044 = vmatprep.subr.bf16.mxu0 %v2954
    %4045 = vmatpush1.bf16.msra.mxu0 %v2953
    %4046 = vmatprep.subr.bf16.mxu0 %v2962
    %4047 = vmatpush1.bf16.msra.mxu0 %v2961
    %4048 = vmatprep.subr.bf16.mxu0 %v2970
    %4049 = vmatpush1.bf16.msra.mxu0 %v2969
    %4050 = vmatprep.subr.bf16.mxu0 %v2978
    %4051 = vmatpush1.bf16.msra.mxu0 %v2977
    %4052 = vmatprep.subr.bf16.mxu0 %v2986
    %4053 = vmatpush1.bf16.msra.mxu0 %v2985
    %4054 = vmatprep.subr.bf16.mxu0 %v2994
    %4055 = vmatpush1.bf16.msra.mxu0 %v2993
    %4056 = vmatprep.subr.bf16.mxu0 %v3002
    %4057 = vmatpush1.bf16.msra.mxu0 %v3001
    %4058 = vmatprep.subr.bf16.mxu0 %v3010
    %4059 = vmatpush1.bf16.msra.mxu0 %v3009
    %4060 = vmatprep.subr.bf16.mxu0 %v3018
    %4061 = vmatpush1.bf16.msra.mxu0 %v3017
    %4062 = vmatprep.subr.bf16.mxu0 %v3026
    %4063 = vmatpush1.bf16.msra.mxu0 %v3025
    %4064 = vmatprep.subr.bf16.mxu0 %v3034
    %4065 = vmatpush1.bf16.msra.mxu0 %v3033
    %4066 = vmatprep.subr.bf16.mxu0 %v3042
    %4067 = vmatpush1.bf16.msra.mxu0 %v3041
    %4068 = vmatprep.subr.bf16.mxu0 %v3050
    %4069 = vmatpush1.bf16.msra.mxu0 %v3049
    %4070 = vmatprep.mubr.bf16.mxu0 %v450
    %4071 = vmatmul.mubr.bf16.gmra.mrb[0].mxu0 %v449
    %v4072 = vpop.f32.mrb[0].mxu0
    %v4073 = vadd.f32 %v4030, %v4072
    %v4074 = vpop.f32.mrb[0].mxu0
    %v4075 = vadd.f32 %v4032, %v4074
    %v4076 = vpop.f32.mrb[0].mxu0
    %v4077 = vadd.f32 %v4034, %v4076
    %v4078 = vpop.f32.mrb[0].mxu0
    %v4079 = vadd.f32 %v4036, %v4078
    %4080 = vdwg.mxu0
    %4081 = vmatprep.subr.bf16.mxu0 %v2548
    %4082 = vmatpush1.bf16.msra.mxu0 %v2547
    %4083 = vmatprep.subr.bf16.mxu0 %v2556
    %4084 = vmatpush1.bf16.msra.mxu0 %v2555
    %4085 = vmatprep.subr.bf16.mxu0 %v2564
    %4086 = vmatpush1.bf16.msra.mxu0 %v2563
    %4087 = vmatprep.subr.bf16.mxu0 %v2572
    %4088 = vmatpush1.bf16.msra.mxu0 %v2571
    %4089 = vmatprep.subr.bf16.mxu0 %v2580
    %4090 = vmatpush1.bf16.msra.mxu0 %v2579
    %4091 = vmatprep.subr.bf16.mxu0 %v2588
    %4092 = vmatpush1.bf16.msra.mxu0 %v2587
    %4093 = vmatprep.subr.bf16.mxu0 %v2596
    %4094 = vmatpush1.bf16.msra.mxu0 %v2595
    %4095 = vmatprep.subr.bf16.mxu0 %v2604
    %4096 = vmatpush1.bf16.msra.mxu0 %v2603
    %4097 = vmatprep.subr.bf16.mxu0 %v2612
    %4098 = vmatpush1.bf16.msra.mxu0 %v2611
    %4099 = vmatprep.subr.bf16.mxu0 %v2620
    %4100 = vmatpush1.bf16.msra.mxu0 %v2619
    %4101 = vmatprep.subr.bf16.mxu0 %v2628
    %4102 = vmatpush1.bf16.msra.mxu0 %v2627
    %4103 = vmatprep.subr.bf16.mxu0 %v2636
    %4104 = vmatpush1.bf16.msra.mxu0 %v2635
    %4105 = vmatprep.subr.bf16.mxu0 %v2644
    %4106 = vmatpush1.bf16.msra.mxu0 %v2643
    %4107 = vmatprep.subr.bf16.mxu0 %v2652
    %4108 = vmatpush1.bf16.msra.mxu0 %v2651
    %4109 = vmatprep.subr.bf16.mxu0 %v2660
    %4110 = vmatpush1.bf16.msra.mxu0 %v2659
    %4111 = vmatprep.subr.bf16.mxu0 %v2668
    %4112 = vmatpush1.bf16.msra.mxu0 %v2667
    %4113 = vmatprep.mubr.bf16.mxu0 %v444
    %4114 = vmatmul.mubr.bf16.gmra.mrb[0].mxu0 %v443
    %v4115 = vpop.f32.mrb[0].mxu0
    %v4116 = vadd.f32 %v992, %v4115
    %v4117 = vpop.f32.mrb[0].mxu0
    %v4118 = vadd.f32 %v996, %v4117
    %v4119 = vpop.f32.mrb[0].mxu0
    %v4120 = vadd.f32 %v992, %v4119
    %v4121 = vpop.f32.mrb[0].mxu0
    %v4122 = vadd.f32 %v996, %v4121
    %4123 = vdwg.mxu0
    %4124 = vmatprep.subr.bf16.mxu0 %v2676
    %4125 = vmatpush1.bf16.msra.mxu0 %v2675
    %4126 = vmatprep.subr.bf16.mxu0 %v2684
    %4127 = vmatpush1.bf16.msra.mxu0 %v2683
    %4128 = vmatprep.subr.bf16.mxu0 %v2692
    %4129 = vmatpush1.bf16.msra.mxu0 %v2691
    %4130 = vmatprep.subr.bf16.mxu0 %v2700
    %4131 = vmatpush1.bf16.msra.mxu0 %v2699
    %4132 = vmatprep.subr.bf16.mxu0 %v2708
    %4133 = vmatpush1.bf16.msra.mxu0 %v2707
    %4134 = vmatprep.subr.bf16.mxu0 %v2716
    %4135 = vmatpush1.bf16.msra.mxu0 %v2715
    %4136 = vmatprep.subr.bf16.mxu0 %v2724
    %4137 = vmatpush1.bf16.msra.mxu0 %v2723
    %4138 = vmatprep.subr.bf16.mxu0 %v2732
    %4139 = vmatpush1.bf16.msra.mxu0 %v2731
    %4140 = vmatprep.subr.bf16.mxu0 %v2740
    %4141 = vmatpush1.bf16.msra.mxu0 %v2739
    %4142 = vmatprep.subr.bf16.mxu0 %v2748
    %4143 = vmatpush1.bf16.msra.mxu0 %v2747
    %4144 = vmatprep.subr.bf16.mxu0 %v2756
    %4145 = vmatpush1.bf16.msra.mxu0 %v2755
    %4146 = vmatprep.subr.bf16.mxu0 %v2764
    %4147 = vmatpush1.bf16.msra.mxu0 %v2763
    %4148 = vmatprep.subr.bf16.mxu0 %v2772
    %4149 = vmatpush1.bf16.msra.mxu0 %v2771
    %4150 = vmatprep.subr.bf16.mxu0 %v2780
    %4151 = vmatpush1.bf16.msra.mxu0 %v2779
    %4152 = vmatprep.subr.bf16.mxu0 %v2788
    %4153 = vmatpush1.bf16.msra.mxu0 %v2787
    %4154 = vmatprep.subr.bf16.mxu0 %v2796
    %4155 = vmatpush1.bf16.msra.mxu0 %v2795
    %4156 = vmatprep.mubr.bf16.mxu0 %v446
    %4157 = vmatmul.mubr.bf16.gmra.mrb[0].mxu0 %v445
    %v4158 = vpop.f32.mrb[0].mxu0
    %v4159 = vadd.f32 %v4116, %v4158
    %v4160 = vpop.f32.mrb[0].mxu0
    %v4161 = vadd.f32 %v4118, %v4160
    %v4162 = vpop.f32.mrb[0].mxu0
    %v4163 = vadd.f32 %v4120, %v4162
    %v4164 = vpop.f32.mrb[0].mxu0
    %v4165 = vadd.f32 %v4122, %v4164
    %4166 = vdwg.mxu0
    %4167 = vmatprep.subr.bf16.mxu0 %v2804
    %4168 = vmatpush1.bf16.msra.mxu0 %v2803
    %4169 = vmatprep.subr.bf16.mxu0 %v2812
    %4170 = vmatpush1.bf16.msra.mxu0 %v2811
    %4171 = vmatprep.subr.bf16.mxu0 %v2820
    %4172 = vmatpush1.bf16.msra.mxu0 %v2819
    %4173 = vmatprep.subr.bf16.mxu0 %v2828
    %4174 = vmatpush1.bf16.msra.mxu0 %v2827
    %4175 = vmatprep.subr.bf16.mxu0 %v2836
    %4176 = vmatpush1.bf16.msra.mxu0 %v2835
    %4177 = vmatprep.subr.bf16.mxu0 %v2844
    %4178 = vmatpush1.bf16.msra.mxu0 %v2843
    %4179 = vmatprep.subr.bf16.mxu0 %v2852
    %4180 = vmatpush1.bf16.msra.mxu0 %v2851
    %4181 = vmatprep.subr.bf16.mxu0 %v2860
    %4182 = vmatpush1.bf16.msra.mxu0 %v2859
    %4183 = vmatprep.subr.bf16.mxu0 %v2868
    %4184 = vmatpush1.bf16.msra.mxu0 %v2867
    %4185 = vmatprep.subr.bf16.mxu0 %v2876
    %4186 = vmatpush1.bf16.msra.mxu0 %v2875
    %4187 = vmatprep.subr.bf16.mxu0 %v2884
    %4188 = vmatpush1.bf16.msra.mxu0 %v2883
    %4189 = vmatprep.subr.bf16.mxu0 %v2892
    %4190 = vmatpush1.bf16.msra.mxu0 %v2891
    %4191 = vmatprep.subr.bf16.mxu0 %v2900
    %4192 = vmatpush1.bf16.msra.mxu0 %v2899
    %4193 = vmatprep.subr.bf16.mxu0 %v2908
    %4194 = vmatpush1.bf16.msra.mxu0 %v2907
    %4195 = vmatprep.subr.bf16.mxu0 %v2916
    %4196 = vmatpush1.bf16.msra.mxu0 %v2915
    %4197 = vmatprep.subr.bf16.mxu0 %v2924
    %4198 = vmatpush1.bf16.msra.mxu0 %v2923
    %4199 = vmatprep.mubr.bf16.mxu0 %v448
    %4200 = vmatmul.mubr.bf16.gmra.mrb[0].mxu0 %v447
    %v4201 = vpop.f32.mrb[0].mxu0
    %v4202 = vadd.f32 %v4159, %v4201
    %v4203 = vpop.f32.mrb[0].mxu0
    %v4204 = vadd.f32 %v4161, %v4203
    %v4205 = vpop.f32.mrb[0].mxu0
    %v4206 = vadd.f32 %v4163, %v4205
    %v4207 = vpop.f32.mrb[0].mxu0
    %v4208 = vadd.f32 %v4165, %v4207
    %4209 = vdwg.mxu0
    %4210 = vmatprep.subr.bf16.mxu0 %v2932
    %4211 = vmatpush1.bf16.msra.mxu0 %v2931
    %4212 = vmatprep.subr.bf16.mxu0 %v2940
    %4213 = vmatpush1.bf16.msra.mxu0 %v2939
    %4214 = vmatprep.subr.bf16.mxu0 %v2948
    %4215 = vmatpush1.bf16.msra.mxu0 %v2947
    %4216 = vmatprep.subr.bf16.mxu0 %v2956
    %4217 = vmatpush1.bf16.msra.mxu0 %v2955
    %4218 = vmatprep.subr.bf16.mxu0 %v2964
    %4219 = vmatpush1.bf16.msra.mxu0 %v2963
    %4220 = vmatprep.subr.bf16.mxu0 %v2972
    %4221 = vmatpush1.bf16.msra.mxu0 %v2971
    %4222 = vmatprep.subr.bf16.mxu0 %v2980
    %4223 = vmatpush1.bf16.msra.mxu0 %v2979
    %4224 = vmatprep.subr.bf16.mxu0 %v2988
    %4225 = vmatpush1.bf16.msra.mxu0 %v2987
    %4226 = vmatprep.subr.bf16.mxu0 %v2996
    %4227 = vmatpush1.bf16.msra.mxu0 %v2995
    %4228 = vmatprep.subr.bf16.mxu0 %v3004
    %4229 = vmatpush1.bf16.msra.mxu0 %v3003
    %4230 = vmatprep.subr.bf16.mxu0 %v3012
    %4231 = vmatpush1.bf16.msra.mxu0 %v3011
    %4232 = vmatprep.subr.bf16.mxu0 %v3020
    %4233 = vmatpush1.bf16.msra.mxu0 %v3019
    %4234 = vmatprep.subr.bf16.mxu0 %v3028
    %4235 = vmatpush1.bf16.msra.mxu0 %v3027
    %4236 = vmatprep.subr.bf16.mxu0 %v3036
    %4237 = vmatpush1.bf16.msra.mxu0 %v3035
    %4238 = vmatprep.subr.bf16.mxu0 %v3044
    %4239 = vmatpush1.bf16.msra.mxu0 %v3043
    %4240 = vmatprep.subr.bf16.mxu0 %v3052
    %4241 = vmatpush1.bf16.msra.mxu0 %v3051
    %4242 = vmatprep.mubr.bf16.mxu0 %v450
    %4243 = vmatmul.mubr.bf16.gmra.mrb[0].mxu0 %v449
    %v4244 = vpop.f32.mrb[0].mxu0
    %v4245 = vadd.f32 %v4202, %v4244
    %v4246 = vpop.f32.mrb[0].mxu0
    %v4247 = vadd.f32 %v4204, %v4246
    %v4248 = vpop.f32.mrb[0].mxu0
    %v4249 = vadd.f32 %v4206, %v4248
    %v4250 = vpop.f32.mrb[0].mxu0
    %v4251 = vadd.f32 %v4208, %v4250
    %4252 = vdwg.mxu0
    %v4253 = vmax.f32 %v3729, 0.0
    %v4254 = vmax.f32 %v3731, 0.0
    %v4255 = vmax.f32 %v3901, 0.0
    %v4256 = vmax.f32 %v3903, 0.0
    %v4257 = vmax.f32 %v4073, 0.0
    %v4258 = vmax.f32 %v4075, 0.0
    %v4259 = vmax.f32 %v4245, 0.0
    %v4260 = vmax.f32 %v4247, 0.0
    %v4261 = vmax.f32 %v3733, 0.0
    %v4262 = vmax.f32 %v3735, 0.0
    %v4263 = vmax.f32 %v3905, 0.0
    %v4264 = vmax.f32 %v3907, 0.0
    %v4265 = vmax.f32 %v4077, 0.0
    %v4266 = vmax.f32 %v4079, 0.0
    %v4267 = vmax.f32 %v4249, 0.0
    %v4268 = vmax.f32 %v4251, 0.0
    %v4269 = vld [vmem:[#allocation12] sm:$0xff]
    %v4270 = vunpack.c.l.bf16 %v4269
    %v4271 = vunpack.c.h.bf16 %v4269
    %v4272 = vld [vmem:[#allocation2] sm:$0x1]
    %4274 = vset.pattern.permute.xlu0 0
    %4275 = vperm.xlu0 %4274, %v4272
    %v4276 = vpop.permute.xlu0 %4275
    %v4278 = vlaneseq
    %v4279 = vshrl.u32 %v4278, 7
    %v4280 = vsub.s32 0, %v4279
    %v4281 = vrot.slane %v4276, %v4280
    %v4284 = vlaneseq
    %v4285 = vshrl.u32 %v4284, 7
    %v4286 = vsub.s32 0, %v4285
    %v4287 = vrot.slane %v4270, %v4286
    %v4288 = vlaneseq
    %v4289 = vshrl.u32 %v4288, 7
    %v4290 = vsub.s32 2, %v4289
    %v4291 = vrot.slane %v4270, %v4290
    %v4292 = vlaneseq
    %v4293 = vshrl.u32 %v4292, 7
    %v4294 = vsub.s32 4, %v4293
    %v4295 = vrot.slane %v4270, %v4294
    %v4296 = vlaneseq
    %v4297 = vshrl.u32 %v4296, 7
    %v4298 = vsub.s32 6, %v4297
    %v4299 = vrot.slane %v4270, %v4298
    %v4300 = vlaneseq
    %v4301 = vshrl.u32 %v4300, 7
    %v4302 = vsub.s32 0, %v4301
    %v4303 = vrot.slane %v4271, %v4302
    %v4304 = vlaneseq
    %v4305 = vshrl.u32 %v4304, 7
    %v4306 = vsub.s32 2, %v4305
    %v4307 = vrot.slane %v4271, %v4306
    %v4308 = vlaneseq
    %v4309 = vshrl.u32 %v4308, 7
    %v4310 = vsub.s32 4, %v4309
    %v4311 = vrot.slane %v4271, %v4310
    %v4312 = vlaneseq
    %v4313 = vshrl.u32 %v4312, 7
    %v4314 = vsub.s32 6, %v4313
    %v4315 = vrot.slane %v4271, %v4314
    %4324 = vmatprep.subr.mxu0 %v4254
    %4325 = vmatpush1.xpose.msra.mxu0 %v4253
    %4326 = vmatprep.subr.mxu0 %v4262
    %4327 = vmatpush1.xpose.msra.mxu0 %v4261
    %4328 = vmatprep.subr.mxu0 0.0
    %4329 = vmatpush1.xpose.msra.mxu0 0.0
    %4330 = vmatprep.subr.mxu0 0.0
    %4331 = vmatpush1.xpose.msra.mxu0 0.0
    %4332 = vmatprep.subr.mxu0 0.0
    %4333 = vmatpush1.xpose.msra.mxu0 0.0
    %4334 = vmatprep.subr.mxu0 0.0
    %4335 = vmatpush1.xpose.msra.mxu0 0.0
    %4336 = vmatprep.subr.mxu0 0.0
    %4337 = vmatpush1.xpose.msra.mxu0 0.0
    %4338 = vmatprep.subr.mxu0 0.0
    %4339 = vmatpush1.xpose.msra.mxu0 0.0
    %4340 = vmatprep.subr.mxu0 0.0
    %4341 = vmatpush1.xpose.msra.mxu0 0.0
    %4342 = vmatprep.subr.mxu0 0.0
    %4343 = vmatpush1.xpose.msra.mxu0 0.0
    %4344 = vmatprep.subr.mxu0 0.0
    %4345 = vmatpush1.xpose.msra.mxu0 0.0
    %4346 = vmatprep.subr.mxu0 0.0
    %4347 = vmatpush1.xpose.msra.mxu0 0.0
    %4348 = vmatprep.subr.mxu0 0.0
    %4349 = vmatpush1.xpose.msra.mxu0 0.0
    %4350 = vmatprep.subr.mxu0 0.0
    %4351 = vmatpush1.xpose.msra.mxu0 0.0
    %4352 = vmatprep.subr.mxu0 0.0
    %4353 = vmatpush1.xpose.msra.mxu0 0.0
    %4354 = vmatprep.subr.mxu0 0.0
    %4355 = vmatpush1.xpose.msra.mxu0 0.0
    %4356 = vmatprep.subr.mxu0 0.0
    %4357 = vmatpush1.xpose.msra.mxu0 0.0
    %4358 = vmatprep.subr.mxu0 0.0
    %4359 = vmatpush1.xpose.msra.mxu0 0.0
    %4360 = vmatprep.subr.mxu0 0.0
    %4361 = vmatpush1.xpose.msra.mxu0 0.0
    %4362 = vmatprep.subr.mxu0 0.0
    %4363 = vmatpush1.xpose.msra.mxu0 0.0
    %4364 = vmatprep.subr.mxu0 0.0
    %4365 = vmatpush1.xpose.msra.mxu0 0.0
    %4366 = vmatprep.subr.mxu0 0.0
    %4367 = vmatpush1.xpose.msra.mxu0 0.0
    %4368 = vmatprep.subr.mxu0 0.0
    %4369 = vmatpush1.xpose.msra.mxu0 0.0
    %4370 = vmatprep.subr.mxu0 0.0
    %4371 = vmatpush1.xpose.msra.mxu0 0.0
    %4372 = vmatprep.subr.mxu0 0.0
    %4373 = vmatpush1.xpose.msra.mxu0 0.0
    %4374 = vmatprep.subr.mxu0 0.0
    %4375 = vmatpush1.xpose.msra.mxu0 0.0
    %4376 = vmatprep.subr.mxu0 0.0
    %4377 = vmatpush1.xpose.msra.mxu0 0.0
    %4378 = vmatprep.subr.mxu0 0.0
    %4379 = vmatpush1.xpose.msra.mxu0 0.0
    %4380 = vmatprep.subr.mxu0 0.0
    %4381 = vmatpush1.xpose.msra.mxu0 0.0
    %4382 = vmatprep.subr.mxu0 0.0
    %4383 = vmatpush1.xpose.msra.mxu0 0.0
    %4384 = vmatprep.subr.mxu0 0.0
    %4385 = vmatpush1.xpose.msra.mxu0 0.0
    %4386 = vmatprep.subr.mxu0 0.0
    %4387 = vmatpush1.xpose.msra.mxu0 0.0
    %4388 = vmatprep.mubr.f32.mxu0 %v4291
    %4389 = vmatmul.mubr.f32.gmra.mrb[0].mxu0 %v4287
    %v4390 = vpop.f32.mrb[0].mxu0
    %v4391 = vadd.f32 %v4281, %v4390
    %v4392 = vpop.f32.mrb[0].mxu0
    %4393 = vdwg.mxu0
    %4394 = vmatprep.subr.mxu0 %v4256
    %4395 = vmatpush1.xpose.msra.mxu0 %v4255
    %4396 = vmatprep.subr.mxu0 %v4264
    %4397 = vmatpush1.xpose.msra.mxu0 %v4263
    %4398 = vmatprep.subr.mxu0 0.0
    %4399 = vmatpush1.xpose.msra.mxu0 0.0
    %4400 = vmatprep.subr.mxu0 0.0
    %4401 = vmatpush1.xpose.msra.mxu0 0.0
    %4402 = vmatprep.subr.mxu0 0.0
    %4403 = vmatpush1.xpose.msra.mxu0 0.0
    %4404 = vmatprep.subr.mxu0 0.0
    %4405 = vmatpush1.xpose.msra.mxu0 0.0
    %4406 = vmatprep.subr.mxu0 0.0
    %4407 = vmatpush1.xpose.msra.mxu0 0.0
    %4408 = vmatprep.subr.mxu0 0.0
    %4409 = vmatpush1.xpose.msra.mxu0 0.0
    %4410 = vmatprep.subr.mxu0 0.0
    %4411 = vmatpush1.xpose.msra.mxu0 0.0
    %4412 = vmatprep.subr.mxu0 0.0
    %4413 = vmatpush1.xpose.msra.mxu0 0.0
    %4414 = vmatprep.subr.mxu0 0.0
    %4415 = vmatpush1.xpose.msra.mxu0 0.0
    %4416 = vmatprep.subr.mxu0 0.0
    %4417 = vmatpush1.xpose.msra.mxu0 0.0
    %4418 = vmatprep.subr.mxu0 0.0
    %4419 = vmatpush1.xpose.msra.mxu0 0.0
    %4420 = vmatprep.subr.mxu0 0.0
    %4421 = vmatpush1.xpose.msra.mxu0 0.0
    %4422 = vmatprep.subr.mxu0 0.0
    %4423 = vmatpush1.xpose.msra.mxu0 0.0
    %4424 = vmatprep.subr.mxu0 0.0
    %4425 = vmatpush1.xpose.msra.mxu0 0.0
    %4426 = vmatprep.subr.mxu0 0.0
    %4427 = vmatpush1.xpose.msra.mxu0 0.0
    %4428 = vmatprep.subr.mxu0 0.0
    %4429 = vmatpush1.xpose.msra.mxu0 0.0
    %4430 = vmatprep.subr.mxu0 0.0
    %4431 = vmatpush1.xpose.msra.mxu0 0.0
    %4432 = vmatprep.subr.mxu0 0.0
    %4433 = vmatpush1.xpose.msra.mxu0 0.0
    %4434 = vmatprep.subr.mxu0 0.0
    %4435 = vmatpush1.xpose.msra.mxu0 0.0
    %4436 = vmatprep.subr.mxu0 0.0
    %4437 = vmatpush1.xpose.msra.mxu0 0.0
    %4438 = vmatprep.subr.mxu0 0.0
    %4439 = vmatpush1.xpose.msra.mxu0 0.0
    %4440 = vmatprep.subr.mxu0 0.0
    %4441 = vmatpush1.xpose.msra.mxu0 0.0
    %4442 = vmatprep.subr.mxu0 0.0
    %4443 = vmatpush1.xpose.msra.mxu0 0.0
    %4444 = vmatprep.subr.mxu0 0.0
    %4445 = vmatpush1.xpose.msra.mxu0 0.0
    %4446 = vmatprep.subr.mxu0 0.0
    %4447 = vmatpush1.xpose.msra.mxu0 0.0
    %4448 = vmatprep.subr.mxu0 0.0
    %4449 = vmatpush1.xpose.msra.mxu0 0.0
    %4450 = vmatprep.subr.mxu0 0.0
    %4451 = vmatpush1.xpose.msra.mxu0 0.0
    %4452 = vmatprep.subr.mxu0 0.0
    %4453 = vmatpush1.xpose.msra.mxu0 0.0
    %4454 = vmatprep.subr.mxu0 0.0
    %4455 = vmatpush1.xpose.msra.mxu0 0.0
    %4456 = vmatprep.subr.mxu0 0.0
    %4457 = vmatpush1.xpose.msra.mxu0 0.0
    %4458 = vmatprep.mubr.f32.mxu0 %v4299
    %4459 = vmatmul.mubr.f32.gmra.mrb[0].mxu0 %v4295
    %v4460 = vpop.f32.mrb[0].mxu0
    %v4461 = vadd.f32 %v4391, %v4460
    %v4462 = vpop.f32.mrb[0].mxu0
    %4463 = vdwg.mxu0
    %4464 = vmatprep.subr.mxu0 %v4258
    %4465 = vmatpush1.xpose.msra.mxu0 %v4257
    %4466 = vmatprep.subr.mxu0 %v4266
    %4467 = vmatpush1.xpose.msra.mxu0 %v4265
    %4468 = vmatprep.subr.mxu0 0.0
    %4469 = vmatpush1.xpose.msra.mxu0 0.0
    %4470 = vmatprep.subr.mxu0 0.0
    %4471 = vmatpush1.xpose.msra.mxu0 0.0
    %4472 = vmatprep.subr.mxu0 0.0
    %4473 = vmatpush1.xpose.msra.mxu0 0.0
    %4474 = vmatprep.subr.mxu0 0.0
    %4475 = vmatpush1.xpose.msra.mxu0 0.0
    %4476 = vmatprep.subr.mxu0 0.0
    %4477 = vmatpush1.xpose.msra.mxu0 0.0
    %4478 = vmatprep.subr.mxu0 0.0
    %4479 = vmatpush1.xpose.msra.mxu0 0.0
    %4480 = vmatprep.subr.mxu0 0.0
    %4481 = vmatpush1.xpose.msra.mxu0 0.0
    %4482 = vmatprep.subr.mxu0 0.0
    %4483 = vmatpush1.xpose.msra.mxu0 0.0
    %4484 = vmatprep.subr.mxu0 0.0
    %4485 = vmatpush1.xpose.msra.mxu0 0.0
    %4486 = vmatprep.subr.mxu0 0.0
    %4487 = vmatpush1.xpose.msra.mxu0 0.0
    %4488 = vmatprep.subr.mxu0 0.0
    %4489 = vmatpush1.xpose.msra.mxu0 0.0
    %4490 = vmatprep.subr.mxu0 0.0
    %4491 = vmatpush1.xpose.msra.mxu0 0.0
    %4492 = vmatprep.subr.mxu0 0.0
    %4493 = vmatpush1.xpose.msra.mxu0 0.0
    %4494 = vmatprep.subr.mxu0 0.0
    %4495 = vmatpush1.xpose.msra.mxu0 0.0
    %4496 = vmatprep.subr.mxu0 0.0
    %4497 = vmatpush1.xpose.msra.mxu0 0.0
    %4498 = vmatprep.subr.mxu0 0.0
    %4499 = vmatpush1.xpose.msra.mxu0 0.0
    %4500 = vmatprep.subr.mxu0 0.0
    %4501 = vmatpush1.xpose.msra.mxu0 0.0
    %4502 = vmatprep.subr.mxu0 0.0
    %4503 = vmatpush1.xpose.msra.mxu0 0.0
    %4504 = vmatprep.subr.mxu0 0.0
    %4505 = vmatpush1.xpose.msra.mxu0 0.0
    %4506 = vmatprep.subr.mxu0 0.0
    %4507 = vmatpush1.xpose.msra.mxu0 0.0
    %4508 = vmatprep.subr.mxu0 0.0
    %4509 = vmatpush1.xpose.msra.mxu0 0.0
    %4510 = vmatprep.subr.mxu0 0.0
    %4511 = vmatpush1.xpose.msra.mxu0 0.0
    %4512 = vmatprep.subr.mxu0 0.0
    %4513 = vmatpush1.xpose.msra.mxu0 0.0
    %4514 = vmatprep.subr.mxu0 0.0
    %4515 = vmatpush1.xpose.msra.mxu0 0.0
    %4516 = vmatprep.subr.mxu0 0.0
    %4517 = vmatpush1.xpose.msra.mxu0 0.0
    %4518 = vmatprep.subr.mxu0 0.0
    %4519 = vmatpush1.xpose.msra.mxu0 0.0
    %4520 = vmatprep.subr.mxu0 0.0
    %4521 = vmatpush1.xpose.msra.mxu0 0.0
    %4522 = vmatprep.subr.mxu0 0.0
    %4523 = vmatpush1.xpose.msra.mxu0 0.0
    %4524 = vmatprep.subr.mxu0 0.0
    %4525 = vmatpush1.xpose.msra.mxu0 0.0
    %4526 = vmatprep.subr.mxu0 0.0
    %4527 = vmatpush1.xpose.msra.mxu0 0.0
    %4528 = vmatprep.mubr.f32.mxu0 %v4307
    %4529 = vmatmul.mubr.f32.gmra.mrb[0].mxu0 %v4303
    %v4530 = vpop.f32.mrb[0].mxu0
    %v4531 = vadd.f32 %v4461, %v4530
    %v4532 = vpop.f32.mrb[0].mxu0
    %4533 = vdwg.mxu0
    %4534 = vmatprep.subr.mxu0 %v4260
    %4535 = vmatpush1.xpose.msra.mxu0 %v4259
    %4536 = vmatprep.subr.mxu0 %v4268
    %4537 = vmatpush1.xpose.msra.mxu0 %v4267
    %4538 = vmatprep.subr.mxu0 0.0
    %4539 = vmatpush1.xpose.msra.mxu0 0.0
    %4540 = vmatprep.subr.mxu0 0.0
    %4541 = vmatpush1.xpose.msra.mxu0 0.0
    %4542 = vmatprep.subr.mxu0 0.0
    %4543 = vmatpush1.xpose.msra.mxu0 0.0
    %4544 = vmatprep.subr.mxu0 0.0
    %4545 = vmatpush1.xpose.msra.mxu0 0.0
    %4546 = vmatprep.subr.mxu0 0.0
    %4547 = vmatpush1.xpose.msra.mxu0 0.0
    %4548 = vmatprep.subr.mxu0 0.0
    %4549 = vmatpush1.xpose.msra.mxu0 0.0
    %4550 = vmatprep.subr.mxu0 0.0
    %4551 = vmatpush1.xpose.msra.mxu0 0.0
    %4552 = vmatprep.subr.mxu0 0.0
    %4553 = vmatpush1.xpose.msra.mxu0 0.0
    %4554 = vmatprep.subr.mxu0 0.0
    %4555 = vmatpush1.xpose.msra.mxu0 0.0
    %4556 = vmatprep.subr.mxu0 0.0
    %4557 = vmatpush1.xpose.msra.mxu0 0.0
    %4558 = vmatprep.subr.mxu0 0.0
    %4559 = vmatpush1.xpose.msra.mxu0 0.0
    %4560 = vmatprep.subr.mxu0 0.0
    %4561 = vmatpush1.xpose.msra.mxu0 0.0
    %4562 = vmatprep.subr.mxu0 0.0
    %4563 = vmatpush1.xpose.msra.mxu0 0.0
    %4564 = vmatprep.subr.mxu0 0.0
    %4565 = vmatpush1.xpose.msra.mxu0 0.0
    %4566 = vmatprep.subr.mxu0 0.0
    %4567 = vmatpush1.xpose.msra.mxu0 0.0
    %4568 = vmatprep.subr.mxu0 0.0
    %4569 = vmatpush1.xpose.msra.mxu0 0.0
    %4570 = vmatprep.subr.mxu0 0.0
    %4571 = vmatpush1.xpose.msra.mxu0 0.0
    %4572 = vmatprep.subr.mxu0 0.0
    %4573 = vmatpush1.xpose.msra.mxu0 0.0
    %4574 = vmatprep.subr.mxu0 0.0
    %4575 = vmatpush1.xpose.msra.mxu0 0.0
    %4576 = vmatprep.subr.mxu0 0.0
    %4577 = vmatpush1.xpose.msra.mxu0 0.0
    %4578 = vmatprep.subr.mxu0 0.0
    %4579 = vmatpush1.xpose.msra.mxu0 0.0
    %4580 = vmatprep.subr.mxu0 0.0
    %4581 = vmatpush1.xpose.msra.mxu0 0.0
    %4582 = vmatprep.subr.mxu0 0.0
    %4583 = vmatpush1.xpose.msra.mxu0 0.0
    %4584 = vmatprep.subr.mxu0 0.0
    %4585 = vmatpush1.xpose.msra.mxu0 0.0
    %4586 = vmatprep.subr.mxu0 0.0
    %4587 = vmatpush1.xpose.msra.mxu0 0.0
    %4588 = vmatprep.subr.mxu0 0.0
    %4589 = vmatpush1.xpose.msra.mxu0 0.0
    %4590 = vmatprep.subr.mxu0 0.0
    %4591 = vmatpush1.xpose.msra.mxu0 0.0
    %4592 = vmatprep.subr.mxu0 0.0
    %4593 = vmatpush1.xpose.msra.mxu0 0.0
    %4594 = vmatprep.subr.mxu0 0.0
    %4595 = vmatpush1.xpose.msra.mxu0 0.0
    %4596 = vmatprep.subr.mxu0 0.0
    %4597 = vmatpush1.xpose.msra.mxu0 0.0
    %4598 = vmatprep.mubr.f32.mxu0 %v4315
    %4599 = vmatmul.mubr.f32.gmra.mrb[0].mxu0 %v4311
    %v4600 = vpop.f32.mrb[0].mxu0
    %v4601 = vadd.f32 %v4531, %v4600
    %v4602 = vpop.f32.mrb[0].mxu0
    %4603 = vdwg.mxu0
    %v4604 = vxor.u32 %v4601, 2147483648
    %v4605 = vmul.f32 %v4604, 1.442695
    %v4606 = vpow.pop %v4605
    %v4607 = vadd.f32 %v4606, 1.0
    %v4608 = vrcp.pop %v4607
    %v4609 = vmul.f32 1.0, %v4608
    %vm4610 = vcmask 122880
    %4611 = vst.msk [vmem:[#allocation14] sm:$0x1] %vm4610, %v4609
    // Predicated region
    $region54: #{tpu_custom_call.1} parent=1 // pred_check
      _
    $region55: #{tpu_custom_call.1} parent=1 // pred_check_branch
      %4613 = sbr.rel (0) target = $region57
    $region56: #{tpu_custom_call.1} parent=1 // pred_region
      %s4615 = ssub.s32 16, 16
      %4616 = vsyncadd [#allocation5], %s4615
      %s4618 = sshll.u32 [#allocation14], 4
      %s4619 = int_to_ptr.vmem [resolvable:$true] %s4618
      %4621 = dma.vmem_to_hbm [thread:$0]  %s4619, 16, %s7, [#allocation5]
    $region57: #{tpu_custom_call.1} parent=1 // pred_fallthru
      _
    // Predicated region
    $region58: #{tpu_custom_call.1} parent=1 // pred_check
      _
    $region59: #{tpu_custom_call.1} parent=1 // pred_check_branch
      %4623 = sbr.rel (0) target = $region61
    $region60: #{tpu_custom_call.1} parent=1 // pred_region
      %4624 = dma.done [#allocation5], 16
    $region61: #{tpu_custom_call.1} parent=1 // pred_fallthru
      _
    %4625 = vsyncpa [#allocation4], 1
    %4626 = vsyncpa [#allocation7], 1
    %4627 = vsyncpa [#allocation10], 1
    %4628 = vsyncpa [#allocation13], 1
    %4629 = vsyncpa [#allocation5], 1

// kernel: tpu_custom_call.1
$region0: #{tpu_custom_call.1}
  #allocation0 [shape = 'u32[]', space=smem, size = 0x4, offset = 0x4, fixed_abs, tag = 'smem constant byte address 0x4 - core index']
  #allocation1 [shape = 'u32[144,128]{1,0:T(1,128)}', space=vmem, size = 0x12000, scoped, tag = 'internal scratch']
  #allocation2 [shape = 'f32[1,1]{1,0:T(1,128)S(1)}', space=vmem, size = 0x200, scoped, tag = 'scoped memory for tpu_custom_call.1']
  %s0 = inlined_call_operand.hbm [shape: bf16[16,32], index: 0, kind: input, shape index: {}]
  %s1 = inlined_call_operand.hbm [shape: bf16[32,1024], index: 1, kind: input, shape index: {}]
  %s2 = inlined_call_operand.hbm [shape: f32[1,1024], index: 2, kind: input, shape index: {}]
  %s3 = inlined_call_operand.hbm [shape: bf16[1024,1024], index: 3, kind: input, shape index: {}]
  %s4 = inlined_call_operand.hbm [shape: f32[1,1024], index: 4, kind: input, shape index: {}]
  %s5 = inlined_call_operand.hbm [shape: bf16[1,1024], index: 5, kind: input, shape index: {}]
  %s6 = inlined_call_operand.<no memory space> [shape: f32[1,1], index: 6, kind: input, shape index: {}]
  %s7 = inlined_call_operand.hbm [shape: f32[1,1,16], index: 7, kind: output, shape index: {}]
  %s8 = sld [smem:[#allocation0]]
  $region62: #{tpu_custom_call.1} parent=0
    _
  %s10 = ssub.s32 1, %s8
  %s11 = scalar_select 0, %s10, %s8
  %v12 = vstv %s6
  %13 = vst [vmem:[#allocation2] sm:$0x1] %v12
  $region1: #{tpu_custom_call.1} parent=0
    #allocation3 [shape = 'u8[4096]{0}', space=vmem, size = 0x1000, scoped, tag = 'input window, operand 0, single buffered']
    #allocation4 [shape = 's32[1]{0}', space=sflag, size = 0x4, scoped, tag = 'scoped memory for tpu_custom_call.1']
    #allocation5 [shape = 's32[1]{0}', space=sflag, size = 0x4, scoped, tag = 'scoped memory for tpu_custom_call.1']
    #allocation6 [shape = 'u8[65536]{0}', space=vmem, size = 0x10000, scoped, tag = 'input window, operand 1, single buffered']
    #allocation7 [shape = 's32[1]{0}', space=sflag, size = 0x4, scoped, tag = 'scoped memory for tpu_custom_call.1']
    #allocation8 [shape = 'u8[4096]{0}', space=vmem, size = 0x1000, scoped, tag = 'input window, operand 2, single buffered']
    #allocation9 [shape = 'u8[2097152]{0}', space=vmem, size = 0x200000, scoped, tag = 'input window, operand 3, single buffered']
    #allocation10 [shape = 's32[1]{0}', space=sflag, size = 0x4, scoped, tag = 'scoped memory for tpu_custom_call.1']
    #allocation11 [shape = 'u8[4096]{0}', space=vmem, size = 0x1000, scoped, tag = 'input window, operand 4, single buffered']
    #allocation12 [shape = 'u8[4096]{0}', space=vmem, size = 0x1000, scoped, tag = 'input window, operand 5, single buffered']
    #allocation13 [shape = 's32[1]{0}', space=sflag, size = 0x4, scoped, tag = 'scoped memory for tpu_custom_call.1']
    #allocation14 [shape = 'u8[512]{0}', space=vmem, size = 0x400, scoped, tag = 'output window, operand 0, single buffered']
    %14 = vsyncpa [#allocation4], 0
    %15 = vsyncpa [#allocation7], 0
    %16 = vsyncpa [#allocation10], 0
    %17 = vsyncpa [#allocation13], 0
    %18 = vsyncpa [#allocation5], 0
    // Predicated region
    $region2: #{tpu_custom_call.1} parent=1 // pred_check
      _
    $region3: #{tpu_custom_call.1} parent=1 // pred_check_branch
      %20 = sbr.rel (0) target = $region5
    $region4: #{tpu_custom_call.1} parent=1 // pred_region
      %s22 = ssub.s32 128, 128
      %23 = vsyncadd [#allocation4], %s22
      %s24 = sshll.u32 [#allocation3], 4
      %s25 = int_to_ptr.vmem [resolvable:$true] %s24
      %30 = dma.hbm_to_vmem [thread:$0]  %s0, 128, %s25, [#allocation4], 64, 64, 4
    $region5: #{tpu_custom_call.1} parent=1 // pred_fallthru
      _
    // Predicated region
    $region6: #{tpu_custom_call.1} parent=1 // pred_check
      _
    $region7: #{tpu_custom_call.1} parent=1 // pred_check_branch
      %32 = sbr.rel (0) target = $region9
    $region8: #{tpu_custom_call.1} parent=1 // pred_region
      %s34 = ssub.s32 2048, 2048
      %35 = vsyncadd [#allocation7], %s34
      %s36 = sshll.u32 [#allocation6], 4
      %s37 = int_to_ptr.vmem [resolvable:$true] %s36
      %42 = dma.hbm_to_vmem [thread:$0]  %s1, 2048, %s37, [#allocation7], 512, 512, 32
    $region9: #{tpu_custom_call.1} parent=1 // pred_fallthru
      _
    // Predicated region
    $region10: #{tpu_custom_call.1} parent=1 // pred_check
      _
    $region11: #{tpu_custom_call.1} parent=1 // pred_check_branch
      %44 = sbr.rel (0) target = $region13
    $region12: #{tpu_custom_call.1} parent=1 // pred_region
      %s46 = ssub.s32 128, 128
      %47 = vsyncadd [#allocation7], %s46
      %s49 = sshll.u32 [#allocation8], 4
      %s50 = int_to_ptr.vmem [resolvable:$true] %s49
      %52 = dma.hbm_to_vmem [thread:$0]  %s2, 128, %s50, [#allocation7]
    $region13: #{tpu_custom_call.1} parent=1 // pred_fallthru
      _
    // Predicated region
    $region14: #{tpu_custom_call.1} parent=1 // pred_check
      _
    $region15: #{tpu_custom_call.1} parent=1 // pred_check_branch
      %54 = sbr.rel (0) target = $region17
    $region16: #{tpu_custom_call.1} parent=1 // pred_region
      %s56 = ssub.s32 65536, 65536
      %57 = vsyncadd [#allocation10], %s56
      %s58 = sshll.u32 [#allocation9], 4
      %s59 = int_to_ptr.vmem [resolvable:$true] %s58
      %64 = dma.hbm_to_vmem [thread:$0]  %s3, 65536, %s59, [#allocation10], 512, 512, 32
    $region17: #{tpu_custom_call.1} parent=1 // pred_fallthru
      _
    // Predicated region
    $region18: #{tpu_custom_call.1} parent=1 // pred_check
      _
    $region19: #{tpu_custom_call.1} parent=1 // pred_check_branch
      %66 = sbr.rel (0) target = $region21
    $region20: #{tpu_custom_call.1} parent=1 // pred_region
      %s68 = ssub.s32 128, 128
      %69 = vsyncadd [#allocation10], %s68
      %s71 = sshll.u32 [#allocation11], 4
      %s72 = int_to_ptr.vmem [resolvable:$true] %s71
      %74 = dma.hbm_to_vmem [thread:$0]  %s4, 128, %s72, [#allocation10]
    $region21: #{tpu_custom_call.1} parent=1 // pred_fallthru
      _
    // Predicated region
    $region22: #{tpu_custom_call.1} parent=1 // pred_check
      _
    $region23: #{tpu_custom_call.1} parent=1 // pred_check_branch
      %76 = sbr.rel (0) target = $region25
    $region24: #{tpu_custom_call.1} parent=1 // pred_region
      %s78 = ssub.s32 128, 128
      %79 = vsyncadd [#allocation13], %s78
      %s81 = sshll.u32 [#allocation12], 4
      %s82 = int_to_ptr.vmem [resolvable:$true] %s81
      %84 = dma.hbm_to_vmem [thread:$0]  %s5, 128, %s82, [#allocation13]
    $region25: #{tpu_custom_call.1} parent=1 // pred_fallthru
      _
    // Predicated region
    $region26: #{tpu_custom_call.1} parent=1 // pred_check
      _
    $region27: #{tpu_custom_call.1} parent=1 // pred_check_branch
      %86 = sbr.rel (0) target = $region29
    $region28: #{tpu_custom_call.1} parent=1 // pred_region
      _
    $region29: #{tpu_custom_call.1} parent=1 // pred_fallthru
      _
    // Predicated region
    $region30: #{tpu_custom_call.1} parent=1 // pred_check
      _
    $region31: #{tpu_custom_call.1} parent=1 // pred_check_branch
      %88 = sbr.rel (0) target = $region33
    $region32: #{tpu_custom_call.1} parent=1 // pred_region
      %89 = dma.done [#allocation4], 128
    $region33: #{tpu_custom_call.1} parent=1 // pred_fallthru
      _
    // Predicated region
    $region34: #{tpu_custom_call.1} parent=1 // pred_check
      _
    $region35: #{tpu_custom_call.1} parent=1 // pred_check_branch
      %91 = sbr.rel (0) target = $region37
    $region36: #{tpu_custom_call.1} parent=1 // pred_region
      %92 = dma.done [#allocation7], 2048
    $region37: #{tpu_custom_call.1} parent=1 // pred_fallthru
      _
    // Predicated region
    $region38: #{tpu_custom_call.1} parent=1 // pred_check
      _
    $region39: #{tpu_custom_call.1} parent=1 // pred_check_branch
      %94 = sbr.rel (0) target = $region41
    $region40: #{tpu_custom_call.1} parent=1 // pred_region
      %95 = dma.done [#allocation7], 128
    $region41: #{tpu_custom_call.1} parent=1 // pred_fallthru
      _
    // Predicated region
    $region42: #{tpu_custom_call.1} parent=1 // pred_check
      _
    $region43: #{tpu_custom_call.1} parent=1 // pred_check_branch
      %97 = sbr.rel (0) target = $region45
    $region44: #{tpu_custom_call.1} parent=1 // pred_region
      %98 = dma.done [#allocation10], 65536
    $region45: #{tpu_custom_call.1} parent=1 // pred_fallthru
      _
    // Predicated region
    $region46: #{tpu_custom_call.1} parent=1 // pred_check
      _
    $region47: #{tpu_custom_call.1} parent=1 // pred_check_branch
      %100 = sbr.rel (0) target = $region49
    $region48: #{tpu_custom_call.1} parent=1 // pred_region
      %101 = dma.done [#allocation10], 128
    $region49: #{tpu_custom_call.1} parent=1 // pred_fallthru
      _
    // Predicated region
    $region50: #{tpu_custom_call.1} parent=1 // pred_check
      _
    $region51: #{tpu_custom_call.1} parent=1 // pred_check_branch
      %103 = sbr.rel (0) target = $region53
    $region52: #{tpu_custom_call.1} parent=1 // pred_region
      %104 = dma.done [#allocation13], 128
    $region53: #{tpu_custom_call.1} parent=1 // pred_fallthru
      _
    %v106 = vld [vmem:[#allocation3] sm:$0xf]
    %v107 = vld [vmem:[#allocation3 + $0x4] sm:$0xf]
    %v108 = vld [vmem:[#allocation6] sm:$0xff]
    %v109 = vld [vmem:[#allocation6 + $0x8] sm:$0xff]
    %v110 = vld [vmem:[#allocation6 + $0x10] sm:$0xff]
    %v111 = vld [vmem:[#allocation6 + $0x18] sm:$0xff]
    %v112 = vld [vmem:[#allocation6 + $0x20] sm:$0xff]
    %v113 = vld [vmem:[#allocation6 + $0x28] sm:$0xff]
    %v114 = vld [vmem:[#allocation6 + $0x30] sm:$0xff]
    %v115 = vld [vmem:[#allocation6 + $0x38] sm:$0xff]
    %v116 = vld [vmem:[#allocation6 + $0x40] sm:$0xff]
    %v117 = vld [vmem:[#allocation6 + $0x48] sm:$0xff]
    %v118 = vld [vmem:[#allocation6 + $0x50] sm:$0xff]
    %v119 = vld [vmem:[#allocation6 + $0x58] sm:$0xff]
    %v120 = vld [vmem:[#allocation6 + $0x60] sm:$0xff]
    %v121 = vld [vmem:[#allocation6 + $0x68] sm:$0xff]
    %v122 = vld [vmem:[#allocation6 + $0x70] sm:$0xff]
    %v123 = vld [vmem:[#allocation6 + $0x78] sm:$0xff]
    %v124 = vld [vmem:[#allocation8] sm:$0xff]
    %v126 = vlaneseq
    %v127 = vshrl.u32 %v126, 7
    %v128 = vsub.s32 0, %v127
    %v129 = vrot.slane %v124, %v128
    %v130 = vlaneseq
    %v131 = vshrl.u32 %v130, 7
    %v132 = vsub.s32 1, %v131
    %v133 = vrot.slane %v124, %v132
    %v134 = vlaneseq
    %v135 = vshrl.u32 %v134, 7
    %v136 = vsub.s32 2, %v135
    %v137 = vrot.slane %v124, %v136
    %v138 = vlaneseq
    %v139 = vshrl.u32 %v138, 7
    %v140 = vsub.s32 3, %v139
    %v141 = vrot.slane %v124, %v140
    %v142 = vlaneseq
    %v143 = vshrl.u32 %v142, 7
    %v144 = vsub.s32 4, %v143
    %v145 = vrot.slane %v124, %v144
    %v146 = vlaneseq
    %v147 = vshrl.u32 %v146, 7
    %v148 = vsub.s32 5, %v147
    %v149 = vrot.slane %v124, %v148
    %v150 = vlaneseq
    %v151 = vshrl.u32 %v150, 7
    %v152 = vsub.s32 6, %v151
    %v153 = vrot.slane %v124, %v152
    %v154 = vlaneseq
    %v155 = vshrl.u32 %v154, 7
    %v156 = vsub.s32 7, %v155
    %v157 = vrot.slane %v124, %v156
    %v168 = vunpack.c.l.b16 %v106
    %v169 = vunpack.c.l.b16 %v107
    %v170 = vpack.c.b16 %v169, %v168
    %v187 = vunpack.c.l.b16 %v108
    %v188 = vunpack.c.h.b16 %v108
    %v189 = vunpack.c.l.b16 %v109
    %v190 = vunpack.c.h.b16 %v109
    %v191 = vunpack.c.l.b16 %v110
    %v192 = vunpack.c.h.b16 %v110
    %v193 = vunpack.c.l.b16 %v111
    %v194 = vunpack.c.h.b16 %v111
    %v195 = vunpack.c.l.b16 %v112
    %v196 = vunpack.c.h.b16 %v112
    %v197 = vunpack.c.l.b16 %v113
    %v198 = vunpack.c.h.b16 %v113
    %v199 = vunpack.c.l.b16 %v114
    %v200 = vunpack.c.h.b16 %v114
    %v201 = vunpack.c.l.b16 %v115
    %v202 = vunpack.c.h.b16 %v115
    %v203 = vunpack.c.l.b16 %v116
    %v204 = vunpack.c.h.b16 %v116
    %v205 = vunpack.c.l.b16 %v117
    %v206 = vunpack.c.h.b16 %v117
    %v207 = vunpack.c.l.b16 %v118
    %v208 = vunpack.c.h.b16 %v118
    %v209 = vunpack.c.l.b16 %v119
    %v210 = vunpack.c.h.b16 %v119
    %v211 = vunpack.c.l.b16 %v120
    %v212 = vunpack.c.h.b16 %v120
    %v213 = vunpack.c.l.b16 %v121
    %v214 = vunpack.c.h.b16 %v121
    %v215 = vunpack.c.l.b16 %v122
    %v216 = vunpack.c.h.b16 %v122
    %v217 = vunpack.c.l.b16 %v123
    %v218 = vunpack.c.h.b16 %v123
    %v219 = vpack.c.b16 %v195, %v187
    %v220 = vpack.c.b16 %v196, %v188
    %v221 = vpack.c.b16 %v197, %v189
    %v222 = vpack.c.b16 %v198, %v190
    %v223 = vpack.c.b16 %v199, %v191
    %v224 = vpack.c.b16 %v200, %v192
    %v225 = vpack.c.b16 %v201, %v193
    %v226 = vpack.c.b16 %v202, %v194
    %v227 = vpack.c.b16 %v211, %v203
    %v228 = vpack.c.b16 %v212, %v204
    %v229 = vpack.c.b16 %v213, %v205
    %v230 = vpack.c.b16 %v214, %v206
    %v231 = vpack.c.b16 %v215, %v207
    %v232 = vpack.c.b16 %v216, %v208
    %v233 = vpack.c.b16 %v217, %v209
    %v234 = vpack.c.b16 %v218, %v210
    %vm251 = vcmask 261120
    %v253 = vsel %vm251, %v170, 0
    %255 = vmatprep.subr.bf16.mxu0 %v220
    %256 = vmatpush1.bf16.msra.mxu0 %v219
    %257 = vmatprep.subr.bf16.mxu0 %v228
    %258 = vmatpush1.bf16.msra.mxu0 %v227
    %259 = vmatprep.subr.bf16.mxu0 0
    %260 = vmatpush1.bf16.msra.mxu0 0
    %261 = vmatprep.subr.bf16.mxu0 0
    %262 = vmatpush1.bf16.msra.mxu0 0
    %263 = vmatprep.subr.bf16.mxu0 0
    %264 = vmatpush1.bf16.msra.mxu0 0
    %265 = vmatprep.subr.bf16.mxu0 0
    %266 = vmatpush1.bf16.msra.mxu0 0
    %267 = vmatprep.subr.bf16.mxu0 0
    %268 = vmatpush1.bf16.msra.mxu0 0
    %269 = vmatprep.subr.bf16.mxu0 0
    %270 = vmatpush1.bf16.msra.mxu0 0
    %271 = vmatprep.subr.bf16.mxu0 0
    %272 = vmatpush1.bf16.msra.mxu0 0
    %273 = vmatprep.subr.bf16.mxu0 0
    %274 = vmatpush1.bf16.msra.mxu0 0
    %275 = vmatprep.subr.bf16.mxu0 0
    %276 = vmatpush1.bf16.msra.mxu0 0
    %277 = vmatprep.subr.bf16.mxu0 0
    %278 = vmatpush1.bf16.msra.mxu0 0
    %279 = vmatprep.subr.bf16.mxu0 0
    %280 = vmatpush1.bf16.msra.mxu0 0
    %281 = vmatprep.subr.bf16.mxu0 0
    %282 = vmatpush1.bf16.msra.mxu0 0
    %283 = vmatprep.subr.bf16.mxu0 0
    %284 = vmatpush1.bf16.msra.mxu0 0
    %285 = vmatprep.subr.bf16.mxu0 0
    %286 = vmatpush1.bf16.msra.mxu0 0
    %287 = vmatprep.mubr.bf16.mxu0 0
    %288 = vmatmul.mubr.bf16.gmra.mrb[0].mxu0 %v253
    %v289 = vpop.f32.mrb[0].mxu0
    %v290 = vadd.f32 %v129, %v289
    %v291 = vpop.f32.mrb[0].mxu0
    %v292 = vadd.f32 %v133, %v291
    %v293 = vpop.f32.mrb[0].mxu0
    %v294 = vadd.f32 %v129, %v293
    %v295 = vpop.f32.mrb[0].mxu0
    %v296 = vadd.f32 %v133, %v295
    %297 = vdwg.mxu0
    %298 = vmatprep.subr.bf16.mxu0 %v222
    %299 = vmatpush1.bf16.msra.mxu0 %v221
    %300 = vmatprep.subr.bf16.mxu0 %v230
    %301 = vmatpush1.bf16.msra.mxu0 %v229
    %302 = vmatprep.subr.bf16.mxu0 0
    %303 = vmatpush1.bf16.msra.mxu0 0
    %304 = vmatprep.subr.bf16.mxu0 0
    %305 = vmatpush1.bf16.msra.mxu0 0
    %306 = vmatprep.subr.bf16.mxu0 0
    %307 = vmatpush1.bf16.msra.mxu0 0
    %308 = vmatprep.subr.bf16.mxu0 0
    %309 = vmatpush1.bf16.msra.mxu0 0
    %310 = vmatprep.subr.bf16.mxu0 0
    %311 = vmatpush1.bf16.msra.mxu0 0
    %312 = vmatprep.subr.bf16.mxu0 0
    %313 = vmatpush1.bf16.msra.mxu0 0
    %314 = vmatprep.subr.bf16.mxu0 0
    %315 = vmatpush1.bf16.msra.mxu0 0
    %316 = vmatprep.subr.bf16.mxu0 0
    %317 = vmatpush1.bf16.msra.mxu0 0
    %318 = vmatprep.subr.bf16.mxu0 0
    %319 = vmatpush1.bf16.msra.mxu0 0
    %320 = vmatprep.subr.bf16.mxu0 0
    %321 = vmatpush1.bf16.msra.mxu0 0
    %322 = vmatprep.subr.bf16.mxu0 0
    %323 = vmatpush1.bf16.msra.mxu0 0
    %324 = vmatprep.subr.bf16.mxu0 0
    %325 = vmatpush1.bf16.msra.mxu0 0
    %326 = vmatprep.subr.bf16.mxu0 0
    %327 = vmatpush1.bf16.msra.mxu0 0
    %328 = vmatprep.subr.bf16.mxu0 0
    %329 = vmatpush1.bf16.msra.mxu0 0
    %330 = vmatprep.mubr.bf16.mxu0 0
    %331 = vmatmul.mubr.bf16.gmra.mrb[0].mxu0 %v253
    %v332 = vpop.f32.mrb[0].mxu0
    %v333 = vadd.f32 %v137, %v332
    %v334 = vpop.f32.mrb[0].mxu0
    %v335 = vadd.f32 %v141, %v334
    %v336 = vpop.f32.mrb[0].mxu0
    %v337 = vadd.f32 %v137, %v336
    %v338 = vpop.f32.mrb[0].mxu0
    %v339 = vadd.f32 %v141, %v338
    %340 = vdwg.mxu0
    %341 = vmatprep.subr.bf16.mxu0 %v224
    %342 = vmatpush1.bf16.msra.mxu0 %v223
    %343 = vmatprep.subr.bf16.mxu0 %v232
    %344 = vmatpush1.bf16.msra.mxu0 %v231
    %345 = vmatprep.subr.bf16.mxu0 0
    %346 = vmatpush1.bf16.msra.mxu0 0
    %347 = vmatprep.subr.bf16.mxu0 0
    %348 = vmatpush1.bf16.msra.mxu0 0
    %349 = vmatprep.subr.bf16.mxu0 0
    %350 = vmatpush1.bf16.msra.mxu0 0
    %351 = vmatprep.subr.bf16.mxu0 0
    %352 = vmatpush1.bf16.msra.mxu0 0
    %353 = vmatprep.subr.bf16.mxu0 0
    %354 = vmatpush1.bf16.msra.mxu0 0
    %355 = vmatprep.subr.bf16.mxu0 0
    %356 = vmatpush1.bf16.msra.mxu0 0
    %357 = vmatprep.subr.bf16.mxu0 0
    %358 = vmatpush1.bf16.msra.mxu0 0
    %359 = vmatprep.subr.bf16.mxu0 0
    %360 = vmatpush1.bf16.msra.mxu0 0
    %361 = vmatprep.subr.bf16.mxu0 0
    %362 = vmatpush1.bf16.msra.mxu0 0
    %363 = vmatprep.subr.bf16.mxu0 0
    %364 = vmatpush1.bf16.msra.mxu0 0
    %365 = vmatprep.subr.bf16.mxu0 0
    %366 = vmatpush1.bf16.msra.mxu0 0
    %367 = vmatprep.subr.bf16.mxu0 0
    %368 = vmatpush1.bf16.msra.mxu0 0
    %369 = vmatprep.subr.bf16.mxu0 0
    %370 = vmatpush1.bf16.msra.mxu0 0
    %371 = vmatprep.subr.bf16.mxu0 0
    %372 = vmatpush1.bf16.msra.mxu0 0
    %373 = vmatprep.mubr.bf16.mxu0 0
    %374 = vmatmul.mubr.bf16.gmra.mrb[0].mxu0 %v253
    %v375 = vpop.f32.mrb[0].mxu0
    %v376 = vadd.f32 %v145, %v375
    %v377 = vpop.f32.mrb[0].mxu0
    %v378 = vadd.f32 %v149, %v377
    %v379 = vpop.f32.mrb[0].mxu0
    %v380 = vadd.f32 %v145, %v379
    %v381 = vpop.f32.mrb[0].mxu0
    %v382 = vadd.f32 %v149, %v381
    %383 = vdwg.mxu0
    %384 = vmatprep.subr.bf16.mxu0 %v226
    %385 = vmatpush1.bf16.msra.mxu0 %v225
    %386 = vmatprep.subr.bf16.mxu0 %v234
    %387 = vmatpush1.bf16.msra.mxu0 %v233
    %388 = vmatprep.subr.bf16.mxu0 0
    %389 = vmatpush1.bf16.msra.mxu0 0
    %390 = vmatprep.subr.bf16.mxu0 0
    %391 = vmatpush1.bf16.msra.mxu0 0
    %392 = vmatprep.subr.bf16.mxu0 0
    %393 = vmatpush1.bf16.msra.mxu0 0
    %394 = vmatprep.subr.bf16.mxu0 0
    %395 = vmatpush1.bf16.msra.mxu0 0
    %396 = vmatprep.subr.bf16.mxu0 0
    %397 = vmatpush1.bf16.msra.mxu0 0
    %398 = vmatprep.subr.bf16.mxu0 0
    %399 = vmatpush1.bf16.msra.mxu0 0
    %400 = vmatprep.subr.bf16.mxu0 0
    %401 = vmatpush1.bf16.msra.mxu0 0
    %402 = vmatprep.subr.bf16.mxu0 0
    %403 = vmatpush1.bf16.msra.mxu0 0
    %404 = vmatprep.subr.bf16.mxu0 0
    %405 = vmatpush1.bf16.msra.mxu0 0
    %406 = vmatprep.subr.bf16.mxu0 0
    %407 = vmatpush1.bf16.msra.mxu0 0
    %408 = vmatprep.subr.bf16.mxu0 0
    %409 = vmatpush1.bf16.msra.mxu0 0
    %410 = vmatprep.subr.bf16.mxu0 0
    %411 = vmatpush1.bf16.msra.mxu0 0
    %412 = vmatprep.subr.bf16.mxu0 0
    %413 = vmatpush1.bf16.msra.mxu0 0
    %414 = vmatprep.subr.bf16.mxu0 0
    %415 = vmatpush1.bf16.msra.mxu0 0
    %416 = vmatprep.mubr.bf16.mxu0 0
    %417 = vmatmul.mubr.bf16.gmra.mrb[0].mxu0 %v253
    %v418 = vpop.f32.mrb[0].mxu0
    %v419 = vadd.f32 %v153, %v418
    %v420 = vpop.f32.mrb[0].mxu0
    %v421 = vadd.f32 %v157, %v420
    %v422 = vpop.f32.mrb[0].mxu0
    %v423 = vadd.f32 %v153, %v422
    %v424 = vpop.f32.mrb[0].mxu0
    %v425 = vadd.f32 %v157, %v424
    %426 = vdwg.mxu0
    %v427 = vmax.f32 %v290, 0.0
    %v428 = vmax.f32 %v292, 0.0
    %v429 = vmax.f32 %v333, 0.0
    %v430 = vmax.f32 %v335, 0.0
    %v431 = vmax.f32 %v376, 0.0
    %v432 = vmax.f32 %v378, 0.0
    %v433 = vmax.f32 %v419, 0.0
    %v434 = vmax.f32 %v421, 0.0
    %v435 = vmax.f32 %v294, 0.0
    %v436 = vmax.f32 %v296, 0.0
    %v437 = vmax.f32 %v337, 0.0
    %v438 = vmax.f32 %v339, 0.0
    %v439 = vmax.f32 %v380, 0.0
    %v440 = vmax.f32 %v382, 0.0
    %v441 = vmax.f32 %v423, 0.0
    %v442 = vmax.f32 %v425, 0.0
    %v443 = vpack.c.bf16 %v435, %v427
    %v444 = vpack.c.bf16 %v436, %v428
    %v445 = vpack.c.bf16 %v437, %v429
    %v446 = vpack.c.bf16 %v438, %v430
    %v447 = vpack.c.bf16 %v439, %v431
    %v448 = vpack.c.bf16 %v440, %v432
    %v449 = vpack.c.bf16 %v441, %v433
    %v450 = vpack.c.bf16 %v442, %v434
    %v451 = vld [vmem:[#allocation9] sm:$0xff]
    %v452 = vld [vmem:[#allocation9 + $0x8] sm:$0xff]
    %v453 = vld [vmem:[#allocation9 + $0x10] sm:$0xff]
    %v454 = vld [vmem:[#allocation9 + $0x18] sm:$0xff]
    %v455 = vld [vmem:[#allocation9 + $0x20] sm:$0xff]
    %v456 = vld [vmem:[#allocation9 + $0x28] sm:$0xff]
    %v457 = vld [vmem:[#allocation9 + $0x30] sm:$0xff]
    %v458 = vld [vmem:[#allocation9 + $0x38] sm:$0xff]
    %v459 = vld [vmem:[#allocation9 + $0x40] sm:$0xff]
    %v460 = vld [vmem:[#allocation9 + $0x48] sm:$0xff]
    %v461 = vld [vmem:[#allocation9 + $0x50] sm:$0xff]
    %v462 = vld [vmem:[#allocation9 + $0x58] sm:$0xff]
    %v463 = vld [vmem:[#allocation9 + $0x60] sm:$0xff]
    %v464 = vld [vmem:[#allocation9 + $0x68] sm:$0xff]
    %v465 = vld [vmem:[#allocation9 + $0x70] sm:$0xff]
    %v466 = vld [vmem:[#allocation9 + $0x78] sm:$0xff]
    %v467 = vld [vmem:[#allocation9 + $0x80] sm:$0xff]
    %v468 = vld [vmem:[#allocation9 + $0x88] sm:$0xff]
    %v469 = vld [vmem:[#allocation9 + $0x90] sm:$0xff]
    %v470 = vld [vmem:[#allocation9 + $0x98] sm:$0xff]
    %v471 = vld [vmem:[#allocation9 + $0xa0] sm:$0xff]
    %v472 = vld [vmem:[#allocation9 + $0xa8] sm:$0xff]
    %v473 = vld [vmem:[#allocation9 + $0xb0] sm:$0xff]
    %v474 = vld [vmem:[#allocation9 + $0xb8] sm:$0xff]
    %v475 = vld [vmem:[#allocation9 + $0xc0] sm:$0xff]
    %v476 = vld [vmem:[#allocation9 + $0xc8] sm:$0xff]
    %v477 = vld [vmem:[#allocation9 + $0xd0] sm:$0xff]
    %v478 = vld [vmem:[#allocation9 + $0xd8] sm:$0xff]
    %v479 = vld [vmem:[#allocation9 + $0xe0] sm:$0xff]
    %v480 = vld [vmem:[#allocation9 + $0xe8] sm:$0xff]
    %v481 = vld [vmem:[#allocation9 + $0xf0] sm:$0xff]
    %v482 = vld [vmem:[#allocation9 + $0xf8] sm:$0xff]
    %v483 = vld [vmem:[#allocation9 + $0x100] sm:$0xff]
    %v484 = vld [vmem:[#allocation9 + $0x108] sm:$0xff]
    %v485 = vld [vmem:[#allocation9 + $0x110] sm:$0xff]
    %v486 = vld [vmem:[#allocation9 + $0x118] sm:$0xff]
    %v487 = vld [vmem:[#allocation9 + $0x120] sm:$0xff]
    %v488 = vld [vmem:[#allocation9 + $0x128] sm:$0xff]
    %v489 = vld [vmem:[#allocation9 + $0x130] sm:$0xff]
    %v490 = vld [vmem:[#allocation9 + $0x138] sm:$0xff]
    %v491 = vld [vmem:[#allocation9 + $0x140] sm:$0xff]
    %v492 = vld [vmem:[#allocation9 + $0x148] sm:$0xff]
    %v493 = vld [vmem:[#allocation9 + $0x150] sm:$0xff]
    %v494 = vld [vmem:[#allocation9 + $0x158] sm:$0xff]
    %v495 = vld [vmem:[#allocation9 + $0x160] sm:$0xff]
    %v496 = vld [vmem:[#allocation9 + $0x168] sm:$0xff]
    %v497 = vld [vmem:[#allocation9 + $0x170] sm:$0xff]
    %v498 = vld [vmem:[#allocation9 + $0x178] sm:$0xff]
    %v499 = vld [vmem:[#allocation9 + $0x180] sm:$0xff]
    %v500 = vld [vmem:[#allocation9 + $0x188] sm:$0xff]
    %v501 = vld [vmem:[#allocation9 + $0x190] sm:$0xff]
    %v502 = vld [vmem:[#allocation9 + $0x198] sm:$0xff]
    %v503 = vld [vmem:[#allocation9 + $0x1a0] sm:$0xff]
    %v504 = vld [vmem:[#allocation9 + $0x1a8] sm:$0xff]
    %v505 = vld [vmem:[#allocation9 + $0x1b0] sm:$0xff]
    %v506 = vld [vmem:[#allocation9 + $0x1b8] sm:$0xff]
    %v507 = vld [vmem:[#allocation9 + $0x1c0] sm:$0xff]
    %v508 = vld [vmem:[#allocation9 + $0x1c8] sm:$0xff]
    %v509 = vld [vmem:[#allocation9 + $0x1d0] sm:$0xff]
    %v510 = vld [vmem:[#allocation9 + $0x1d8] sm:$0xff]
    %v511 = vld [vmem:[#allocation9 + $0x1e0] sm:$0xff]
    %v512 = vld [vmem:[#allocation9 + $0x1e8] sm:$0xff]
    %v513 = vld [vmem:[#allocation9 + $0x1f0] sm:$0xff]
    %v514 = vld [vmem:[#allocation9 + $0x1f8] sm:$0xff]
    %v515 = vld [vmem:[#allocation9 + $0x200] sm:$0xff]
    %v516 = vld [vmem:[#allocation9 + $0x208] sm:$0xff]
    %v517 = vld [vmem:[#allocation9 + $0x210] sm:$0xff]
    %v518 = vld [vmem:[#allocation9 + $0x218] sm:$0xff]
    %v519 = vld [vmem:[#allocation9 + $0x220] sm:$0xff]
    %v520 = vld [vmem:[#allocation9 + $0x228] sm:$0xff]
    %v521 = vld [vmem:[#allocation9 + $0x230] sm:$0xff]
    %v522 = vld [vmem:[#allocation9 + $0x238] sm:$0xff]
    %v523 = vld [vmem:[#allocation9 + $0x240] sm:$0xff]
    %v524 = vld [vmem:[#allocation9 + $0x248] sm:$0xff]
    %v525 = vld [vmem:[#allocation9 + $0x250] sm:$0xff]
    %v526 = vld [vmem:[#allocation9 + $0x258] sm:$0xff]
    %v527 = vld [vmem:[#allocation9 + $0x260] sm:$0xff]
    %v528 = vld [vmem:[#allocation9 + $0x268] sm:$0xff]
    %v529 = vld [vmem:[#allocation9 + $0x270] sm:$0xff]
    %v530 = vld [vmem:[#allocation9 + $0x278] sm:$0xff]
    %v531 = vld [vmem:[#allocation9 + $0x280] sm:$0xff]
    %v532 = vld [vmem:[#allocation9 + $0x288] sm:$0xff]
    %v533 = vld [vmem:[#allocation9 + $0x290] sm:$0xff]
    %v534 = vld [vmem:[#allocation9 + $0x298] sm:$0xff]
    %v535 = vld [vmem:[#allocation9 + $0x2a0] sm:$0xff]
    %v536 = vld [vmem:[#allocation9 + $0x2a8] sm:$0xff]
    %v537 = vld [vmem:[#allocation9 + $0x2b0] sm:$0xff]
    %v538 = vld [vmem:[#allocation9 + $0x2b8] sm:$0xff]
    %v539 = vld [vmem:[#allocation9 + $0x2c0] sm:$0xff]
    %v540 = vld [vmem:[#allocation9 + $0x2c8] sm:$0xff]
    %v541 = vld [vmem:[#allocation9 + $0x2d0] sm:$0xff]
    %v542 = vld [vmem:[#allocation9 + $0x2d8] sm:$0xff]
    %v543 = vld [vmem:[#allocation9 + $0x2e0] sm:$0xff]
    %v544 = vld [vmem:[#allocation9 + $0x2e8] sm:$0xff]
    %v545 = vld [vmem:[#allocation9 + $0x2f0] sm:$0xff]
    %v546 = vld [vmem:[#allocation9 + $0x2f8] sm:$0xff]
    %v547 = vld [vmem:[#allocation9 + $0x300] sm:$0xff]
    %v548 = vld [vmem:[#allocation9 + $0x308] sm:$0xff]
    %v549 = vld [vmem:[#allocation9 + $0x310] sm:$0xff]
    %v550 = vld [vmem:[#allocation9 + $0x318] sm:$0xff]
    %v551 = vld [vmem:[#allocation9 + $0x320] sm:$0xff]
    %v552 = vld [vmem:[#allocation9 + $0x328] sm:$0xff]
    %v553 = vld [vmem:[#allocation9 + $0x330] sm:$0xff]
    %v554 = vld [vmem:[#allocation9 + $0x338] sm:$0xff]
    %v555 = vld [vmem:[#allocation9 + $0x340] sm:$0xff]
    %v556 = vld [vmem:[#allocation9 + $0x348] sm:$0xff]
    %v557 = vld [vmem:[#allocation9 + $0x350] sm:$0xff]
    %v558 = vld [vmem:[#allocation9 + $0x358] sm:$0xff]
    %v559 = vld [vmem:[#allocation9 + $0x360] sm:$0xff]
    %v560 = vld [vmem:[#allocation9 + $0x368] sm:$0xff]
    %v561 = vld [vmem:[#allocation9 + $0x370] sm:$0xff]
    %v562 = vld [vmem:[#allocation9 + $0x378] sm:$0xff]
    %v563 = vld [vmem:[#allocation9 + $0x380] sm:$0xff]
    %v564 = vld [vmem:[#allocation9 + $0x388] sm:$0xff]
    %v565 = vld [vmem:[#allocation9 + $0x390] sm:$0xff]
    %v566 = vld [vmem:[#allocation9 + $0x398] sm:$0xff]
    %v567 = vld [vmem:[#allocation9 + $0x3a0] sm:$0xff]
    %v568 = vld [vmem:[#allocation9 + $0x3a8] sm:$0xff]
    %v569 = vld [vmem:[#allocation9 + $0x3b0] sm:$0xff]
    %v570 = vld [vmem:[#allocation9 + $0x3b8] sm:$0xff]
    %v571 = vld [vmem:[#allocation9 + $0x3c0] sm:$0xff]
    %v572 = vld [vmem:[#allocation9 + $0x3c8] sm:$0xff]
    %v573 = vld [vmem:[#allocation9 + $0x3d0] sm:$0xff]
    %v574 = vld [vmem:[#allocation9 + $0x3d8] sm:$0xff]
    %v575 = vld [vmem:[#allocation9 + $0x3e0] sm:$0xff]
    %v576 = vld [vmem:[#allocation9 + $0x3e8] sm:$0xff]
    %v577 = vld [vmem:[#allocation9 + $0x3f0] sm:$0xff]
    %v578 = vld [vmem:[#allocation9 + $0x3f8] sm:$0xff]
    %v579 = vld [vmem:[#allocation9 + $0x400] sm:$0xff]
    %v580 = vld [vmem:[#allocation9 + $0x408] sm:$0xff]
    %v581 = vld [vmem:[#allocation9 + $0x410] sm:$0xff]
    %v582 = vld [vmem:[#allocation9 + $0x418] sm:$0xff]
    %v583 = vld [vmem:[#allocation9 + $0x420] sm:$0xff]
    %v584 = vld [vmem:[#allocation9 + $0x428] sm:$0xff]
    %v585 = vld [vmem:[#allocation9 + $0x430] sm:$0xff]
    %v586 = vld [vmem:[#allocation9 + $0x438] sm:$0xff]
    %v587 = vld [vmem:[#allocation9 + $0x440] sm:$0xff]
    %v588 = vld [vmem:[#allocation9 + $0x448] sm:$0xff]
    %v589 = vld [vmem:[#allocation9 + $0x450] sm:$0xff]
    %v590 = vld [vmem:[#allocation9 + $0x458] sm:$0xff]
    %v591 = vld [vmem:[#allocation9 + $0x460] sm:$0xff]
    %v592 = vld [vmem:[#allocation9 + $0x468] sm:$0xff]
    %v593 = vld [vmem:[#allocation9 + $0x470] sm:$0xff]
    %v594 = vld [vmem:[#allocation9 + $0x478] sm:$0xff]
    %v595 = vld [vmem:[#allocation9 + $0x480] sm:$0xff]
    %v596 = vld [vmem:[#allocation9 + $0x488] sm:$0xff]
    %v597 = vld [vmem:[#allocation9 + $0x490] sm:$0xff]
    %v598 = vld [vmem:[#allocation9 + $0x498] sm:$0xff]
    %v599 = vld [vmem:[#allocation9 + $0x4a0] sm:$0xff]
    %v600 = vld [vmem:[#allocation9 + $0x4a8] sm:$0xff]
    %v601 = vld [vmem:[#allocation9 + $0x4b0] sm:$0xff]
    %v602 = vld [vmem:[#allocation9 + $0x4b8] sm:$0xff]
    %v603 = vld [vmem:[#allocation9 + $0x4c0] sm:$0xff]
    %v604 = vld [vmem:[#allocation9 + $0x4c8] sm:$0xff]
    %v605 = vld [vmem:[#allocation9 + $0x4d0] sm:$0xff]
    %v606 = vld [vmem:[#allocation9 + $0x4d8] sm:$0xff]
    %v607 = vld [vmem:[#allocation9 + $0x4e0] sm:$0xff]
    %v608 = vld [vmem:[#allocation9 + $0x4e8] sm:$0xff]
    %v609 = vld [vmem:[#allocation9 + $0x4f0] sm:$0xff]
    %v610 = vld [vmem:[#allocation9 + $0x4f8] sm:$0xff]
    %v611 = vld [vmem:[#allocation9 + $0x500] sm:$0xff]
    %v612 = vld [vmem:[#allocation9 + $0x508] sm:$0xff]
    %v613 = vld [vmem:[#allocation9 + $0x510] sm:$0xff]
    %v614 = vld [vmem:[#allocation9 + $0x518] sm:$0xff]
    %v615 = vld [vmem:[#allocation9 + $0x520] sm:$0xff]
    %v616 = vld [vmem:[#allocation9 + $0x528] sm:$0xff]
    %v617 = vld [vmem:[#allocation9 + $0x530] sm:$0xff]
    %v618 = vld [vmem:[#allocation9 + $0x538] sm:$0xff]
    %v619 = vld [vmem:[#allocation9 + $0x540] sm:$0xff]
    %v620 = vld [vmem:[#allocation9 + $0x548] sm:$0xff]
    %v621 = vld [vmem:[#allocation9 + $0x550] sm:$0xff]
    %v622 = vld [vmem:[#allocation9 + $0x558] sm:$0xff]
    %v623 = vld [vmem:[#allocation9 + $0x560] sm:$0xff]
    %v624 = vld [vmem:[#allocation9 + $0x568] sm:$0xff]
    %v625 = vld [vmem:[#allocation9 + $0x570] sm:$0xff]
    %v626 = vld [vmem:[#allocation9 + $0x578] sm:$0xff]
    %v627 = vld [vmem:[#allocation9 + $0x580] sm:$0xff]
    %v628 = vld [vmem:[#allocation9 + $0x588] sm:$0xff]
    %v629 = vld [vmem:[#allocation9 + $0x590] sm:$0xff]
    %v630 = vld [vmem:[#allocation9 + $0x598] sm:$0xff]
    %v631 = vld [vmem:[#allocation9 + $0x5a0] sm:$0xff]
    %v632 = vld [vmem:[#allocation9 + $0x5a8] sm:$0xff]
    %v633 = vld [vmem:[#allocation9 + $0x5b0] sm:$0xff]
    %v634 = vld [vmem:[#allocation9 + $0x5b8] sm:$0xff]
    %v635 = vld [vmem:[#allocation9 + $0x5c0] sm:$0xff]
    %v636 = vld [vmem:[#allocation9 + $0x5c8] sm:$0xff]
    %v637 = vld [vmem:[#allocation9 + $0x5d0] sm:$0xff]
    %v638 = vld [vmem:[#allocation9 + $0x5d8] sm:$0xff]
    %v639 = vld [vmem:[#allocation9 + $0x5e0] sm:$0xff]
    %v640 = vld [vmem:[#allocation9 + $0x5e8] sm:$0xff]
    %v641 = vld [vmem:[#allocation9 + $0x5f0] sm:$0xff]
    %v642 = vld [vmem:[#allocation9 + $0x5f8] sm:$0xff]
    %v643 = vld [vmem:[#allocation9 + $0x600] sm:$0xff]
    %v644 = vld [vmem:[#allocation9 + $0x608] sm:$0xff]
    %v645 = vld [vmem:[#allocation9 + $0x610] sm:$0xff]
    %v646 = vld [vmem:[#allocation9 + $0x618] sm:$0xff]
    %v647 = vld [vmem:[#allocation9 + $0x620] sm:$0xff]
    %v648 = vld [vmem:[#allocation9 + $0x628] sm:$0xff]
    %v649 = vld [vmem:[#allocation9 + $0x630] sm:$0xff]
    %v650 = vld [vmem:[#allocation9 + $0x638] sm:$0xff]
    %v651 = vld [vmem:[#allocation9 + $0x640] sm:$0xff]
    %v652 = vld [vmem:[#allocation9 + $0x648] sm:$0xff]
    %v653 = vld [vmem:[#allocation9 + $0x650] sm:$0xff]
    %v654 = vld [vmem:[#allocation9 + $0x658] sm:$0xff]
    %v655 = vld [vmem:[#allocation9 + $0x660] sm:$0xff]
    %v656 = vld [vmem:[#allocation9 + $0x668] sm:$0xff]
    %v657 = vld [vmem:[#allocation9 + $0x670] sm:$0xff]
    %v658 = vld [vmem:[#allocation9 + $0x678] sm:$0xff]
    %v659 = vld [vmem:[#allocation9 + $0x680] sm:$0xff]
    %v660 = vld [vmem:[#allocation9 + $0x688] sm:$0xff]
    %v661 = vld [vmem:[#allocation9 + $0x690] sm:$0xff]
    %v662 = vld [vmem:[#allocation9 + $0x698] sm:$0xff]
    %v663 = vld [vmem:[#allocation9 + $0x6a0] sm:$0xff]
    %v664 = vld [vmem:[#allocation9 + $0x6a8] sm:$0xff]
    %v665 = vld [vmem:[#allocation9 + $0x6b0] sm:$0xff]
    %v666 = vld [vmem:[#allocation9 + $0x6b8] sm:$0xff]
    %v667 = vld [vmem:[#allocation9 + $0x6c0] sm:$0xff]
    %v668 = vld [vmem:[#allocation9 + $0x6c8] sm:$0xff]
    %v669 = vld [vmem:[#allocation9 + $0x6d0] sm:$0xff]
    %v670 = vld [vmem:[#allocation9 + $0x6d8] sm:$0xff]
    %v671 = vld [vmem:[#allocation9 + $0x6e0] sm:$0xff]
    %v672 = vld [vmem:[#allocation9 + $0x6e8] sm:$0xff]
    %v673 = vld [vmem:[#allocation9 + $0x6f0] sm:$0xff]
    %v674 = vld [vmem:[#allocation9 + $0x6f8] sm:$0xff]
    %v675 = vld [vmem:[#allocation9 + $0x700] sm:$0xff]
    %v676 = vld [vmem:[#allocation9 + $0x708] sm:$0xff]
    %v677 = vld [vmem:[#allocation9 + $0x710] sm:$0xff]
    %v678 = vld [vmem:[#allocation9 + $0x718] sm:$0xff]
    %v679 = vld [vmem:[#allocation9 + $0x720] sm:$0xff]
    %v680 = vld [vmem:[#allocation9 + $0x728] sm:$0xff]
    %v681 = vld [vmem:[#allocation9 + $0x730] sm:$0xff]
    %v682 = vld [vmem:[#allocation9 + $0x738] sm:$0xff]
    %v683 = vld [vmem:[#allocation9 + $0x740] sm:$0xff]
    %v684 = vld [vmem:[#allocation9 + $0x748] sm:$0xff]
    %v685 = vld [vmem:[#allocation9 + $0x750] sm:$0xff]
    %v686 = vld [vmem:[#allocation9 + $0x758] sm:$0xff]
    %v687 = vld [vmem:[#allocation9 + $0x760] sm:$0xff]
    %v688 = vld [vmem:[#allocation9 + $0x768] sm:$0xff]
    %v689 = vld [vmem:[#allocation9 + $0x770] sm:$0xff]
    %v690 = vld [vmem:[#allocation9 + $0x778] sm:$0xff]
    %v691 = vld [vmem:[#allocation9 + $0x780] sm:$0xff]
    %v692 = vld [vmem:[#allocation9 + $0x788] sm:$0xff]
    %v693 = vld [vmem:[#allocation9 + $0x790] sm:$0xff]
    %v694 = vld [vmem:[#allocation9 + $0x798] sm:$0xff]
    %v695 = vld [vmem:[#allocation9 + $0x7a0] sm:$0xff]
    %v696 = vld [vmem:[#allocation9 + $0x7a8] sm:$0xff]
    %v697 = vld [vmem:[#allocation9 + $0x7b0] sm:$0xff]
    %v698 = vld [vmem:[#allocation9 + $0x7b8] sm:$0xff]
    %v699 = vld [vmem:[#allocation9 + $0x7c0] sm:$0xff]
    %v700 = vld [vmem:[#allocation9 + $0x7c8] sm:$0xff]
    %v701 = vld [vmem:[#allocation9 + $0x7d0] sm:$0xff]
    %v702 = vld [vmem:[#allocation9 + $0x7d8] sm:$0xff]
    %v703 = vld [vmem:[#allocation9 + $0x7e0] sm:$0xff]
    %v704 = vld [vmem:[#allocation9 + $0x7e8] sm:$0xff]
    %v705 = vld [vmem:[#allocation9 + $0x7f0] sm:$0xff]
    %v706 = vld [vmem:[#allocation9 + $0x7f8] sm:$0xff]
    %v707 = vld [vmem:[#allocation9 + $0x800] sm:$0xff]
    %v708 = vld [vmem:[#allocation9 + $0x808] sm:$0xff]
    %v709 = vld [vmem:[#allocation9 + $0x810] sm:$0xff]
    %v710 = vld [vmem:[#allocation9 + $0x818] sm:$0xff]
    %v711 = vld [vmem:[#allocation9 + $0x820] sm:$0xff]
    %v712 = vld [vmem:[#allocation9 + $0x828] sm:$0xff]
    %v713 = vld [vmem:[#allocation9 + $0x830] sm:$0xff]
    %v714 = vld [vmem:[#allocation9 + $0x838] sm:$0xff]
    %v715 = vld [vmem:[#allocation9 + $0x840] sm:$0xff]
    %v716 = vld [vmem:[#allocation9 + $0x848] sm:$0xff]
    %v717 = vld [vmem:[#allocation9 + $0x850] sm:$0xff]
    %v718 = vld [vmem:[#allocation9 + $0x858] sm:$0xff]
    %v719 = vld [vmem:[#allocation9 + $0x860] sm:$0xff]
    %v720 = vld [vmem:[#allocation9 + $0x868] sm:$0xff]
    %v721 = vld [vmem:[#allocation9 + $0x870] sm:$0xff]
    %v722 = vld [vmem:[#allocation9 + $0x878] sm:$0xff]
    %v723 = vld [vmem:[#allocation9 + $0x880] sm:$0xff]
    %v724 = vld [vmem:[#allocation9 + $0x888] sm:$0xff]
    %v725 = vld [vmem:[#allocation9 + $0x890] sm:$0xff]
    %v726 = vld [vmem:[#allocation9 + $0x898] sm:$0xff]
    %v727 = vld [vmem:[#allocation9 + $0x8a0] sm:$0xff]
    %v728 = vld [vmem:[#allocation9 + $0x8a8] sm:$0xff]
    %v729 = vld [vmem:[#allocation9 + $0x8b0] sm:$0xff]
    %v730 = vld [vmem:[#allocation9 + $0x8b8] sm:$0xff]
    %v731 = vld [vmem:[#allocation9 + $0x8c0] sm:$0xff]
    %v732 = vld [vmem:[#allocation9 + $0x8c8] sm:$0xff]
    %v733 = vld [vmem:[#allocation9 + $0x8d0] sm:$0xff]
    %v734 = vld [vmem:[#allocation9 + $0x8d8] sm:$0xff]
    %v735 = vld [vmem:[#allocation9 + $0x8e0] sm:$0xff]
    %v736 = vld [vmem:[#allocation9 + $0x8e8] sm:$0xff]
    %v737 = vld [vmem:[#allocation9 + $0x8f0] sm:$0xff]
    %v738 = vld [vmem:[#allocation9 + $0x8f8] sm:$0xff]
    %v739 = vld [vmem:[#allocation9 + $0x900] sm:$0xff]
    %v740 = vld [vmem:[#allocation9 + $0x908] sm:$0xff]
    %v741 = vld [vmem:[#allocation9 + $0x910] sm:$0xff]
    %v742 = vld [vmem:[#allocation9 + $0x918] sm:$0xff]
    %v743 = vld [vmem:[#allocation9 + $0x920] sm:$0xff]
    %v744 = vld [vmem:[#allocation9 + $0x928] sm:$0xff]
    %v745 = vld [vmem:[#allocation9 + $0x930] sm:$0xff]
    %v746 = vld [vmem:[#allocation9 + $0x938] sm:$0xff]
    %v747 = vld [vmem:[#allocation9 + $0x940] sm:$0xff]
    %v748 = vld [vmem:[#allocation9 + $0x948] sm:$0xff]
    %v749 = vld [vmem:[#allocation9 + $0x950] sm:$0xff]
    %v750 = vld [vmem:[#allocation9 + $0x958] sm:$0xff]
    %v751 = vld [vmem:[#allocation9 + $0x960] sm:$0xff]
    %v752 = vld [vmem:[#allocation9 + $0x968] sm:$0xff]
    %v753 = vld [vmem:[#allocation9 + $0x970] sm:$0xff]
    %v754 = vld [vmem:[#allocation9 + $0x978] sm:$0xff]
    %v755 = vld [vmem:[#allocation9 + $0x980] sm:$0xff]
    %v756 = vld [vmem:[#allocation9 + $0x988] sm:$0xff]
    %v757 = vld [vmem:[#allocation9 + $0x990] sm:$0xff]
    %v758 = vld [vmem:[#allocation9 + $0x998] sm:$0xff]
    %v759 = vld [vmem:[#allocation9 + $0x9a0] sm:$0xff]
    %v760 = vld [vmem:[#allocation9 + $0x9a8] sm:$0xff]
    %v761 = vld [vmem:[#allocation9 + $0x9b0] sm:$0xff]
    %v762 = vld [vmem:[#allocation9 + $0x9b8] sm:$0xff]
    %v763 = vld [vmem:[#allocation9 + $0x9c0] sm:$0xff]
    %v764 = vld [vmem:[#allocation9 + $0x9c8] sm:$0xff]
    %v765 = vld [vmem:[#allocation9 + $0x9d0] sm:$0xff]
    %v766 = vld [vmem:[#allocation9 + $0x9d8] sm:$0xff]
    %v767 = vld [vmem:[#allocation9 + $0x9e0] sm:$0xff]
    %v768 = vld [vmem:[#allocation9 + $0x9e8] sm:$0xff]
    %v769 = vld [vmem:[#allocation9 + $0x9f0] sm:$0xff]
    %v770 = vld [vmem:[#allocation9 + $0x9f8] sm:$0xff]
    %v771 = vld [vmem:[#allocation9 + $0xa00] sm:$0xff]
    %v772 = vld [vmem:[#allocation9 + $0xa08] sm:$0xff]
    %v773 = vld [vmem:[#allocation9 + $0xa10] sm:$0xff]
    %v774 = vld [vmem:[#allocation9 + $0xa18] sm:$0xff]
    %v775 = vld [vmem:[#allocation9 + $0xa20] sm:$0xff]
    %v776 = vld [vmem:[#allocation9 + $0xa28] sm:$0xff]
    %v777 = vld [vmem:[#allocation9 + $0xa30] sm:$0xff]
    %v778 = vld [vmem:[#allocation9 + $0xa38] sm:$0xff]
    %v779 = vld [vmem:[#allocation9 + $0xa40] sm:$0xff]
    %v780 = vld [vmem:[#allocation9 + $0xa48] sm:$0xff]
    %v781 = vld [vmem:[#allocation9 + $0xa50] sm:$0xff]
    %v782 = vld [vmem:[#allocation9 + $0xa58] sm:$0xff]
    %v783 = vld [vmem:[#allocation9 + $0xa60] sm:$0xff]
    %v784 = vld [vmem:[#allocation9 + $0xa68] sm:$0xff]
    %v785 = vld [vmem:[#allocation9 + $0xa70] sm:$0xff]
    %v786 = vld [vmem:[#allocation9 + $0xa78] sm:$0xff]
    %v787 = vld [vmem:[#allocation9 + $0xa80] sm:$0xff]
    %v788 = vld [vmem:[#allocation9 + $0xa88] sm:$0xff]
    %v789 = vld [vmem:[#allocation9 + $0xa90] sm:$0xff]
    %v790 = vld [vmem:[#allocation9 + $0xa98] sm:$0xff]
    %v791 = vld [vmem:[#allocation9 + $0xaa0] sm:$0xff]
    %v792 = vld [vmem:[#allocation9 + $0xaa8] sm:$0xff]
    %v793 = vld [vmem:[#allocation9 + $0xab0] sm:$0xff]
    %v794 = vld [vmem:[#allocation9 + $0xab8] sm:$0xff]
    %v795 = vld [vmem:[#allocation9 + $0xac0] sm:$0xff]
    %v796 = vld [vmem:[#allocation9 + $0xac8] sm:$0xff]
    %v797 = vld [vmem:[#allocation9 + $0xad0] sm:$0xff]
    %v798 = vld [vmem:[#allocation9 + $0xad8] sm:$0xff]
    %v799 = vld [vmem:[#allocation9 + $0xae0] sm:$0xff]
    %v800 = vld [vmem:[#allocation9 + $0xae8] sm:$0xff]
    %v801 = vld [vmem:[#allocation9 + $0xaf0] sm:$0xff]
    %v802 = vld [vmem:[#allocation9 + $0xaf8] sm:$0xff]
    %v803 = vld [vmem:[#allocation9 + $0xb00] sm:$0xff]
    %v804 = vld [vmem:[#allocation9 + $0xb08] sm:$0xff]
    %v805 = vld [vmem:[#allocation9 + $0xb10] sm:$0xff]
    %v806 = vld [vmem:[#allocation9 + $0xb18] sm:$0xff]
    %v807 = vld [vmem:[#allocation9 + $0xb20] sm:$0xff]
    %v808 = vld [vmem:[#allocation9 + $0xb28] sm:$0xff]
    %v809 = vld [vmem:[#allocation9 + $0xb30] sm:$0xff]
    %v810 = vld [vmem:[#allocation9 + $0xb38] sm:$0xff]
    %v811 = vld [vmem:[#allocation9 + $0xb40] sm:$0xff]
    %v812 = vld [vmem:[#allocation9 + $0xb48] sm:$0xff]
    %v813 = vld [vmem:[#allocation9 + $0xb50] sm:$0xff]
    %v814 = vld [vmem:[#allocation9 + $0xb58] sm:$0xff]
    %v815 = vld [vmem:[#allocation9 + $0xb60] sm:$0xff]
    %v816 = vld [vmem:[#allocation9 + $0xb68] sm:$0xff]
    %v817 = vld [vmem:[#allocation9 + $0xb70] sm:$0xff]
    %v818 = vld [vmem:[#allocation9 + $0xb78] sm:$0xff]
    %v819 = vld [vmem:[#allocation9 + $0xb80] sm:$0xff]
    %v820 = vld [vmem:[#allocation9 + $0xb88] sm:$0xff]
    %v821 = vld [vmem:[#allocation9 + $0xb90] sm:$0xff]
    %v822 = vld [vmem:[#allocation9 + $0xb98] sm:$0xff]
    %v823 = vld [vmem:[#allocation9 + $0xba0] sm:$0xff]
    %v824 = vld [vmem:[#allocation9 + $0xba8] sm:$0xff]
    %v825 = vld [vmem:[#allocation9 + $0xbb0] sm:$0xff]
    %v826 = vld [vmem:[#allocation9 + $0xbb8] sm:$0xff]
    %v827 = vld [vmem:[#allocation9 + $0xbc0] sm:$0xff]
    %v828 = vld [vmem:[#allocation9 + $0xbc8] sm:$0xff]
    %v829 = vld [vmem:[#allocation9 + $0xbd0] sm:$0xff]
    %v830 = vld [vmem:[#allocation9 + $0xbd8] sm:$0xff]
    %v831 = vld [vmem:[#allocation9 + $0xbe0] sm:$0xff]
    %v832 = vld [vmem:[#allocation9 + $0xbe8] sm:$0xff]
    %v833 = vld [vmem:[#allocation9 + $0xbf0] sm:$0xff]
    %v834 = vld [vmem:[#allocation9 + $0xbf8] sm:$0xff]
    %v835 = vld [vmem:[#allocation9 + $0xc00] sm:$0xff]
    %v836 = vld [vmem:[#allocation9 + $0xc08] sm:$0xff]
    %v837 = vld [vmem:[#allocation9 + $0xc10] sm:$0xff]
    %v838 = vld [vmem:[#allocation9 + $0xc18] sm:$0xff]
    %v839 = vld [vmem:[#allocation9 + $0xc20] sm:$0xff]
    %v840 = vld [vmem:[#allocation9 + $0xc28] sm:$0xff]
    %v841 = vld [vmem:[#allocation9 + $0xc30] sm:$0xff]
    %v842 = vld [vmem:[#allocation9 + $0xc38] sm:$0xff]
    %v843 = vld [vmem:[#allocation9 + $0xc40] sm:$0xff]
    %v844 = vld [vmem:[#allocation9 + $0xc48] sm:$0xff]
    %v845 = vld [vmem:[#allocation9 + $0xc50] sm:$0xff]
    %v846 = vld [vmem:[#allocation9 + $0xc58] sm:$0xff]
    %v847 = vld [vmem:[#allocation9 + $0xc60] sm:$0xff]
    %v848 = vld [vmem:[#allocation9 + $0xc68] sm:$0xff]
    %v849 = vld [vmem:[#allocation9 + $0xc70] sm:$0xff]
    %v850 = vld [vmem:[#allocation9 + $0xc78] sm:$0xff]
    %v851 = vld [vmem:[#allocation9 + $0xc80] sm:$0xff]
    %v852 = vld [vmem:[#allocation9 + $0xc88] sm:$0xff]
    %v853 = vld [vmem:[#allocation9 + $0xc90] sm:$0xff]
    %v854 = vld [vmem:[#allocation9 + $0xc98] sm:$0xff]
    %v855 = vld [vmem:[#allocation9 + $0xca0] sm:$0xff]
    %v856 = vld [vmem:[#allocation9 + $0xca8] sm:$0xff]
    %v857 = vld [vmem:[#allocation9 + $0xcb0] sm:$0xff]
    %v858 = vld [vmem:[#allocation9 + $0xcb8] sm:$0xff]
    %v859 = vld [vmem:[#allocation9 + $0xcc0] sm:$0xff]
    %v860 = vld [vmem:[#allocation9 + $0xcc8] sm:$0xff]
    %v861 = vld [vmem:[#allocation9 + $0xcd0] sm:$0xff]
    %v862 = vld [vmem:[#allocation9 + $0xcd8] sm:$0xff]
    %v863 = vld [vmem:[#allocation9 + $0xce0] sm:$0xff]
    %v864 = vld [vmem:[#allocation9 + $0xce8] sm:$0xff]
    %v865 = vld [vmem:[#allocation9 + $0xcf0] sm:$0xff]
    %v866 = vld [vmem:[#allocation9 + $0xcf8] sm:$0xff]
    %v867 = vld [vmem:[#allocation9 + $0xd00] sm:$0xff]
    %v868 = vld [vmem:[#allocation9 + $0xd08] sm:$0xff]
    %v869 = vld [vmem:[#allocation9 + $0xd10] sm:$0xff]
    %v870 = vld [vmem:[#allocation9 + $0xd18] sm:$0xff]
    %v871 = vld [vmem:[#allocation9 + $0xd20] sm:$0xff]
    %v872 = vld [vmem:[#allocation9 + $0xd28] sm:$0xff]
    %v873 = vld [vmem:[#allocation9 + $0xd30] sm:$0xff]
    %v874 = vld [vmem:[#allocation9 + $0xd38] sm:$0xff]
    %v875 = vld [vmem:[#allocation9 + $0xd40] sm:$0xff]
    %v876 = vld [vmem:[#allocation9 + $0xd48] sm:$0xff]
    %v877 = vld [vmem:[#allocation9 + $0xd50] sm:$0xff]
    %v878 = vld [vmem:[#allocation9 + $0xd58] sm:$0xff]
    %v879 = vld [vmem:[#allocation9 + $0xd60] sm:$0xff]
    %v880 = vld [vmem:[#allocation9 + $0xd68] sm:$0xff]
    %v881 = vld [vmem:[#allocation9 + $0xd70] sm:$0xff]
    %v882 = vld [vmem:[#allocation9 + $0xd78] sm:$0xff]
    %v883 = vld [vmem:[#allocation9 + $0xd80] sm:$0xff]
    %v884 = vld [vmem:[#allocation9 + $0xd88] sm:$0xff]
    %v885 = vld [vmem:[#allocation9 + $0xd90] sm:$0xff]
    %v886 = vld [vmem:[#allocation9 + $0xd98] sm:$0xff]
    %v887 = vld [vmem:[#allocation9 + $0xda0] sm:$0xff]
    %v888 = vld [vmem:[#allocation9 + $0xda8] sm:$0xff]
    %v889 = vld [vmem:[#allocation9 + $0xdb0] sm:$0xff]
    %v890 = vld [vmem:[#allocation9 + $0xdb8] sm:$0xff]
    %v891 = vld [vmem:[#allocation9 + $0xdc0] sm:$0xff]
    %v892 = vld [vmem:[#allocation9 + $0xdc8] sm:$0xff]
    %v893 = vld [vmem:[#allocation9 + $0xdd0] sm:$0xff]
    %v894 = vld [vmem:[#allocation9 + $0xdd8] sm:$0xff]
    %v895 = vld [vmem:[#allocation9 + $0xde0] sm:$0xff]
    %v896 = vld [vmem:[#allocation9 + $0xde8] sm:$0xff]
    %v897 = vld [vmem:[#allocation9 + $0xdf0] sm:$0xff]
    %v898 = vld [vmem:[#allocation9 + $0xdf8] sm:$0xff]
    %v899 = vld [vmem:[#allocation9 + $0xe00] sm:$0xff]
    %v900 = vld [vmem:[#allocation9 + $0xe08] sm:$0xff]
    %v901 = vld [vmem:[#allocation9 + $0xe10] sm:$0xff]
    %v902 = vld [vmem:[#allocation9 + $0xe18] sm:$0xff]
    %v903 = vld [vmem:[#allocation9 + $0xe20] sm:$0xff]
    %v904 = vld [vmem:[#allocation9 + $0xe28] sm:$0xff]
    %v905 = vld [vmem:[#allocation9 + $0xe30] sm:$0xff]
    %v906 = vld [vmem:[#allocation9 + $0xe38] sm:$0xff]
    %v907 = vld [vmem:[#allocation9 + $0xe40] sm:$0xff]
    %v908 = vld [vmem:[#allocation9 + $0xe48] sm:$0xff]
    %v909 = vld [vmem:[#allocation9 + $0xe50] sm:$0xff]
    %v910 = vld [vmem:[#allocation9 + $0xe58] sm:$0xff]
    %v911 = vld [vmem:[#allocation9 + $0xe60] sm:$0xff]
    %v912 = vld [vmem:[#allocation9 + $0xe68] sm:$0xff]
    %v913 = vld [vmem:[#allocation9 + $0xe70] sm:$0xff]
    %v914 = vld [vmem:[#allocation9 + $0xe78] sm:$0xff]
    %v915 = vld [vmem:[#allocation9 + $0xe80] sm:$0xff]
    %v916 = vld [vmem:[#allocation9 + $0xe88] sm:$0xff]
    %v917 = vld [vmem:[#allocation9 + $0xe90] sm:$0xff]
    %v918 = vld [vmem:[#allocation9 + $0xe98] sm:$0xff]
    %v919 = vld [vmem:[#allocation9 + $0xea0] sm:$0xff]
    %v920 = vld [vmem:[#allocation9 + $0xea8] sm:$0xff]
    %v921 = vld [vmem:[#allocation9 + $0xeb0] sm:$0xff]
    %v922 = vld [vmem:[#allocation9 + $0xeb8] sm:$0xff]
    %v923 = vld [vmem:[#allocation9 + $0xec0] sm:$0xff]
    %v924 = vld [vmem:[#allocation9 + $0xec8] sm:$0xff]
    %v925 = vld [vmem:[#allocation9 + $0xed0] sm:$0xff]
    %v926 = vld [vmem:[#allocation9 + $0xed8] sm:$0xff]
    %v927 = vld [vmem:[#allocation9 + $0xee0] sm:$0xff]
    %v928 = vld [vmem:[#allocation9 + $0xee8] sm:$0xff]
    %v929 = vld [vmem:[#allocation9 + $0xef0] sm:$0xff]
    %v930 = vld [vmem:[#allocation9 + $0xef8] sm:$0xff]
    %v931 = vld [vmem:[#allocation9 + $0xf00] sm:$0xff]
    %v932 = vld [vmem:[#allocation9 + $0xf08] sm:$0xff]
    %v933 = vld [vmem:[#allocation9 + $0xf10] sm:$0xff]
    %v934 = vld [vmem:[#allocation9 + $0xf18] sm:$0xff]
    %v935 = vld [vmem:[#allocation9 + $0xf20] sm:$0xff]
    %v936 = vld [vmem:[#allocation9 + $0xf28] sm:$0xff]
    %v937 = vld [vmem:[#allocation9 + $0xf30] sm:$0xff]
    %v938 = vld [vmem:[#allocation9 + $0xf38] sm:$0xff]
    %v939 = vld [vmem:[#allocation9 + $0xf40] sm:$0xff]
    %v940 = vld [vmem:[#allocation9 + $0xf48] sm:$0xff]
    %v941 = vld [vmem:[#allocation9 + $0xf50] sm:$0xff]
    %v942 = vld [vmem:[#allocation9 + $0xf58] sm:$0xff]
    %v943 = vld [vmem:[#allocation9 + $0xf60] sm:$0xff]
    %v944 = vld [vmem:[#allocation9 + $0xf68] sm:$0xff]
    %v945 = vld [vmem:[#allocation9 + $0xf70] sm:$0xff]
    %v946 = vld [vmem:[#allocation9 + $0xf78] sm:$0xff]
    %v947 = vld [vmem:[#allocation9 + $0xf80] sm:$0xff]
    %v948 = vld [vmem:[#allocation9 + $0xf88] sm:$0xff]
    %v949 = vld [vmem:[#allocation9 + $0xf90] sm:$0xff]
    %v950 = vld [vmem:[#allocation9 + $0xf98] sm:$0xff]
    %v951 = vld [vmem:[#allocation9 + $0xfa0] sm:$0xff]
    %v952 = vld [vmem:[#allocation9 + $0xfa8] sm:$0xff]
    %v953 = vld [vmem:[#allocation9 + $0xfb0] sm:$0xff]
    %v954 = vld [vmem:[#allocation9 + $0xfb8] sm:$0xff]
    %v955 = vld [vmem:[#allocation9 + $0xfc0] sm:$0xff]
    %v956 = vld [vmem:[#allocation9 + $0xfc8] sm:$0xff]
    %v957 = vld [vmem:[#allocation9 + $0xfd0] sm:$0xff]
    %v958 = vld [vmem:[#allocation9 + $0xfd8] sm:$0xff]
    %v959 = vld [vmem:[#allocation9 + $0xfe0] sm:$0xff]
    %v960 = vld [vmem:[#allocation9 + $0xfe8] sm:$0xff]
    %v961 = vld [vmem:[#allocation9 + $0xff0] sm:$0xff]
    %v962 = vld [vmem:[#allocation9 + $0xff8] sm:$0xff]
    %v963 = vld [vmem:[#allocation11] sm:$0xff]
    %v965 = vlaneseq
    %v966 = vshrl.u32 %v965, 7
    %v967 = vsub.s32 0, %v966
    %v968 = vrot.slane %v963, %v967
    %v969 = vlaneseq
    %v970 = vshrl.u32 %v969, 7
    %v971 = vsub.s32 1, %v970
    %v972 = vrot.slane %v963, %v971
    %v973 = vlaneseq
    %v974 = vshrl.u32 %v973, 7
    %v975 = vsub.s32 2, %v974
    %v976 = vrot.slane %v963, %v975
    %v977 = vlaneseq
    %v978 = vshrl.u32 %v977, 7
    %v979 = vsub.s32 3, %v978
    %v980 = vrot.slane %v963, %v979
    %v981 = vlaneseq
    %v982 = vshrl.u32 %v981, 7
    %v983 = vsub.s32 4, %v982
    %v984 = vrot.slane %v963, %v983
    %v985 = vlaneseq
    %v986 = vshrl.u32 %v985, 7
    %v987 = vsub.s32 5, %v986
    %v988 = vrot.slane %v963, %v987
    %v989 = vlaneseq
    %v990 = vshrl.u32 %v989, 7
    %v991 = vsub.s32 6, %v990
    %v992 = vrot.slane %v963, %v991
    %v993 = vlaneseq
    %v994 = vshrl.u32 %v993, 7
    %v995 = vsub.s32 7, %v994
    %v996 = vrot.slane %v963, %v995
    %v1517 = vunpack.c.l.b16 %v451
    %v1518 = vunpack.c.h.b16 %v451
    %v1519 = vunpack.c.l.b16 %v452
    %v1520 = vunpack.c.h.b16 %v452
    %v1521 = vunpack.c.l.b16 %v453
    %v1522 = vunpack.c.h.b16 %v453
    %v1523 = vunpack.c.l.b16 %v454
    %v1524 = vunpack.c.h.b16 %v454
    %v1525 = vunpack.c.l.b16 %v455
    %v1526 = vunpack.c.h.b16 %v455
    %v1527 = vunpack.c.l.b16 %v456
    %v1528 = vunpack.c.h.b16 %v456
    %v1529 = vunpack.c.l.b16 %v457
    %v1530 = vunpack.c.h.b16 %v457
    %v1531 = vunpack.c.l.b16 %v458
    %v1532 = vunpack.c.h.b16 %v458
    %v1533 = vunpack.c.l.b16 %v459
    %v1534 = vunpack.c.h.b16 %v459
    %v1535 = vunpack.c.l.b16 %v460
    %v1536 = vunpack.c.h.b16 %v460
    %v1537 = vunpack.c.l.b16 %v461
    %v1538 = vunpack.c.h.b16 %v461
    %v1539 = vunpack.c.l.b16 %v462
    %v1540 = vunpack.c.h.b16 %v462
    %v1541 = vunpack.c.l.b16 %v463
    %v1542 = vunpack.c.h.b16 %v463
    %v1543 = vunpack.c.l.b16 %v464
    %v1544 = vunpack.c.h.b16 %v464
    %v1545 = vunpack.c.l.b16 %v465
    %v1546 = vunpack.c.h.b16 %v465
    %v1547 = vunpack.c.l.b16 %v466
    %v1548 = vunpack.c.h.b16 %v466
    %v1549 = vunpack.c.l.b16 %v467
    %v1550 = vunpack.c.h.b16 %v467
    %v1551 = vunpack.c.l.b16 %v468
    %v1552 = vunpack.c.h.b16 %v468
    %v1553 = vunpack.c.l.b16 %v469
    %v1554 = vunpack.c.h.b16 %v469
    %v1555 = vunpack.c.l.b16 %v470
    %v1556 = vunpack.c.h.b16 %v470
    %v1557 = vunpack.c.l.b16 %v471
    %v1558 = vunpack.c.h.b16 %v471
    %v1559 = vunpack.c.l.b16 %v472
    %v1560 = vunpack.c.h.b16 %v472
    %v1561 = vunpack.c.l.b16 %v473
    %v1562 = vunpack.c.h.b16 %v473
    %v1563 = vunpack.c.l.b16 %v474
    %v1564 = vunpack.c.h.b16 %v474
    %v1565 = vunpack.c.l.b16 %v475
    %v1566 = vunpack.c.h.b16 %v475
    %v1567 = vunpack.c.l.b16 %v476
    %v1568 = vunpack.c.h.b16 %v476
    %v1569 = vunpack.c.l.b16 %v477
    %v1570 = vunpack.c.h.b16 %v477
    %v1571 = vunpack.c.l.b16 %v478
    %v1572 = vunpack.c.h.b16 %v478
    %v1573 = vunpack.c.l.b16 %v479
    %v1574 = vunpack.c.h.b16 %v479
    %v1575 = vunpack.c.l.b16 %v480
    %v1576 = vunpack.c.h.b16 %v480
    %v1577 = vunpack.c.l.b16 %v481
    %v1578 = vunpack.c.h.b16 %v481
    %v1579 = vunpack.c.l.b16 %v482
    %v1580 = vunpack.c.h.b16 %v482
    %v1581 = vunpack.c.l.b16 %v483
    %v1582 = vunpack.c.h.b16 %v483
    %v1583 = vunpack.c.l.b16 %v484
    %v1584 = vunpack.c.h.b16 %v484
    %v1585 = vunpack.c.l.b16 %v485
    %v1586 = vunpack.c.h.b16 %v485
    %v1587 = vunpack.c.l.b16 %v486
    %v1588 = vunpack.c.h.b16 %v486
    %v1589 = vunpack.c.l.b16 %v487
    %v1590 = vunpack.c.h.b16 %v487
    %v1591 = vunpack.c.l.b16 %v488
    %v1592 = vunpack.c.h.b16 %v488
    %v1593 = vunpack.c.l.b16 %v489
    %v1594 = vunpack.c.h.b16 %v489
    %v1595 = vunpack.c.l.b16 %v490
    %v1596 = vunpack.c.h.b16 %v490
    %v1597 = vunpack.c.l.b16 %v491
    %v1598 = vunpack.c.h.b16 %v491
    %v1599 = vunpack.c.l.b16 %v492
    %v1600 = vunpack.c.h.b16 %v492
    %v1601 = vunpack.c.l.b16 %v493
    %v1602 = vunpack.c.h.b16 %v493
    %v1603 = vunpack.c.l.b16 %v494
    %v1604 = vunpack.c.h.b16 %v494
    %v1605 = vunpack.c.l.b16 %v495
    %v1606 = vunpack.c.h.b16 %v495
    %v1607 = vunpack.c.l.b16 %v496
    %v1608 = vunpack.c.h.b16 %v496
    %v1609 = vunpack.c.l.b16 %v497
    %v1610 = vunpack.c.h.b16 %v497
    %v1611 = vunpack.c.l.b16 %v498
    %v1612 = vunpack.c.h.b16 %v498
    %v1613 = vunpack.c.l.b16 %v499
    %v1614 = vunpack.c.h.b16 %v499
    %v1615 = vunpack.c.l.b16 %v500
    %v1616 = vunpack.c.h.b16 %v500
    %v1617 = vunpack.c.l.b16 %v501
    %v1618 = vunpack.c.h.b16 %v501
    %v1619 = vunpack.c.l.b16 %v502
    %v1620 = vunpack.c.h.b16 %v502
    %v1621 = vunpack.c.l.b16 %v503
    %v1622 = vunpack.c.h.b16 %v503
    %v1623 = vunpack.c.l.b16 %v504
    %v1624 = vunpack.c.h.b16 %v504
    %v1625 = vunpack.c.l.b16 %v505
    %v1626 = vunpack.c.h.b16 %v505
    %v1627 = vunpack.c.l.b16 %v506
    %v1628 = vunpack.c.h.b16 %v506
    %v1629 = vunpack.c.l.b16 %v507
    %v1630 = vunpack.c.h.b16 %v507
    %v1631 = vunpack.c.l.b16 %v508
    %v1632 = vunpack.c.h.b16 %v508
    %v1633 = vunpack.c.l.b16 %v509
    %v1634 = vunpack.c.h.b16 %v509
    %v1635 = vunpack.c.l.b16 %v510
    %v1636 = vunpack.c.h.b16 %v510
    %v1637 = vunpack.c.l.b16 %v511
    %v1638 = vunpack.c.h.b16 %v511
    %v1639 = vunpack.c.l.b16 %v512
    %v1640 = vunpack.c.h.b16 %v512
    %v1641 = vunpack.c.l.b16 %v513
    %v1642 = vunpack.c.h.b16 %v513
    %v1643 = vunpack.c.l.b16 %v514
    %v1644 = vunpack.c.h.b16 %v514
    %v1645 = vunpack.c.l.b16 %v515
    %v1646 = vunpack.c.h.b16 %v515
    %v1647 = vunpack.c.l.b16 %v516
    %v1648 = vunpack.c.h.b16 %v516
    %v1649 = vunpack.c.l.b16 %v517
    %v1650 = vunpack.c.h.b16 %v517
    %v1651 = vunpack.c.l.b16 %v518
    %v1652 = vunpack.c.h.b16 %v518
    %v1653 = vunpack.c.l.b16 %v519
    %v1654 = vunpack.c.h.b16 %v519
    %v1655 = vunpack.c.l.b16 %v520
    %v1656 = vunpack.c.h.b16 %v520
    %v1657 = vunpack.c.l.b16 %v521
    %v1658 = vunpack.c.h.b16 %v521
    %v1659 = vunpack.c.l.b16 %v522
    %v1660 = vunpack.c.h.b16 %v522
    %v1661 = vunpack.c.l.b16 %v523
    %v1662 = vunpack.c.h.b16 %v523
    %v1663 = vunpack.c.l.b16 %v524
    %v1664 = vunpack.c.h.b16 %v524
    %v1665 = vunpack.c.l.b16 %v525
    %v1666 = vunpack.c.h.b16 %v525
    %v1667 = vunpack.c.l.b16 %v526
    %v1668 = vunpack.c.h.b16 %v526
    %v1669 = vunpack.c.l.b16 %v527
    %v1670 = vunpack.c.h.b16 %v527
    %v1671 = vunpack.c.l.b16 %v528
    %v1672 = vunpack.c.h.b16 %v528
    %v1673 = vunpack.c.l.b16 %v529
    %v1674 = vunpack.c.h.b16 %v529
    %v1675 = vunpack.c.l.b16 %v530
    %v1676 = vunpack.c.h.b16 %v530
    %v1677 = vunpack.c.l.b16 %v531
    %v1678 = vunpack.c.h.b16 %v531
    %v1679 = vunpack.c.l.b16 %v532
    %v1680 = vunpack.c.h.b16 %v532
    %v1681 = vunpack.c.l.b16 %v533
    %v1682 = vunpack.c.h.b16 %v533
    %v1683 = vunpack.c.l.b16 %v534
    %v1684 = vunpack.c.h.b16 %v534
    %v1685 = vunpack.c.l.b16 %v535
    %v1686 = vunpack.c.h.b16 %v535
    %v1687 = vunpack.c.l.b16 %v536
    %v1688 = vunpack.c.h.b16 %v536
    %v1689 = vunpack.c.l.b16 %v537
    %v1690 = vunpack.c.h.b16 %v537
    %v1691 = vunpack.c.l.b16 %v538
    %v1692 = vunpack.c.h.b16 %v538
    %v1693 = vunpack.c.l.b16 %v539
    %v1694 = vunpack.c.h.b16 %v539
    %v1695 = vunpack.c.l.b16 %v540
    %v1696 = vunpack.c.h.b16 %v540
    %v1697 = vunpack.c.l.b16 %v541
    %v1698 = vunpack.c.h.b16 %v541
    %v1699 = vunpack.c.l.b16 %v542
    %v1700 = vunpack.c.h.b16 %v542
    %v1701 = vunpack.c.l.b16 %v543
    %v1702 = vunpack.c.h.b16 %v543
    %v1703 = vunpack.c.l.b16 %v544
    %v1704 = vunpack.c.h.b16 %v544
    %v1705 = vunpack.c.l.b16 %v545
    %v1706 = vunpack.c.h.b16 %v545
    %v1707 = vunpack.c.l.b16 %v546
    %v1708 = vunpack.c.h.b16 %v546
    %v1709 = vunpack.c.l.b16 %v547
    %v1710 = vunpack.c.h.b16 %v547
    %v1711 = vunpack.c.l.b16 %v548
    %v1712 = vunpack.c.h.b16 %v548
    %v1713 = vunpack.c.l.b16 %v549
    %v1714 = vunpack.c.h.b16 %v549
    %v1715 = vunpack.c.l.b16 %v550
    %v1716 = vunpack.c.h.b16 %v550
    %v1717 = vunpack.c.l.b16 %v551
    %v1718 = vunpack.c.h.b16 %v551
    %v1719 = vunpack.c.l.b16 %v552
    %v1720 = vunpack.c.h.b16 %v552
    %v1721 = vunpack.c.l.b16 %v553
    %v1722 = vunpack.c.h.b16 %v553
    %v1723 = vunpack.c.l.b16 %v554
    %v1724 = vunpack.c.h.b16 %v554
    %v1725 = vunpack.c.l.b16 %v555
    %v1726 = vunpack.c.h.b16 %v555
    %v1727 = vunpack.c.l.b16 %v556
    %v1728 = vunpack.c.h.b16 %v556
    %v1729 = vunpack.c.l.b16 %v557
    %v1730 = vunpack.c.h.b16 %v557
    %v1731 = vunpack.c.l.b16 %v558
    %v1732 = vunpack.c.h.b16 %v558
    %v1733 = vunpack.c.l.b16 %v559
    %v1734 = vunpack.c.h.b16 %v559
    %v1735 = vunpack.c.l.b16 %v560
    %v1736 = vunpack.c.h.b16 %v560
    %v1737 = vunpack.c.l.b16 %v561
    %v1738 = vunpack.c.h.b16 %v561
    %v1739 = vunpack.c.l.b16 %v562
    %v1740 = vunpack.c.h.b16 %v562
    %v1741 = vunpack.c.l.b16 %v563
    %v1742 = vunpack.c.h.b16 %v563
    %v1743 = vunpack.c.l.b16 %v564
    %v1744 = vunpack.c.h.b16 %v564
    %v1745 = vunpack.c.l.b16 %v565
    %v1746 = vunpack.c.h.b16 %v565
    %v1747 = vunpack.c.l.b16 %v566
    %v1748 = vunpack.c.h.b16 %v566
    %v1749 = vunpack.c.l.b16 %v567
    %v1750 = vunpack.c.h.b16 %v567
    %v1751 = vunpack.c.l.b16 %v568
    %v1752 = vunpack.c.h.b16 %v568
    %v1753 = vunpack.c.l.b16 %v569
    %v1754 = vunpack.c.h.b16 %v569
    %v1755 = vunpack.c.l.b16 %v570
    %v1756 = vunpack.c.h.b16 %v570
    %v1757 = vunpack.c.l.b16 %v571
    %v1758 = vunpack.c.h.b16 %v571
    %v1759 = vunpack.c.l.b16 %v572
    %v1760 = vunpack.c.h.b16 %v572
    %v1761 = vunpack.c.l.b16 %v573
    %v1762 = vunpack.c.h.b16 %v573
    %v1763 = vunpack.c.l.b16 %v574
    %v1764 = vunpack.c.h.b16 %v574
    %v1765 = vunpack.c.l.b16 %v575
    %v1766 = vunpack.c.h.b16 %v575
    %v1767 = vunpack.c.l.b16 %v576
    %v1768 = vunpack.c.h.b16 %v576
    %v1769 = vunpack.c.l.b16 %v577
    %v1770 = vunpack.c.h.b16 %v577
    %v1771 = vunpack.c.l.b16 %v578
    %v1772 = vunpack.c.h.b16 %v578
    %v1773 = vunpack.c.l.b16 %v579
    %v1774 = vunpack.c.h.b16 %v579
    %v1775 = vunpack.c.l.b16 %v580
    %v1776 = vunpack.c.h.b16 %v580
    %v1777 = vunpack.c.l.b16 %v581
    %v1778 = vunpack.c.h.b16 %v581
    %v1779 = vunpack.c.l.b16 %v582
    %v1780 = vunpack.c.h.b16 %v582
    %v1781 = vunpack.c.l.b16 %v583
    %v1782 = vunpack.c.h.b16 %v583
    %v1783 = vunpack.c.l.b16 %v584
    %v1784 = vunpack.c.h.b16 %v584
    %v1785 = vunpack.c.l.b16 %v585
    %v1786 = vunpack.c.h.b16 %v585
    %v1787 = vunpack.c.l.b16 %v586
    %v1788 = vunpack.c.h.b16 %v586
    %v1789 = vunpack.c.l.b16 %v587
    %v1790 = vunpack.c.h.b16 %v587
    %v1791 = vunpack.c.l.b16 %v588
    %v1792 = vunpack.c.h.b16 %v588
    %v1793 = vunpack.c.l.b16 %v589
    %v1794 = vunpack.c.h.b16 %v589
    %v1795 = vunpack.c.l.b16 %v590
    %v1796 = vunpack.c.h.b16 %v590
    %v1797 = vunpack.c.l.b16 %v591
    %v1798 = vunpack.c.h.b16 %v591
    %v1799 = vunpack.c.l.b16 %v592
    %v1800 = vunpack.c.h.b16 %v592
    %v1801 = vunpack.c.l.b16 %v593
    %v1802 = vunpack.c.h.b16 %v593
    %v1803 = vunpack.c.l.b16 %v594
    %v1804 = vunpack.c.h.b16 %v594
    %v1805 = vunpack.c.l.b16 %v595
    %v1806 = vunpack.c.h.b16 %v595
    %v1807 = vunpack.c.l.b16 %v596
    %v1808 = vunpack.c.h.b16 %v596
    %v1809 = vunpack.c.l.b16 %v597
    %v1810 = vunpack.c.h.b16 %v597
    %v1811 = vunpack.c.l.b16 %v598
    %v1812 = vunpack.c.h.b16 %v598
    %v1813 = vunpack.c.l.b16 %v599
    %v1814 = vunpack.c.h.b16 %v599
    %v1815 = vunpack.c.l.b16 %v600
    %v1816 = vunpack.c.h.b16 %v600
    %v1817 = vunpack.c.l.b16 %v601
    %v1818 = vunpack.c.h.b16 %v601
    %v1819 = vunpack.c.l.b16 %v602
    %v1820 = vunpack.c.h.b16 %v602
    %v1821 = vunpack.c.l.b16 %v603
    %v1822 = vunpack.c.h.b16 %v603
    %v1823 = vunpack.c.l.b16 %v604
    %v1824 = vunpack.c.h.b16 %v604
    %v1825 = vunpack.c.l.b16 %v605
    %v1826 = vunpack.c.h.b16 %v605
    %v1827 = vunpack.c.l.b16 %v606
    %v1828 = vunpack.c.h.b16 %v606
    %v1829 = vunpack.c.l.b16 %v607
    %v1830 = vunpack.c.h.b16 %v607
    %v1831 = vunpack.c.l.b16 %v608
    %v1832 = vunpack.c.h.b16 %v608
    %v1833 = vunpack.c.l.b16 %v609
    %v1834 = vunpack.c.h.b16 %v609
    %v1835 = vunpack.c.l.b16 %v610
    %v1836 = vunpack.c.h.b16 %v610
    %v1837 = vunpack.c.l.b16 %v611
    %v1838 = vunpack.c.h.b16 %v611
    %v1839 = vunpack.c.l.b16 %v612
    %v1840 = vunpack.c.h.b16 %v612
    %v1841 = vunpack.c.l.b16 %v613
    %v1842 = vunpack.c.h.b16 %v613
    %v1843 = vunpack.c.l.b16 %v614
    %v1844 = vunpack.c.h.b16 %v614
    %v1845 = vunpack.c.l.b16 %v615
    %v1846 = vunpack.c.h.b16 %v615
    %v1847 = vunpack.c.l.b16 %v616
    %v1848 = vunpack.c.h.b16 %v616
    %v1849 = vunpack.c.l.b16 %v617
    %v1850 = vunpack.c.h.b16 %v617
    %v1851 = vunpack.c.l.b16 %v618
    %v1852 = vunpack.c.h.b16 %v618
    %v1853 = vunpack.c.l.b16 %v619
    %v1854 = vunpack.c.h.b16 %v619
    %v1855 = vunpack.c.l.b16 %v620
    %v1856 = vunpack.c.h.b16 %v620
    %v1857 = vunpack.c.l.b16 %v621
    %v1858 = vunpack.c.h.b16 %v621
    %v1859 = vunpack.c.l.b16 %v622
    %v1860 = vunpack.c.h.b16 %v622
    %v1861 = vunpack.c.l.b16 %v623
    %v1862 = vunpack.c.h.b16 %v623
    %v1863 = vunpack.c.l.b16 %v624
    %v1864 = vunpack.c.h.b16 %v624
    %v1865 = vunpack.c.l.b16 %v625
    %v1866 = vunpack.c.h.b16 %v625
    %v1867 = vunpack.c.l.b16 %v626
    %v1868 = vunpack.c.h.b16 %v626
    %v1869 = vunpack.c.l.b16 %v627
    %v1870 = vunpack.c.h.b16 %v627
    %v1871 = vunpack.c.l.b16 %v628
    %v1872 = vunpack.c.h.b16 %v628
    %v1873 = vunpack.c.l.b16 %v629
    %v1874 = vunpack.c.h.b16 %v629
    %v1875 = vunpack.c.l.b16 %v630
    %v1876 = vunpack.c.h.b16 %v630
    %v1877 = vunpack.c.l.b16 %v631
    %v1878 = vunpack.c.h.b16 %v631
    %v1879 = vunpack.c.l.b16 %v632
    %v1880 = vunpack.c.h.b16 %v632
    %v1881 = vunpack.c.l.b16 %v633
    %v1882 = vunpack.c.h.b16 %v633
    %v1883 = vunpack.c.l.b16 %v634
    %v1884 = vunpack.c.h.b16 %v634
    %v1885 = vunpack.c.l.b16 %v635
    %v1886 = vunpack.c.h.b16 %v635
    %v1887 = vunpack.c.l.b16 %v636
    %v1888 = vunpack.c.h.b16 %v636
    %v1889 = vunpack.c.l.b16 %v637
    %v1890 = vunpack.c.h.b16 %v637
    %v1891 = vunpack.c.l.b16 %v638
    %v1892 = vunpack.c.h.b16 %v638
    %v1893 = vunpack.c.l.b16 %v639
    %v1894 = vunpack.c.h.b16 %v639
    %v1895 = vunpack.c.l.b16 %v640
    %v1896 = vunpack.c.h.b16 %v640
    %v1897 = vunpack.c.l.b16 %v641
    %v1898 = vunpack.c.h.b16 %v641
    %v1899 = vunpack.c.l.b16 %v642
    %v1900 = vunpack.c.h.b16 %v642
    %v1901 = vunpack.c.l.b16 %v643
    %v1902 = vunpack.c.h.b16 %v643
    %v1903 = vunpack.c.l.b16 %v644
    %v1904 = vunpack.c.h.b16 %v644
    %v1905 = vunpack.c.l.b16 %v645
    %v1906 = vunpack.c.h.b16 %v645
    %v1907 = vunpack.c.l.b16 %v646
    %v1908 = vunpack.c.h.b16 %v646
    %v1909 = vunpack.c.l.b16 %v647
    %v1910 = vunpack.c.h.b16 %v647
    %v1911 = vunpack.c.l.b16 %v648
    %v1912 = vunpack.c.h.b16 %v648
    %v1913 = vunpack.c.l.b16 %v649
    %v1914 = vunpack.c.h.b16 %v649
    %v1915 = vunpack.c.l.b16 %v650
    %v1916 = vunpack.c.h.b16 %v650
    %v1917 = vunpack.c.l.b16 %v651
    %v1918 = vunpack.c.h.b16 %v651
    %v1919 = vunpack.c.l.b16 %v652
    %v1920 = vunpack.c.h.b16 %v652
    %v1921 = vunpack.c.l.b16 %v653
    %v1922 = vunpack.c.h.b16 %v653
    %v1923 = vunpack.c.l.b16 %v654
    %v1924 = vunpack.c.h.b16 %v654
    %v1925 = vunpack.c.l.b16 %v655
    %v1926 = vunpack.c.h.b16 %v655
    %v1927 = vunpack.c.l.b16 %v656
    %v1928 = vunpack.c.h.b16 %v656
    %v1929 = vunpack.c.l.b16 %v657
    %v1930 = vunpack.c.h.b16 %v657
    %v1931 = vunpack.c.l.b16 %v658
    %v1932 = vunpack.c.h.b16 %v658
    %v1933 = vunpack.c.l.b16 %v659
    %v1934 = vunpack.c.h.b16 %v659
    %v1935 = vunpack.c.l.b16 %v660
    %v1936 = vunpack.c.h.b16 %v660
    %v1937 = vunpack.c.l.b16 %v661
    %v1938 = vunpack.c.h.b16 %v661
    %v1939 = vunpack.c.l.b16 %v662
    %v1940 = vunpack.c.h.b16 %v662
    %v1941 = vunpack.c.l.b16 %v663
    %v1942 = vunpack.c.h.b16 %v663
    %v1943 = vunpack.c.l.b16 %v664
    %v1944 = vunpack.c.h.b16 %v664
    %v1945 = vunpack.c.l.b16 %v665
    %v1946 = vunpack.c.h.b16 %v665
    %v1947 = vunpack.c.l.b16 %v666
    %v1948 = vunpack.c.h.b16 %v666
    %v1949 = vunpack.c.l.b16 %v667
    %v1950 = vunpack.c.h.b16 %v667
    %v1951 = vunpack.c.l.b16 %v668
    %v1952 = vunpack.c.h.b16 %v668
    %v1953 = vunpack.c.l.b16 %v669
    %v1954 = vunpack.c.h.b16 %v669
    %v1955 = vunpack.c.l.b16 %v670
    %v1956 = vunpack.c.h.b16 %v670
    %v1957 = vunpack.c.l.b16 %v671
    %v1958 = vunpack.c.h.b16 %v671
    %v1959 = vunpack.c.l.b16 %v672
    %v1960 = vunpack.c.h.b16 %v672
    %v1961 = vunpack.c.l.b16 %v673
    %v1962 = vunpack.c.h.b16 %v673
    %v1963 = vunpack.c.l.b16 %v674
    %v1964 = vunpack.c.h.b16 %v674
    %v1965 = vunpack.c.l.b16 %v675
    %v1966 = vunpack.c.h.b16 %v675
    %v1967 = vunpack.c.l.b16 %v676
    %v1968 = vunpack.c.h.b16 %v676
    %v1969 = vunpack.c.l.b16 %v677
    %v1970 = vunpack.c.h.b16 %v677
    %v1971 = vunpack.c.l.b16 %v678
    %v1972 = vunpack.c.h.b16 %v678
    %v1973 = vunpack.c.l.b16 %v679
    %v1974 = vunpack.c.h.b16 %v679
    %v1975 = vunpack.c.l.b16 %v680
    %v1976 = vunpack.c.h.b16 %v680
    %v1977 = vunpack.c.l.b16 %v681
    %v1978 = vunpack.c.h.b16 %v681
    %v1979 = vunpack.c.l.b16 %v682
    %v1980 = vunpack.c.h.b16 %v682
    %v1981 = vunpack.c.l.b16 %v683
    %v1982 = vunpack.c.h.b16 %v683
    %v1983 = vunpack.c.l.b16 %v684
    %v1984 = vunpack.c.h.b16 %v684
    %v1985 = vunpack.c.l.b16 %v685
    %v1986 = vunpack.c.h.b16 %v685
    %v1987 = vunpack.c.l.b16 %v686
    %v1988 = vunpack.c.h.b16 %v686
    %v1989 = vunpack.c.l.b16 %v687
    %v1990 = vunpack.c.h.b16 %v687
    %v1991 = vunpack.c.l.b16 %v688
    %v1992 = vunpack.c.h.b16 %v688
    %v1993 = vunpack.c.l.b16 %v689
    %v1994 = vunpack.c.h.b16 %v689
    %v1995 = vunpack.c.l.b16 %v690
    %v1996 = vunpack.c.h.b16 %v690
    %v1997 = vunpack.c.l.b16 %v691
    %v1998 = vunpack.c.h.b16 %v691
    %v1999 = vunpack.c.l.b16 %v692
    %v2000 = vunpack.c.h.b16 %v692
    %v2001 = vunpack.c.l.b16 %v693
    %v2002 = vunpack.c.h.b16 %v693
    %v2003 = vunpack.c.l.b16 %v694
    %v2004 = vunpack.c.h.b16 %v694
    %v2005 = vunpack.c.l.b16 %v695
    %v2006 = vunpack.c.h.b16 %v695
    %v2007 = vunpack.c.l.b16 %v696
    %v2008 = vunpack.c.h.b16 %v696
    %v2009 = vunpack.c.l.b16 %v697
    %v2010 = vunpack.c.h.b16 %v697
    %v2011 = vunpack.c.l.b16 %v698
    %v2012 = vunpack.c.h.b16 %v698
    %v2013 = vunpack.c.l.b16 %v699
    %v2014 = vunpack.c.h.b16 %v699
    %v2015 = vunpack.c.l.b16 %v700
    %v2016 = vunpack.c.h.b16 %v700
    %v2017 = vunpack.c.l.b16 %v701
    %v2018 = vunpack.c.h.b16 %v701
    %v2019 = vunpack.c.l.b16 %v702
    %v2020 = vunpack.c.h.b16 %v702
    %v2021 = vunpack.c.l.b16 %v703
    %v2022 = vunpack.c.h.b16 %v703
    %v2023 = vunpack.c.l.b16 %v704
    %v2024 = vunpack.c.h.b16 %v704
    %v2025 = vunpack.c.l.b16 %v705
    %v2026 = vunpack.c.h.b16 %v705
    %v2027 = vunpack.c.l.b16 %v706
    %v2028 = vunpack.c.h.b16 %v706
    %v2029 = vunpack.c.l.b16 %v707
    %v2030 = vunpack.c.h.b16 %v707
    %v2031 = vunpack.c.l.b16 %v708
    %v2032 = vunpack.c.h.b16 %v708
    %v2033 = vunpack.c.l.b16 %v709
    %v2034 = vunpack.c.h.b16 %v709
    %v2035 = vunpack.c.l.b16 %v710
    %v2036 = vunpack.c.h.b16 %v710
    %v2037 = vunpack.c.l.b16 %v711
    %v2038 = vunpack.c.h.b16 %v711
    %v2039 = vunpack.c.l.b16 %v712
    %v2040 = vunpack.c.h.b16 %v712
    %v2041 = vunpack.c.l.b16 %v713
    %v2042 = vunpack.c.h.b16 %v713
    %v2043 = vunpack.c.l.b16 %v714
    %v2044 = vunpack.c.h.b16 %v714
    %v2045 = vunpack.c.l.b16 %v715
    %v2046 = vunpack.c.h.b16 %v715
    %v2047 = vunpack.c.l.b16 %v716
    %v2048 = vunpack.c.h.b16 %v716
    %v2049 = vunpack.c.l.b16 %v717
    %v2050 = vunpack.c.h.b16 %v717
    %v2051 = vunpack.c.l.b16 %v718
    %v2052 = vunpack.c.h.b16 %v718
    %v2053 = vunpack.c.l.b16 %v719
    %v2054 = vunpack.c.h.b16 %v719
    %v2055 = vunpack.c.l.b16 %v720
    %v2056 = vunpack.c.h.b16 %v720
    %v2057 = vunpack.c.l.b16 %v721
    %v2058 = vunpack.c.h.b16 %v721
    %v2059 = vunpack.c.l.b16 %v722
    %v2060 = vunpack.c.h.b16 %v722
    %v2061 = vunpack.c.l.b16 %v723
    %v2062 = vunpack.c.h.b16 %v723
    %v2063 = vunpack.c.l.b16 %v724
    %v2064 = vunpack.c.h.b16 %v724
    %v2065 = vunpack.c.l.b16 %v725
    %v2066 = vunpack.c.h.b16 %v725
    %v2067 = vunpack.c.l.b16 %v726
    %v2068 = vunpack.c.h.b16 %v726
    %v2069 = vunpack.c.l.b16 %v727
    %v2070 = vunpack.c.h.b16 %v727
    %v2071 = vunpack.c.l.b16 %v728
    %v2072 = vunpack.c.h.b16 %v728
    %v2073 = vunpack.c.l.b16 %v729
    %v2074 = vunpack.c.h.b16 %v729
    %v2075 = vunpack.c.l.b16 %v730
    %v2076 = vunpack.c.h.b16 %v730
    %v2077 = vunpack.c.l.b16 %v731
    %v2078 = vunpack.c.h.b16 %v731
    %v2079 = vunpack.c.l.b16 %v732
    %v2080 = vunpack.c.h.b16 %v732
    %v2081 = vunpack.c.l.b16 %v733
    %v2082 = vunpack.c.h.b16 %v733
    %v2083 = vunpack.c.l.b16 %v734
    %v2084 = vunpack.c.h.b16 %v734
    %v2085 = vunpack.c.l.b16 %v735
    %v2086 = vunpack.c.h.b16 %v735
    %v2087 = vunpack.c.l.b16 %v736
    %v2088 = vunpack.c.h.b16 %v736
    %v2089 = vunpack.c.l.b16 %v737
    %v2090 = vunpack.c.h.b16 %v737
    %v2091 = vunpack.c.l.b16 %v738
    %v2092 = vunpack.c.h.b16 %v738
    %v2093 = vunpack.c.l.b16 %v739
    %v2094 = vunpack.c.h.b16 %v739
    %v2095 = vunpack.c.l.b16 %v740
    %v2096 = vunpack.c.h.b16 %v740
    %v2097 = vunpack.c.l.b16 %v741
    %v2098 = vunpack.c.h.b16 %v741
    %v2099 = vunpack.c.l.b16 %v742
    %v2100 = vunpack.c.h.b16 %v742
    %v2101 = vunpack.c.l.b16 %v743
    %v2102 = vunpack.c.h.b16 %v743
    %v2103 = vunpack.c.l.b16 %v744
    %v2104 = vunpack.c.h.b16 %v744
    %v2105 = vunpack.c.l.b16 %v745
    %v2106 = vunpack.c.h.b16 %v745
    %v2107 = vunpack.c.l.b16 %v746
    %v2108 = vunpack.c.h.b16 %v746
    %v2109 = vunpack.c.l.b16 %v747
    %v2110 = vunpack.c.h.b16 %v747
    %v2111 = vunpack.c.l.b16 %v748
    %v2112 = vunpack.c.h.b16 %v748
    %v2113 = vunpack.c.l.b16 %v749
    %v2114 = vunpack.c.h.b16 %v749
    %v2115 = vunpack.c.l.b16 %v750
    %v2116 = vunpack.c.h.b16 %v750
    %v2117 = vunpack.c.l.b16 %v751
    %v2118 = vunpack.c.h.b16 %v751
    %v2119 = vunpack.c.l.b16 %v752
    %v2120 = vunpack.c.h.b16 %v752
    %v2121 = vunpack.c.l.b16 %v753
    %v2122 = vunpack.c.h.b16 %v753
    %v2123 = vunpack.c.l.b16 %v754
    %v2124 = vunpack.c.h.b16 %v754
    %v2125 = vunpack.c.l.b16 %v755
    %v2126 = vunpack.c.h.b16 %v755
    %v2127 = vunpack.c.l.b16 %v756
    %v2128 = vunpack.c.h.b16 %v756
    %v2129 = vunpack.c.l.b16 %v757
    %v2130 = vunpack.c.h.b16 %v757
    %v2131 = vunpack.c.l.b16 %v758
    %v2132 = vunpack.c.h.b16 %v758
    %v2133 = vunpack.c.l.b16 %v759
    %v2134 = vunpack.c.h.b16 %v759
    %v2135 = vunpack.c.l.b16 %v760
    %v2136 = vunpack.c.h.b16 %v760
    %v2137 = vunpack.c.l.b16 %v761
    %v2138 = vunpack.c.h.b16 %v761
    %v2139 = vunpack.c.l.b16 %v762
    %v2140 = vunpack.c.h.b16 %v762
    %v2141 = vunpack.c.l.b16 %v763
    %v2142 = vunpack.c.h.b16 %v763
    %v2143 = vunpack.c.l.b16 %v764
    %v2144 = vunpack.c.h.b16 %v764
    %v2145 = vunpack.c.l.b16 %v765
    %v2146 = vunpack.c.h.b16 %v765
    %v2147 = vunpack.c.l.b16 %v766
    %v2148 = vunpack.c.h.b16 %v766
    %v2149 = vunpack.c.l.b16 %v767
    %v2150 = vunpack.c.h.b16 %v767
    %v2151 = vunpack.c.l.b16 %v768
    %v2152 = vunpack.c.h.b16 %v768
    %v2153 = vunpack.c.l.b16 %v769
    %v2154 = vunpack.c.h.b16 %v769
    %v2155 = vunpack.c.l.b16 %v770
    %v2156 = vunpack.c.h.b16 %v770
    %v2157 = vunpack.c.l.b16 %v771
    %v2158 = vunpack.c.h.b16 %v771
    %v2159 = vunpack.c.l.b16 %v772
    %v2160 = vunpack.c.h.b16 %v772
    %v2161 = vunpack.c.l.b16 %v773
    %v2162 = vunpack.c.h.b16 %v773
    %v2163 = vunpack.c.l.b16 %v774
    %v2164 = vunpack.c.h.b16 %v774
    %v2165 = vunpack.c.l.b16 %v775
    %v2166 = vunpack.c.h.b16 %v775
    %v2167 = vunpack.c.l.b16 %v776
    %v2168 = vunpack.c.h.b16 %v776
    %v2169 = vunpack.c.l.b16 %v777
    %v2170 = vunpack.c.h.b16 %v777
    %v2171 = vunpack.c.l.b16 %v778
    %v2172 = vunpack.c.h.b16 %v778
    %v2173 = vunpack.c.l.b16 %v779
    %v2174 = vunpack.c.h.b16 %v779
    %v2175 = vunpack.c.l.b16 %v780
    %v2176 = vunpack.c.h.b16 %v780
    %v2177 = vunpack.c.l.b16 %v781
    %v2178 = vunpack.c.h.b16 %v781
    %v2179 = vunpack.c.l.b16 %v782
    %v2180 = vunpack.c.h.b16 %v782
    %v2181 = vunpack.c.l.b16 %v783
    %v2182 = vunpack.c.h.b16 %v783
    %v2183 = vunpack.c.l.b16 %v784
    %v2184 = vunpack.c.h.b16 %v784
    %v2185 = vunpack.c.l.b16 %v785
    %v2186 = vunpack.c.h.b16 %v785
    %v2187 = vunpack.c.l.b16 %v786
    %v2188 = vunpack.c.h.b16 %v786
    %v2189 = vunpack.c.l.b16 %v787
    %v2190 = vunpack.c.h.b16 %v787
    %v2191 = vunpack.c.l.b16 %v788
    %v2192 = vunpack.c.h.b16 %v788
    %v2193 = vunpack.c.l.b16 %v789
    %v2194 = vunpack.c.h.b16 %v789
    %v2195 = vunpack.c.l.b16 %v790
    %v2196 = vunpack.c.h.b16 %v790
    %v2197 = vunpack.c.l.b16 %v791
    %v2198 = vunpack.c.h.b16 %v791
    %v2199 = vunpack.c.l.b16 %v792
    %v2200 = vunpack.c.h.b16 %v792
    %v2201 = vunpack.c.l.b16 %v793
    %v2202 = vunpack.c.h.b16 %v793
    %v2203 = vunpack.c.l.b16 %v794
    %v2204 = vunpack.c.h.b16 %v794
    %v2205 = vunpack.c.l.b16 %v795
    %v2206 = vunpack.c.h.b16 %v795
    %v2207 = vunpack.c.l.b16 %v796
    %v2208 = vunpack.c.h.b16 %v796
    %v2209 = vunpack.c.l.b16 %v797
    %v2210 = vunpack.c.h.b16 %v797
    %v2211 = vunpack.c.l.b16 %v798
    %v2212 = vunpack.c.h.b16 %v798
    %v2213 = vunpack.c.l.b16 %v799
    %v2214 = vunpack.c.h.b16 %v799
    %v2215 = vunpack.c.l.b16 %v800
    %v2216 = vunpack.c.h.b16 %v800
    %v2217 = vunpack.c.l.b16 %v801
    %v2218 = vunpack.c.h.b16 %v801
    %v2219 = vunpack.c.l.b16 %v802
    %v2220 = vunpack.c.h.b16 %v802
    %v2221 = vunpack.c.l.b16 %v803
    %v2222 = vunpack.c.h.b16 %v803
    %v2223 = vunpack.c.l.b16 %v804
    %v2224 = vunpack.c.h.b16 %v804
    %v2225 = vunpack.c.l.b16 %v805
    %v2226 = vunpack.c.h.b16 %v805
    %v2227 = vunpack.c.l.b16 %v806
    %v2228 = vunpack.c.h.b16 %v806
    %v2229 = vunpack.c.l.b16 %v807
    %v2230 = vunpack.c.h.b16 %v807
    %v2231 = vunpack.c.l.b16 %v808
    %v2232 = vunpack.c.h.b16 %v808
    %v2233 = vunpack.c.l.b16 %v809
    %v2234 = vunpack.c.h.b16 %v809
    %v2235 = vunpack.c.l.b16 %v810
    %v2236 = vunpack.c.h.b16 %v810
    %v2237 = vunpack.c.l.b16 %v811
    %v2238 = vunpack.c.h.b16 %v811
    %v2239 = vunpack.c.l.b16 %v812
    %v2240 = vunpack.c.h.b16 %v812
    %v2241 = vunpack.c.l.b16 %v813
    %v2242 = vunpack.c.h.b16 %v813
    %v2243 = vunpack.c.l.b16 %v814
    %v2244 = vunpack.c.h.b16 %v814
    %v2245 = vunpack.c.l.b16 %v815
    %v2246 = vunpack.c.h.b16 %v815
    %v2247 = vunpack.c.l.b16 %v816
    %v2248 = vunpack.c.h.b16 %v816
    %v2249 = vunpack.c.l.b16 %v817
    %v2250 = vunpack.c.h.b16 %v817
    %v2251 = vunpack.c.l.b16 %v818
    %v2252 = vunpack.c.h.b16 %v818
    %v2253 = vunpack.c.l.b16 %v819
    %v2254 = vunpack.c.h.b16 %v819
    %v2255 = vunpack.c.l.b16 %v820
    %v2256 = vunpack.c.h.b16 %v820
    %v2257 = vunpack.c.l.b16 %v821
    %v2258 = vunpack.c.h.b16 %v821
    %v2259 = vunpack.c.l.b16 %v822
    %v2260 = vunpack.c.h.b16 %v822
    %v2261 = vunpack.c.l.b16 %v823
    %v2262 = vunpack.c.h.b16 %v823
    %v2263 = vunpack.c.l.b16 %v824
    %v2264 = vunpack.c.h.b16 %v824
    %v2265 = vunpack.c.l.b16 %v825
    %v2266 = vunpack.c.h.b16 %v825
    %v2267 = vunpack.c.l.b16 %v826
    %v2268 = vunpack.c.h.b16 %v826
    %v2269 = vunpack.c.l.b16 %v827
    %v2270 = vunpack.c.h.b16 %v827
    %v2271 = vunpack.c.l.b16 %v828
    %v2272 = vunpack.c.h.b16 %v828
    %v2273 = vunpack.c.l.b16 %v829
    %v2274 = vunpack.c.h.b16 %v829
    %v2275 = vunpack.c.l.b16 %v830
    %v2276 = vunpack.c.h.b16 %v830
    %v2277 = vunpack.c.l.b16 %v831
    %v2278 = vunpack.c.h.b16 %v831
    %v2279 = vunpack.c.l.b16 %v832
    %v2280 = vunpack.c.h.b16 %v832
    %v2281 = vunpack.c.l.b16 %v833
    %v2282 = vunpack.c.h.b16 %v833
    %v2283 = vunpack.c.l.b16 %v834
    %v2284 = vunpack.c.h.b16 %v834
    %v2285 = vunpack.c.l.b16 %v835
    %v2286 = vunpack.c.h.b16 %v835
    %v2287 = vunpack.c.l.b16 %v836
    %v2288 = vunpack.c.h.b16 %v836
    %v2289 = vunpack.c.l.b16 %v837
    %v2290 = vunpack.c.h.b16 %v837
    %v2291 = vunpack.c.l.b16 %v838
    %v2292 = vunpack.c.h.b16 %v838
    %v2293 = vunpack.c.l.b16 %v839
    %v2294 = vunpack.c.h.b16 %v839
    %v2295 = vunpack.c.l.b16 %v840
    %v2296 = vunpack.c.h.b16 %v840
    %v2297 = vunpack.c.l.b16 %v841
    %v2298 = vunpack.c.h.b16 %v841
    %v2299 = vunpack.c.l.b16 %v842
    %v2300 = vunpack.c.h.b16 %v842
    %v2301 = vunpack.c.l.b16 %v843
    %v2302 = vunpack.c.h.b16 %v843
    %v2303 = vunpack.c.l.b16 %v844
    %v2304 = vunpack.c.h.b16 %v844
    %v2305 = vunpack.c.l.b16 %v845
    %v2306 = vunpack.c.h.b16 %v845
    %v2307 = vunpack.c.l.b16 %v846
    %v2308 = vunpack.c.h.b16 %v846
    %v2309 = vunpack.c.l.b16 %v847
    %v2310 = vunpack.c.h.b16 %v847
    %v2311 = vunpack.c.l.b16 %v848
    %v2312 = vunpack.c.h.b16 %v848
    %v2313 = vunpack.c.l.b16 %v849
    %v2314 = vunpack.c.h.b16 %v849
    %v2315 = vunpack.c.l.b16 %v850
    %v2316 = vunpack.c.h.b16 %v850
    %v2317 = vunpack.c.l.b16 %v851
    %v2318 = vunpack.c.h.b16 %v851
    %v2319 = vunpack.c.l.b16 %v852
    %v2320 = vunpack.c.h.b16 %v852
    %v2321 = vunpack.c.l.b16 %v853
    %v2322 = vunpack.c.h.b16 %v853
    %v2323 = vunpack.c.l.b16 %v854
    %v2324 = vunpack.c.h.b16 %v854
    %v2325 = vunpack.c.l.b16 %v855
    %v2326 = vunpack.c.h.b16 %v855
    %v2327 = vunpack.c.l.b16 %v856
    %v2328 = vunpack.c.h.b16 %v856
    %v2329 = vunpack.c.l.b16 %v857
    %v2330 = vunpack.c.h.b16 %v857
    %v2331 = vunpack.c.l.b16 %v858
    %v2332 = vunpack.c.h.b16 %v858
    %v2333 = vunpack.c.l.b16 %v859
    %v2334 = vunpack.c.h.b16 %v859
    %v2335 = vunpack.c.l.b16 %v860
    %v2336 = vunpack.c.h.b16 %v860
    %v2337 = vunpack.c.l.b16 %v861
    %v2338 = vunpack.c.h.b16 %v861
    %v2339 = vunpack.c.l.b16 %v862
    %v2340 = vunpack.c.h.b16 %v862
    %v2341 = vunpack.c.l.b16 %v863
    %v2342 = vunpack.c.h.b16 %v863
    %v2343 = vunpack.c.l.b16 %v864
    %v2344 = vunpack.c.h.b16 %v864
    %v2345 = vunpack.c.l.b16 %v865
    %v2346 = vunpack.c.h.b16 %v865
    %v2347 = vunpack.c.l.b16 %v866
    %v2348 = vunpack.c.h.b16 %v866
    %v2349 = vunpack.c.l.b16 %v867
    %v2350 = vunpack.c.h.b16 %v867
    %v2351 = vunpack.c.l.b16 %v868
    %v2352 = vunpack.c.h.b16 %v868
    %v2353 = vunpack.c.l.b16 %v869
    %v2354 = vunpack.c.h.b16 %v869
    %v2355 = vunpack.c.l.b16 %v870
    %v2356 = vunpack.c.h.b16 %v870
    %v2357 = vunpack.c.l.b16 %v871
    %v2358 = vunpack.c.h.b16 %v871
    %v2359 = vunpack.c.l.b16 %v872
    %v2360 = vunpack.c.h.b16 %v872
    %v2361 = vunpack.c.l.b16 %v873
    %v2362 = vunpack.c.h.b16 %v873
    %v2363 = vunpack.c.l.b16 %v874
    %v2364 = vunpack.c.h.b16 %v874
    %v2365 = vunpack.c.l.b16 %v875
    %v2366 = vunpack.c.h.b16 %v875
    %v2367 = vunpack.c.l.b16 %v876
    %v2368 = vunpack.c.h.b16 %v876
    %v2369 = vunpack.c.l.b16 %v877
    %v2370 = vunpack.c.h.b16 %v877
    %v2371 = vunpack.c.l.b16 %v878
    %v2372 = vunpack.c.h.b16 %v878
    %v2373 = vunpack.c.l.b16 %v879
    %v2374 = vunpack.c.h.b16 %v879
    %v2375 = vunpack.c.l.b16 %v880
    %v2376 = vunpack.c.h.b16 %v880
    %v2377 = vunpack.c.l.b16 %v881
    %v2378 = vunpack.c.h.b16 %v881
    %v2379 = vunpack.c.l.b16 %v882
    %v2380 = vunpack.c.h.b16 %v882
    %v2381 = vunpack.c.l.b16 %v883
    %v2382 = vunpack.c.h.b16 %v883
    %v2383 = vunpack.c.l.b16 %v884
    %v2384 = vunpack.c.h.b16 %v884
    %v2385 = vunpack.c.l.b16 %v885
    %v2386 = vunpack.c.h.b16 %v885
    %v2387 = vunpack.c.l.b16 %v886
    %v2388 = vunpack.c.h.b16 %v886
    %v2389 = vunpack.c.l.b16 %v887
    %v2390 = vunpack.c.h.b16 %v887
    %v2391 = vunpack.c.l.b16 %v888
    %v2392 = vunpack.c.h.b16 %v888
    %v2393 = vunpack.c.l.b16 %v889
    %v2394 = vunpack.c.h.b16 %v889
    %v2395 = vunpack.c.l.b16 %v890
    %v2396 = vunpack.c.h.b16 %v890
    %v2397 = vunpack.c.l.b16 %v891
    %v2398 = vunpack.c.h.b16 %v891
    %v2399 = vunpack.c.l.b16 %v892
    %v2400 = vunpack.c.h.b16 %v892
    %v2401 = vunpack.c.l.b16 %v893
    %v2402 = vunpack.c.h.b16 %v893
    %v2403 = vunpack.c.l.b16 %v894
    %v2404 = vunpack.c.h.b16 %v894
    %v2405 = vunpack.c.l.b16 %v895
    %v2406 = vunpack.c.h.b16 %v895
    %v2407 = vunpack.c.l.b16 %v896
    %v2408 = vunpack.c.h.b16 %v896
    %v2409 = vunpack.c.l.b16 %v897
    %v2410 = vunpack.c.h.b16 %v897
    %v2411 = vunpack.c.l.b16 %v898
    %v2412 = vunpack.c.h.b16 %v898
    %v2413 = vunpack.c.l.b16 %v899
    %v2414 = vunpack.c.h.b16 %v899
    %v2415 = vunpack.c.l.b16 %v900
    %v2416 = vunpack.c.h.b16 %v900
    %v2417 = vunpack.c.l.b16 %v901
    %v2418 = vunpack.c.h.b16 %v901
    %v2419 = vunpack.c.l.b16 %v902
    %v2420 = vunpack.c.h.b16 %v902
    %v2421 = vunpack.c.l.b16 %v903
    %v2422 = vunpack.c.h.b16 %v903
    %v2423 = vunpack.c.l.b16 %v904
    %v2424 = vunpack.c.h.b16 %v904
    %v2425 = vunpack.c.l.b16 %v905
    %v2426 = vunpack.c.h.b16 %v905
    %v2427 = vunpack.c.l.b16 %v906
    %v2428 = vunpack.c.h.b16 %v906
    %v2429 = vunpack.c.l.b16 %v907
    %v2430 = vunpack.c.h.b16 %v907
    %v2431 = vunpack.c.l.b16 %v908
    %v2432 = vunpack.c.h.b16 %v908
    %v2433 = vunpack.c.l.b16 %v909
    %v2434 = vunpack.c.h.b16 %v909
    %v2435 = vunpack.c.l.b16 %v910
    %v2436 = vunpack.c.h.b16 %v910
    %v2437 = vunpack.c.l.b16 %v911
    %v2438 = vunpack.c.h.b16 %v911
    %v2439 = vunpack.c.l.b16 %v912
    %v2440 = vunpack.c.h.b16 %v912
    %v2441 = vunpack.c.l.b16 %v913
    %v2442 = vunpack.c.h.b16 %v913
    %v2443 = vunpack.c.l.b16 %v914
    %v2444 = vunpack.c.h.b16 %v914
    %v2445 = vunpack.c.l.b16 %v915
    %v2446 = vunpack.c.h.b16 %v915
    %v2447 = vunpack.c.l.b16 %v916
    %v2448 = vunpack.c.h.b16 %v916
    %v2449 = vunpack.c.l.b16 %v917
    %v2450 = vunpack.c.h.b16 %v917
    %v2451 = vunpack.c.l.b16 %v918
    %v2452 = vunpack.c.h.b16 %v918
    %v2453 = vunpack.c.l.b16 %v919
    %v2454 = vunpack.c.h.b16 %v919
    %v2455 = vunpack.c.l.b16 %v920
    %v2456 = vunpack.c.h.b16 %v920
    %v2457 = vunpack.c.l.b16 %v921
    %v2458 = vunpack.c.h.b16 %v921
    %v2459 = vunpack.c.l.b16 %v922
    %v2460 = vunpack.c.h.b16 %v922
    %v2461 = vunpack.c.l.b16 %v923
    %v2462 = vunpack.c.h.b16 %v923
    %v2463 = vunpack.c.l.b16 %v924
    %v2464 = vunpack.c.h.b16 %v924
    %v2465 = vunpack.c.l.b16 %v925
    %v2466 = vunpack.c.h.b16 %v925
    %v2467 = vunpack.c.l.b16 %v926
    %v2468 = vunpack.c.h.b16 %v926
    %v2469 = vunpack.c.l.b16 %v927
    %v2470 = vunpack.c.h.b16 %v927
    %v2471 = vunpack.c.l.b16 %v928
    %v2472 = vunpack.c.h.b16 %v928
    %v2473 = vunpack.c.l.b16 %v929
    %v2474 = vunpack.c.h.b16 %v929
    %v2475 = vunpack.c.l.b16 %v930
    %v2476 = vunpack.c.h.b16 %v930
    %v2477 = vunpack.c.l.b16 %v931
    %v2478 = vunpack.c.h.b16 %v931
    %v2479 = vunpack.c.l.b16 %v932
    %v2480 = vunpack.c.h.b16 %v932
    %v2481 = vunpack.c.l.b16 %v933
    %v2482 = vunpack.c.h.b16 %v933
    %v2483 = vunpack.c.l.b16 %v934
    %v2484 = vunpack.c.h.b16 %v934
    %v2485 = vunpack.c.l.b16 %v935
    %v2486 = vunpack.c.h.b16 %v935
    %v2487 = vunpack.c.l.b16 %v936
    %v2488 = vunpack.c.h.b16 %v936
    %v2489 = vunpack.c.l.b16 %v937
    %v2490 = vunpack.c.h.b16 %v937
    %v2491 = vunpack.c.l.b16 %v938
    %v2492 = vunpack.c.h.b16 %v938
    %v2493 = vunpack.c.l.b16 %v939
    %v2494 = vunpack.c.h.b16 %v939
    %v2495 = vunpack.c.l.b16 %v940
    %v2496 = vunpack.c.h.b16 %v940
    %v2497 = vunpack.c.l.b16 %v941
    %v2498 = vunpack.c.h.b16 %v941
    %v2499 = vunpack.c.l.b16 %v942
    %v2500 = vunpack.c.h.b16 %v942
    %v2501 = vunpack.c.l.b16 %v943
    %v2502 = vunpack.c.h.b16 %v943
    %v2503 = vunpack.c.l.b16 %v944
    %v2504 = vunpack.c.h.b16 %v944
    %v2505 = vunpack.c.l.b16 %v945
    %v2506 = vunpack.c.h.b16 %v945
    %v2507 = vunpack.c.l.b16 %v946
    %v2508 = vunpack.c.h.b16 %v946
    %v2509 = vunpack.c.l.b16 %v947
    %v2510 = vunpack.c.h.b16 %v947
    %v2511 = vunpack.c.l.b16 %v948
    %v2512 = vunpack.c.h.b16 %v948
    %v2513 = vunpack.c.l.b16 %v949
    %v2514 = vunpack.c.h.b16 %v949
    %v2515 = vunpack.c.l.b16 %v950
    %v2516 = vunpack.c.h.b16 %v950
    %v2517 = vunpack.c.l.b16 %v951
    %v2518 = vunpack.c.h.b16 %v951
    %v2519 = vunpack.c.l.b16 %v952
    %v2520 = vunpack.c.h.b16 %v952
    %v2521 = vunpack.c.l.b16 %v953
    %v2522 = vunpack.c.h.b16 %v953
    %v2523 = vunpack.c.l.b16 %v954
    %v2524 = vunpack.c.h.b16 %v954
    %v2525 = vunpack.c.l.b16 %v955
    %v2526 = vunpack.c.h.b16 %v955
    %v2527 = vunpack.c.l.b16 %v956
    %v2528 = vunpack.c.h.b16 %v956
    %v2529 = vunpack.c.l.b16 %v957
    %v2530 = vunpack.c.h.b16 %v957
    %v2531 = vunpack.c.l.b16 %v958
    %v2532 = vunpack.c.h.b16 %v958
    %v2533 = vunpack.c.l.b16 %v959
    %v2534 = vunpack.c.h.b16 %v959
    %v2535 = vunpack.c.l.b16 %v960
    %v2536 = vunpack.c.h.b16 %v960
    %v2537 = vunpack.c.l.b16 %v961
    %v2538 = vunpack.c.h.b16 %v961
    %v2539 = vunpack.c.l.b16 %v962
    %v2540 = vunpack.c.h.b16 %v962
    %v2541 = vpack.c.b16 %v1525, %v1517
    %v2542 = vpack.c.b16 %v1526, %v1518
    %v2543 = vpack.c.b16 %v1527, %v1519
    %v2544 = vpack.c.b16 %v1528, %v1520
    %v2545 = vpack.c.b16 %v1529, %v1521
    %v2546 = vpack.c.b16 %v1530, %v1522
    %v2547 = vpack.c.b16 %v1531, %v1523
    %v2548 = vpack.c.b16 %v1532, %v1524
    %v2549 = vpack.c.b16 %v1541, %v1533
    %v2550 = vpack.c.b16 %v1542, %v1534
    %v2551 = vpack.c.b16 %v1543, %v1535
    %v2552 = vpack.c.b16 %v1544, %v1536
    %v2553 = vpack.c.b16 %v1545, %v1537
    %v2554 = vpack.c.b16 %v1546, %v1538
    %v2555 = vpack.c.b16 %v1547, %v1539
    %v2556 = vpack.c.b16 %v1548, %v1540
    %v2557 = vpack.c.b16 %v1557, %v1549
    %v2558 = vpack.c.b16 %v1558, %v1550
    %v2559 = vpack.c.b16 %v1559, %v1551
    %v2560 = vpack.c.b16 %v1560, %v1552
    %v2561 = vpack.c.b16 %v1561, %v1553
    %v2562 = vpack.c.b16 %v1562, %v1554
    %v2563 = vpack.c.b16 %v1563, %v1555
    %v2564 = vpack.c.b16 %v1564, %v1556
    %v2565 = vpack.c.b16 %v1573, %v1565
    %v2566 = vpack.c.b16 %v1574, %v1566
    %v2567 = vpack.c.b16 %v1575, %v1567
    %v2568 = vpack.c.b16 %v1576, %v1568
    %v2569 = vpack.c.b16 %v1577, %v1569
    %v2570 = vpack.c.b16 %v1578, %v1570
    %v2571 = vpack.c.b16 %v1579, %v1571
    %v2572 = vpack.c.b16 %v1580, %v1572
    %v2573 = vpack.c.b16 %v1589, %v1581
    %v2574 = vpack.c.b16 %v1590, %v1582
    %v2575 = vpack.c.b16 %v1591, %v1583
    %v2576 = vpack.c.b16 %v1592, %v1584
    %v2577 = vpack.c.b16 %v1593, %v1585
    %v2578 = vpack.c.b16 %v1594, %v1586
    %v2579 = vpack.c.b16 %v1595, %v1587
    %v2580 = vpack.c.b16 %v1596, %v1588
    %v2581 = vpack.c.b16 %v1605, %v1597
    %v2582 = vpack.c.b16 %v1606, %v1598
    %v2583 = vpack.c.b16 %v1607, %v1599
    %v2584 = vpack.c.b16 %v1608, %v1600
    %v2585 = vpack.c.b16 %v1609, %v1601
    %v2586 = vpack.c.b16 %v1610, %v1602
    %v2587 = vpack.c.b16 %v1611, %v1603
    %v2588 = vpack.c.b16 %v1612, %v1604
    %v2589 = vpack.c.b16 %v1621, %v1613
    %v2590 = vpack.c.b16 %v1622, %v1614
    %v2591 = vpack.c.b16 %v1623, %v1615
    %v2592 = vpack.c.b16 %v1624, %v1616
    %v2593 = vpack.c.b16 %v1625, %v1617
    %v2594 = vpack.c.b16 %v1626, %v1618
    %v2595 = vpack.c.b16 %v1627, %v1619
    %v2596 = vpack.c.b16 %v1628, %v1620
    %v2597 = vpack.c.b16 %v1637, %v1629
    %v2598 = vpack.c.b16 %v1638, %v1630
    %v2599 = vpack.c.b16 %v1639, %v1631
    %v2600 = vpack.c.b16 %v1640, %v1632
    %v2601 = vpack.c.b16 %v1641, %v1633
    %v2602 = vpack.c.b16 %v1642, %v1634
    %v2603 = vpack.c.b16 %v1643, %v1635
    %v2604 = vpack.c.b16 %v1644, %v1636
    %v2605 = vpack.c.b16 %v1653, %v1645
    %v2606 = vpack.c.b16 %v1654, %v1646
    %v2607 = vpack.c.b16 %v1655, %v1647
    %v2608 = vpack.c.b16 %v1656, %v1648
    %v2609 = vpack.c.b16 %v1657, %v1649
    %v2610 = vpack.c.b16 %v1658, %v1650
    %v2611 = vpack.c.b16 %v1659, %v1651
    %v2612 = vpack.c.b16 %v1660, %v1652
    %v2613 = vpack.c.b16 %v1669, %v1661
    %v2614 = vpack.c.b16 %v1670, %v1662
    %v2615 = vpack.c.b16 %v1671, %v1663
    %v2616 = vpack.c.b16 %v1672, %v1664
    %v2617 = vpack.c.b16 %v1673, %v1665
    %v2618 = vpack.c.b16 %v1674, %v1666
    %v2619 = vpack.c.b16 %v1675, %v1667
    %v2620 = vpack.c.b16 %v1676, %v1668
    %v2621 = vpack.c.b16 %v1685, %v1677
    %v2622 = vpack.c.b16 %v1686, %v1678
    %v2623 = vpack.c.b16 %v1687, %v1679
    %v2624 = vpack.c.b16 %v1688, %v1680
    %v2625 = vpack.c.b16 %v1689, %v1681
    %v2626 = vpack.c.b16 %v1690, %v1682
    %v2627 = vpack.c.b16 %v1691, %v1683
    %v2628 = vpack.c.b16 %v1692, %v1684
    %v2629 = vpack.c.b16 %v1701, %v1693
    %v2630 = vpack.c.b16 %v1702, %v1694
    %v2631 = vpack.c.b16 %v1703, %v1695
    %v2632 = vpack.c.b16 %v1704, %v1696
    %v2633 = vpack.c.b16 %v1705, %v1697
    %v2634 = vpack.c.b16 %v1706, %v1698
    %v2635 = vpack.c.b16 %v1707, %v1699
    %v2636 = vpack.c.b16 %v1708, %v1700
    %v2637 = vpack.c.b16 %v1717, %v1709
    %v2638 = vpack.c.b16 %v1718, %v1710
    %v2639 = vpack.c.b16 %v1719, %v1711
    %v2640 = vpack.c.b16 %v1720, %v1712
    %v2641 = vpack.c.b16 %v1721, %v1713
    %v2642 = vpack.c.b16 %v1722, %v1714
    %v2643 = vpack.c.b16 %v1723, %v1715
    %v2644 = vpack.c.b16 %v1724, %v1716
    %v2645 = vpack.c.b16 %v1733, %v1725
    %v2646 = vpack.c.b16 %v1734, %v1726
    %v2647 = vpack.c.b16 %v1735, %v1727
    %v2648 = vpack.c.b16 %v1736, %v1728
    %v2649 = vpack.c.b16 %v1737, %v1729
    %v2650 = vpack.c.b16 %v1738, %v1730
    %v2651 = vpack.c.b16 %v1739, %v1731
    %v2652 = vpack.c.b16 %v1740, %v1732
    %v2653 = vpack.c.b16 %v1749, %v1741
    %v2654 = vpack.c.b16 %v1750, %v1742
    %v2655 = vpack.c.b16 %v1751, %v1743
    %v2656 = vpack.c.b16 %v1752, %v1744
    %v2657 = vpack.c.b16 %v1753, %v1745
    %v2658 = vpack.c.b16 %v1754, %v1746
    %v2659 = vpack.c.b16 %v1755, %v1747
    %v2660 = vpack.c.b16 %v1756, %v1748
    %v2661 = vpack.c.b16 %v1765, %v1757
    %v2662 = vpack.c.b16 %v1766, %v1758
    %v2663 = vpack.c.b16 %v1767, %v1759
    %v2664 = vpack.c.b16 %v1768, %v1760
    %v2665 = vpack.c.b16 %v1769, %v1761
    %v2666 = vpack.c.b16 %v1770, %v1762
    %v2667 = vpack.c.b16 %v1771, %v1763
    %v2668 = vpack.c.b16 %v1772, %v1764
    %v2669 = vpack.c.b16 %v1781, %v1773
    %v2670 = vpack.c.b16 %v1782, %v1774
    %v2671 = vpack.c.b16 %v1783, %v1775
    %v2672 = vpack.c.b16 %v1784, %v1776
    %v2673 = vpack.c.b16 %v1785, %v1777
    %v2674 = vpack.c.b16 %v1786, %v1778
    %v2675 = vpack.c.b16 %v1787, %v1779
    %v2676 = vpack.c.b16 %v1788, %v1780
    %v2677 = vpack.c.b16 %v1797, %v1789
    %v2678 = vpack.c.b16 %v1798, %v1790
    %v2679 = vpack.c.b16 %v1799, %v1791
    %v2680 = vpack.c.b16 %v1800, %v1792
    %v2681 = vpack.c.b16 %v1801, %v1793
    %v2682 = vpack.c.b16 %v1802, %v1794
    %v2683 = vpack.c.b16 %v1803, %v1795
    %v2684 = vpack.c.b16 %v1804, %v1796
    %v2685 = vpack.c.b16 %v1813, %v1805
    %v2686 = vpack.c.b16 %v1814, %v1806
    %v2687 = vpack.c.b16 %v1815, %v1807
    %v2688 = vpack.c.b16 %v1816, %v1808
    %v2689 = vpack.c.b16 %v1817, %v1809
    %v2690 = vpack.c.b16 %v1818, %v1810
    %v2691 = vpack.c.b16 %v1819, %v1811
    %v2692 = vpack.c.b16 %v1820, %v1812
    %v2693 = vpack.c.b16 %v1829, %v1821
    %v2694 = vpack.c.b16 %v1830, %v1822
    %v2695 = vpack.c.b16 %v1831, %v1823
    %v2696 = vpack.c.b16 %v1832, %v1824
    %v2697 = vpack.c.b16 %v1833, %v1825
    %v2698 = vpack.c.b16 %v1834, %v1826
    %v2699 = vpack.c.b16 %v1835, %v1827
    %v2700 = vpack.c.b16 %v1836, %v1828
    %v2701 = vpack.c.b16 %v1845, %v1837
    %v2702 = vpack.c.b16 %v1846, %v1838
    %v2703 = vpack.c.b16 %v1847, %v1839
    %v2704 = vpack.c.b16 %v1848, %v1840
    %v2705 = vpack.c.b16 %v1849, %v1841
    %v2706 = vpack.c.b16 %v1850, %v1842
    %v2707 = vpack.c.b16 %v1851, %v1843
    %v2708 = vpack.c.b16 %v1852, %v1844
    %v2709 = vpack.c.b16 %v1861, %v1853
    %v2710 = vpack.c.b16 %v1862, %v1854
    %v2711 = vpack.c.b16 %v1863, %v1855
    %v2712 = vpack.c.b16 %v1864, %v1856
    %v2713 = vpack.c.b16 %v1865, %v1857
    %v2714 = vpack.c.b16 %v1866, %v1858
    %v2715 = vpack.c.b16 %v1867, %v1859
    %v2716 = vpack.c.b16 %v1868, %v1860
    %v2717 = vpack.c.b16 %v1877, %v1869
    %v2718 = vpack.c.b16 %v1878, %v1870
    %v2719 = vpack.c.b16 %v1879, %v1871
    %v2720 = vpack.c.b16 %v1880, %v1872
    %v2721 = vpack.c.b16 %v1881, %v1873
    %v2722 = vpack.c.b16 %v1882, %v1874
    %v2723 = vpack.c.b16 %v1883, %v1875
    %v2724 = vpack.c.b16 %v1884, %v1876
    %v2725 = vpack.c.b16 %v1893, %v1885
    %v2726 = vpack.c.b16 %v1894, %v1886
    %v2727 = vpack.c.b16 %v1895, %v1887
    %v2728 = vpack.c.b16 %v1896, %v1888
    %v2729 = vpack.c.b16 %v1897, %v1889
    %v2730 = vpack.c.b16 %v1898, %v1890
    %v2731 = vpack.c.b16 %v1899, %v1891
    %v2732 = vpack.c.b16 %v1900, %v1892
    %v2733 = vpack.c.b16 %v1909, %v1901
    %v2734 = vpack.c.b16 %v1910, %v1902
    %v2735 = vpack.c.b16 %v1911, %v1903
    %v2736 = vpack.c.b16 %v1912, %v1904
    %v2737 = vpack.c.b16 %v1913, %v1905
    %v2738 = vpack.c.b16 %v1914, %v1906
    %v2739 = vpack.c.b16 %v1915, %v1907
    %v2740 = vpack.c.b16 %v1916, %v1908
    %v2741 = vpack.c.b16 %v1925, %v1917
    %v2742 = vpack.c.b16 %v1926, %v1918
    %v2743 = vpack.c.b16 %v1927, %v1919
    %v2744 = vpack.c.b16 %v1928, %v1920
    %v2745 = vpack.c.b16 %v1929, %v1921
    %v2746 = vpack.c.b16 %v1930, %v1922
    %v2747 = vpack.c.b16 %v1931, %v1923
    %v2748 = vpack.c.b16 %v1932, %v1924
    %v2749 = vpack.c.b16 %v1941, %v1933
    %v2750 = vpack.c.b16 %v1942, %v1934
    %v2751 = vpack.c.b16 %v1943, %v1935
    %v2752 = vpack.c.b16 %v1944, %v1936
    %v2753 = vpack.c.b16 %v1945, %v1937
    %v2754 = vpack.c.b16 %v1946, %v1938
    %v2755 = vpack.c.b16 %v1947, %v1939
    %v2756 = vpack.c.b16 %v1948, %v1940
    %v2757 = vpack.c.b16 %v1957, %v1949
    %v2758 = vpack.c.b16 %v1958, %v1950
    %v2759 = vpack.c.b16 %v1959, %v1951
    %v2760 = vpack.c.b16 %v1960, %v1952
    %v2761 = vpack.c.b16 %v1961, %v1953
    %v2762 = vpack.c.b16 %v1962, %v1954
    %v2763 = vpack.c.b16 %v1963, %v1955
    %v2764 = vpack.c.b16 %v1964, %v1956
    %v2765 = vpack.c.b16 %v1973, %v1965
    %v2766 = vpack.c.b16 %v1974, %v1966
    %v2767 = vpack.c.b16 %v1975, %v1967
    %v2768 = vpack.c.b16 %v1976, %v1968
    %v2769 = vpack.c.b16 %v1977, %v1969
    %v2770 = vpack.c.b16 %v1978, %v1970
    %v2771 = vpack.c.b16 %v1979, %v1971
    %v2772 = vpack.c.b16 %v1980, %v1972
    %v2773 = vpack.c.b16 %v1989, %v1981
    %v2774 = vpack.c.b16 %v1990, %v1982
    %v2775 = vpack.c.b16 %v1991, %v1983
    %v2776 = vpack.c.b16 %v1992, %v1984
    %v2777 = vpack.c.b16 %v1993, %v1985
    %v2778 = vpack.c.b16 %v1994, %v1986
    %v2779 = vpack.c.b16 %v1995, %v1987
    %v2780 = vpack.c.b16 %v1996, %v1988
    %v2781 = vpack.c.b16 %v2005, %v1997
    %v2782 = vpack.c.b16 %v2006, %v1998
    %v2783 = vpack.c.b16 %v2007, %v1999
    %v2784 = vpack.c.b16 %v2008, %v2000
    %v2785 = vpack.c.b16 %v2009, %v2001
    %v2786 = vpack.c.b16 %v2010, %v2002
    %v2787 = vpack.c.b16 %v2011, %v2003
    %v2788 = vpack.c.b16 %v2012, %v2004
    %v2789 = vpack.c.b16 %v2021, %v2013
    %v2790 = vpack.c.b16 %v2022, %v2014
    %v2791 = vpack.c.b16 %v2023, %v2015
    %v2792 = vpack.c.b16 %v2024, %v2016
    %v2793 = vpack.c.b16 %v2025, %v2017
    %v2794 = vpack.c.b16 %v2026, %v2018
    %v2795 = vpack.c.b16 %v2027, %v2019
    %v2796 = vpack.c.b16 %v2028, %v2020
    %v2797 = vpack.c.b16 %v2037, %v2029
    %v2798 = vpack.c.b16 %v2038, %v2030
    %v2799 = vpack.c.b16 %v2039, %v2031
    %v2800 = vpack.c.b16 %v2040, %v2032
    %v2801 = vpack.c.b16 %v2041, %v2033
    %v2802 = vpack.c.b16 %v2042, %v2034
    %v2803 = vpack.c.b16 %v2043, %v2035
    %v2804 = vpack.c.b16 %v2044, %v2036
    %v2805 = vpack.c.b16 %v2053, %v2045
    %v2806 = vpack.c.b16 %v2054, %v2046
    %v2807 = vpack.c.b16 %v2055, %v2047
    %v2808 = vpack.c.b16 %v2056, %v2048
    %v2809 = vpack.c.b16 %v2057, %v2049
    %v2810 = vpack.c.b16 %v2058, %v2050
    %v2811 = vpack.c.b16 %v2059, %v2051
    %v2812 = vpack.c.b16 %v2060, %v2052
    %v2813 = vpack.c.b16 %v2069, %v2061
    %v2814 = vpack.c.b16 %v2070, %v2062
    %v2815 = vpack.c.b16 %v2071, %v2063
    %v2816 = vpack.c.b16 %v2072, %v2064
    %v2817 = vpack.c.b16 %v2073, %v2065
    %v2818 = vpack.c.b16 %v2074, %v2066
    %v2819 = vpack.c.b16 %v2075, %v2067
    %v2820 = vpack.c.b16 %v2076, %v2068
    %v2821 = vpack.c.b16 %v2085, %v2077
    %v2822 = vpack.c.b16 %v2086, %v2078
    %v2823 = vpack.c.b16 %v2087, %v2079
    %v2824 = vpack.c.b16 %v2088, %v2080
    %v2825 = vpack.c.b16 %v2089, %v2081
    %v2826 = vpack.c.b16 %v2090, %v2082
    %v2827 = vpack.c.b16 %v2091, %v2083
    %v2828 = vpack.c.b16 %v2092, %v2084
    %v2829 = vpack.c.b16 %v2101, %v2093
    %v2830 = vpack.c.b16 %v2102, %v2094
    %v2831 = vpack.c.b16 %v2103, %v2095
    %v2832 = vpack.c.b16 %v2104, %v2096
    %v2833 = vpack.c.b16 %v2105, %v2097
    %v2834 = vpack.c.b16 %v2106, %v2098
    %v2835 = vpack.c.b16 %v2107, %v2099
    %v2836 = vpack.c.b16 %v2108, %v2100
    %v2837 = vpack.c.b16 %v2117, %v2109
    %v2838 = vpack.c.b16 %v2118, %v2110
    %v2839 = vpack.c.b16 %v2119, %v2111
    %v2840 = vpack.c.b16 %v2120, %v2112
    %v2841 = vpack.c.b16 %v2121, %v2113
    %v2842 = vpack.c.b16 %v2122, %v2114
    %v2843 = vpack.c.b16 %v2123, %v2115
    %v2844 = vpack.c.b16 %v2124, %v2116
    %v2845 = vpack.c.b16 %v2133, %v2125
    %v2846 = vpack.c.b16 %v2134, %v2126
    %v2847 = vpack.c.b16 %v2135, %v2127
    %v2848 = vpack.c.b16 %v2136, %v2128
    %v2849 = vpack.c.b16 %v2137, %v2129
    %v2850 = vpack.c.b16 %v2138, %v2130
    %v2851 = vpack.c.b16 %v2139, %v2131
    %v2852 = vpack.c.b16 %v2140, %v2132
    %v2853 = vpack.c.b16 %v2149, %v2141
    %v2854 = vpack.c.b16 %v2150, %v2142
    %v2855 = vpack.c.b16 %v2151, %v2143
    %v2856 = vpack.c.b16 %v2152, %v2144
    %v2857 = vpack.c.b16 %v2153, %v2145
    %v2858 = vpack.c.b16 %v2154, %v2146
    %v2859 = vpack.c.b16 %v2155, %v2147
    %v2860 = vpack.c.b16 %v2156, %v2148
    %v2861 = vpack.c.b16 %v2165, %v2157
    %v2862 = vpack.c.b16 %v2166, %v2158
    %v2863 = vpack.c.b16 %v2167, %v2159
    %v2864 = vpack.c.b16 %v2168, %v2160
    %v2865 = vpack.c.b16 %v2169, %v2161
    %v2866 = vpack.c.b16 %v2170, %v2162
    %v2867 = vpack.c.b16 %v2171, %v2163
    %v2868 = vpack.c.b16 %v2172, %v2164
    %v2869 = vpack.c.b16 %v2181, %v2173
    %v2870 = vpack.c.b16 %v2182, %v2174
    %v2871 = vpack.c.b16 %v2183, %v2175
    %v2872 = vpack.c.b16 %v2184, %v2176
    %v2873 = vpack.c.b16 %v2185, %v2177
    %v2874 = vpack.c.b16 %v2186, %v2178
    %v2875 = vpack.c.b16 %v2187, %v2179
    %v2876 = vpack.c.b16 %v2188, %v2180
    %v2877 = vpack.c.b16 %v2197, %v2189
    %v2878 = vpack.c.b16 %v2198, %v2190
    %v2879 = vpack.c.b16 %v2199, %v2191
    %v2880 = vpack.c.b16 %v2200, %v2192
    %v2881 = vpack.c.b16 %v2201, %v2193
    %v2882 = vpack.c.b16 %v2202, %v2194
    %v2883 = vpack.c.b16 %v2203, %v2195
    %v2884 = vpack.c.b16 %v2204, %v2196
    %v2885 = vpack.c.b16 %v2213, %v2205
    %v2886 = vpack.c.b16 %v2214, %v2206
    %v2887 = vpack.c.b16 %v2215, %v2207
    %v2888 = vpack.c.b16 %v2216, %v2208
    %v2889 = vpack.c.b16 %v2217, %v2209
    %v2890 = vpack.c.b16 %v2218, %v2210
    %v2891 = vpack.c.b16 %v2219, %v2211
    %v2892 = vpack.c.b16 %v2220, %v2212
    %v2893 = vpack.c.b16 %v2229, %v2221
    %v2894 = vpack.c.b16 %v2230, %v2222
    %v2895 = vpack.c.b16 %v2231, %v2223
    %v2896 = vpack.c.b16 %v2232, %v2224
    %v2897 = vpack.c.b16 %v2233, %v2225
    %v2898 = vpack.c.b16 %v2234, %v2226
    %v2899 = vpack.c.b16 %v2235, %v2227
    %v2900 = vpack.c.b16 %v2236, %v2228
    %v2901 = vpack.c.b16 %v2245, %v2237
    %v2902 = vpack.c.b16 %v2246, %v2238
    %v2903 = vpack.c.b16 %v2247, %v2239
    %v2904 = vpack.c.b16 %v2248, %v2240
    %v2905 = vpack.c.b16 %v2249, %v2241
    %v2906 = vpack.c.b16 %v2250, %v2242
    %v2907 = vpack.c.b16 %v2251, %v2243
    %v2908 = vpack.c.b16 %v2252, %v2244
    %v2909 = vpack.c.b16 %v2261, %v2253
    %v2910 = vpack.c.b16 %v2262, %v2254
    %v2911 = vpack.c.b16 %v2263, %v2255
    %v2912 = vpack.c.b16 %v2264, %v2256
    %v2913 = vpack.c.b16 %v2265, %v2257
    %v2914 = vpack.c.b16 %v2266, %v2258
    %v2915 = vpack.c.b16 %v2267, %v2259
    %v2916 = vpack.c.b16 %v2268, %v2260
    %v2917 = vpack.c.b16 %v2277, %v2269
    %v2918 = vpack.c.b16 %v2278, %v2270
    %v2919 = vpack.c.b16 %v2279, %v2271
    %v2920 = vpack.c.b16 %v2280, %v2272
    %v2921 = vpack.c.b16 %v2281, %v2273
    %v2922 = vpack.c.b16 %v2282, %v2274
    %v2923 = vpack.c.b16 %v2283, %v2275
    %v2924 = vpack.c.b16 %v2284, %v2276
    %v2925 = vpack.c.b16 %v2293, %v2285
    %v2926 = vpack.c.b16 %v2294, %v2286
    %v2927 = vpack.c.b16 %v2295, %v2287
    %v2928 = vpack.c.b16 %v2296, %v2288
    %v2929 = vpack.c.b16 %v2297, %v2289
    %v2930 = vpack.c.b16 %v2298, %v2290
    %v2931 = vpack.c.b16 %v2299, %v2291
    %v2932 = vpack.c.b16 %v2300, %v2292
    %v2933 = vpack.c.b16 %v2309, %v2301
    %v2934 = vpack.c.b16 %v2310, %v2302
    %v2935 = vpack.c.b16 %v2311, %v2303
    %v2936 = vpack.c.b16 %v2312, %v2304
    %v2937 = vpack.c.b16 %v2313, %v2305
    %v2938 = vpack.c.b16 %v2314, %v2306
    %v2939 = vpack.c.b16 %v2315, %v2307
    %v2940 = vpack.c.b16 %v2316, %v2308
    %v2941 = vpack.c.b16 %v2325, %v2317
    %v2942 = vpack.c.b16 %v2326, %v2318
    %v2943 = vpack.c.b16 %v2327, %v2319
    %v2944 = vpack.c.b16 %v2328, %v2320
    %v2945 = vpack.c.b16 %v2329, %v2321
    %v2946 = vpack.c.b16 %v2330, %v2322
    %v2947 = vpack.c.b16 %v2331, %v2323
    %v2948 = vpack.c.b16 %v2332, %v2324
    %v2949 = vpack.c.b16 %v2341, %v2333
    %v2950 = vpack.c.b16 %v2342, %v2334
    %v2951 = vpack.c.b16 %v2343, %v2335
    %v2952 = vpack.c.b16 %v2344, %v2336
    %v2953 = vpack.c.b16 %v2345, %v2337
    %v2954 = vpack.c.b16 %v2346, %v2338
    %v2955 = vpack.c.b16 %v2347, %v2339
    %v2956 = vpack.c.b16 %v2348, %v2340
    %v2957 = vpack.c.b16 %v2357, %v2349
    %v2958 = vpack.c.b16 %v2358, %v2350
    %v2959 = vpack.c.b16 %v2359, %v2351
    %v2960 = vpack.c.b16 %v2360, %v2352
    %v2961 = vpack.c.b16 %v2361, %v2353
    %v2962 = vpack.c.b16 %v2362, %v2354
    %v2963 = vpack.c.b16 %v2363, %v2355
    %v2964 = vpack.c.b16 %v2364, %v2356
    %v2965 = vpack.c.b16 %v2373, %v2365
    %v2966 = vpack.c.b16 %v2374, %v2366
    %v2967 = vpack.c.b16 %v2375, %v2367
    %v2968 = vpack.c.b16 %v2376, %v2368
    %v2969 = vpack.c.b16 %v2377, %v2369
    %v2970 = vpack.c.b16 %v2378, %v2370
    %v2971 = vpack.c.b16 %v2379, %v2371
    %v2972 = vpack.c.b16 %v2380, %v2372
    %v2973 = vpack.c.b16 %v2389, %v2381
    %v2974 = vpack.c.b16 %v2390, %v2382
    %v2975 = vpack.c.b16 %v2391, %v2383
    %v2976 = vpack.c.b16 %v2392, %v2384
    %v2977 = vpack.c.b16 %v2393, %v2385
    %v2978 = vpack.c.b16 %v2394, %v2386
    %v2979 = vpack.c.b16 %v2395, %v2387
    %v2980 = vpack.c.b16 %v2396, %v2388
    %v2981 = vpack.c.b16 %v2405, %v2397
    %v2982 = vpack.c.b16 %v2406, %v2398
    %v2983 = vpack.c.b16 %v2407, %v2399
    %v2984 = vpack.c.b16 %v2408, %v2400
    %v2985 = vpack.c.b16 %v2409, %v2401
    %v2986 = vpack.c.b16 %v2410, %v2402
    %v2987 = vpack.c.b16 %v2411, %v2403
    %v2988 = vpack.c.b16 %v2412, %v2404
    %v2989 = vpack.c.b16 %v2421, %v2413
    %v2990 = vpack.c.b16 %v2422, %v2414
    %v2991 = vpack.c.b16 %v2423, %v2415
    %v2992 = vpack.c.b16 %v2424, %v2416
    %v2993 = vpack.c.b16 %v2425, %v2417
    %v2994 = vpack.c.b16 %v2426, %v2418
    %v2995 = vpack.c.b16 %v2427, %v2419
    %v2996 = vpack.c.b16 %v2428, %v2420
    %v2997 = vpack.c.b16 %v2437, %v2429
    %v2998 = vpack.c.b16 %v2438, %v2430
    %v2999 = vpack.c.b16 %v2439, %v2431
    %v3000 = vpack.c.b16 %v2440, %v2432
    %v3001 = vpack.c.b16 %v2441, %v2433
    %v3002 = vpack.c.b16 %v2442, %v2434
    %v3003 = vpack.c.b16 %v2443, %v2435
    %v3004 = vpack.c.b16 %v2444, %v2436
    %v3005 = vpack.c.b16 %v2453, %v2445
    %v3006 = vpack.c.b16 %v2454, %v2446
    %v3007 = vpack.c.b16 %v2455, %v2447
    %v3008 = vpack.c.b16 %v2456, %v2448
    %v3009 = vpack.c.b16 %v2457, %v2449
    %v3010 = vpack.c.b16 %v2458, %v2450
    %v3011 = vpack.c.b16 %v2459, %v2451
    %v3012 = vpack.c.b16 %v2460, %v2452
    %v3013 = vpack.c.b16 %v2469, %v2461
    %v3014 = vpack.c.b16 %v2470, %v2462
    %v3015 = vpack.c.b16 %v2471, %v2463
    %v3016 = vpack.c.b16 %v2472, %v2464
    %v3017 = vpack.c.b16 %v2473, %v2465
    %v3018 = vpack.c.b16 %v2474, %v2466
    %v3019 = vpack.c.b16 %v2475, %v2467
    %v3020 = vpack.c.b16 %v2476, %v2468
    %v3021 = vpack.c.b16 %v2485, %v2477
    %v3022 = vpack.c.b16 %v2486, %v2478
    %v3023 = vpack.c.b16 %v2487, %v2479
    %v3024 = vpack.c.b16 %v2488, %v2480
    %v3025 = vpack.c.b16 %v2489, %v2481
    %v3026 = vpack.c.b16 %v2490, %v2482
    %v3027 = vpack.c.b16 %v2491, %v2483
    %v3028 = vpack.c.b16 %v2492, %v2484
    %v3029 = vpack.c.b16 %v2501, %v2493
    %v3030 = vpack.c.b16 %v2502, %v2494
    %v3031 = vpack.c.b16 %v2503, %v2495
    %v3032 = vpack.c.b16 %v2504, %v2496
    %v3033 = vpack.c.b16 %v2505, %v2497
    %v3034 = vpack.c.b16 %v2506, %v2498
    %v3035 = vpack.c.b16 %v2507, %v2499
    %v3036 = vpack.c.b16 %v2508, %v2500
    %v3037 = vpack.c.b16 %v2517, %v2509
    %v3038 = vpack.c.b16 %v2518, %v2510
    %v3039 = vpack.c.b16 %v2519, %v2511
    %v3040 = vpack.c.b16 %v2520, %v2512
    %v3041 = vpack.c.b16 %v2521, %v2513
    %v3042 = vpack.c.b16 %v2522, %v2514
    %v3043 = vpack.c.b16 %v2523, %v2515
    %v3044 = vpack.c.b16 %v2524, %v2516
    %v3045 = vpack.c.b16 %v2533, %v2525
    %v3046 = vpack.c.b16 %v2534, %v2526
    %v3047 = vpack.c.b16 %v2535, %v2527
    %v3048 = vpack.c.b16 %v2536, %v2528
    %v3049 = vpack.c.b16 %v2537, %v2529
    %v3050 = vpack.c.b16 %v2538, %v2530
    %v3051 = vpack.c.b16 %v2539, %v2531
    %v3052 = vpack.c.b16 %v2540, %v2532
    %3565 = vmatprep.subr.bf16.mxu0 %v2542
    %3566 = vmatpush1.bf16.msra.mxu0 %v2541
    %3567 = vmatprep.subr.bf16.mxu0 %v2550
    %3568 = vmatpush1.bf16.msra.mxu0 %v2549
    %3569 = vmatprep.subr.bf16.mxu0 %v2558
    %3570 = vmatpush1.bf16.msra.mxu0 %v2557
    %3571 = vmatprep.subr.bf16.mxu0 %v2566
    %3572 = vmatpush1.bf16.msra.mxu0 %v2565
    %3573 = vmatprep.subr.bf16.mxu0 %v2574
    %3574 = vmatpush1.bf16.msra.mxu0 %v2573
    %3575 = vmatprep.subr.bf16.mxu0 %v2582
    %3576 = vmatpush1.bf16.msra.mxu0 %v2581
    %3577 = vmatprep.subr.bf16.mxu0 %v2590
    %3578 = vmatpush1.bf16.msra.mxu0 %v2589
    %3579 = vmatprep.subr.bf16.mxu0 %v2598
    %3580 = vmatpush1.bf16.msra.mxu0 %v2597
    %3581 = vmatprep.subr.bf16.mxu0 %v2606
    %3582 = vmatpush1.bf16.msra.mxu0 %v2605
    %3583 = vmatprep.subr.bf16.mxu0 %v2614
    %3584 = vmatpush1.bf16.msra.mxu0 %v2613
    %3585 = vmatprep.subr.bf16.mxu0 %v2622
    %3586 = vmatpush1.bf16.msra.mxu0 %v2621
    %3587 = vmatprep.subr.bf16.mxu0 %v2630
    %3588 = vmatpush1.bf16.msra.mxu0 %v2629
    %3589 = vmatprep.subr.bf16.mxu0 %v2638
    %3590 = vmatpush1.bf16.msra.mxu0 %v2637
    %3591 = vmatprep.subr.bf16.mxu0 %v2646
    %3592 = vmatpush1.bf16.msra.mxu0 %v2645
    %3593 = vmatprep.subr.bf16.mxu0 %v2654
    %3594 = vmatpush1.bf16.msra.mxu0 %v2653
    %3595 = vmatprep.subr.bf16.mxu0 %v2662
    %3596 = vmatpush1.bf16.msra.mxu0 %v2661
    %3597 = vmatprep.mubr.bf16.mxu0 %v444
    %3598 = vmatmul.mubr.bf16.gmra.mrb[0].mxu0 %v443
    %v3599 = vpop.f32.mrb[0].mxu0
    %v3600 = vadd.f32 %v968, %v3599
    %v3601 = vpop.f32.mrb[0].mxu0
    %v3602 = vadd.f32 %v972, %v3601
    %v3603 = vpop.f32.mrb[0].mxu0
    %v3604 = vadd.f32 %v968, %v3603
    %v3605 = vpop.f32.mrb[0].mxu0
    %v3606 = vadd.f32 %v972, %v3605
    %3607 = vdwg.mxu0
    %3608 = vmatprep.subr.bf16.mxu0 %v2670
    %3609 = vmatpush1.bf16.msra.mxu0 %v2669
    %3610 = vmatprep.subr.bf16.mxu0 %v2678
    %3611 = vmatpush1.bf16.msra.mxu0 %v2677
    %3612 = vmatprep.subr.bf16.mxu0 %v2686
    %3613 = vmatpush1.bf16.msra.mxu0 %v2685
    %3614 = vmatprep.subr.bf16.mxu0 %v2694
    %3615 = vmatpush1.bf16.msra.mxu0 %v2693
    %3616 = vmatprep.subr.bf16.mxu0 %v2702
    %3617 = vmatpush1.bf16.msra.mxu0 %v2701
    %3618 = vmatprep.subr.bf16.mxu0 %v2710
    %3619 = vmatpush1.bf16.msra.mxu0 %v2709
    %3620 = vmatprep.subr.bf16.mxu0 %v2718
    %3621 = vmatpush1.bf16.msra.mxu0 %v2717
    %3622 = vmatprep.subr.bf16.mxu0 %v2726
    %3623 = vmatpush1.bf16.msra.mxu0 %v2725
    %3624 = vmatprep.subr.bf16.mxu0 %v2734
    %3625 = vmatpush1.bf16.msra.mxu0 %v2733
    %3626 = vmatprep.subr.bf16.mxu0 %v2742
    %3627 = vmatpush1.bf16.msra.mxu0 %v2741
    %3628 = vmatprep.subr.bf16.mxu0 %v2750
    %3629 = vmatpush1.bf16.msra.mxu0 %v2749
    %3630 = vmatprep.subr.bf16.mxu0 %v2758
    %3631 = vmatpush1.bf16.msra.mxu0 %v2757
    %3632 = vmatprep.subr.bf16.mxu0 %v2766
    %3633 = vmatpush1.bf16.msra.mxu0 %v2765
    %3634 = vmatprep.subr.bf16.mxu0 %v2774
    %3635 = vmatpush1.bf16.msra.mxu0 %v2773
    %3636 = vmatprep.subr.bf16.mxu0 %v2782
    %3637 = vmatpush1.bf16.msra.mxu0 %v2781
    %3638 = vmatprep.subr.bf16.mxu0 %v2790
    %3639 = vmatpush1.bf16.msra.mxu0 %v2789
    %3640 = vmatprep.mubr.bf16.mxu0 %v446
    %3641 = vmatmul.mubr.bf16.gmra.mrb[0].mxu0 %v445
    %v3642 = vpop.f32.mrb[0].mxu0
    %v3643 = vadd.f32 %v3600, %v3642
    %v3644 = vpop.f32.mrb[0].mxu0
    %v3645 = vadd.f32 %v3602, %v3644
    %v3646 = vpop.f32.mrb[0].mxu0
    %v3647 = vadd.f32 %v3604, %v3646
    %v3648 = vpop.f32.mrb[0].mxu0
    %v3649 = vadd.f32 %v3606, %v3648
    %3650 = vdwg.mxu0
    %3651 = vmatprep.subr.bf16.mxu0 %v2798
    %3652 = vmatpush1.bf16.msra.mxu0 %v2797
    %3653 = vmatprep.subr.bf16.mxu0 %v2806
    %3654 = vmatpush1.bf16.msra.mxu0 %v2805
    %3655 = vmatprep.subr.bf16.mxu0 %v2814
    %3656 = vmatpush1.bf16.msra.mxu0 %v2813
    %3657 = vmatprep.subr.bf16.mxu0 %v2822
    %3658 = vmatpush1.bf16.msra.mxu0 %v2821
    %3659 = vmatprep.subr.bf16.mxu0 %v2830
    %3660 = vmatpush1.bf16.msra.mxu0 %v2829
    %3661 = vmatprep.subr.bf16.mxu0 %v2838
    %3662 = vmatpush1.bf16.msra.mxu0 %v2837
    %3663 = vmatprep.subr.bf16.mxu0 %v2846
    %3664 = vmatpush1.bf16.msra.mxu0 %v2845
    %3665 = vmatprep.subr.bf16.mxu0 %v2854
    %3666 = vmatpush1.bf16.msra.mxu0 %v2853
    %3667 = vmatprep.subr.bf16.mxu0 %v2862
    %3668 = vmatpush1.bf16.msra.mxu0 %v2861
    %3669 = vmatprep.subr.bf16.mxu0 %v2870
    %3670 = vmatpush1.bf16.msra.mxu0 %v2869
    %3671 = vmatprep.subr.bf16.mxu0 %v2878
    %3672 = vmatpush1.bf16.msra.mxu0 %v2877
    %3673 = vmatprep.subr.bf16.mxu0 %v2886
    %3674 = vmatpush1.bf16.msra.mxu0 %v2885
    %3675 = vmatprep.subr.bf16.mxu0 %v2894
    %3676 = vmatpush1.bf16.msra.mxu0 %v2893
    %3677 = vmatprep.subr.bf16.mxu0 %v2902
    %3678 = vmatpush1.bf16.msra.mxu0 %v2901
    %3679 = vmatprep.subr.bf16.mxu0 %v2910
    %3680 = vmatpush1.bf16.msra.mxu0 %v2909
    %3681 = vmatprep.subr.bf16.mxu0 %v2918
    %3682 = vmatpush1.bf16.msra.mxu0 %v2917
    %3683 = vmatprep.mubr.bf16.mxu0 %v448
    %3684 = vmatmul.mubr.bf16.gmra.mrb[0].mxu0 %v447
    %v3685 = vpop.f32.mrb[0].mxu0
    %v3686 = vadd.f32 %v3643, %v3685
    %v3687 = vpop.f32.mrb[0].mxu0
    %v3688 = vadd.f32 %v3645, %v3687
    %v3689 = vpop.f32.mrb[0].mxu0
    %v3690 = vadd.f32 %v3647, %v3689
    %v3691 = vpop.f32.mrb[0].mxu0
    %v3692 = vadd.f32 %v3649, %v3691
    %3693 = vdwg.mxu0
    %3694 = vmatprep.subr.bf16.mxu0 %v2926
    %3695 = vmatpush1.bf16.msra.mxu0 %v2925
    %3696 = vmatprep.subr.bf16.mxu0 %v2934
    %3697 = vmatpush1.bf16.msra.mxu0 %v2933
    %3698 = vmatprep.subr.bf16.mxu0 %v2942
    %3699 = vmatpush1.bf16.msra.mxu0 %v2941
    %3700 = vmatprep.subr.bf16.mxu0 %v2950
    %3701 = vmatpush1.bf16.msra.mxu0 %v2949
    %3702 = vmatprep.subr.bf16.mxu0 %v2958
    %3703 = vmatpush1.bf16.msra.mxu0 %v2957
    %3704 = vmatprep.subr.bf16.mxu0 %v2966
    %3705 = vmatpush1.bf16.msra.mxu0 %v2965
    %3706 = vmatprep.subr.bf16.mxu0 %v2974
    %3707 = vmatpush1.bf16.msra.mxu0 %v2973
    %3708 = vmatprep.subr.bf16.mxu0 %v2982
    %3709 = vmatpush1.bf16.msra.mxu0 %v2981
    %3710 = vmatprep.subr.bf16.mxu0 %v2990
    %3711 = vmatpush1.bf16.msra.mxu0 %v2989
    %3712 = vmatprep.subr.bf16.mxu0 %v2998
    %3713 = vmatpush1.bf16.msra.mxu0 %v2997
    %3714 = vmatprep.subr.bf16.mxu0 %v3006
    %3715 = vmatpush1.bf16.msra.mxu0 %v3005
    %3716 = vmatprep.subr.bf16.mxu0 %v3014
    %3717 = vmatpush1.bf16.msra.mxu0 %v3013
    %3718 = vmatprep.subr.bf16.mxu0 %v3022
    %3719 = vmatpush1.bf16.msra.mxu0 %v3021
    %3720 = vmatprep.subr.bf16.mxu0 %v3030
    %3721 = vmatpush1.bf16.msra.mxu0 %v3029
    %3722 = vmatprep.subr.bf16.mxu0 %v3038
    %3723 = vmatpush1.bf16.msra.mxu0 %v3037
    %3724 = vmatprep.subr.bf16.mxu0 %v3046
    %3725 = vmatpush1.bf16.msra.mxu0 %v3045
    %3726 = vmatprep.mubr.bf16.mxu0 %v450
    %3727 = vmatmul.mubr.bf16.gmra.mrb[0].mxu0 %v449
    %v3728 = vpop.f32.mrb[0].mxu0
    %v3729 = vadd.f32 %v3686, %v3728
    %v3730 = vpop.f32.mrb[0].mxu0
    %v3731 = vadd.f32 %v3688, %v3730
    %v3732 = vpop.f32.mrb[0].mxu0
    %v3733 = vadd.f32 %v3690, %v3732
    %v3734 = vpop.f32.mrb[0].mxu0
    %v3735 = vadd.f32 %v3692, %v3734
    %3736 = vdwg.mxu0
    %3737 = vmatprep.subr.bf16.mxu0 %v2544
    %3738 = vmatpush1.bf16.msra.mxu0 %v2543
    %3739 = vmatprep.subr.bf16.mxu0 %v2552
    %3740 = vmatpush1.bf16.msra.mxu0 %v2551
    %3741 = vmatprep.subr.bf16.mxu0 %v2560
    %3742 = vmatpush1.bf16.msra.mxu0 %v2559
    %3743 = vmatprep.subr.bf16.mxu0 %v2568
    %3744 = vmatpush1.bf16.msra.mxu0 %v2567
    %3745 = vmatprep.subr.bf16.mxu0 %v2576
    %3746 = vmatpush1.bf16.msra.mxu0 %v2575
    %3747 = vmatprep.subr.bf16.mxu0 %v2584
    %3748 = vmatpush1.bf16.msra.mxu0 %v2583
    %3749 = vmatprep.subr.bf16.mxu0 %v2592
    %3750 = vmatpush1.bf16.msra.mxu0 %v2591
    %3751 = vmatprep.subr.bf16.mxu0 %v2600
    %3752 = vmatpush1.bf16.msra.mxu0 %v2599
    %3753 = vmatprep.subr.bf16.mxu0 %v2608
    %3754 = vmatpush1.bf16.msra.mxu0 %v2607
    %3755 = vmatprep.subr.bf16.mxu0 %v2616
    %3756 = vmatpush1.bf16.msra.mxu0 %v2615
    %3757 = vmatprep.subr.bf16.mxu0 %v2624
    %3758 = vmatpush1.bf16.msra.mxu0 %v2623
    %3759 = vmatprep.subr.bf16.mxu0 %v2632
    %3760 = vmatpush1.bf16.msra.mxu0 %v2631
    %3761 = vmatprep.subr.bf16.mxu0 %v2640
    %3762 = vmatpush1.bf16.msra.mxu0 %v2639
    %3763 = vmatprep.subr.bf16.mxu0 %v2648
    %3764 = vmatpush1.bf16.msra.mxu0 %v2647
    %3765 = vmatprep.subr.bf16.mxu0 %v2656
    %3766 = vmatpush1.bf16.msra.mxu0 %v2655
    %3767 = vmatprep.subr.bf16.mxu0 %v2664
    %3768 = vmatpush1.bf16.msra.mxu0 %v2663
    %3769 = vmatprep.mubr.bf16.mxu0 %v444
    %3770 = vmatmul.mubr.bf16.gmra.mrb[0].mxu0 %v443
    %v3771 = vpop.f32.mrb[0].mxu0
    %v3772 = vadd.f32 %v976, %v3771
    %v3773 = vpop.f32.mrb[0].mxu0
    %v3774 = vadd.f32 %v980, %v3773
    %v3775 = vpop.f32.mrb[0].mxu0
    %v3776 = vadd.f32 %v976, %v3775
    %v3777 = vpop.f32.mrb[0].mxu0
    %v3778 = vadd.f32 %v980, %v3777
    %3779 = vdwg.mxu0
    %3780 = vmatprep.subr.bf16.mxu0 %v2672
    %3781 = vmatpush1.bf16.msra.mxu0 %v2671
    %3782 = vmatprep.subr.bf16.mxu0 %v2680
    %3783 = vmatpush1.bf16.msra.mxu0 %v2679
    %3784 = vmatprep.subr.bf16.mxu0 %v2688
    %3785 = vmatpush1.bf16.msra.mxu0 %v2687
    %3786 = vmatprep.subr.bf16.mxu0 %v2696
    %3787 = vmatpush1.bf16.msra.mxu0 %v2695
    %3788 = vmatprep.subr.bf16.mxu0 %v2704
    %3789 = vmatpush1.bf16.msra.mxu0 %v2703
    %3790 = vmatprep.subr.bf16.mxu0 %v2712
    %3791 = vmatpush1.bf16.msra.mxu0 %v2711
    %3792 = vmatprep.subr.bf16.mxu0 %v2720
    %3793 = vmatpush1.bf16.msra.mxu0 %v2719
    %3794 = vmatprep.subr.bf16.mxu0 %v2728
    %3795 = vmatpush1.bf16.msra.mxu0 %v2727
    %3796 = vmatprep.subr.bf16.mxu0 %v2736
    %3797 = vmatpush1.bf16.msra.mxu0 %v2735
    %3798 = vmatprep.subr.bf16.mxu0 %v2744
    %3799 = vmatpush1.bf16.msra.mxu0 %v2743
    %3800 = vmatprep.subr.bf16.mxu0 %v2752
    %3801 = vmatpush1.bf16.msra.mxu0 %v2751
    %3802 = vmatprep.subr.bf16.mxu0 %v2760
    %3803 = vmatpush1.bf16.msra.mxu0 %v2759
    %3804 = vmatprep.subr.bf16.mxu0 %v2768
    %3805 = vmatpush1.bf16.msra.mxu0 %v2767
    %3806 = vmatprep.subr.bf16.mxu0 %v2776
    %3807 = vmatpush1.bf16.msra.mxu0 %v2775
    %3808 = vmatprep.subr.bf16.mxu0 %v2784
    %3809 = vmatpush1.bf16.msra.mxu0 %v2783
    %3810 = vmatprep.subr.bf16.mxu0 %v2792
    %3811 = vmatpush1.bf16.msra.mxu0 %v2791
    %3812 = vmatprep.mubr.bf16.mxu0 %v446
    %3813 = vmatmul.mubr.bf16.gmra.mrb[0].mxu0 %v445
    %v3814 = vpop.f32.mrb[0].mxu0
    %v3815 = vadd.f32 %v3772, %v3814
    %v3816 = vpop.f32.mrb[0].mxu0
    %v3817 = vadd.f32 %v3774, %v3816
    %v3818 = vpop.f32.mrb[0].mxu0
    %v3819 = vadd.f32 %v3776, %v3818
    %v3820 = vpop.f32.mrb[0].mxu0
    %v3821 = vadd.f32 %v3778, %v3820
    %3822 = vdwg.mxu0
    %3823 = vmatprep.subr.bf16.mxu0 %v2800
    %3824 = vmatpush1.bf16.msra.mxu0 %v2799
    %3825 = vmatprep.subr.bf16.mxu0 %v2808
    %3826 = vmatpush1.bf16.msra.mxu0 %v2807
    %3827 = vmatprep.subr.bf16.mxu0 %v2816
    %3828 = vmatpush1.bf16.msra.mxu0 %v2815
    %3829 = vmatprep.subr.bf16.mxu0 %v2824
    %3830 = vmatpush1.bf16.msra.mxu0 %v2823
    %3831 = vmatprep.subr.bf16.mxu0 %v2832
    %3832 = vmatpush1.bf16.msra.mxu0 %v2831
    %3833 = vmatprep.subr.bf16.mxu0 %v2840
    %3834 = vmatpush1.bf16.msra.mxu0 %v2839
    %3835 = vmatprep.subr.bf16.mxu0 %v2848
    %3836 = vmatpush1.bf16.msra.mxu0 %v2847
    %3837 = vmatprep.subr.bf16.mxu0 %v2856
    %3838 = vmatpush1.bf16.msra.mxu0 %v2855
    %3839 = vmatprep.subr.bf16.mxu0 %v2864
    %3840 = vmatpush1.bf16.msra.mxu0 %v2863
    %3841 = vmatprep.subr.bf16.mxu0 %v2872
    %3842 = vmatpush1.bf16.msra.mxu0 %v2871
    %3843 = vmatprep.subr.bf16.mxu0 %v2880
    %3844 = vmatpush1.bf16.msra.mxu0 %v2879
    %3845 = vmatprep.subr.bf16.mxu0 %v2888
    %3846 = vmatpush1.bf16.msra.mxu0 %v2887
    %3847 = vmatprep.subr.bf16.mxu0 %v2896
    %3848 = vmatpush1.bf16.msra.mxu0 %v2895
    %3849 = vmatprep.subr.bf16.mxu0 %v2904
    %3850 = vmatpush1.bf16.msra.mxu0 %v2903
    %3851 = vmatprep.subr.bf16.mxu0 %v2912
    %3852 = vmatpush1.bf16.msra.mxu0 %v2911
    %3853 = vmatprep.subr.bf16.mxu0 %v2920
    %3854 = vmatpush1.bf16.msra.mxu0 %v2919
    %3855 = vmatprep.mubr.bf16.mxu0 %v448
    %3856 = vmatmul.mubr.bf16.gmra.mrb[0].mxu0 %v447
    %v3857 = vpop.f32.mrb[0].mxu0
    %v3858 = vadd.f32 %v3815, %v3857
    %v3859 = vpop.f32.mrb[0].mxu0
    %v3860 = vadd.f32 %v3817, %v3859
    %v3861 = vpop.f32.mrb[0].mxu0
    %v3862 = vadd.f32 %v3819, %v3861
    %v3863 = vpop.f32.mrb[0].mxu0
    %v3864 = vadd.f32 %v3821, %v3863
    %3865 = vdwg.mxu0
    %3866 = vmatprep.subr.bf16.mxu0 %v2928
    %3867 = vmatpush1.bf16.msra.mxu0 %v2927
    %3868 = vmatprep.subr.bf16.mxu0 %v2936
    %3869 = vmatpush1.bf16.msra.mxu0 %v2935
    %3870 = vmatprep.subr.bf16.mxu0 %v2944
    %3871 = vmatpush1.bf16.msra.mxu0 %v2943
    %3872 = vmatprep.subr.bf16.mxu0 %v2952
    %3873 = vmatpush1.bf16.msra.mxu0 %v2951
    %3874 = vmatprep.subr.bf16.mxu0 %v2960
    %3875 = vmatpush1.bf16.msra.mxu0 %v2959
    %3876 = vmatprep.subr.bf16.mxu0 %v2968
    %3877 = vmatpush1.bf16.msra.mxu0 %v2967
    %3878 = vmatprep.subr.bf16.mxu0 %v2976
    %3879 = vmatpush1.bf16.msra.mxu0 %v2975
    %3880 = vmatprep.subr.bf16.mxu0 %v2984
    %3881 = vmatpush1.bf16.msra.mxu0 %v2983
    %3882 = vmatprep.subr.bf16.mxu0 %v2992
    %3883 = vmatpush1.bf16.msra.mxu0 %v2991
    %3884 = vmatprep.subr.bf16.mxu0 %v3000
    %3885 = vmatpush1.bf16.msra.mxu0 %v2999
    %3886 = vmatprep.subr.bf16.mxu0 %v3008
    %3887 = vmatpush1.bf16.msra.mxu0 %v3007
    %3888 = vmatprep.subr.bf16.mxu0 %v3016
    %3889 = vmatpush1.bf16.msra.mxu0 %v3015
    %3890 = vmatprep.subr.bf16.mxu0 %v3024
    %3891 = vmatpush1.bf16.msra.mxu0 %v3023
    %3892 = vmatprep.subr.bf16.mxu0 %v3032
    %3893 = vmatpush1.bf16.msra.mxu0 %v3031
    %3894 = vmatprep.subr.bf16.mxu0 %v3040
    %3895 = vmatpush1.bf16.msra.mxu0 %v3039
    %3896 = vmatprep.subr.bf16.mxu0 %v3048
    %3897 = vmatpush1.bf16.msra.mxu0 %v3047
    %3898 = vmatprep.mubr.bf16.mxu0 %v450
    %3899 = vmatmul.mubr.bf16.gmra.mrb[0].mxu0 %v449
    %v3900 = vpop.f32.mrb[0].mxu0
    %v3901 = vadd.f32 %v3858, %v3900
    %v3902 = vpop.f32.mrb[0].mxu0
    %v3903 = vadd.f32 %v3860, %v3902
    %v3904 = vpop.f32.mrb[0].mxu0
    %v3905 = vadd.f32 %v3862, %v3904
    %v3906 = vpop.f32.mrb[0].mxu0
    %v3907 = vadd.f32 %v3864, %v3906
    %3908 = vdwg.mxu0
    %3909 = vmatprep.subr.bf16.mxu0 %v2546
    %3910 = vmatpush1.bf16.msra.mxu0 %v2545
    %3911 = vmatprep.subr.bf16.mxu0 %v2554
    %3912 = vmatpush1.bf16.msra.mxu0 %v2553
    %3913 = vmatprep.subr.bf16.mxu0 %v2562
    %3914 = vmatpush1.bf16.msra.mxu0 %v2561
    %3915 = vmatprep.subr.bf16.mxu0 %v2570
    %3916 = vmatpush1.bf16.msra.mxu0 %v2569
    %3917 = vmatprep.subr.bf16.mxu0 %v2578
    %3918 = vmatpush1.bf16.msra.mxu0 %v2577
    %3919 = vmatprep.subr.bf16.mxu0 %v2586
    %3920 = vmatpush1.bf16.msra.mxu0 %v2585
    %3921 = vmatprep.subr.bf16.mxu0 %v2594
    %3922 = vmatpush1.bf16.msra.mxu0 %v2593
    %3923 = vmatprep.subr.bf16.mxu0 %v2602
    %3924 = vmatpush1.bf16.msra.mxu0 %v2601
    %3925 = vmatprep.subr.bf16.mxu0 %v2610
    %3926 = vmatpush1.bf16.msra.mxu0 %v2609
    %3927 = vmatprep.subr.bf16.mxu0 %v2618
    %3928 = vmatpush1.bf16.msra.mxu0 %v2617
    %3929 = vmatprep.subr.bf16.mxu0 %v2626
    %3930 = vmatpush1.bf16.msra.mxu0 %v2625
    %3931 = vmatprep.subr.bf16.mxu0 %v2634
    %3932 = vmatpush1.bf16.msra.mxu0 %v2633
    %3933 = vmatprep.subr.bf16.mxu0 %v2642
    %3934 = vmatpush1.bf16.msra.mxu0 %v2641
    %3935 = vmatprep.subr.bf16.mxu0 %v2650
    %3936 = vmatpush1.bf16.msra.mxu0 %v2649
    %3937 = vmatprep.subr.bf16.mxu0 %v2658
    %3938 = vmatpush1.bf16.msra.mxu0 %v2657
    %3939 = vmatprep.subr.bf16.mxu0 %v2666
    %3940 = vmatpush1.bf16.msra.mxu0 %v2665
    %3941 = vmatprep.mubr.bf16.mxu0 %v444
    %3942 = vmatmul.mubr.bf16.gmra.mrb[0].mxu0 %v443
    %v3943 = vpop.f32.mrb[0].mxu0
    %v3944 = vadd.f32 %v984, %v3943
    %v3945 = vpop.f32.mrb[0].mxu0
    %v3946 = vadd.f32 %v988, %v3945
    %v3947 = vpop.f32.mrb[0].mxu0
    %v3948 = vadd.f32 %v984, %v3947
    %v3949 = vpop.f32.mrb[0].mxu0
    %v3950 = vadd.f32 %v988, %v3949
    %3951 = vdwg.mxu0
    %3952 = vmatprep.subr.bf16.mxu0 %v2674
    %3953 = vmatpush1.bf16.msra.mxu0 %v2673
    %3954 = vmatprep.subr.bf16.mxu0 %v2682
    %3955 = vmatpush1.bf16.msra.mxu0 %v2681
    %3956 = vmatprep.subr.bf16.mxu0 %v2690
    %3957 = vmatpush1.bf16.msra.mxu0 %v2689
    %3958 = vmatprep.subr.bf16.mxu0 %v2698
    %3959 = vmatpush1.bf16.msra.mxu0 %v2697
    %3960 = vmatprep.subr.bf16.mxu0 %v2706
    %3961 = vmatpush1.bf16.msra.mxu0 %v2705
    %3962 = vmatprep.subr.bf16.mxu0 %v2714
    %3963 = vmatpush1.bf16.msra.mxu0 %v2713
    %3964 = vmatprep.subr.bf16.mxu0 %v2722
    %3965 = vmatpush1.bf16.msra.mxu0 %v2721
    %3966 = vmatprep.subr.bf16.mxu0 %v2730
    %3967 = vmatpush1.bf16.msra.mxu0 %v2729
    %3968 = vmatprep.subr.bf16.mxu0 %v2738
    %3969 = vmatpush1.bf16.msra.mxu0 %v2737
    %3970 = vmatprep.subr.bf16.mxu0 %v2746
    %3971 = vmatpush1.bf16.msra.mxu0 %v2745
    %3972 = vmatprep.subr.bf16.mxu0 %v2754
    %3973 = vmatpush1.bf16.msra.mxu0 %v2753
    %3974 = vmatprep.subr.bf16.mxu0 %v2762
    %3975 = vmatpush1.bf16.msra.mxu0 %v2761
    %3976 = vmatprep.subr.bf16.mxu0 %v2770
    %3977 = vmatpush1.bf16.msra.mxu0 %v2769
    %3978 = vmatprep.subr.bf16.mxu0 %v2778
    %3979 = vmatpush1.bf16.msra.mxu0 %v2777
    %3980 = vmatprep.subr.bf16.mxu0 %v2786
    %3981 = vmatpush1.bf16.msra.mxu0 %v2785
    %3982 = vmatprep.subr.bf16.mxu0 %v2794
    %3983 = vmatpush1.bf16.msra.mxu0 %v2793
    %3984 = vmatprep.mubr.bf16.mxu0 %v446
    %3985 = vmatmul.mubr.bf16.gmra.mrb[0].mxu0 %v445
    %v3986 = vpop.f32.mrb[0].mxu0
    %v3987 = vadd.f32 %v3944, %v3986
    %v3988 = vpop.f32.mrb[0].mxu0
    %v3989 = vadd.f32 %v3946, %v3988
    %v3990 = vpop.f32.mrb[0].mxu0
    %v3991 = vadd.f32 %v3948, %v3990
    %v3992 = vpop.f32.mrb[0].mxu0
    %v3993 = vadd.f32 %v3950, %v3992
    %3994 = vdwg.mxu0
    %3995 = vmatprep.subr.bf16.mxu0 %v2802
    %3996 = vmatpush1.bf16.msra.mxu0 %v2801
    %3997 = vmatprep.subr.bf16.mxu0 %v2810
    %3998 = vmatpush1.bf16.msra.mxu0 %v2809
    %3999 = vmatprep.subr.bf16.mxu0 %v2818
    %4000 = vmatpush1.bf16.msra.mxu0 %v2817
    %4001 = vmatprep.subr.bf16.mxu0 %v2826
    %4002 = vmatpush1.bf16.msra.mxu0 %v2825
    %4003 = vmatprep.subr.bf16.mxu0 %v2834
    %4004 = vmatpush1.bf16.msra.mxu0 %v2833
    %4005 = vmatprep.subr.bf16.mxu0 %v2842
    %4006 = vmatpush1.bf16.msra.mxu0 %v2841
    %4007 = vmatprep.subr.bf16.mxu0 %v2850
    %4008 = vmatpush1.bf16.msra.mxu0 %v2849
    %4009 = vmatprep.subr.bf16.mxu0 %v2858
    %4010 = vmatpush1.bf16.msra.mxu0 %v2857
    %4011 = vmatprep.subr.bf16.mxu0 %v2866
    %4012 = vmatpush1.bf16.msra.mxu0 %v2865
    %4013 = vmatprep.subr.bf16.mxu0 %v2874
    %4014 = vmatpush1.bf16.msra.mxu0 %v2873
    %4015 = vmatprep.subr.bf16.mxu0 %v2882
    %4016 = vmatpush1.bf16.msra.mxu0 %v2881
    %4017 = vmatprep.subr.bf16.mxu0 %v2890
    %4018 = vmatpush1.bf16.msra.mxu0 %v2889
    %4019 = vmatprep.subr.bf16.mxu0 %v2898
    %4020 = vmatpush1.bf16.msra.mxu0 %v2897
    %4021 = vmatprep.subr.bf16.mxu0 %v2906
    %4022 = vmatpush1.bf16.msra.mxu0 %v2905
    %4023 = vmatprep.subr.bf16.mxu0 %v2914
    %4024 = vmatpush1.bf16.msra.mxu0 %v2913
    %4025 = vmatprep.subr.bf16.mxu0 %v2922
    %4026 = vmatpush1.bf16.msra.mxu0 %v2921
    %4027 = vmatprep.mubr.bf16.mxu0 %v448
    %4028 = vmatmul.mubr.bf16.gmra.mrb[0].mxu0 %v447
    %v4029 = vpop.f32.mrb[0].mxu0
    %v4030 = vadd.f32 %v3987, %v4029
    %v4031 = vpop.f32.mrb[0].mxu0
    %v4032 = vadd.f32 %v3989, %v4031
    %v4033 = vpop.f32.mrb[0].mxu0
    %v4034 = vadd.f32 %v3991, %v4033
    %v4035 = vpop.f32.mrb[0].mxu0
    %v4036 = vadd.f32 %v3993, %v4035
    %4037 = vdwg.mxu0
    %4038 = vmatprep.subr.bf16.mxu0 %v2930
    %4039 = vmatpush1.bf16.msra.mxu0 %v2929
    %4040 = vmatprep.subr.bf16.mxu0 %v2938
    %4041 = vmatpush1.bf16.msra.mxu0 %v2937
    %4042 = vmatprep.subr.bf16.mxu0 %v2946
    %4043 = vmatpush1.bf16.msra.mxu0 %v2945
    %4044 = vmatprep.subr.bf16.mxu0 %v2954
    %4045 = vmatpush1.bf16.msra.mxu0 %v2953
    %4046 = vmatprep.subr.bf16.mxu0 %v2962
    %4047 = vmatpush1.bf16.msra.mxu0 %v2961
    %4048 = vmatprep.subr.bf16.mxu0 %v2970
    %4049 = vmatpush1.bf16.msra.mxu0 %v2969
    %4050 = vmatprep.subr.bf16.mxu0 %v2978
    %4051 = vmatpush1.bf16.msra.mxu0 %v2977
    %4052 = vmatprep.subr.bf16.mxu0 %v2986
    %4053 = vmatpush1.bf16.msra.mxu0 %v2985
    %4054 = vmatprep.subr.bf16.mxu0 %v2994
    %4055 = vmatpush1.bf16.msra.mxu0 %v2993
    %4056 = vmatprep.subr.bf16.mxu0 %v3002
    %4057 = vmatpush1.bf16.msra.mxu0 %v3001
    %4058 = vmatprep.subr.bf16.mxu0 %v3010
    %4059 = vmatpush1.bf16.msra.mxu0 %v3009
    %4060 = vmatprep.subr.bf16.mxu0 %v3018
    %4061 = vmatpush1.bf16.msra.mxu0 %v3017
    %4062 = vmatprep.subr.bf16.mxu0 %v3026
    %4063 = vmatpush1.bf16.msra.mxu0 %v3025
    %4064 = vmatprep.subr.bf16.mxu0 %v3034
    %4065 = vmatpush1.bf16.msra.mxu0 %v3033
    %4066 = vmatprep.subr.bf16.mxu0 %v3042
    %4067 = vmatpush1.bf16.msra.mxu0 %v3041
    %4068 = vmatprep.subr.bf16.mxu0 %v3050
    %4069 = vmatpush1.bf16.msra.mxu0 %v3049
    %4070 = vmatprep.mubr.bf16.mxu0 %v450
    %4071 = vmatmul.mubr.bf16.gmra.mrb[0].mxu0 %v449
    %v4072 = vpop.f32.mrb[0].mxu0
    %v4073 = vadd.f32 %v4030, %v4072
    %v4074 = vpop.f32.mrb[0].mxu0
    %v4075 = vadd.f32 %v4032, %v4074
    %v4076 = vpop.f32.mrb[0].mxu0
    %v4077 = vadd.f32 %v4034, %v4076
    %v4078 = vpop.f32.mrb[0].mxu0
    %v4079 = vadd.f32 %v4036, %v4078
    %4080 = vdwg.mxu0
    %4081 = vmatprep.subr.bf16.mxu0 %v2548
    %4082 = vmatpush1.bf16.msra.mxu0 %v2547
    %4083 = vmatprep.subr.bf16.mxu0 %v2556
    %4084 = vmatpush1.bf16.msra.mxu0 %v2555
    %4085 = vmatprep.subr.bf16.mxu0 %v2564
    %4086 = vmatpush1.bf16.msra.mxu0 %v2563
    %4087 = vmatprep.subr.bf16.mxu0 %v2572
    %4088 = vmatpush1.bf16.msra.mxu0 %v2571
    %4089 = vmatprep.subr.bf16.mxu0 %v2580
    %4090 = vmatpush1.bf16.msra.mxu0 %v2579
    %4091 = vmatprep.subr.bf16.mxu0 %v2588
    %4092 = vmatpush1.bf16.msra.mxu0 %v2587
    %4093 = vmatprep.subr.bf16.mxu0 %v2596
    %4094 = vmatpush1.bf16.msra.mxu0 %v2595
    %4095 = vmatprep.subr.bf16.mxu0 %v2604
    %4096 = vmatpush1.bf16.msra.mxu0 %v2603
    %4097 = vmatprep.subr.bf16.mxu0 %v2612
    %4098 = vmatpush1.bf16.msra.mxu0 %v2611
    %4099 = vmatprep.subr.bf16.mxu0 %v2620
    %4100 = vmatpush1.bf16.msra.mxu0 %v2619
    %4101 = vmatprep.subr.bf16.mxu0 %v2628
    %4102 = vmatpush1.bf16.msra.mxu0 %v2627
    %4103 = vmatprep.subr.bf16.mxu0 %v2636
    %4104 = vmatpush1.bf16.msra.mxu0 %v2635
    %4105 = vmatprep.subr.bf16.mxu0 %v2644
    %4106 = vmatpush1.bf16.msra.mxu0 %v2643
    %4107 = vmatprep.subr.bf16.mxu0 %v2652
    %4108 = vmatpush1.bf16.msra.mxu0 %v2651
    %4109 = vmatprep.subr.bf16.mxu0 %v2660
    %4110 = vmatpush1.bf16.msra.mxu0 %v2659
    %4111 = vmatprep.subr.bf16.mxu0 %v2668
    %4112 = vmatpush1.bf16.msra.mxu0 %v2667
    %4113 = vmatprep.mubr.bf16.mxu0 %v444
    %4114 = vmatmul.mubr.bf16.gmra.mrb[0].mxu0 %v443
    %v4115 = vpop.f32.mrb[0].mxu0
    %v4116 = vadd.f32 %v992, %v4115
    %v4117 = vpop.f32.mrb[0].mxu0
    %v4118 = vadd.f32 %v996, %v4117
    %v4119 = vpop.f32.mrb[0].mxu0
    %v4120 = vadd.f32 %v992, %v4119
    %v4121 = vpop.f32.mrb[0].mxu0
    %v4122 = vadd.f32 %v996, %v4121
    %4123 = vdwg.mxu0
    %4124 = vmatprep.subr.bf16.mxu0 %v2676
    %4125 = vmatpush1.bf16.msra.mxu0 %v2675
    %4126 = vmatprep.subr.bf16.mxu0 %v2684
    %4127 = vmatpush1.bf16.msra.mxu0 %v2683
    %4128 = vmatprep.subr.bf16.mxu0 %v2692
    %4129 = vmatpush1.bf16.msra.mxu0 %v2691
    %4130 = vmatprep.subr.bf16.mxu0 %v2700
    %4131 = vmatpush1.bf16.msra.mxu0 %v2699
    %4132 = vmatprep.subr.bf16.mxu0 %v2708
    %4133 = vmatpush1.bf16.msra.mxu0 %v2707
    %4134 = vmatprep.subr.bf16.mxu0 %v2716
    %4135 = vmatpush1.bf16.msra.mxu0 %v2715
    %4136 = vmatprep.subr.bf16.mxu0 %v2724
    %4137 = vmatpush1.bf16.msra.mxu0 %v2723
    %4138 = vmatprep.subr.bf16.mxu0 %v2732
    %4139 = vmatpush1.bf16.msra.mxu0 %v2731
    %4140 = vmatprep.subr.bf16.mxu0 %v2740
    %4141 = vmatpush1.bf16.msra.mxu0 %v2739
    %4142 = vmatprep.subr.bf16.mxu0 %v2748
    %4143 = vmatpush1.bf16.msra.mxu0 %v2747
    %4144 = vmatprep.subr.bf16.mxu0 %v2756
    %4145 = vmatpush1.bf16.msra.mxu0 %v2755
    %4146 = vmatprep.subr.bf16.mxu0 %v2764
    %4147 = vmatpush1.bf16.msra.mxu0 %v2763
    %4148 = vmatprep.subr.bf16.mxu0 %v2772
    %4149 = vmatpush1.bf16.msra.mxu0 %v2771
    %4150 = vmatprep.subr.bf16.mxu0 %v2780
    %4151 = vmatpush1.bf16.msra.mxu0 %v2779
    %4152 = vmatprep.subr.bf16.mxu0 %v2788
    %4153 = vmatpush1.bf16.msra.mxu0 %v2787
    %4154 = vmatprep.subr.bf16.mxu0 %v2796
    %4155 = vmatpush1.bf16.msra.mxu0 %v2795
    %4156 = vmatprep.mubr.bf16.mxu0 %v446
    %4157 = vmatmul.mubr.bf16.gmra.mrb[0].mxu0 %v445
    %v4158 = vpop.f32.mrb[0].mxu0
    %v4159 = vadd.f32 %v4116, %v4158
    %v4160 = vpop.f32.mrb[0].mxu0
    %v4161 = vadd.f32 %v4118, %v4160
    %v4162 = vpop.f32.mrb[0].mxu0
    %v4163 = vadd.f32 %v4120, %v4162
    %v4164 = vpop.f32.mrb[0].mxu0
    %v4165 = vadd.f32 %v4122, %v4164
    %4166 = vdwg.mxu0
    %4167 = vmatprep.subr.bf16.mxu0 %v2804
    %4168 = vmatpush1.bf16.msra.mxu0 %v2803
    %4169 = vmatprep.subr.bf16.mxu0 %v2812
    %4170 = vmatpush1.bf16.msra.mxu0 %v2811
    %4171 = vmatprep.subr.bf16.mxu0 %v2820
    %4172 = vmatpush1.bf16.msra.mxu0 %v2819
    %4173 = vmatprep.subr.bf16.mxu0 %v2828
    %4174 = vmatpush1.bf16.msra.mxu0 %v2827
    %4175 = vmatprep.subr.bf16.mxu0 %v2836
    %4176 = vmatpush1.bf16.msra.mxu0 %v2835
    %4177 = vmatprep.subr.bf16.mxu0 %v2844
    %4178 = vmatpush1.bf16.msra.mxu0 %v2843
    %4179 = vmatprep.subr.bf16.mxu0 %v2852
    %4180 = vmatpush1.bf16.msra.mxu0 %v2851
    %4181 = vmatprep.subr.bf16.mxu0 %v2860
    %4182 = vmatpush1.bf16.msra.mxu0 %v2859
    %4183 = vmatprep.subr.bf16.mxu0 %v2868
    %4184 = vmatpush1.bf16.msra.mxu0 %v2867
    %4185 = vmatprep.subr.bf16.mxu0 %v2876
    %4186 = vmatpush1.bf16.msra.mxu0 %v2875
    %4187 = vmatprep.subr.bf16.mxu0 %v2884
    %4188 = vmatpush1.bf16.msra.mxu0 %v2883
    %4189 = vmatprep.subr.bf16.mxu0 %v2892
    %4190 = vmatpush1.bf16.msra.mxu0 %v2891
    %4191 = vmatprep.subr.bf16.mxu0 %v2900
    %4192 = vmatpush1.bf16.msra.mxu0 %v2899
    %4193 = vmatprep.subr.bf16.mxu0 %v2908
    %4194 = vmatpush1.bf16.msra.mxu0 %v2907
    %4195 = vmatprep.subr.bf16.mxu0 %v2916
    %4196 = vmatpush1.bf16.msra.mxu0 %v2915
    %4197 = vmatprep.subr.bf16.mxu0 %v2924
    %4198 = vmatpush1.bf16.msra.mxu0 %v2923
    %4199 = vmatprep.mubr.bf16.mxu0 %v448
    %4200 = vmatmul.mubr.bf16.gmra.mrb[0].mxu0 %v447
    %v4201 = vpop.f32.mrb[0].mxu0
    %v4202 = vadd.f32 %v4159, %v4201
    %v4203 = vpop.f32.mrb[0].mxu0
    %v4204 = vadd.f32 %v4161, %v4203
    %v4205 = vpop.f32.mrb[0].mxu0
    %v4206 = vadd.f32 %v4163, %v4205
    %v4207 = vpop.f32.mrb[0].mxu0
    %v4208 = vadd.f32 %v4165, %v4207
    %4209 = vdwg.mxu0
    %4210 = vmatprep.subr.bf16.mxu0 %v2932
    %4211 = vmatpush1.bf16.msra.mxu0 %v2931
    %4212 = vmatprep.subr.bf16.mxu0 %v2940
    %4213 = vmatpush1.bf16.msra.mxu0 %v2939
    %4214 = vmatprep.subr.bf16.mxu0 %v2948
    %4215 = vmatpush1.bf16.msra.mxu0 %v2947
    %4216 = vmatprep.subr.bf16.mxu0 %v2956
    %4217 = vmatpush1.bf16.msra.mxu0 %v2955
    %4218 = vmatprep.subr.bf16.mxu0 %v2964
    %4219 = vmatpush1.bf16.msra.mxu0 %v2963
    %4220 = vmatprep.subr.bf16.mxu0 %v2972
    %4221 = vmatpush1.bf16.msra.mxu0 %v2971
    %4222 = vmatprep.subr.bf16.mxu0 %v2980
    %4223 = vmatpush1.bf16.msra.mxu0 %v2979
    %4224 = vmatprep.subr.bf16.mxu0 %v2988
    %4225 = vmatpush1.bf16.msra.mxu0 %v2987
    %4226 = vmatprep.subr.bf16.mxu0 %v2996
    %4227 = vmatpush1.bf16.msra.mxu0 %v2995
    %4228 = vmatprep.subr.bf16.mxu0 %v3004
    %4229 = vmatpush1.bf16.msra.mxu0 %v3003
    %4230 = vmatprep.subr.bf16.mxu0 %v3012
    %4231 = vmatpush1.bf16.msra.mxu0 %v3011
    %4232 = vmatprep.subr.bf16.mxu0 %v3020
    %4233 = vmatpush1.bf16.msra.mxu0 %v3019
    %4234 = vmatprep.subr.bf16.mxu0 %v3028
    %4235 = vmatpush1.bf16.msra.mxu0 %v3027
    %4236 = vmatprep.subr.bf16.mxu0 %v3036
    %4237 = vmatpush1.bf16.msra.mxu0 %v3035
    %4238 = vmatprep.subr.bf16.mxu0 %v3044
    %4239 = vmatpush1.bf16.msra.mxu0 %v3043
    %4240 = vmatprep.subr.bf16.mxu0 %v3052
    %4241 = vmatpush1.bf16.msra.mxu0 %v3051
    %4242 = vmatprep.mubr.bf16.mxu0 %v450
    %4243 = vmatmul.mubr.bf16.gmra.mrb[0].mxu0 %v449
    %v4244 = vpop.f32.mrb[0].mxu0
    %v4245 = vadd.f32 %v4202, %v4244
    %v4246 = vpop.f32.mrb[0].mxu0
    %v4247 = vadd.f32 %v4204, %v4246
    %v4248 = vpop.f32.mrb[0].mxu0
    %v4249 = vadd.f32 %v4206, %v4248
    %v4250 = vpop.f32.mrb[0].mxu0
    %v4251 = vadd.f32 %v4208, %v4250
    %4252 = vdwg.mxu0
    %v4253 = vmax.f32 %v3729, 0.0
    %v4254 = vmax.f32 %v3731, 0.0
    %v4255 = vmax.f32 %v3901, 0.0
    %v4256 = vmax.f32 %v3903, 0.0
    %v4257 = vmax.f32 %v4073, 0.0
    %v4258 = vmax.f32 %v4075, 0.0
    %v4259 = vmax.f32 %v4245, 0.0
    %v4260 = vmax.f32 %v4247, 0.0
    %v4261 = vmax.f32 %v3733, 0.0
    %v4262 = vmax.f32 %v3735, 0.0
    %v4263 = vmax.f32 %v3905, 0.0
    %v4264 = vmax.f32 %v3907, 0.0
    %v4265 = vmax.f32 %v4077, 0.0
    %v4266 = vmax.f32 %v4079, 0.0
    %v4267 = vmax.f32 %v4249, 0.0
    %v4268 = vmax.f32 %v4251, 0.0
    %v4269 = vld [vmem:[#allocation12] sm:$0xff]
    %v4270 = vunpack.c.l.bf16 %v4269
    %v4271 = vunpack.c.h.bf16 %v4269
    %v4272 = vld [vmem:[#allocation2] sm:$0x1]
    %4274 = vset.pattern.permute.xlu0 0
    %4275 = vperm.xlu0 %4274, %v4272
    %v4276 = vpop.permute.xlu0 %4275
    %v4278 = vlaneseq
    %v4279 = vshrl.u32 %v4278, 7
    %v4280 = vsub.s32 0, %v4279
    %v4281 = vrot.slane %v4276, %v4280
    %v4284 = vlaneseq
    %v4285 = vshrl.u32 %v4284, 7
    %v4286 = vsub.s32 0, %v4285
    %v4287 = vrot.slane %v4270, %v4286
    %v4288 = vlaneseq
    %v4289 = vshrl.u32 %v4288, 7
    %v4290 = vsub.s32 2, %v4289
    %v4291 = vrot.slane %v4270, %v4290
    %v4292 = vlaneseq
    %v4293 = vshrl.u32 %v4292, 7
    %v4294 = vsub.s32 4, %v4293
    %v4295 = vrot.slane %v4270, %v4294
    %v4296 = vlaneseq
    %v4297 = vshrl.u32 %v4296, 7
    %v4298 = vsub.s32 6, %v4297
    %v4299 = vrot.slane %v4270, %v4298
    %v4300 = vlaneseq
    %v4301 = vshrl.u32 %v4300, 7
    %v4302 = vsub.s32 0, %v4301
    %v4303 = vrot.slane %v4271, %v4302
    %v4304 = vlaneseq
    %v4305 = vshrl.u32 %v4304, 7
    %v4306 = vsub.s32 2, %v4305
    %v4307 = vrot.slane %v4271, %v4306
    %v4308 = vlaneseq
    %v4309 = vshrl.u32 %v4308, 7
    %v4310 = vsub.s32 4, %v4309
    %v4311 = vrot.slane %v4271, %v4310
    %v4312 = vlaneseq
    %v4313 = vshrl.u32 %v4312, 7
    %v4314 = vsub.s32 6, %v4313
    %v4315 = vrot.slane %v4271, %v4314
    %4324 = vmatprep.subr.mxu0 %v4254
    %4325 = vmatpush1.xpose.msra.mxu0 %v4253
    %4326 = vmatprep.subr.mxu0 %v4262
    %4327 = vmatpush1.xpose.msra.mxu0 %v4261
    %4328 = vmatprep.subr.mxu0 0.0
    %4329 = vmatpush1.xpose.msra.mxu0 0.0
    %4330 = vmatprep.subr.mxu0 0.0
    %4331 = vmatpush1.xpose.msra.mxu0 0.0
    %4332 = vmatprep.subr.mxu0 0.0
    %4333 = vmatpush1.xpose.msra.mxu0 0.0
    %4334 = vmatprep.subr.mxu0 0.0
    %4335 = vmatpush1.xpose.msra.mxu0 0.0
    %4336 = vmatprep.subr.mxu0 0.0
    %4337 = vmatpush1.xpose.msra.mxu0 0.0
    %4338 = vmatprep.subr.mxu0 0.0
    %4339 = vmatpush1.xpose.msra.mxu0 0.0
    %4340 = vmatprep.subr.mxu0 0.0
    %4341 = vmatpush1.xpose.msra.mxu0 0.0
    %4342 = vmatprep.subr.mxu0 0.0
    %4343 = vmatpush1.xpose.msra.mxu0 0.0
    %4344 = vmatprep.subr.mxu0 0.0
    %4345 = vmatpush1.xpose.msra.mxu0 0.0
    %4346 = vmatprep.subr.mxu0 0.0
    %4347 = vmatpush1.xpose.msra.mxu0 0.0
    %4348 = vmatprep.subr.mxu0 0.0
    %4349 = vmatpush1.xpose.msra.mxu0 0.0
    %4350 = vmatprep.subr.mxu0 0.0
    %4351 = vmatpush1.xpose.msra.mxu0 0.0
    %4352 = vmatprep.subr.mxu0 0.0
    %4353 = vmatpush1.xpose.msra.mxu0 0.0
    %4354 = vmatprep.subr.mxu0 0.0
    %4355 = vmatpush1.xpose.msra.mxu0 0.0
    %4356 = vmatprep.subr.mxu0 0.0
    %4357 = vmatpush1.xpose.msra.mxu0 0.0
    %4358 = vmatprep.subr.mxu0 0.0
    %4359 = vmatpush1.xpose.msra.mxu0 0.0
    %4360 = vmatprep.subr.mxu0 0.0
    %4361 = vmatpush1.xpose.msra.mxu0 0.0
    %4362 = vmatprep.subr.mxu0 0.0
    %4363 = vmatpush1.xpose.msra.mxu0 0.0
    %4364 = vmatprep.subr.mxu0 0.0
    %4365 = vmatpush1.xpose.msra.mxu0 0.0
    %4366 = vmatprep.subr.mxu0 0.0
    %4367 = vmatpush1.xpose.msra.mxu0 0.0
    %4368 = vmatprep.subr.mxu0 0.0
    %4369 = vmatpush1.xpose.msra.mxu0 0.0
    %4370 = vmatprep.subr.mxu0 0.0
    %4371 = vmatpush1.xpose.msra.mxu0 0.0
    %4372 = vmatprep.subr.mxu0 0.0
    %4373 = vmatpush1.xpose.msra.mxu0 0.0
    %4374 = vmatprep.subr.mxu0 0.0
    %4375 = vmatpush1.xpose.msra.mxu0 0.0
    %4376 = vmatprep.subr.mxu0 0.0
    %4377 = vmatpush1.xpose.msra.mxu0 0.0
    %4378 = vmatprep.subr.mxu0 0.0
    %4379 = vmatpush1.xpose.msra.mxu0 0.0
    %4380 = vmatprep.subr.mxu0 0.0
    %4381 = vmatpush1.xpose.msra.mxu0 0.0
    %4382 = vmatprep.subr.mxu0 0.0
    %4383 = vmatpush1.xpose.msra.mxu0 0.0
    %4384 = vmatprep.subr.mxu0 0.0
    %4385 = vmatpush1.xpose.msra.mxu0 0.0
    %4386 = vmatprep.subr.mxu0 0.0
    %4387 = vmatpush1.xpose.msra.mxu0 0.0
    %4388 = vmatprep.mubr.f32.mxu0 %v4291
    %4389 = vmatmul.mubr.f32.gmra.mrb[0].mxu0 %v4287
    %v4390 = vpop.f32.mrb[0].mxu0
    %v4391 = vadd.f32 %v4281, %v4390
    %v4392 = vpop.f32.mrb[0].mxu0
    %4393 = vdwg.mxu0
    %4394 = vmatprep.subr.mxu0 %v4256
    %4395 = vmatpush1.xpose.msra.mxu0 %v4255
    %4396 = vmatprep.subr.mxu0 %v4264
    %4397 = vmatpush1.xpose.msra.mxu0 %v4263
    %4398 = vmatprep.subr.mxu0 0.0
    %4399 = vmatpush1.xpose.msra.mxu0 0.0
    %4400 = vmatprep.subr.mxu0 0.0
    %4401 = vmatpush1.xpose.msra.mxu0 0.0
    %4402 = vmatprep.subr.mxu0 0.0
    %4403 = vmatpush1.xpose.msra.mxu0 0.0
    %4404 = vmatprep.subr.mxu0 0.0
    %4405 = vmatpush1.xpose.msra.mxu0 0.0
    %4406 = vmatprep.subr.mxu0 0.0
    %4407 = vmatpush1.xpose.msra.mxu0 0.0
    %4408 = vmatprep.subr.mxu0 0.0
    %4409 = vmatpush1.xpose.msra.mxu0 0.0
    %4410 = vmatprep.subr.mxu0 0.0
    %4411 = vmatpush1.xpose.msra.mxu0 0.0
    %4412 = vmatprep.subr.mxu0 0.0
    %4413 = vmatpush1.xpose.msra.mxu0 0.0
    %4414 = vmatprep.subr.mxu0 0.0
    %4415 = vmatpush1.xpose.msra.mxu0 0.0
    %4416 = vmatprep.subr.mxu0 0.0
    %4417 = vmatpush1.xpose.msra.mxu0 0.0
    %4418 = vmatprep.subr.mxu0 0.0
    %4419 = vmatpush1.xpose.msra.mxu0 0.0
    %4420 = vmatprep.subr.mxu0 0.0
    %4421 = vmatpush1.xpose.msra.mxu0 0.0
    %4422 = vmatprep.subr.mxu0 0.0
    %4423 = vmatpush1.xpose.msra.mxu0 0.0
    %4424 = vmatprep.subr.mxu0 0.0
    %4425 = vmatpush1.xpose.msra.mxu0 0.0
    %4426 = vmatprep.subr.mxu0 0.0
    %4427 = vmatpush1.xpose.msra.mxu0 0.0
    %4428 = vmatprep.subr.mxu0 0.0
    %4429 = vmatpush1.xpose.msra.mxu0 0.0
    %4430 = vmatprep.subr.mxu0 0.0
    %4431 = vmatpush1.xpose.msra.mxu0 0.0
    %4432 = vmatprep.subr.mxu0 0.0
    %4433 = vmatpush1.xpose.msra.mxu0 0.0
    %4434 = vmatprep.subr.mxu0 0.0
    %4435 = vmatpush1.xpose.msra.mxu0 0.0
    %4436 = vmatprep.subr.mxu0 0.0
    %4437 = vmatpush1.xpose.msra.mxu0 0.0
    %4438 = vmatprep.subr.mxu0 0.0
    %4439 = vmatpush1.xpose.msra.mxu0 0.0
    %4440 = vmatprep.subr.mxu0 0.0
    %4441 = vmatpush1.xpose.msra.mxu0 0.0
    %4442 = vmatprep.subr.mxu0 0.0
    %4443 = vmatpush1.xpose.msra.mxu0 0.0
    %4444 = vmatprep.subr.mxu0 0.0
    %4445 = vmatpush1.xpose.msra.mxu0 0.0
    %4446 = vmatprep.subr.mxu0 0.0
    %4447 = vmatpush1.xpose.msra.mxu0 0.0
    %4448 = vmatprep.subr.mxu0 0.0
    %4449 = vmatpush1.xpose.msra.mxu0 0.0
    %4450 = vmatprep.subr.mxu0 0.0
    %4451 = vmatpush1.xpose.msra.mxu0 0.0
    %4452 = vmatprep.subr.mxu0 0.0
    %4453 = vmatpush1.xpose.msra.mxu0 0.0
    %4454 = vmatprep.subr.mxu0 0.0
    %4455 = vmatpush1.xpose.msra.mxu0 0.0
    %4456 = vmatprep.subr.mxu0 0.0
    %4457 = vmatpush1.xpose.msra.mxu0 0.0
    %4458 = vmatprep.mubr.f32.mxu0 %v4299
    %4459 = vmatmul.mubr.f32.gmra.mrb[0].mxu0 %v4295
    %v4460 = vpop.f32.mrb[0].mxu0
    %v4461 = vadd.f32 %v4391, %v4460
    %v4462 = vpop.f32.mrb[0].mxu0
    %4463 = vdwg.mxu0
    %4464 = vmatprep.subr.mxu0 %v4258
    %4465 = vmatpush1.xpose.msra.mxu0 %v4257
    %4466 = vmatprep.subr.mxu0 %v4266
    %4467 = vmatpush1.xpose.msra.mxu0 %v4265
    %4468 = vmatprep.subr.mxu0 0.0
    %4469 = vmatpush1.xpose.msra.mxu0 0.0
    %4470 = vmatprep.subr.mxu0 0.0
    %4471 = vmatpush1.xpose.msra.mxu0 0.0
    %4472 = vmatprep.subr.mxu0 0.0
    %4473 = vmatpush1.xpose.msra.mxu0 0.0
    %4474 = vmatprep.subr.mxu0 0.0
    %4475 = vmatpush1.xpose.msra.mxu0 0.0
    %4476 = vmatprep.subr.mxu0 0.0
    %4477 = vmatpush1.xpose.msra.mxu0 0.0
    %4478 = vmatprep.subr.mxu0 0.0
    %4479 = vmatpush1.xpose.msra.mxu0 0.0
    %4480 = vmatprep.subr.mxu0 0.0
    %4481 = vmatpush1.xpose.msra.mxu0 0.0
    %4482 = vmatprep.subr.mxu0 0.0
    %4483 = vmatpush1.xpose.msra.mxu0 0.0
    %4484 = vmatprep.subr.mxu0 0.0
    %4485 = vmatpush1.xpose.msra.mxu0 0.0
    %4486 = vmatprep.subr.mxu0 0.0
    %4487 = vmatpush1.xpose.msra.mxu0 0.0
    %4488 = vmatprep.subr.mxu0 0.0
    %4489 = vmatpush1.xpose.msra.mxu0 0.0
    %4490 = vmatprep.subr.mxu0 0.0
    %4491 = vmatpush1.xpose.msra.mxu0 0.0
    %4492 = vmatprep.subr.mxu0 0.0
    %4493 = vmatpush1.xpose.msra.mxu0 0.0
    %4494 = vmatprep.subr.mxu0 0.0
    %4495 = vmatpush1.xpose.msra.mxu0 0.0
    %4496 = vmatprep.subr.mxu0 0.0
    %4497 = vmatpush1.xpose.msra.mxu0 0.0
    %4498 = vmatprep.subr.mxu0 0.0
    %4499 = vmatpush1.xpose.msra.mxu0 0.0
    %4500 = vmatprep.subr.mxu0 0.0
    %4501 = vmatpush1.xpose.msra.mxu0 0.0
    %4502 = vmatprep.subr.mxu0 0.0
    %4503 = vmatpush1.xpose.msra.mxu0 0.0
    %4504 = vmatprep.subr.mxu0 0.0
    %4505 = vmatpush1.xpose.msra.mxu0 0.0
    %4506 = vmatprep.subr.mxu0 0.0
    %4507 = vmatpush1.xpose.msra.mxu0 0.0
    %4508 = vmatprep.subr.mxu0 0.0
    %4509 = vmatpush1.xpose.msra.mxu0 0.0
    %4510 = vmatprep.subr.mxu0 0.0
    %4511 = vmatpush1.xpose.msra.mxu0 0.0
    %4512 = vmatprep.subr.mxu0 0.0
    %4513 = vmatpush1.xpose.msra.mxu0 0.0
    %4514 = vmatprep.subr.mxu0 0.0
    %4515 = vmatpush1.xpose.msra.mxu0 0.0
    %4516 = vmatprep.subr.mxu0 0.0
    %4517 = vmatpush1.xpose.msra.mxu0 0.0
    %4518 = vmatprep.subr.mxu0 0.0
    %4519 = vmatpush1.xpose.msra.mxu0 0.0
    %4520 = vmatprep.subr.mxu0 0.0
    %4521 = vmatpush1.xpose.msra.mxu0 0.0
    %4522 = vmatprep.subr.mxu0 0.0
    %4523 = vmatpush1.xpose.msra.mxu0 0.0
    %4524 = vmatprep.subr.mxu0 0.0
    %4525 = vmatpush1.xpose.msra.mxu0 0.0
    %4526 = vmatprep.subr.mxu0 0.0
    %4527 = vmatpush1.xpose.msra.mxu0 0.0
    %4528 = vmatprep.mubr.f32.mxu0 %v4307
    %4529 = vmatmul.mubr.f32.gmra.mrb[0].mxu0 %v4303
    %v4530 = vpop.f32.mrb[0].mxu0
    %v4531 = vadd.f32 %v4461, %v4530
    %v4532 = vpop.f32.mrb[0].mxu0
    %4533 = vdwg.mxu0
    %4534 = vmatprep.subr.mxu0 %v4260
    %4535 = vmatpush1.xpose.msra.mxu0 %v4259
    %4536 = vmatprep.subr.mxu0 %v4268
    %4537 = vmatpush1.xpose.msra.mxu0 %v4267
    %4538 = vmatprep.subr.mxu0 0.0
    %4539 = vmatpush1.xpose.msra.mxu0 0.0
    %4540 = vmatprep.subr.mxu0 0.0
    %4541 = vmatpush1.xpose.msra.mxu0 0.0
    %4542 = vmatprep.subr.mxu0 0.0
    %4543 = vmatpush1.xpose.msra.mxu0 0.0
    %4544 = vmatprep.subr.mxu0 0.0
    %4545 = vmatpush1.xpose.msra.mxu0 0.0
    %4546 = vmatprep.subr.mxu0 0.0
    %4547 = vmatpush1.xpose.msra.mxu0 0.0
    %4548 = vmatprep.subr.mxu0 0.0
    %4549 = vmatpush1.xpose.msra.mxu0 0.0
    %4550 = vmatprep.subr.mxu0 0.0
    %4551 = vmatpush1.xpose.msra.mxu0 0.0
    %4552 = vmatprep.subr.mxu0 0.0
    %4553 = vmatpush1.xpose.msra.mxu0 0.0
    %4554 = vmatprep.subr.mxu0 0.0
    %4555 = vmatpush1.xpose.msra.mxu0 0.0
    %4556 = vmatprep.subr.mxu0 0.0
    %4557 = vmatpush1.xpose.msra.mxu0 0.0
    %4558 = vmatprep.subr.mxu0 0.0
    %4559 = vmatpush1.xpose.msra.mxu0 0.0
    %4560 = vmatprep.subr.mxu0 0.0
    %4561 = vmatpush1.xpose.msra.mxu0 0.0
    %4562 = vmatprep.subr.mxu0 0.0
    %4563 = vmatpush1.xpose.msra.mxu0 0.0
    %4564 = vmatprep.subr.mxu0 0.0
    %4565 = vmatpush1.xpose.msra.mxu0 0.0
    %4566 = vmatprep.subr.mxu0 0.0
    %4567 = vmatpush1.xpose.msra.mxu0 0.0
    %4568 = vmatprep.subr.mxu0 0.0
    %4569 = vmatpush1.xpose.msra.mxu0 0.0
    %4570 = vmatprep.subr.mxu0 0.0
    %4571 = vmatpush1.xpose.msra.mxu0 0.0
    %4572 = vmatprep.subr.mxu0 0.0
    %4573 = vmatpush1.xpose.msra.mxu0 0.0
    %4574 = vmatprep.subr.mxu0 0.0
    %4575 = vmatpush1.xpose.msra.mxu0 0.0
    %4576 = vmatprep.subr.mxu0 0.0
    %4577 = vmatpush1.xpose.msra.mxu0 0.0
    %4578 = vmatprep.subr.mxu0 0.0
    %4579 = vmatpush1.xpose.msra.mxu0 0.0
    %4580 = vmatprep.subr.mxu0 0.0
    %4581 = vmatpush1.xpose.msra.mxu0 0.0
    %4582 = vmatprep.subr.mxu0 0.0
    %4583 = vmatpush1.xpose.msra.mxu0 0.0
    %4584 = vmatprep.subr.mxu0 0.0
    %4585 = vmatpush1.xpose.msra.mxu0 0.0
    %4586 = vmatprep.subr.mxu0 0.0
    %4587 = vmatpush1.xpose.msra.mxu0 0.0
    %4588 = vmatprep.subr.mxu0 0.0
    %4589 = vmatpush1.xpose.msra.mxu0 0.0
    %4590 = vmatprep.subr.mxu0 0.0
    %4591 = vmatpush1.xpose.msra.mxu0 0.0
    %4592 = vmatprep.subr.mxu0 0.0
    %4593 = vmatpush1.xpose.msra.mxu0 0.0
    %4594 = vmatprep.subr.mxu0 0.0
    %4595 = vmatpush1.xpose.msra.mxu0 0.0
    %4596 = vmatprep.subr.mxu0 0.0
    %4597 = vmatpush1.xpose.msra.mxu0 0.0
    %4598 = vmatprep.mubr.f32.mxu0 %v4315
    %4599 = vmatmul.mubr.f32.gmra.mrb[0].mxu0 %v4311
    %v4600 = vpop.f32.mrb[0].mxu0
    %v4601 = vadd.f32 %v4531, %v4600
    %v4602 = vpop.f32.mrb[0].mxu0
    %4603 = vdwg.mxu0
    %v4604 = vxor.u32 %v4601, 2147483648
    %v4605 = vmul.f32 %v4604, 1.442695
    %v4606 = vpow.pop %v4605
    %v4607 = vadd.f32 %v4606, 1.0
    %v4608 = vrcp.pop %v4607
    %v4609 = vmul.f32 1.0, %v4608
    %vm4610 = vcmask 122880
    %4611 = vst.msk [vmem:[#allocation14] sm:$0x1] %vm4610, %v4609
    // Predicated region
    $region54: #{tpu_custom_call.1} parent=1 // pred_check
      _
    $region55: #{tpu_custom_call.1} parent=1 // pred_check_branch
      %4613 = sbr.rel (0) target = $region57
    $region56: #{tpu_custom_call.1} parent=1 // pred_region
      %s4615 = ssub.s32 16, 16
      %4616 = vsyncadd [#allocation5], %s4615
      %s4618 = sshll.u32 [#allocation14], 4
      %s4619 = int_to_ptr.vmem [resolvable:$true] %s4618
      %4621 = dma.vmem_to_hbm [thread:$0]  %s4619, 16, %s7, [#allocation5]
    $region57: #{tpu_custom_call.1} parent=1 // pred_fallthru
      _
    // Predicated region
    $region58: #{tpu_custom_call.1} parent=1 // pred_check
      _
    $region59: #{tpu_custom_call.1} parent=1 // pred_check_branch
      %4623 = sbr.rel (0) target = $region61
    $region60: #{tpu_custom_call.1} parent=1 // pred_region
      %4624 = dma.done [#allocation5], 16
    $region61: #{tpu_custom_call.1} parent=1 // pred_fallthru
      _
    %4625 = vsyncpa [#allocation4], 1
    %4626 = vsyncpa [#allocation7], 1
    %4627 = vsyncpa [#allocation10], 1
    %4628 = vsyncpa [#allocation13], 1
    %4629 = vsyncpa [#allocation5], 1

</llo_original>
